<compile_context>
chip_gen: v7x
topology: tpu7x:2x2x1
jax: 0.10.0
libtpu: 0.0.40
codegen_flags: <defaults>
</compile_context>

<pallas_src>
import jax
import jax.numpy as jnp
import numpy as np
from jax.experimental import pallas as pl
from jax.experimental.pallas import tpu as pltpu


# --------------------- static constants (numpy, exact) ----------------------

# conv1 band helpers:  u - w == kw tap  (u in [0,64), w in [0,60))
_D1 = np.arange(64)[:, None] - np.arange(60)[None, :]
_V1 = (_D1 >= 0) & (_D1 <= 4)
_K1 = np.clip(_D1, 0, 4)

# conv2 band helpers:  w1 - w2 == kw tap  (w1 in [0,20), w2 in [0,16))
_D2 = np.arange(20)[:, None] - np.arange(16)[None, :]
_V2 = (_D2 >= 0) & (_D2 <= 4)
_K2 = np.clip(_D2, 0, 4)


def _pool_w_select(w_out, nch, lanes_in, lanes_out):
    """0/1 matrix picking lane (3*o)*nch + c -> o*nch + c (one select per pool)."""
    s = np.zeros((lanes_in, lanes_out), np.float32)
    for o in range(w_out):
        for c in range(nch):
            s[3 * o * nch + c, o * nch + c] = 1.0
    return s


_SW1 = _pool_w_select(20, 10, 640, 256)    # pool1 W select: (640, 256)
_SW2 = _pool_w_select(5, 20, 384, 128)     # pool2 W select: (384, 128)


# --------------------- weight preprocessing (hoisted) ------------------------

def _conv1_banded(w1):
    """conv1_w (10,1,5,5) -> (5, 64, 640); M[kh][u, w*10+c] = w1[c,0,kh,u-w]."""
    g = w1[:, 0, :, :][:, :, _K1]                 # (c, kh, u, w) = (10, 5, 64, 60)
    g = jnp.transpose(g, (1, 2, 3, 0))            # (kh, u, w, c)
    g = jnp.where(_V1[None, :, :, None], g, 0.0)
    g = g.reshape(5, 64, 600)
    return jnp.pad(g, ((0, 0), (0, 0), (0, 40)))  # lane pad 600 -> 640


def _conv2_banded(w2):
    """conv2_w (20,10,5,5) -> (5, 256, 384); M[kh][w1*10+ci, w2*20+co] = w2[co,ci,kh,w1-w2]."""
    g = w2[:, :, :, _K2]                          # (co, ci, kh, w1, w2) = (20,10,5,20,16)
    g = jnp.transpose(g, (2, 3, 1, 4, 0))         # (kh, w1, ci, w2, co)
    g = jnp.where(_V2[None, :, None, :, None], g, 0.0)
    g = g.reshape(5, 200, 320)
    return jnp.pad(g, ((0, 0), (0, 56), (0, 64))) # pad K 200->256, lanes 320->384


def prepare_params(params):
    """Run once per model: banded/select/permuted/padded constants for the kernel."""
    m1 = _conv1_banded(params["conv1_w"])                             # (5, 64, 640)
    b1 = jnp.pad(jnp.tile(params["conv1_b"], 60), (0, 40)).reshape(1, 640)
    m2 = _conv2_banded(params["conv2_w"])                             # (5, 256, 384)
    b2 = jnp.pad(jnp.tile(params["conv2_b"], 16), (0, 64)).reshape(1, 384)

    # fc1 weight permuted so its row index matches the pooled lane layout w*20+c,
    # split per pooled row h (torch Flatten order of NCHW is c*25 + h*5 + w).
    w1p = params["fc1_w"].reshape(100, 20, 5, 5).transpose(2, 3, 1, 0)
    w1p = w1p.reshape(5, 100, 100)
    w1p = jnp.pad(w1p, ((0, 0), (0, 28), (0, 28)))                    # (5, 128, 128)
    fb1 = jnp.pad(params["fc1_b"], (0, 28)).reshape(1, 128)

    w2 = jnp.pad(params["fc2_w"].T, ((0, 28), (0, 113)))              # (128, 128)
    fb2 = jnp.pad(params["fc2_b"], (0, 113)).reshape(1, 128)

    return dict(m1=m1, b1=b1, sw1=jnp.asarray(_SW1), m2=m2, b2=b2,
                sw2=jnp.asarray(_SW2), w1p=w1p, fb1=fb1, w2=w2, fb2=fb2)


# ------------------------------ fused kernel --------------------------------

def _simplenet_kernel(x_ref, m1_ref, b1_ref, sw1_ref, m2_ref, b2_ref, sw2_ref,
                      w1p_ref, fb1_ref, w2_ref, fb2_ref, out_ref):
    f32 = jnp.float32
    bsz = x_ref.shape[0]
    rows = bsz * 64

    def rollr(v, k):   # result[i, :] = v[i + k, :]  (wrapped rows are never used)
        return jnp.roll(v, -k, axis=0)

    def rolll(v, k):   # result[:, j] = v[:, j + k]  (wrapped lanes are never used)
        return jnp.roll(v, -k, axis=1)

    # Images stacked along sublanes: per-image 64-row blocks (64 % 8 == 0, so all
    # reshapes between (B,64,L) and (B*64,L) are layout-trivial).
    x2d = x_ref[...].reshape(rows, 64)

    # ---- conv1 (5x5, 1->10) + ReLU: 5 banded MXU matmuls over row-shifted input
    acc1 = jnp.dot(x2d, m1_ref[0], preferred_element_type=f32)
    for kh in range(1, 5):
        acc1 = acc1 + jnp.dot(rollr(x2d, kh), m1_ref[kh],
                              preferred_element_type=f32)
    acc1 = jnp.maximum(acc1 + b1_ref[...], 0.0)            # (rows, 640), lane = w*10+c

    # ---- maxpool1 3x3/3: lane rolls + max (W), one select matmul, row rolls + max (H)
    wmax = jnp.maximum(acc1, rolll(acc1, 10))
    wmax = jnp.maximum(wmax, rolll(acc1, 20))
    p1 = jnp.dot(wmax, sw1_ref[...], preferred_element_type=f32)      # (rows, 256)
    p1h = jnp.maximum(jnp.maximum(p1, rollr(p1, 1)), rollr(p1, 2))
    # valid pool1 rows live at physical rows 3*o (o = 0..19) of each 64-row block

    # ---- conv2 (5x5, 10->20) + ReLU: 5 banded matmuls; taps are row-shifts by 3*kh
    acc2 = jnp.dot(p1h, m2_ref[0], preferred_element_type=f32)
    for kh in range(1, 5):
        acc2 = acc2 + jnp.dot(rollr(p1h, 3 * kh), m2_ref[kh],
                              preferred_element_type=f32)
    acc2 = jnp.maximum(acc2 + b2_ref[...], 0.0)            # (rows, 384), lane = w*20+c
    # valid conv2 rows live at physical rows 3*h2 (h2 = 0..15)

    # ---- maxpool2 3x3/3 ------------------------------------------------------
    wm2 = jnp.maximum(acc2, rolll(acc2, 20))
    wm2 = jnp.maximum(wm2, rolll(acc2, 40))
    p2 = jnp.dot(wm2, sw2_ref[...], preferred_element_type=f32)       # (rows, 128)
    p2h = jnp.maximum(jnp.maximum(p2, rollr(p2, 3)), rollr(p2, 6))
    # valid pool2 rows live at physical rows 9*p (p = 0..4), lane = w*20+c

    # ---- compact to 40-row blocks for the fc stages (40 % 8 == 0, 9*4 = 36 < 40)
    p2c = p2h.reshape(bsz, 64, 128)[:, 0:40, :].reshape(bsz * 40, 128)

    # ---- fc1 (500 -> 100, lane-padded to 128): 5 row-shifted batched matmuls --
    h1 = jnp.dot(p2c, w1p_ref[0], preferred_element_type=f32)
    for r in range(1, 5):
        h1 = h1 + jnp.dot(rollr(p2c, 9 * r), w1p_ref[r],
                          preferred_element_type=f32)
    h1 = h1 + fb1_ref[...]

    # ---- fc2 (100 -> 15, lane-padded to 128); image b's scores are at row 40*b
    out = jnp.dot(h1, w2_ref[...], preferred_element_type=f32) + fb2_ref[...]
    out_ref[...] = out.reshape(bsz, 40, 128)[:, 0:8, :]   # dense (B,8,128) store


# ------------------------------- wrapper -------------------------------------

def simple_net_forward(x_nchw, prep, block_b=8):
    n = x_nchw.shape[0]
    x = x_nchw[:, 0, :, :]                                  # (N, 64, 64), Cin = 1

    b = int(min(block_b, n))
    n_pad = -(-n // b) * b
    if n_pad != n:
        x = jnp.pad(x, ((0, n_pad - n), (0, 0), (0, 0)))
    grid = (n_pad // b,)

    operands = (x, prep["m1"], prep["b1"], prep["sw1"], prep["m2"], prep["b2"],
                prep["sw2"], prep["w1p"], prep["fb1"], prep["w2"], prep["fb2"])

    def const_spec(a):
        r = a.ndim
        return pl.BlockSpec(a.shape, lambda i, _r=r: (0,) * _r)

    in_specs = [pl.BlockSpec((b, 64, 64), lambda i: (i, 0, 0))]
    in_specs += [const_spec(a) for a in operands[1:]]

    out = pl.pallas_call(
        _simplenet_kernel,
        out_shape=jax.ShapeDtypeStruct((n_pad, 8, 128), jnp.float32),
        grid=grid,
        in_specs=in_specs,
        out_specs=pl.BlockSpec((b, 8, 128), lambda i: (i, 0, 0)),
        compiler_params=pltpu.CompilerParams(
            dimension_semantics=("parallel",),
            vmem_limit_bytes=32 * 1024 * 1024),
    )(*operands)
    return out[:n, 0, :15]


# ------------------------------ reference ------------------------------------

def reference_forward(x_nchw, p):
    """Pure-JAX/XLA reference mirroring the PyTorch module exactly."""
    dn = ("NCHW", "OIHW", "NCHW")
    y = jax.lax.conv_general_dilated(x_nchw, p["conv1_w"], (1, 1), "VALID",
                                     dimension_numbers=dn)
    y = jax.nn.relu(y + p["conv1_b"][None, :, None, None])
    y = jax.lax.reduce_window(y, -jnp.inf, jax.lax.max,
                              (1, 1, 3, 3), (1, 1, 3, 3), "VALID")
    y = jax.lax.conv_general_dilated(y, p["conv2_w"], (1, 1), "VALID",
                                     dimension_numbers=dn)
    y = jax.nn.relu(y + p["conv2_b"][None, :, None, None])
    y = jax.lax.reduce_window(y, -jnp.inf, jax.lax.max,
                              (1, 1, 3, 3), (1, 1, 3, 3), "VALID")
    flat = y.reshape(y.shape[0], -1)
    h = flat @ p["fc1_w"].T + p["fc1_b"]
    return h @ p["fc2_w"].T + p["fc2_b"]


def init_params(key):
    ks = jax.random.split(key, 8)
    return {
        "conv1_w": 0.1 * jax.random.normal(ks[0], (10, 1, 5, 5), jnp.float32),
        "conv1_b": 0.1 * jax.random.normal(ks[1], (10,), jnp.float32),
        "conv2_w": 0.05 * jax.random.normal(ks[2], (20, 10, 5, 5), jnp.float32),
        "conv2_b": 0.1 * jax.random.normal(ks[3], (20,), jnp.float32),
        "fc1_w": 0.05 * jax.random.normal(ks[4], (100, 500), jnp.float32),
        "fc1_b": 0.1 * jax.random.normal(ks[5], (100,), jnp.float32),
        "fc2_w": 0.1 * jax.random.normal(ks[6], (15, 100), jnp.float32),
        "fc2_b": 0.1 * jax.random.normal(ks[7], (15,), jnp.float32),
    }


if __name__ == "__main__":
    root = jax.random.PRNGKey(0)
    kx, kp, kx2 = jax.random.split(root, 3)
    params = init_params(kp)
    prep = prepare_params(params)            # hoisted weight prep: runs once
    fwd = jax.jit(simple_net_forward)

    # Input implied by the module: Conv2d(1,10,5) + Linear(500,...) forces a
    # single-channel 64x64 image (20ch * 5 * 5 = 500 after the CNN stack).
    x = jax.random.normal(kx, (2, 1, 64, 64), jnp.float32)
    out = jax.block_until_ready(fwd(x, prep))
    assert out.shape == (2, 15), out.shape
    ref = jax.block_until_ready(reference_forward(x, params))
    np.testing.assert_allclose(np.asarray(out), np.asarray(ref),
                               rtol=2e-3, atol=2e-3)

    # Second check: exercises the multi-step grid and batch padding (B=8 blocks).
    x2 = jax.random.normal(kx2, (10, 1, 64, 64), jnp.float32)
    out2 = jax.block_until_ready(fwd(x2, prep))
    ref2 = jax.block_until_ready(reference_forward(x2, params))
    np.testing.assert_allclose(np.asarray(out2), np.asarray(ref2),
                               rtol=2e-3, atol=2e-3)

    print("KERNEL_OK")
</pallas_src>

<mosaic_0001>
module attributes {stable_mosaic.version = 11 : i64} {
  func.func @_simplenet_kernel(%arg0: i32, %arg1: memref<2x64x64xf32, #tpu.memory_space<vmem>>, %arg2: memref<5x64x640xf32, #tpu.memory_space<vmem>>, %arg3: memref<1x640xf32, #tpu.memory_space<vmem>>, %arg4: memref<640x256xf32, #tpu.memory_space<vmem>>, %arg5: memref<5x256x384xf32, #tpu.memory_space<vmem>>, %arg6: memref<1x384xf32, #tpu.memory_space<vmem>>, %arg7: memref<384x128xf32, #tpu.memory_space<vmem>>, %arg8: memref<5x128x128xf32, #tpu.memory_space<vmem>>, %arg9: memref<1x128xf32, #tpu.memory_space<vmem>>, %arg10: memref<128x128xf32, #tpu.memory_space<vmem>>, %arg11: memref<1x128xf32, #tpu.memory_space<vmem>>, %arg12: memref<2x8x128xf32, #tpu.memory_space<vmem>>) attributes {dimension_semantics = [#tpu.dimension_semantics<parallel>], iteration_bounds = array<i64: 1>, scalar_prefetch = 0 : i64, scratch_operands = 0 : i64, tpu.core_type = #tpu.core_type<tc>, window_params = [{transform_indices = @transform_0, window_bounds = array<i64: 2, 64, 64>}, {pipeline_mode = #tpu.pipeline_mode<synchronous>, transform_indices = @transform_1, window_bounds = array<i64: 5, 64, 640>}, {pipeline_mode = #tpu.pipeline_mode<synchronous>, transform_indices = @transform_2, window_bounds = array<i64: 1, 640>}, {pipeline_mode = #tpu.pipeline_mode<synchronous>, transform_indices = @transform_3, window_bounds = array<i64: 640, 256>}, {pipeline_mode = #tpu.pipeline_mode<synchronous>, transform_indices = @transform_4, window_bounds = array<i64: 5, 256, 384>}, {pipeline_mode = #tpu.pipeline_mode<synchronous>, transform_indices = @transform_5, window_bounds = array<i64: 1, 384>}, {pipeline_mode = #tpu.pipeline_mode<synchronous>, transform_indices = @transform_6, window_bounds = array<i64: 384, 128>}, {pipeline_mode = #tpu.pipeline_mode<synchronous>, transform_indices = @transform_7, window_bounds = array<i64: 5, 128, 128>}, {pipeline_mode = #tpu.pipeline_mode<synchronous>, transform_indices = @transform_8, window_bounds = array<i64: 1, 128>}, {pipeline_mode = #tpu.pipeline_mode<synchronous>, transform_indices = @transform_9, window_bounds = array<i64: 128, 128>}, {pipeline_mode = #tpu.pipeline_mode<synchronous>, transform_indices = @transform_10, window_bounds = array<i64: 1, 128>}, {transform_indices = @transform_11, window_bounds = array<i64: 2, 8, 128>}]} {
    %c0 = arith.constant 0 : index
    %c0_0 = arith.constant 0 : index
    %c0_1 = arith.constant 0 : index
    %0 = vector.load %arg1[%c0, %c0_0, %c0_1] : memref<2x64x64xf32, #tpu.memory_space<vmem>>, vector<2x64x64xf32>
    %1 = vector.shape_cast %0 : vector<2x64x64xf32> to vector<128x64xf32>
    %c0_2 = arith.constant 0 : index
    %c0_3 = arith.constant 0 : index
    %c0_4 = arith.constant 0 : index
    %2 = vector.load %arg2[%c0_2, %c0_3, %c0_4] : memref<5x64x640xf32, #tpu.memory_space<vmem>>, vector<1x64x640xf32>
    %3 = vector.shape_cast %2 : vector<1x64x640xf32> to vector<64x640xf32>
    %cst = arith.constant dense<0.000000e+00> : vector<128x640xf32>
    %4 = tpu.matmul %1, %3, %cst {dimension_numbers = #tpu.dot_dimension_numbers<[1], [0], [0], [1], [0, 0, 1, 1], [], []>} : vector<128x64xf32>, vector<64x640xf32>, vector<128x640xf32> -> vector<128x640xf32>
    %5 = vector.extract_strided_slice %1 {offsets = [1, 0], sizes = [127, 64], strides = [1, 1]} : vector<128x64xf32> to vector<127x64xf32>
    %6 = vector.extract_strided_slice %1 {offsets = [0, 0], sizes = [1, 64], strides = [1, 1]} : vector<128x64xf32> to vector<1x64xf32>
    %7 = tpu.concatenate %5, %6 in 0 : vector<127x64xf32>, vector<1x64xf32> -> vector<128x64xf32>
    %c1 = arith.constant 1 : index
    %c0_5 = arith.constant 0 : index
    %c0_6 = arith.constant 0 : index
    %8 = vector.load %arg2[%c1, %c0_5, %c0_6] : memref<5x64x640xf32, #tpu.memory_space<vmem>>, vector<1x64x640xf32>
    %9 = vector.shape_cast %8 : vector<1x64x640xf32> to vector<64x640xf32>
    %cst_7 = arith.constant dense<0.000000e+00> : vector<128x640xf32>
    %10 = tpu.matmul %7, %9, %cst_7 {dimension_numbers = #tpu.dot_dimension_numbers<[1], [0], [0], [1], [0, 0, 1, 1], [], []>} : vector<128x64xf32>, vector<64x640xf32>, vector<128x640xf32> -> vector<128x640xf32>
    %11 = arith.addf %4, %10 : vector<128x640xf32>
    %12 = vector.extract_strided_slice %1 {offsets = [2, 0], sizes = [126, 64], strides = [1, 1]} : vector<128x64xf32> to vector<126x64xf32>
    %13 = vector.extract_strided_slice %1 {offsets = [0, 0], sizes = [2, 64], strides = [1, 1]} : vector<128x64xf32> to vector<2x64xf32>
    %14 = tpu.concatenate %12, %13 in 0 : vector<126x64xf32>, vector<2x64xf32> -> vector<128x64xf32>
    %c2 = arith.constant 2 : index
    %c0_8 = arith.constant 0 : index
    %c0_9 = arith.constant 0 : index
    %15 = vector.load %arg2[%c2, %c0_8, %c0_9] : memref<5x64x640xf32, #tpu.memory_space<vmem>>, vector<1x64x640xf32>
    %16 = vector.shape_cast %15 : vector<1x64x640xf32> to vector<64x640xf32>
    %cst_10 = arith.constant dense<0.000000e+00> : vector<128x640xf32>
    %17 = tpu.matmul %14, %16, %cst_10 {dimension_numbers = #tpu.dot_dimension_numbers<[1], [0], [0], [1], [0, 0, 1, 1], [], []>} : vector<128x64xf32>, vector<64x640xf32>, vector<128x640xf32> -> vector<128x640xf32>
    %18 = arith.addf %11, %17 : vector<128x640xf32>
    %19 = vector.extract_strided_slice %1 {offsets = [3, 0], sizes = [125, 64], strides = [1, 1]} : vector<128x64xf32> to vector<125x64xf32>
    %20 = vector.extract_strided_slice %1 {offsets = [0, 0], sizes = [3, 64], strides = [1, 1]} : vector<128x64xf32> to vector<3x64xf32>
    %21 = tpu.concatenate %19, %20 in 0 : vector<125x64xf32>, vector<3x64xf32> -> vector<128x64xf32>
    %c3 = arith.constant 3 : index
    %c0_11 = arith.constant 0 : index
    %c0_12 = arith.constant 0 : index
    %22 = vector.load %arg2[%c3, %c0_11, %c0_12] : memref<5x64x640xf32, #tpu.memory_space<vmem>>, vector<1x64x640xf32>
    %23 = vector.shape_cast %22 : vector<1x64x640xf32> to vector<64x640xf32>
    %cst_13 = arith.constant dense<0.000000e+00> : vector<128x640xf32>
    %24 = tpu.matmul %21, %23, %cst_13 {dimension_numbers = #tpu.dot_dimension_numbers<[1], [0], [0], [1], [0, 0, 1, 1], [], []>} : vector<128x64xf32>, vector<64x640xf32>, vector<128x640xf32> -> vector<128x640xf32>
    %25 = arith.addf %18, %24 : vector<128x640xf32>
    %26 = vector.extract_strided_slice %1 {offsets = [4, 0], sizes = [124, 64], strides = [1, 1]} : vector<128x64xf32> to vector<124x64xf32>
    %27 = vector.extract_strided_slice %1 {offsets = [0, 0], sizes = [4, 64], strides = [1, 1]} : vector<128x64xf32> to vector<4x64xf32>
    %28 = tpu.concatenate %26, %27 in 0 : vector<124x64xf32>, vector<4x64xf32> -> vector<128x64xf32>
    %c4 = arith.constant 4 : index
    %c0_14 = arith.constant 0 : index
    %c0_15 = arith.constant 0 : index
    %29 = vector.load %arg2[%c4, %c0_14, %c0_15] : memref<5x64x640xf32, #tpu.memory_space<vmem>>, vector<1x64x640xf32>
    %30 = vector.shape_cast %29 : vector<1x64x640xf32> to vector<64x640xf32>
    %cst_16 = arith.constant dense<0.000000e+00> : vector<128x640xf32>
    %31 = tpu.matmul %28, %30, %cst_16 {dimension_numbers = #tpu.dot_dimension_numbers<[1], [0], [0], [1], [0, 0, 1, 1], [], []>} : vector<128x64xf32>, vector<64x640xf32>, vector<128x640xf32> -> vector<128x640xf32>
    %32 = arith.addf %25, %31 : vector<128x640xf32>
    %c0_17 = arith.constant 0 : index
    %c0_18 = arith.constant 0 : index
    %33 = vector.load %arg3[%c0_17, %c0_18] : memref<1x640xf32, #tpu.memory_space<vmem>>, vector<1x640xf32>
    %34 = vector.broadcast %33 : vector<1x640xf32> to vector<128x640xf32>
    %35 = arith.addf %32, %34 : vector<128x640xf32>
    %cst_19 = arith.constant 0.000000e+00 : f32
    %36 = vector.broadcast %cst_19 : f32 to vector<128x640xf32>
    %37 = arith.maximumf %35, %36 : vector<128x640xf32>
    %38 = vector.extract_strided_slice %37 {offsets = [0, 10], sizes = [128, 630], strides = [1, 1]} : vector<128x640xf32> to vector<128x630xf32>
    %39 = vector.extract_strided_slice %37 {offsets = [0, 0], sizes = [128, 10], strides = [1, 1]} : vector<128x640xf32> to vector<128x10xf32>
    %40 = tpu.concatenate %38, %39 in 1 : vector<128x630xf32>, vector<128x10xf32> -> vector<128x640xf32>
    %41 = arith.maximumf %37, %40 : vector<128x640xf32>
    %42 = vector.extract_strided_slice %37 {offsets = [0, 20], sizes = [128, 620], strides = [1, 1]} : vector<128x640xf32> to vector<128x620xf32>
    %43 = vector.extract_strided_slice %37 {offsets = [0, 0], sizes = [128, 20], strides = [1, 1]} : vector<128x640xf32> to vector<128x20xf32>
    %44 = tpu.concatenate %42, %43 in 1 : vector<128x620xf32>, vector<128x20xf32> -> vector<128x640xf32>
    %45 = arith.maximumf %41, %44 : vector<128x640xf32>
    %c0_20 = arith.constant 0 : index
    %c0_21 = arith.constant 0 : index
    %46 = vector.load %arg4[%c0_20, %c0_21] : memref<640x256xf32, #tpu.memory_space<vmem>>, vector<640x256xf32>
    %cst_22 = arith.constant dense<0.000000e+00> : vector<128x256xf32>
    %47 = tpu.matmul %45, %46, %cst_22 {dimension_numbers = #tpu.dot_dimension_numbers<[1], [0], [0], [1], [0, 0, 1, 1], [], []>} : vector<128x640xf32>, vector<640x256xf32>, vector<128x256xf32> -> vector<128x256xf32>
    %48 = vector.extract_strided_slice %47 {offsets = [1, 0], sizes = [127, 256], strides = [1, 1]} : vector<128x256xf32> to vector<127x256xf32>
    %49 = vector.extract_strided_slice %47 {offsets = [0, 0], sizes = [1, 256], strides = [1, 1]} : vector<128x256xf32> to vector<1x256xf32>
    %50 = tpu.concatenate %48, %49 in 0 : vector<127x256xf32>, vector<1x256xf32> -> vector<128x256xf32>
    %51 = arith.maximumf %47, %50 : vector<128x256xf32>
    %52 = vector.extract_strided_slice %47 {offsets = [2, 0], sizes = [126, 256], strides = [1, 1]} : vector<128x256xf32> to vector<126x256xf32>
    %53 = vector.extract_strided_slice %47 {offsets = [0, 0], sizes = [2, 256], strides = [1, 1]} : vector<128x256xf32> to vector<2x256xf32>
    %54 = tpu.concatenate %52, %53 in 0 : vector<126x256xf32>, vector<2x256xf32> -> vector<128x256xf32>
    %55 = arith.maximumf %51, %54 : vector<128x256xf32>
    %c0_23 = arith.constant 0 : index
    %c0_24 = arith.constant 0 : index
    %c0_25 = arith.constant 0 : index
    %56 = vector.load %arg5[%c0_23, %c0_24, %c0_25] : memref<5x256x384xf32, #tpu.memory_space<vmem>>, vector<1x256x384xf32>
    %57 = vector.shape_cast %56 : vector<1x256x384xf32> to vector<256x384xf32>
    %cst_26 = arith.constant dense<0.000000e+00> : vector<128x384xf32>
    %58 = tpu.matmul %55, %57, %cst_26 {dimension_numbers = #tpu.dot_dimension_numbers<[1], [0], [0], [1], [0, 0, 1, 1], [], []>} : vector<128x256xf32>, vector<256x384xf32>, vector<128x384xf32> -> vector<128x384xf32>
    %59 = vector.extract_strided_slice %55 {offsets = [3, 0], sizes = [125, 256], strides = [1, 1]} : vector<128x256xf32> to vector<125x256xf32>
    %60 = vector.extract_strided_slice %55 {offsets = [0, 0], sizes = [3, 256], strides = [1, 1]} : vector<128x256xf32> to vector<3x256xf32>
    %61 = tpu.concatenate %59, %60 in 0 : vector<125x256xf32>, vector<3x256xf32> -> vector<128x256xf32>
    %c1_27 = arith.constant 1 : index
    %c0_28 = arith.constant 0 : index
    %c0_29 = arith.constant 0 : index
    %62 = vector.load %arg5[%c1_27, %c0_28, %c0_29] : memref<5x256x384xf32, #tpu.memory_space<vmem>>, vector<1x256x384xf32>
    %63 = vector.shape_cast %62 : vector<1x256x384xf32> to vector<256x384xf32>
    %cst_30 = arith.constant dense<0.000000e+00> : vector<128x384xf32>
    %64 = tpu.matmul %61, %63, %cst_30 {dimension_numbers = #tpu.dot_dimension_numbers<[1], [0], [0], [1], [0, 0, 1, 1], [], []>} : vector<128x256xf32>, vector<256x384xf32>, vector<128x384xf32> -> vector<128x384xf32>
    %65 = arith.addf %58, %64 : vector<128x384xf32>
    %66 = vector.extract_strided_slice %55 {offsets = [6, 0], sizes = [122, 256], strides = [1, 1]} : vector<128x256xf32> to vector<122x256xf32>
    %67 = vector.extract_strided_slice %55 {offsets = [0, 0], sizes = [6, 256], strides = [1, 1]} : vector<128x256xf32> to vector<6x256xf32>
    %68 = tpu.concatenate %66, %67 in 0 : vector<122x256xf32>, vector<6x256xf32> -> vector<128x256xf32>
    %c2_31 = arith.constant 2 : index
    %c0_32 = arith.constant 0 : index
    %c0_33 = arith.constant 0 : index
    %69 = vector.load %arg5[%c2_31, %c0_32, %c0_33] : memref<5x256x384xf32, #tpu.memory_space<vmem>>, vector<1x256x384xf32>
    %70 = vector.shape_cast %69 : vector<1x256x384xf32> to vector<256x384xf32>
    %cst_34 = arith.constant dense<0.000000e+00> : vector<128x384xf32>
    %71 = tpu.matmul %68, %70, %cst_34 {dimension_numbers = #tpu.dot_dimension_numbers<[1], [0], [0], [1], [0, 0, 1, 1], [], []>} : vector<128x256xf32>, vector<256x384xf32>, vector<128x384xf32> -> vector<128x384xf32>
    %72 = arith.addf %65, %71 : vector<128x384xf32>
    %73 = vector.extract_strided_slice %55 {offsets = [9, 0], sizes = [119, 256], strides = [1, 1]} : vector<128x256xf32> to vector<119x256xf32>
    %74 = vector.extract_strided_slice %55 {offsets = [0, 0], sizes = [9, 256], strides = [1, 1]} : vector<128x256xf32> to vector<9x256xf32>
    %75 = tpu.concatenate %73, %74 in 0 : vector<119x256xf32>, vector<9x256xf32> -> vector<128x256xf32>
    %c3_35 = arith.constant 3 : index
    %c0_36 = arith.constant 0 : index
    %c0_37 = arith.constant 0 : index
    %76 = vector.load %arg5[%c3_35, %c0_36, %c0_37] : memref<5x256x384xf32, #tpu.memory_space<vmem>>, vector<1x256x384xf32>
    %77 = vector.shape_cast %76 : vector<1x256x384xf32> to vector<256x384xf32>
    %cst_38 = arith.constant dense<0.000000e+00> : vector<128x384xf32>
    %78 = tpu.matmul %75, %77, %cst_38 {dimension_numbers = #tpu.dot_dimension_numbers<[1], [0], [0], [1], [0, 0, 1, 1], [], []>} : vector<128x256xf32>, vector<256x384xf32>, vector<128x384xf32> -> vector<128x384xf32>
    %79 = arith.addf %72, %78 : vector<128x384xf32>
    %80 = vector.extract_strided_slice %55 {offsets = [12, 0], sizes = [116, 256], strides = [1, 1]} : vector<128x256xf32> to vector<116x256xf32>
    %81 = vector.extract_strided_slice %55 {offsets = [0, 0], sizes = [12, 256], strides = [1, 1]} : vector<128x256xf32> to vector<12x256xf32>
    %82 = tpu.concatenate %80, %81 in 0 : vector<116x256xf32>, vector<12x256xf32> -> vector<128x256xf32>
    %c4_39 = arith.constant 4 : index
    %c0_40 = arith.constant 0 : index
    %c0_41 = arith.constant 0 : index
    %83 = vector.load %arg5[%c4_39, %c0_40, %c0_41] : memref<5x256x384xf32, #tpu.memory_space<vmem>>, vector<1x256x384xf32>
    %84 = vector.shape_cast %83 : vector<1x256x384xf32> to vector<256x384xf32>
    %cst_42 = arith.constant dense<0.000000e+00> : vector<128x384xf32>
    %85 = tpu.matmul %82, %84, %cst_42 {dimension_numbers = #tpu.dot_dimension_numbers<[1], [0], [0], [1], [0, 0, 1, 1], [], []>} : vector<128x256xf32>, vector<256x384xf32>, vector<128x384xf32> -> vector<128x384xf32>
    %86 = arith.addf %79, %85 : vector<128x384xf32>
    %c0_43 = arith.constant 0 : index
    %c0_44 = arith.constant 0 : index
    %87 = vector.load %arg6[%c0_43, %c0_44] : memref<1x384xf32, #tpu.memory_space<vmem>>, vector<1x384xf32>
    %88 = vector.broadcast %87 : vector<1x384xf32> to vector<128x384xf32>
    %89 = arith.addf %86, %88 : vector<128x384xf32>
    %cst_45 = arith.constant 0.000000e+00 : f32
    %90 = vector.broadcast %cst_45 : f32 to vector<128x384xf32>
    %91 = arith.maximumf %89, %90 : vector<128x384xf32>
    %92 = vector.extract_strided_slice %91 {offsets = [0, 20], sizes = [128, 364], strides = [1, 1]} : vector<128x384xf32> to vector<128x364xf32>
    %93 = vector.extract_strided_slice %91 {offsets = [0, 0], sizes = [128, 20], strides = [1, 1]} : vector<128x384xf32> to vector<128x20xf32>
    %94 = tpu.concatenate %92, %93 in 1 : vector<128x364xf32>, vector<128x20xf32> -> vector<128x384xf32>
    %95 = arith.maximumf %91, %94 : vector<128x384xf32>
    %96 = vector.extract_strided_slice %91 {offsets = [0, 40], sizes = [128, 344], strides = [1, 1]} : vector<128x384xf32> to vector<128x344xf32>
    %97 = vector.extract_strided_slice %91 {offsets = [0, 0], sizes = [128, 40], strides = [1, 1]} : vector<128x384xf32> to vector<128x40xf32>
    %98 = tpu.concatenate %96, %97 in 1 : vector<128x344xf32>, vector<128x40xf32> -> vector<128x384xf32>
    %99 = arith.maximumf %95, %98 : vector<128x384xf32>
    %c0_46 = arith.constant 0 : index
    %c0_47 = arith.constant 0 : index
    %100 = vector.load %arg7[%c0_46, %c0_47] : memref<384x128xf32, #tpu.memory_space<vmem>>, vector<384x128xf32>
    %cst_48 = arith.constant dense<0.000000e+00> : vector<128x128xf32>
    %101 = tpu.matmul %99, %100, %cst_48 {dimension_numbers = #tpu.dot_dimension_numbers<[1], [0], [0], [1], [0, 0, 1, 1], [], []>} : vector<128x384xf32>, vector<384x128xf32>, vector<128x128xf32> -> vector<128x128xf32>
    %102 = vector.extract_strided_slice %101 {offsets = [3, 0], sizes = [125, 128], strides = [1, 1]} : vector<128x128xf32> to vector<125x128xf32>
    %103 = vector.extract_strided_slice %101 {offsets = [0, 0], sizes = [3, 128], strides = [1, 1]} : vector<128x128xf32> to vector<3x128xf32>
    %104 = tpu.concatenate %102, %103 in 0 : vector<125x128xf32>, vector<3x128xf32> -> vector<128x128xf32>
    %105 = arith.maximumf %101, %104 : vector<128x128xf32>
    %106 = vector.extract_strided_slice %101 {offsets = [6, 0], sizes = [122, 128], strides = [1, 1]} : vector<128x128xf32> to vector<122x128xf32>
    %107 = vector.extract_strided_slice %101 {offsets = [0, 0], sizes = [6, 128], strides = [1, 1]} : vector<128x128xf32> to vector<6x128xf32>
    %108 = tpu.concatenate %106, %107 in 0 : vector<122x128xf32>, vector<6x128xf32> -> vector<128x128xf32>
    %109 = arith.maximumf %105, %108 : vector<128x128xf32>
    %110 = vector.shape_cast %109 : vector<128x128xf32> to vector<2x64x128xf32>
    %111 = vector.extract_strided_slice %110 {offsets = [0, 0, 0], sizes = [2, 40, 128], strides = [1, 1, 1]} : vector<2x64x128xf32> to vector<2x40x128xf32>
    %112 = vector.shape_cast %111 : vector<2x40x128xf32> to vector<80x128xf32>
    %c0_49 = arith.constant 0 : index
    %c0_50 = arith.constant 0 : index
    %c0_51 = arith.constant 0 : index
    %113 = vector.load %arg8[%c0_49, %c0_50, %c0_51] : memref<5x128x128xf32, #tpu.memory_space<vmem>>, vector<1x128x128xf32>
    %114 = vector.shape_cast %113 : vector<1x128x128xf32> to vector<128x128xf32>
    %cst_52 = arith.constant dense<0.000000e+00> : vector<80x128xf32>
    %115 = tpu.matmul %112, %114, %cst_52 {dimension_numbers = #tpu.dot_dimension_numbers<[1], [0], [0], [1], [0, 0, 1, 1], [], []>} : vector<80x128xf32>, vector<128x128xf32>, vector<80x128xf32> -> vector<80x128xf32>
    %116 = vector.extract_strided_slice %112 {offsets = [9, 0], sizes = [71, 128], strides = [1, 1]} : vector<80x128xf32> to vector<71x128xf32>
    %117 = vector.extract_strided_slice %112 {offsets = [0, 0], sizes = [9, 128], strides = [1, 1]} : vector<80x128xf32> to vector<9x128xf32>
    %118 = tpu.concatenate %116, %117 in 0 : vector<71x128xf32>, vector<9x128xf32> -> vector<80x128xf32>
    %c1_53 = arith.constant 1 : index
    %c0_54 = arith.constant 0 : index
    %c0_55 = arith.constant 0 : index
    %119 = vector.load %arg8[%c1_53, %c0_54, %c0_55] : memref<5x128x128xf32, #tpu.memory_space<vmem>>, vector<1x128x128xf32>
    %120 = vector.shape_cast %119 : vector<1x128x128xf32> to vector<128x128xf32>
    %cst_56 = arith.constant dense<0.000000e+00> : vector<80x128xf32>
    %121 = tpu.matmul %118, %120, %cst_56 {dimension_numbers = #tpu.dot_dimension_numbers<[1], [0], [0], [1], [0, 0, 1, 1], [], []>} : vector<80x128xf32>, vector<128x128xf32>, vector<80x128xf32> -> vector<80x128xf32>
    %122 = arith.addf %115, %121 : vector<80x128xf32>
    %123 = vector.extract_strided_slice %112 {offsets = [18, 0], sizes = [62, 128], strides = [1, 1]} : vector<80x128xf32> to vector<62x128xf32>
    %124 = vector.extract_strided_slice %112 {offsets = [0, 0], sizes = [18, 128], strides = [1, 1]} : vector<80x128xf32> to vector<18x128xf32>
    %125 = tpu.concatenate %123, %124 in 0 : vector<62x128xf32>, vector<18x128xf32> -> vector<80x128xf32>
    %c2_57 = arith.constant 2 : index
    %c0_58 = arith.constant 0 : index
    %c0_59 = arith.constant 0 : index
    %126 = vector.load %arg8[%c2_57, %c0_58, %c0_59] : memref<5x128x128xf32, #tpu.memory_space<vmem>>, vector<1x128x128xf32>
    %127 = vector.shape_cast %126 : vector<1x128x128xf32> to vector<128x128xf32>
    %cst_60 = arith.constant dense<0.000000e+00> : vector<80x128xf32>
    %128 = tpu.matmul %125, %127, %cst_60 {dimension_numbers = #tpu.dot_dimension_numbers<[1], [0], [0], [1], [0, 0, 1, 1], [], []>} : vector<80x128xf32>, vector<128x128xf32>, vector<80x128xf32> -> vector<80x128xf32>
    %129 = arith.addf %122, %128 : vector<80x128xf32>
    %130 = vector.extract_strided_slice %112 {offsets = [27, 0], sizes = [53, 128], strides = [1, 1]} : vector<80x128xf32> to vector<53x128xf32>
    %131 = vector.extract_strided_slice %112 {offsets = [0, 0], sizes = [27, 128], strides = [1, 1]} : vector<80x128xf32> to vector<27x128xf32>
    %132 = tpu.concatenate %130, %131 in 0 : vector<53x128xf32>, vector<27x128xf32> -> vector<80x128xf32>
    %c3_61 = arith.constant 3 : index
    %c0_62 = arith.constant 0 : index
    %c0_63 = arith.constant 0 : index
    %133 = vector.load %arg8[%c3_61, %c0_62, %c0_63] : memref<5x128x128xf32, #tpu.memory_space<vmem>>, vector<1x128x128xf32>
    %134 = vector.shape_cast %133 : vector<1x128x128xf32> to vector<128x128xf32>
    %cst_64 = arith.constant dense<0.000000e+00> : vector<80x128xf32>
    %135 = tpu.matmul %132, %134, %cst_64 {dimension_numbers = #tpu.dot_dimension_numbers<[1], [0], [0], [1], [0, 0, 1, 1], [], []>} : vector<80x128xf32>, vector<128x128xf32>, vector<80x128xf32> -> vector<80x128xf32>
    %136 = arith.addf %129, %135 : vector<80x128xf32>
    %137 = vector.extract_strided_slice %112 {offsets = [36, 0], sizes = [44, 128], strides = [1, 1]} : vector<80x128xf32> to vector<44x128xf32>
    %138 = vector.extract_strided_slice %112 {offsets = [0, 0], sizes = [36, 128], strides = [1, 1]} : vector<80x128xf32> to vector<36x128xf32>
    %139 = tpu.concatenate %137, %138 in 0 : vector<44x128xf32>, vector<36x128xf32> -> vector<80x128xf32>
    %c4_65 = arith.constant 4 : index
    %c0_66 = arith.constant 0 : index
    %c0_67 = arith.constant 0 : index
    %140 = vector.load %arg8[%c4_65, %c0_66, %c0_67] : memref<5x128x128xf32, #tpu.memory_space<vmem>>, vector<1x128x128xf32>
    %141 = vector.shape_cast %140 : vector<1x128x128xf32> to vector<128x128xf32>
    %cst_68 = arith.constant dense<0.000000e+00> : vector<80x128xf32>
    %142 = tpu.matmul %139, %141, %cst_68 {dimension_numbers = #tpu.dot_dimension_numbers<[1], [0], [0], [1], [0, 0, 1, 1], [], []>} : vector<80x128xf32>, vector<128x128xf32>, vector<80x128xf32> -> vector<80x128xf32>
    %143 = arith.addf %136, %142 : vector<80x128xf32>
    %c0_69 = arith.constant 0 : index
    %c0_70 = arith.constant 0 : index
    %144 = vector.load %arg9[%c0_69, %c0_70] : memref<1x128xf32, #tpu.memory_space<vmem>>, vector<1x128xf32>
    %145 = vector.broadcast %144 : vector<1x128xf32> to vector<80x128xf32>
    %146 = arith.addf %143, %145 : vector<80x128xf32>
    %c0_71 = arith.constant 0 : index
    %c0_72 = arith.constant 0 : index
    %147 = vector.load %arg10[%c0_71, %c0_72] : memref<128x128xf32, #tpu.memory_space<vmem>>, vector<128x128xf32>
    %cst_73 = arith.constant dense<0.000000e+00> : vector<80x128xf32>
    %148 = tpu.matmul %146, %147, %cst_73 {dimension_numbers = #tpu.dot_dimension_numbers<[1], [0], [0], [1], [0, 0, 1, 1], [], []>} : vector<80x128xf32>, vector<128x128xf32>, vector<80x128xf32> -> vector<80x128xf32>
    %c0_74 = arith.constant 0 : index
    %c0_75 = arith.constant 0 : index
    %149 = vector.load %arg11[%c0_74, %c0_75] : memref<1x128xf32, #tpu.memory_space<vmem>>, vector<1x128xf32>
    %150 = vector.broadcast %149 : vector<1x128xf32> to vector<80x128xf32>
    %151 = arith.addf %148, %150 : vector<80x128xf32>
    %152 = vector.shape_cast %151 : vector<80x128xf32> to vector<2x40x128xf32>
    %153 = vector.extract_strided_slice %152 {offsets = [0, 0, 0], sizes = [2, 8, 128], strides = [1, 1, 1]} : vector<2x40x128xf32> to vector<2x8x128xf32>
    %c0_76 = arith.constant 0 : index
    %c0_77 = arith.constant 0 : index
    %c0_78 = arith.constant 0 : index
    %154 = vector.load %arg12[%c0_76, %c0_77, %c0_78] : memref<2x8x128xf32, #tpu.memory_space<vmem>>, vector<2x8x128xf32>
    tpu.vector_store %arg12[%c0_76, %c0_77, %c0_78], %153 {strides = array<i32>} : memref<2x8x128xf32, #tpu.memory_space<vmem>>, vector<2x8x128xf32>,
    return
  }
  func.func @transform_0(%arg0: i32) -> (i32, i32, i32) {
    %c0_i32 = arith.constant 0 : i32
    %c0_i32_0 = arith.constant 0 : i32
    %c0_i32_1 = arith.constant 0 : i32
    return %arg0, %c0_i32, %c0_i32_0 : i32, i32, i32
  }
  func.func @transform_1(%arg0: i32) -> (i32, i32, i32) {
    %c0_i32 = arith.constant 0 : i32
    %c0_i32_0 = arith.constant 0 : i32
    %c0_i32_1 = arith.constant 0 : i32
    %c0_i32_2 = arith.constant 0 : i32
    return %c0_i32, %c0_i32_0, %c0_i32_1 : i32, i32, i32
  }
  func.func @transform_2(%arg0: i32) -> (i32, i32) {
    %c0_i32 = arith.constant 0 : i32
    %c0_i32_0 = arith.constant 0 : i32
    %c0_i32_1 = arith.constant 0 : i32
    return %c0_i32, %c0_i32_0 : i32, i32
  }
  func.func @transform_3(%arg0: i32) -> (i32, i32) {
    %c0_i32 = arith.constant 0 : i32
    %c0_i32_0 = arith.constant 0 : i32
    %c0_i32_1 = arith.constant 0 : i32
    return %c0_i32, %c0_i32_0 : i32, i32
  }
  func.func @transform_4(%arg0: i32) -> (i32, i32, i32) {
    %c0_i32 = arith.constant 0 : i32
    %c0_i32_0 = arith.constant 0 : i32
    %c0_i32_1 = arith.constant 0 : i32
    %c0_i32_2 = arith.constant 0 : i32
    return %c0_i32, %c0_i32_0, %c0_i32_1 : i32, i32, i32
  }
  func.func @transform_5(%arg0: i32) -> (i32, i32) {
    %c0_i32 = arith.constant 0 : i32
    %c0_i32_0 = arith.constant 0 : i32
    %c0_i32_1 = arith.constant 0 : i32
    return %c0_i32, %c0_i32_0 : i32, i32
  }
  func.func @transform_6(%arg0: i32) -> (i32, i32) {
    %c0_i32 = arith.constant 0 : i32
    %c0_i32_0 = arith.constant 0 : i32
    %c0_i32_1 = arith.constant 0 : i32
    return %c0_i32, %c0_i32_0 : i32, i32
  }
  func.func @transform_7(%arg0: i32) -> (i32, i32, i32) {
    %c0_i32 = arith.constant 0 : i32
    %c0_i32_0 = arith.constant 0 : i32
    %c0_i32_1 = arith.constant 0 : i32
    %c0_i32_2 = arith.constant 0 : i32
    return %c0_i32, %c0_i32_0, %c0_i32_1 : i32, i32, i32
  }
  func.func @transform_8(%arg0: i32) -> (i32, i32) {
    %c0_i32 = arith.constant 0 : i32
    %c0_i32_0 = arith.constant 0 : i32
    %c0_i32_1 = arith.constant 0 : i32
    return %c0_i32, %c0_i32_0 : i32, i32
  }
  func.func @transform_9(%arg0: i32) -> (i32, i32) {
    %c0_i32 = arith.constant 0 : i32
    %c0_i32_0 = arith.constant 0 : i32
    %c0_i32_1 = arith.constant 0 : i32
    return %c0_i32, %c0_i32_0 : i32, i32
  }
  func.func @transform_10(%arg0: i32) -> (i32, i32) {
    %c0_i32 = arith.constant 0 : i32
    %c0_i32_0 = arith.constant 0 : i32
    %c0_i32_1 = arith.constant 0 : i32
    return %c0_i32, %c0_i32_0 : i32, i32
  }
  func.func @transform_11(%arg0: i32) -> (i32, i32, i32) {
    %c0_i32 = arith.constant 0 : i32
    %c0_i32_0 = arith.constant 0 : i32
    %c0_i32_1 = arith.constant 0 : i32
    return %arg0, %c0_i32, %c0_i32_0 : i32, i32, i32
  }
}

</mosaic_0001>

<llo_original>
// kernel: simple_net_forward.1
$region0: #{simple_net_forward.1}
  #allocation0 [shape = 'u32[]', space=smem, size = 0x4, offset = 0x4, fixed_abs, tag = 'smem constant byte address 0x4 - core index']
  #allocation1 [shape = 'u32[144,128]{1,0:T(1,128)}', space=vmem, size = 0x12000, scoped, tag = 'internal scratch']
  %s0 = inlined_call_operand.hbm [shape: f32[2,64,64], index: 0, kind: input, shape index: {}]
  %s1 = inlined_call_operand.hbm [shape: f32[5,64,640], index: 1, kind: input, shape index: {}]
  %s2 = inlined_call_operand.hbm [shape: f32[1,640], index: 2, kind: input, shape index: {}]
  %s3 = inlined_call_operand.hbm [shape: f32[640,256], index: 3, kind: input, shape index: {}]
  %s4 = inlined_call_operand.hbm [shape: f32[5,256,384], index: 4, kind: input, shape index: {}]
  %s5 = inlined_call_operand.hbm [shape: f32[1,384], index: 5, kind: input, shape index: {}]
  %s6 = inlined_call_operand.hbm [shape: f32[384,128], index: 6, kind: input, shape index: {}]
  %s7 = inlined_call_operand.hbm [shape: f32[5,128,128], index: 7, kind: input, shape index: {}]
  %s8 = inlined_call_operand.hbm [shape: f32[1,128], index: 8, kind: input, shape index: {}]
  %s9 = inlined_call_operand.hbm [shape: f32[128,128], index: 9, kind: input, shape index: {}]
  %s10 = inlined_call_operand.hbm [shape: f32[1,128], index: 10, kind: input, shape index: {}]
  %s11 = inlined_call_operand.vmem [shape: f32[2,8,128], index: 11, kind: output, shape index: {}]
  %s12 = sld [smem:[#allocation0]]
  $region98: #{simple_net_forward.1} parent=0
    _
  %s14 = ssub.s32 1, %s12
  %s15 = scalar_select 0, %s14, %s12
  $region1: #{simple_net_forward.1} parent=0
    #allocation2 [shape = 'u8[65536]{0}', space=vmem, size = 0x10000, scoped, tag = 'input window, operand 0, single buffered']
    #allocation3 [shape = 's32[1]{0}', space=sflag, size = 0x4, scoped, tag = 'scoped memory for simple_net_forward.1']
    #allocation4 [shape = 'u8[819200]{0}', space=vmem, size = 0xc8000, scoped, tag = 'input window, operand 1, single buffered']
    #allocation5 [shape = 's32[1]{0}', space=sflag, size = 0x4, scoped, tag = 'scoped memory for simple_net_forward.1']
    #allocation6 [shape = 'u8[2560]{0}', space=vmem, size = 0xc00, scoped, tag = 'input window, operand 2, single buffered']
    #allocation7 [shape = 'u8[655360]{0}', space=vmem, size = 0xa0000, scoped, tag = 'input window, operand 3, single buffered']
    #allocation8 [shape = 's32[1]{0}', space=sflag, size = 0x4, scoped, tag = 'scoped memory for simple_net_forward.1']
    #allocation9 [shape = 'u8[1966080]{0}', space=vmem, size = 0x1e0000, scoped, tag = 'input window, operand 4, single buffered']
    #allocation10 [shape = 'u8[1536]{0}', space=vmem, size = 0x800, scoped, tag = 'input window, operand 5, single buffered']
    #allocation11 [shape = 's32[1]{0}', space=sflag, size = 0x4, scoped, tag = 'scoped memory for simple_net_forward.1']
    #allocation12 [shape = 'u8[196608]{0}', space=vmem, size = 0x30000, scoped, tag = 'input window, operand 6, single buffered']
    #allocation13 [shape = 'u8[327680]{0}', space=vmem, size = 0x50000, scoped, tag = 'input window, operand 7, single buffered']
    #allocation14 [shape = 's32[1]{0}', space=sflag, size = 0x4, scoped, tag = 'scoped memory for simple_net_forward.1']
    #allocation15 [shape = 'u8[512]{0}', space=vmem, size = 0x400, scoped, tag = 'input window, operand 8, single buffered']
    #allocation16 [shape = 'u8[65536]{0}', space=vmem, size = 0x10000, scoped, tag = 'input window, operand 9, single buffered']
    #allocation17 [shape = 's32[1]{0}', space=sflag, size = 0x4, scoped, tag = 'scoped memory for simple_net_forward.1']
    #allocation18 [shape = 'u8[512]{0}', space=vmem, size = 0x400, scoped, tag = 'input window, operand 10, single buffered']
    %16 = vsyncpa [#allocation3], 0
    %17 = vsyncpa [#allocation5], 0
    %18 = vsyncpa [#allocation8], 0
    %19 = vsyncpa [#allocation11], 0
    %20 = vsyncpa [#allocation14], 0
    %21 = vsyncpa [#allocation17], 0
    // Predicated region
    $region2: #{simple_net_forward.1} parent=1 // pred_check
      _
    $region3: #{simple_net_forward.1} parent=1 // pred_check_branch
      %23 = sbr.rel (0) target = $region5
    $region4: #{simple_net_forward.1} parent=1 // pred_region
      %s25 = ssub.s32 2048, 2048
      %26 = vsyncadd [#allocation3], %s25
      %s27 = sshll.u32 [#allocation2], 4
      %s28 = int_to_ptr.vmem [resolvable:$true] %s27
      %33 = dma.hbm_to_vmem [thread:$0]  %s0, 2048, %s28, [#allocation3], 128, 128, 8
    $region5: #{simple_net_forward.1} parent=1 // pred_fallthru
      _
    // Predicated region
    $region6: #{simple_net_forward.1} parent=1 // pred_check
      _
    $region7: #{simple_net_forward.1} parent=1 // pred_check_branch
      %35 = sbr.rel (0) target = $region9
    $region8: #{simple_net_forward.1} parent=1 // pred_region
      %s37 = ssub.s32 25600, 25600
      %38 = vsyncadd [#allocation5], %s37
      %s39 = sshll.u32 [#allocation4], 4
      %s40 = int_to_ptr.vmem [resolvable:$true] %s39
      %45 = dma.hbm_to_vmem [thread:$0]  %s1, 25600, %s40, [#allocation5], 640, 640, 40
    $region9: #{simple_net_forward.1} parent=1 // pred_fallthru
      _
    // Predicated region
    $region10: #{simple_net_forward.1} parent=1 // pred_check
      _
    $region11: #{simple_net_forward.1} parent=1 // pred_check_branch
      %47 = sbr.rel (0) target = $region13
    $region12: #{simple_net_forward.1} parent=1 // pred_region
      %s49 = ssub.s32 80, 80
      %50 = vsyncadd [#allocation5], %s49
      %s52 = sshll.u32 [#allocation6], 4
      %s53 = int_to_ptr.vmem [resolvable:$true] %s52
      %55 = dma.hbm_to_vmem [thread:$0]  %s2, 80, %s53, [#allocation5]
    $region13: #{simple_net_forward.1} parent=1 // pred_fallthru
      _
    // Predicated region
    $region14: #{simple_net_forward.1} parent=1 // pred_check
      _
    $region15: #{simple_net_forward.1} parent=1 // pred_check_branch
      %57 = sbr.rel (0) target = $region17
    $region16: #{simple_net_forward.1} parent=1 // pred_region
      %s59 = ssub.s32 20480, 20480
      %60 = vsyncadd [#allocation8], %s59
      %s61 = sshll.u32 [#allocation7], 4
      %s62 = int_to_ptr.vmem [resolvable:$true] %s61
      %67 = dma.hbm_to_vmem [thread:$0]  %s3, 20480, %s62, [#allocation8], 256, 256, 16
    $region17: #{simple_net_forward.1} parent=1 // pred_fallthru
      _
    // Predicated region
    $region18: #{simple_net_forward.1} parent=1 // pred_check
      _
    $region19: #{simple_net_forward.1} parent=1 // pred_check_branch
      %69 = sbr.rel (0) target = $region21
    $region20: #{simple_net_forward.1} parent=1 // pred_region
      %s71 = ssub.s32 61440, 61440
      %72 = vsyncadd [#allocation8], %s71
      %s73 = sshll.u32 [#allocation9], 4
      %s74 = int_to_ptr.vmem [resolvable:$true] %s73
      %79 = dma.hbm_to_vmem [thread:$0]  %s4, 61440, %s74, [#allocation8], 384, 384, 24
    $region21: #{simple_net_forward.1} parent=1 // pred_fallthru
      _
    // Predicated region
    $region22: #{simple_net_forward.1} parent=1 // pred_check
      _
    $region23: #{simple_net_forward.1} parent=1 // pred_check_branch
      %81 = sbr.rel (0) target = $region25
    $region24: #{simple_net_forward.1} parent=1 // pred_region
      %s83 = ssub.s32 48, 48
      %84 = vsyncadd [#allocation11], %s83
      %s86 = sshll.u32 [#allocation10], 4
      %s87 = int_to_ptr.vmem [resolvable:$true] %s86
      %89 = dma.hbm_to_vmem [thread:$0]  %s5, 48, %s87, [#allocation11]
    $region25: #{simple_net_forward.1} parent=1 // pred_fallthru
      _
    // Predicated region
    $region26: #{simple_net_forward.1} parent=1 // pred_check
      _
    $region27: #{simple_net_forward.1} parent=1 // pred_check_branch
      %91 = sbr.rel (0) target = $region29
    $region28: #{simple_net_forward.1} parent=1 // pred_region
      %s93 = ssub.s32 6144, 6144
      %94 = vsyncadd [#allocation11], %s93
      %s95 = sshll.u32 [#allocation12], 4
      %s96 = int_to_ptr.vmem [resolvable:$true] %s95
      %101 = dma.hbm_to_vmem [thread:$0]  %s6, 6144, %s96, [#allocation11], 128, 128, 8
    $region29: #{simple_net_forward.1} parent=1 // pred_fallthru
      _
    // Predicated region
    $region30: #{simple_net_forward.1} parent=1 // pred_check
      _
    $region31: #{simple_net_forward.1} parent=1 // pred_check_branch
      %103 = sbr.rel (0) target = $region33
    $region32: #{simple_net_forward.1} parent=1 // pred_region
      %s105 = ssub.s32 10240, 10240
      %106 = vsyncadd [#allocation14], %s105
      %s107 = sshll.u32 [#allocation13], 4
      %s108 = int_to_ptr.vmem [resolvable:$true] %s107
      %113 = dma.hbm_to_vmem [thread:$0]  %s7, 10240, %s108, [#allocation14], 128, 128, 8
    $region33: #{simple_net_forward.1} parent=1 // pred_fallthru
      _
    // Predicated region
    $region34: #{simple_net_forward.1} parent=1 // pred_check
      _
    $region35: #{simple_net_forward.1} parent=1 // pred_check_branch
      %115 = sbr.rel (0) target = $region37
    $region36: #{simple_net_forward.1} parent=1 // pred_region
      %s117 = ssub.s32 16, 16
      %118 = vsyncadd [#allocation14], %s117
      %s120 = sshll.u32 [#allocation15], 4
      %s121 = int_to_ptr.vmem [resolvable:$true] %s120
      %123 = dma.hbm_to_vmem [thread:$0]  %s8, 16, %s121, [#allocation14]
    $region37: #{simple_net_forward.1} parent=1 // pred_fallthru
      _
    // Predicated region
    $region38: #{simple_net_forward.1} parent=1 // pred_check
      _
    $region39: #{simple_net_forward.1} parent=1 // pred_check_branch
      %125 = sbr.rel (0) target = $region41
    $region40: #{simple_net_forward.1} parent=1 // pred_region
      %s127 = ssub.s32 2048, 2048
      %128 = vsyncadd [#allocation17], %s127
      %s129 = sshll.u32 [#allocation16], 4
      %s130 = int_to_ptr.vmem [resolvable:$true] %s129
      %135 = dma.hbm_to_vmem [thread:$0]  %s9, 2048, %s130, [#allocation17], 128, 128, 8
    $region41: #{simple_net_forward.1} parent=1 // pred_fallthru
      _
    // Predicated region
    $region42: #{simple_net_forward.1} parent=1 // pred_check
      _
    $region43: #{simple_net_forward.1} parent=1 // pred_check_branch
      %137 = sbr.rel (0) target = $region45
    $region44: #{simple_net_forward.1} parent=1 // pred_region
      %s139 = ssub.s32 16, 16
      %140 = vsyncadd [#allocation17], %s139
      %s142 = sshll.u32 [#allocation18], 4
      %s143 = int_to_ptr.vmem [resolvable:$true] %s142
      %145 = dma.hbm_to_vmem [thread:$0]  %s10, 16, %s143, [#allocation17]
    $region45: #{simple_net_forward.1} parent=1 // pred_fallthru
      _
    // Predicated region
    $region46: #{simple_net_forward.1} parent=1 // pred_check
      _
    $region47: #{simple_net_forward.1} parent=1 // pred_check_branch
      %147 = sbr.rel (0) target = $region49
    $region48: #{simple_net_forward.1} parent=1 // pred_region
      %148 = dma.done [#allocation3], 2048
    $region49: #{simple_net_forward.1} parent=1 // pred_fallthru
      _
    // Predicated region
    $region50: #{simple_net_forward.1} parent=1 // pred_check
      _
    $region51: #{simple_net_forward.1} parent=1 // pred_check_branch
      %150 = sbr.rel (0) target = $region53
    $region52: #{simple_net_forward.1} parent=1 // pred_region
      %151 = dma.done [#allocation5], 25600
    $region53: #{simple_net_forward.1} parent=1 // pred_fallthru
      _
    // Predicated region
    $region54: #{simple_net_forward.1} parent=1 // pred_check
      _
    $region55: #{simple_net_forward.1} parent=1 // pred_check_branch
      %153 = sbr.rel (0) target = $region57
    $region56: #{simple_net_forward.1} parent=1 // pred_region
      %154 = dma.done [#allocation5], 80
    $region57: #{simple_net_forward.1} parent=1 // pred_fallthru
      _
    // Predicated region
    $region58: #{simple_net_forward.1} parent=1 // pred_check
      _
    $region59: #{simple_net_forward.1} parent=1 // pred_check_branch
      %156 = sbr.rel (0) target = $region61
    $region60: #{simple_net_forward.1} parent=1 // pred_region
      %157 = dma.done [#allocation8], 20480
    $region61: #{simple_net_forward.1} parent=1 // pred_fallthru
      _
    // Predicated region
    $region62: #{simple_net_forward.1} parent=1 // pred_check
      _
    $region63: #{simple_net_forward.1} parent=1 // pred_check_branch
      %159 = sbr.rel (0) target = $region65
    $region64: #{simple_net_forward.1} parent=1 // pred_region
      %160 = dma.done [#allocation8], 61440
    $region65: #{simple_net_forward.1} parent=1 // pred_fallthru
      _
    // Predicated region
    $region66: #{simple_net_forward.1} parent=1 // pred_check
      _
    $region67: #{simple_net_forward.1} parent=1 // pred_check_branch
      %162 = sbr.rel (0) target = $region69
    $region68: #{simple_net_forward.1} parent=1 // pred_region
      %163 = dma.done [#allocation11], 48
    $region69: #{simple_net_forward.1} parent=1 // pred_fallthru
      _
    // Predicated region
    $region70: #{simple_net_forward.1} parent=1 // pred_check
      _
    $region71: #{simple_net_forward.1} parent=1 // pred_check_branch
      %165 = sbr.rel (0) target = $region73
    $region72: #{simple_net_forward.1} parent=1 // pred_region
      %166 = dma.done [#allocation11], 6144
    $region73: #{simple_net_forward.1} parent=1 // pred_fallthru
      _
    // Predicated region
    $region74: #{simple_net_forward.1} parent=1 // pred_check
      _
    $region75: #{simple_net_forward.1} parent=1 // pred_check_branch
      %168 = sbr.rel (0) target = $region77
    $region76: #{simple_net_forward.1} parent=1 // pred_region
      %169 = dma.done [#allocation14], 10240
    $region77: #{simple_net_forward.1} parent=1 // pred_fallthru
      _
    // Predicated region
    $region78: #{simple_net_forward.1} parent=1 // pred_check
      _
    $region79: #{simple_net_forward.1} parent=1 // pred_check_branch
      %171 = sbr.rel (0) target = $region81
    $region80: #{simple_net_forward.1} parent=1 // pred_region
      %172 = dma.done [#allocation14], 16
    $region81: #{simple_net_forward.1} parent=1 // pred_fallthru
      _
    // Predicated region
    $region82: #{simple_net_forward.1} parent=1 // pred_check
      _
    $region83: #{simple_net_forward.1} parent=1 // pred_check_branch
      %174 = sbr.rel (0) target = $region85
    $region84: #{simple_net_forward.1} parent=1 // pred_region
      %175 = dma.done [#allocation17], 2048
    $region85: #{simple_net_forward.1} parent=1 // pred_fallthru
      _
    // Predicated region
    $region86: #{simple_net_forward.1} parent=1 // pred_check
      _
    $region87: #{simple_net_forward.1} parent=1 // pred_check_branch
      %177 = sbr.rel (0) target = $region89
    $region88: #{simple_net_forward.1} parent=1 // pred_region
      %178 = dma.done [#allocation17], 16
    $region89: #{simple_net_forward.1} parent=1 // pred_fallthru
      _
    %v179 = vld [vmem:[#allocation2] sm:$0xff]
    %v180 = vld [vmem:[#allocation2 + $0x8] sm:$0xff]
    %v181 = vld [vmem:[#allocation2 + $0x10] sm:$0xff]
    %v182 = vld [vmem:[#allocation2 + $0x18] sm:$0xff]
    %v183 = vld [vmem:[#allocation2 + $0x20] sm:$0xff]
    %v184 = vld [vmem:[#allocation2 + $0x28] sm:$0xff]
    %v185 = vld [vmem:[#allocation2 + $0x30] sm:$0xff]
    %v186 = vld [vmem:[#allocation2 + $0x38] sm:$0xff]
    %v187 = vld [vmem:[#allocation2 + $0x40] sm:$0xff]
    %v188 = vld [vmem:[#allocation2 + $0x48] sm:$0xff]
    %v189 = vld [vmem:[#allocation2 + $0x50] sm:$0xff]
    %v190 = vld [vmem:[#allocation2 + $0x58] sm:$0xff]
    %v191 = vld [vmem:[#allocation2 + $0x60] sm:$0xff]
    %v192 = vld [vmem:[#allocation2 + $0x68] sm:$0xff]
    %v193 = vld [vmem:[#allocation2 + $0x70] sm:$0xff]
    %v194 = vld [vmem:[#allocation2 + $0x78] sm:$0xff]
    %v195 = vld [vmem:[#allocation4] sm:$0xff]
    %v196 = vld [vmem:[#allocation4 + $0x8] sm:$0xff]
    %v197 = vld [vmem:[#allocation4 + $0x10] sm:$0xff]
    %v198 = vld [vmem:[#allocation4 + $0x18] sm:$0xff]
    %v199 = vld [vmem:[#allocation4 + $0x20] sm:$0xff]
    %v200 = vld [vmem:[#allocation4 + $0x28] sm:$0xff]
    %v201 = vld [vmem:[#allocation4 + $0x30] sm:$0xff]
    %v202 = vld [vmem:[#allocation4 + $0x38] sm:$0xff]
    %v203 = vld [vmem:[#allocation4 + $0x40] sm:$0xff]
    %v204 = vld [vmem:[#allocation4 + $0x48] sm:$0xff]
    %v205 = vld [vmem:[#allocation4 + $0x50] sm:$0xff]
    %v206 = vld [vmem:[#allocation4 + $0x58] sm:$0xff]
    %v207 = vld [vmem:[#allocation4 + $0x60] sm:$0xff]
    %v208 = vld [vmem:[#allocation4 + $0x68] sm:$0xff]
    %v209 = vld [vmem:[#allocation4 + $0x70] sm:$0xff]
    %v210 = vld [vmem:[#allocation4 + $0x78] sm:$0xff]
    %v211 = vld [vmem:[#allocation4 + $0x80] sm:$0xff]
    %v212 = vld [vmem:[#allocation4 + $0x88] sm:$0xff]
    %v213 = vld [vmem:[#allocation4 + $0x90] sm:$0xff]
    %v214 = vld [vmem:[#allocation4 + $0x98] sm:$0xff]
    %v215 = vld [vmem:[#allocation4 + $0xa0] sm:$0xff]
    %v216 = vld [vmem:[#allocation4 + $0xa8] sm:$0xff]
    %v217 = vld [vmem:[#allocation4 + $0xb0] sm:$0xff]
    %v218 = vld [vmem:[#allocation4 + $0xb8] sm:$0xff]
    %v219 = vld [vmem:[#allocation4 + $0xc0] sm:$0xff]
    %v220 = vld [vmem:[#allocation4 + $0xc8] sm:$0xff]
    %v221 = vld [vmem:[#allocation4 + $0xd0] sm:$0xff]
    %v222 = vld [vmem:[#allocation4 + $0xd8] sm:$0xff]
    %v223 = vld [vmem:[#allocation4 + $0xe0] sm:$0xff]
    %v224 = vld [vmem:[#allocation4 + $0xe8] sm:$0xff]
    %v225 = vld [vmem:[#allocation4 + $0xf0] sm:$0xff]
    %v226 = vld [vmem:[#allocation4 + $0xf8] sm:$0xff]
    %v227 = vld [vmem:[#allocation4 + $0x100] sm:$0xff]
    %v228 = vld [vmem:[#allocation4 + $0x108] sm:$0xff]
    %v229 = vld [vmem:[#allocation4 + $0x110] sm:$0xff]
    %v230 = vld [vmem:[#allocation4 + $0x118] sm:$0xff]
    %v231 = vld [vmem:[#allocation4 + $0x120] sm:$0xff]
    %v232 = vld [vmem:[#allocation4 + $0x128] sm:$0xff]
    %v233 = vld [vmem:[#allocation4 + $0x130] sm:$0xff]
    %v234 = vld [vmem:[#allocation4 + $0x138] sm:$0xff]
    %vm251 = vcmask 1046528
    %v252 = vrot.slane %v179, 1
    %v253 = vrot.slane %v180, 1
    %v254 = vsel %vm251, %v252, %v253
    %v255 = vrot.slane %v181, 1
    %v256 = vsel %vm251, %v253, %v255
    %v257 = vrot.slane %v182, 1
    %v258 = vsel %vm251, %v255, %v257
    %v259 = vrot.slane %v183, 1
    %v260 = vsel %vm251, %v257, %v259
    %v261 = vrot.slane %v184, 1
    %v262 = vsel %vm251, %v259, %v261
    %v263 = vrot.slane %v185, 1
    %v264 = vsel %vm251, %v261, %v263
    %v265 = vrot.slane %v186, 1
    %v266 = vsel %vm251, %v263, %v265
    %v267 = vrot.slane %v187, 1
    %v268 = vsel %vm251, %v265, %v267
    %v269 = vrot.slane %v188, 1
    %v270 = vsel %vm251, %v267, %v269
    %v271 = vrot.slane %v189, 1
    %v272 = vsel %vm251, %v269, %v271
    %v273 = vrot.slane %v190, 1
    %v274 = vsel %vm251, %v271, %v273
    %v275 = vrot.slane %v191, 1
    %v276 = vsel %vm251, %v273, %v275
    %v277 = vrot.slane %v192, 1
    %v278 = vsel %vm251, %v275, %v277
    %v279 = vrot.slane %v193, 1
    %v280 = vsel %vm251, %v277, %v279
    %v281 = vrot.slane %v194, 1
    %v282 = vsel %vm251, %v279, %v281
    %v285 = vsel %vm251, %v281, %v252
    %s286 = scalar_lea.vmem [#allocation4], 320
    %v287 = vld [vmem:[%s286] sm:$0xff]
    %v288 = vld [vmem:[%s286 + $0x8] sm:$0xff]
    %v289 = vld [vmem:[%s286 + $0x10] sm:$0xff]
    %v290 = vld [vmem:[%s286 + $0x18] sm:$0xff]
    %v291 = vld [vmem:[%s286 + $0x20] sm:$0xff]
    %v292 = vld [vmem:[%s286 + $0x28] sm:$0xff]
    %v293 = vld [vmem:[%s286 + $0x30] sm:$0xff]
    %v294 = vld [vmem:[%s286 + $0x38] sm:$0xff]
    %v295 = vld [vmem:[%s286 + $0x40] sm:$0xff]
    %v296 = vld [vmem:[%s286 + $0x48] sm:$0xff]
    %v297 = vld [vmem:[%s286 + $0x50] sm:$0xff]
    %v298 = vld [vmem:[%s286 + $0x58] sm:$0xff]
    %v299 = vld [vmem:[%s286 + $0x60] sm:$0xff]
    %v300 = vld [vmem:[%s286 + $0x68] sm:$0xff]
    %v301 = vld [vmem:[%s286 + $0x70] sm:$0xff]
    %v302 = vld [vmem:[%s286 + $0x78] sm:$0xff]
    %v303 = vld [vmem:[%s286 + $0x80] sm:$0xff]
    %v304 = vld [vmem:[%s286 + $0x88] sm:$0xff]
    %v305 = vld [vmem:[%s286 + $0x90] sm:$0xff]
    %v306 = vld [vmem:[%s286 + $0x98] sm:$0xff]
    %v307 = vld [vmem:[%s286 + $0xa0] sm:$0xff]
    %v308 = vld [vmem:[%s286 + $0xa8] sm:$0xff]
    %v309 = vld [vmem:[%s286 + $0xb0] sm:$0xff]
    %v310 = vld [vmem:[%s286 + $0xb8] sm:$0xff]
    %v311 = vld [vmem:[%s286 + $0xc0] sm:$0xff]
    %v312 = vld [vmem:[%s286 + $0xc8] sm:$0xff]
    %v313 = vld [vmem:[%s286 + $0xd0] sm:$0xff]
    %v314 = vld [vmem:[%s286 + $0xd8] sm:$0xff]
    %v315 = vld [vmem:[%s286 + $0xe0] sm:$0xff]
    %v316 = vld [vmem:[%s286 + $0xe8] sm:$0xff]
    %v317 = vld [vmem:[%s286 + $0xf0] sm:$0xff]
    %v318 = vld [vmem:[%s286 + $0xf8] sm:$0xff]
    %v319 = vld [vmem:[%s286 + $0x100] sm:$0xff]
    %v320 = vld [vmem:[%s286 + $0x108] sm:$0xff]
    %v321 = vld [vmem:[%s286 + $0x110] sm:$0xff]
    %v322 = vld [vmem:[%s286 + $0x118] sm:$0xff]
    %v323 = vld [vmem:[%s286 + $0x120] sm:$0xff]
    %v324 = vld [vmem:[%s286 + $0x128] sm:$0xff]
    %v325 = vld [vmem:[%s286 + $0x130] sm:$0xff]
    %v326 = vld [vmem:[%s286 + $0x138] sm:$0xff]
    %vm327 = vcmask 523264
    %v328 = vsel %vm327, %v254, 0
    %v330 = vsel %vm327, %v256, 0
    %v332 = vsel %vm327, %v258, 0
    %v334 = vsel %vm327, %v260, 0
    %v336 = vsel %vm327, %v262, 0
    %v338 = vsel %vm327, %v264, 0
    %v340 = vsel %vm327, %v266, 0
    %v342 = vsel %vm327, %v268, 0
    %v344 = vsel %vm327, %v270, 0
    %v346 = vsel %vm327, %v272, 0
    %v348 = vsel %vm327, %v274, 0
    %v350 = vsel %vm327, %v276, 0
    %v352 = vsel %vm327, %v278, 0
    %v354 = vsel %vm327, %v280, 0
    %v356 = vsel %vm327, %v282, 0
    %v359 = vsel %vm327, %v285, 0
    %361 = vmatprep.subr.mxu0 %v288
    %362 = vmatpush1.msra.mxu0 %v287
    %363 = vmatprep.subr.mxu0 %v293
    %364 = vmatpush1.msra.mxu0 %v292
    %365 = vmatprep.subr.mxu0 %v298
    %366 = vmatpush1.msra.mxu0 %v297
    %367 = vmatprep.subr.mxu0 %v303
    %368 = vmatpush1.msra.mxu0 %v302
    %369 = vmatprep.subr.mxu0 %v308
    %370 = vmatpush1.msra.mxu0 %v307
    %371 = vmatprep.subr.mxu0 %v313
    %372 = vmatpush1.msra.mxu0 %v312
    %373 = vmatprep.subr.mxu0 %v318
    %374 = vmatpush1.msra.mxu0 %v317
    %375 = vmatprep.subr.mxu0 %v323
    %376 = vmatpush1.msra.mxu0 %v322
    %377 = vmatprep.subr.mxu0 0.0
    %378 = vmatpush1.msra.mxu0 0.0
    %379 = vmatprep.subr.mxu0 0.0
    %380 = vmatpush1.msra.mxu0 0.0
    %381 = vmatprep.subr.mxu0 0.0
    %382 = vmatpush1.msra.mxu0 0.0
    %383 = vmatprep.subr.mxu0 0.0
    %384 = vmatpush1.msra.mxu0 0.0
    %385 = vmatprep.subr.mxu0 0.0
    %386 = vmatpush1.msra.mxu0 0.0
    %387 = vmatprep.subr.mxu0 0.0
    %388 = vmatpush1.msra.mxu0 0.0
    %389 = vmatprep.subr.mxu0 0.0
    %390 = vmatpush1.msra.mxu0 0.0
    %391 = vmatprep.subr.mxu0 0.0
    %392 = vmatpush1.msra.mxu0 0.0
    %393 = vmatprep.subr.mxu0 0.0
    %394 = vmatpush1.msra.mxu0 0.0
    %395 = vmatprep.subr.mxu0 0.0
    %396 = vmatpush1.msra.mxu0 0.0
    %397 = vmatprep.subr.mxu0 0.0
    %398 = vmatpush1.msra.mxu0 0.0
    %399 = vmatprep.subr.mxu0 0.0
    %400 = vmatpush1.msra.mxu0 0.0
    %401 = vmatprep.subr.mxu0 0.0
    %402 = vmatpush1.msra.mxu0 0.0
    %403 = vmatprep.subr.mxu0 0.0
    %404 = vmatpush1.msra.mxu0 0.0
    %405 = vmatprep.subr.mxu0 0.0
    %406 = vmatpush1.msra.mxu0 0.0
    %407 = vmatprep.subr.mxu0 0.0
    %408 = vmatpush1.msra.mxu0 0.0
    %409 = vmatprep.subr.mxu0 0.0
    %410 = vmatpush1.msra.mxu0 0.0
    %411 = vmatprep.subr.mxu0 0.0
    %412 = vmatpush1.msra.mxu0 0.0
    %413 = vmatprep.subr.mxu0 0.0
    %414 = vmatpush1.msra.mxu0 0.0
    %415 = vmatprep.subr.mxu0 0.0
    %416 = vmatpush1.msra.mxu0 0.0
    %417 = vmatprep.subr.mxu0 0.0
    %418 = vmatpush1.msra.mxu0 0.0
    %419 = vmatprep.subr.mxu0 0.0
    %420 = vmatpush1.msra.mxu0 0.0
    %421 = vmatprep.subr.mxu0 0.0
    %422 = vmatpush1.msra.mxu0 0.0
    %423 = vmatprep.subr.mxu0 0.0
    %424 = vmatpush1.msra.mxu0 0.0
    %425 = vmatprep.mubr.f32.mxu0 0.0
    %426 = vmatmul.mubr.f32.gmra.mrb[0].mxu0 %v328
    %v427 = vpop.f32.mrb[0].mxu0
    %v428 = vadd.f32 0.0, %v427
    %v429 = vpop.f32.mrb[0].mxu0
    %v430 = vadd.f32 0.0, %v429
    %431 = vmatprep.mubr.f32.mxu0 0.0
    %432 = vmatmul.mubr.f32.gmra.mrb[0].mxu0 %v330
    %v433 = vpop.f32.mrb[0].mxu0
    %v434 = vadd.f32 0.0, %v433
    %v435 = vpop.f32.mrb[0].mxu0
    %v436 = vadd.f32 0.0, %v435
    %437 = vmatprep.mubr.f32.mxu0 0.0
    %438 = vmatmul.mubr.f32.gmra.mrb[0].mxu0 %v332
    %v439 = vpop.f32.mrb[0].mxu0
    %v440 = vadd.f32 0.0, %v439
    %v441 = vpop.f32.mrb[0].mxu0
    %v442 = vadd.f32 0.0, %v441
    %443 = vmatprep.mubr.f32.mxu0 0.0
    %444 = vmatmul.mubr.f32.gmra.mrb[0].mxu0 %v334
    %v445 = vpop.f32.mrb[0].mxu0
    %v446 = vadd.f32 0.0, %v445
    %v447 = vpop.f32.mrb[0].mxu0
    %v448 = vadd.f32 0.0, %v447
    %449 = vmatprep.mubr.f32.mxu0 0.0
    %450 = vmatmul.mubr.f32.gmra.mrb[0].mxu0 %v336
    %v451 = vpop.f32.mrb[0].mxu0
    %v452 = vadd.f32 0.0, %v451
    %v453 = vpop.f32.mrb[0].mxu0
    %v454 = vadd.f32 0.0, %v453
    %455 = vmatprep.mubr.f32.mxu0 0.0
    %456 = vmatmul.mubr.f32.gmra.mrb[0].mxu0 %v338
    %v457 = vpop.f32.mrb[0].mxu0
    %v458 = vadd.f32 0.0, %v457
    %v459 = vpop.f32.mrb[0].mxu0
    %v460 = vadd.f32 0.0, %v459
    %461 = vmatprep.mubr.f32.mxu0 0.0
    %462 = vmatmul.mubr.f32.gmra.mrb[0].mxu0 %v340
    %v463 = vpop.f32.mrb[0].mxu0
    %v464 = vadd.f32 0.0, %v463
    %v465 = vpop.f32.mrb[0].mxu0
    %v466 = vadd.f32 0.0, %v465
    %467 = vmatprep.mubr.f32.mxu0 0.0
    %468 = vmatmul.mubr.f32.gmra.mrb[0].mxu0 %v342
    %v469 = vpop.f32.mrb[0].mxu0
    %v470 = vadd.f32 0.0, %v469
    %v471 = vpop.f32.mrb[0].mxu0
    %v472 = vadd.f32 0.0, %v471
    %473 = vmatprep.mubr.f32.mxu0 0.0
    %474 = vmatmul.mubr.f32.gmra.mrb[0].mxu0 %v344
    %v475 = vpop.f32.mrb[0].mxu0
    %v476 = vadd.f32 0.0, %v475
    %v477 = vpop.f32.mrb[0].mxu0
    %v478 = vadd.f32 0.0, %v477
    %479 = vmatprep.mubr.f32.mxu0 0.0
    %480 = vmatmul.mubr.f32.gmra.mrb[0].mxu0 %v346
    %v481 = vpop.f32.mrb[0].mxu0
    %v482 = vadd.f32 0.0, %v481
    %v483 = vpop.f32.mrb[0].mxu0
    %v484 = vadd.f32 0.0, %v483
    %485 = vmatprep.mubr.f32.mxu0 0.0
    %486 = vmatmul.mubr.f32.gmra.mrb[0].mxu0 %v348
    %v487 = vpop.f32.mrb[0].mxu0
    %v488 = vadd.f32 0.0, %v487
    %v489 = vpop.f32.mrb[0].mxu0
    %v490 = vadd.f32 0.0, %v489
    %491 = vmatprep.mubr.f32.mxu0 0.0
    %492 = vmatmul.mubr.f32.gmra.mrb[0].mxu0 %v350
    %v493 = vpop.f32.mrb[0].mxu0
    %v494 = vadd.f32 0.0, %v493
    %v495 = vpop.f32.mrb[0].mxu0
    %v496 = vadd.f32 0.0, %v495
    %497 = vmatprep.mubr.f32.mxu0 0.0
    %498 = vmatmul.mubr.f32.gmra.mrb[0].mxu0 %v352
    %v499 = vpop.f32.mrb[0].mxu0
    %v500 = vadd.f32 0.0, %v499
    %v501 = vpop.f32.mrb[0].mxu0
    %v502 = vadd.f32 0.0, %v501
    %503 = vmatprep.mubr.f32.mxu0 0.0
    %504 = vmatmul.mubr.f32.gmra.mrb[0].mxu0 %v354
    %v505 = vpop.f32.mrb[0].mxu0
    %v506 = vadd.f32 0.0, %v505
    %v507 = vpop.f32.mrb[0].mxu0
    %v508 = vadd.f32 0.0, %v507
    %509 = vmatprep.mubr.f32.mxu0 0.0
    %510 = vmatmul.mubr.f32.gmra.mrb[0].mxu0 %v356
    %v511 = vpop.f32.mrb[0].mxu0
    %v512 = vadd.f32 0.0, %v511
    %v513 = vpop.f32.mrb[0].mxu0
    %v514 = vadd.f32 0.0, %v513
    %515 = vmatprep.mubr.f32.mxu0 0.0
    %516 = vmatmul.mubr.f32.gmra.mrb[0].mxu0 %v359
    %v517 = vpop.f32.mrb[0].mxu0
    %v518 = vadd.f32 0.0, %v517
    %v519 = vpop.f32.mrb[0].mxu0
    %v520 = vadd.f32 0.0, %v519
    %521 = vdwg.mxu0
    %522 = vmatprep.subr.mxu0 %v290
    %523 = vmatpush1.msra.mxu0 %v289
    %524 = vmatprep.subr.mxu0 %v295
    %525 = vmatpush1.msra.mxu0 %v294
    %526 = vmatprep.subr.mxu0 %v300
    %527 = vmatpush1.msra.mxu0 %v299
    %528 = vmatprep.subr.mxu0 %v305
    %529 = vmatpush1.msra.mxu0 %v304
    %530 = vmatprep.subr.mxu0 %v310
    %531 = vmatpush1.msra.mxu0 %v309
    %532 = vmatprep.subr.mxu0 %v315
    %533 = vmatpush1.msra.mxu0 %v314
    %534 = vmatprep.subr.mxu0 %v320
    %535 = vmatpush1.msra.mxu0 %v319
    %536 = vmatprep.subr.mxu0 %v325
    %537 = vmatpush1.msra.mxu0 %v324
    %538 = vmatprep.subr.mxu0 0.0
    %539 = vmatpush1.msra.mxu0 0.0
    %540 = vmatprep.subr.mxu0 0.0
    %541 = vmatpush1.msra.mxu0 0.0
    %542 = vmatprep.subr.mxu0 0.0
    %543 = vmatpush1.msra.mxu0 0.0
    %544 = vmatprep.subr.mxu0 0.0
    %545 = vmatpush1.msra.mxu0 0.0
    %546 = vmatprep.subr.mxu0 0.0
    %547 = vmatpush1.msra.mxu0 0.0
    %548 = vmatprep.subr.mxu0 0.0
    %549 = vmatpush1.msra.mxu0 0.0
    %550 = vmatprep.subr.mxu0 0.0
    %551 = vmatpush1.msra.mxu0 0.0
    %552 = vmatprep.subr.mxu0 0.0
    %553 = vmatpush1.msra.mxu0 0.0
    %554 = vmatprep.subr.mxu0 0.0
    %555 = vmatpush1.msra.mxu0 0.0
    %556 = vmatprep.subr.mxu0 0.0
    %557 = vmatpush1.msra.mxu0 0.0
    %558 = vmatprep.subr.mxu0 0.0
    %559 = vmatpush1.msra.mxu0 0.0
    %560 = vmatprep.subr.mxu0 0.0
    %561 = vmatpush1.msra.mxu0 0.0
    %562 = vmatprep.subr.mxu0 0.0
    %563 = vmatpush1.msra.mxu0 0.0
    %564 = vmatprep.subr.mxu0 0.0
    %565 = vmatpush1.msra.mxu0 0.0
    %566 = vmatprep.subr.mxu0 0.0
    %567 = vmatpush1.msra.mxu0 0.0
    %568 = vmatprep.subr.mxu0 0.0
    %569 = vmatpush1.msra.mxu0 0.0
    %570 = vmatprep.subr.mxu0 0.0
    %571 = vmatpush1.msra.mxu0 0.0
    %572 = vmatprep.subr.mxu0 0.0
    %573 = vmatpush1.msra.mxu0 0.0
    %574 = vmatprep.subr.mxu0 0.0
    %575 = vmatpush1.msra.mxu0 0.0
    %576 = vmatprep.subr.mxu0 0.0
    %577 = vmatpush1.msra.mxu0 0.0
    %578 = vmatprep.subr.mxu0 0.0
    %579 = vmatpush1.msra.mxu0 0.0
    %580 = vmatprep.subr.mxu0 0.0
    %581 = vmatpush1.msra.mxu0 0.0
    %582 = vmatprep.subr.mxu0 0.0
    %583 = vmatpush1.msra.mxu0 0.0
    %584 = vmatprep.subr.mxu0 0.0
    %585 = vmatpush1.msra.mxu0 0.0
    %586 = vmatprep.mubr.f32.mxu0 0.0
    %587 = vmatmul.mubr.f32.gmra.mrb[0].mxu0 %v328
    %v588 = vpop.f32.mrb[0].mxu0
    %v589 = vadd.f32 0.0, %v588
    %v590 = vpop.f32.mrb[0].mxu0
    %v591 = vadd.f32 0.0, %v590
    %592 = vmatprep.mubr.f32.mxu0 0.0
    %593 = vmatmul.mubr.f32.gmra.mrb[0].mxu0 %v330
    %v594 = vpop.f32.mrb[0].mxu0
    %v595 = vadd.f32 0.0, %v594
    %v596 = vpop.f32.mrb[0].mxu0
    %v597 = vadd.f32 0.0, %v596
    %598 = vmatprep.mubr.f32.mxu0 0.0
    %599 = vmatmul.mubr.f32.gmra.mrb[0].mxu0 %v332
    %v600 = vpop.f32.mrb[0].mxu0
    %v601 = vadd.f32 0.0, %v600
    %v602 = vpop.f32.mrb[0].mxu0
    %v603 = vadd.f32 0.0, %v602
    %604 = vmatprep.mubr.f32.mxu0 0.0
    %605 = vmatmul.mubr.f32.gmra.mrb[0].mxu0 %v334
    %v606 = vpop.f32.mrb[0].mxu0
    %v607 = vadd.f32 0.0, %v606
    %v608 = vpop.f32.mrb[0].mxu0
    %v609 = vadd.f32 0.0, %v608
    %610 = vmatprep.mubr.f32.mxu0 0.0
    %611 = vmatmul.mubr.f32.gmra.mrb[0].mxu0 %v336
    %v612 = vpop.f32.mrb[0].mxu0
    %v613 = vadd.f32 0.0, %v612
    %v614 = vpop.f32.mrb[0].mxu0
    %v615 = vadd.f32 0.0, %v614
    %616 = vmatprep.mubr.f32.mxu0 0.0
    %617 = vmatmul.mubr.f32.gmra.mrb[0].mxu0 %v338
    %v618 = vpop.f32.mrb[0].mxu0
    %v619 = vadd.f32 0.0, %v618
    %v620 = vpop.f32.mrb[0].mxu0
    %v621 = vadd.f32 0.0, %v620
    %622 = vmatprep.mubr.f32.mxu0 0.0
    %623 = vmatmul.mubr.f32.gmra.mrb[0].mxu0 %v340
    %v624 = vpop.f32.mrb[0].mxu0
    %v625 = vadd.f32 0.0, %v624
    %v626 = vpop.f32.mrb[0].mxu0
    %v627 = vadd.f32 0.0, %v626
    %628 = vmatprep.mubr.f32.mxu0 0.0
    %629 = vmatmul.mubr.f32.gmra.mrb[0].mxu0 %v342
    %v630 = vpop.f32.mrb[0].mxu0
    %v631 = vadd.f32 0.0, %v630
    %v632 = vpop.f32.mrb[0].mxu0
    %v633 = vadd.f32 0.0, %v632
    %634 = vmatprep.mubr.f32.mxu0 0.0
    %635 = vmatmul.mubr.f32.gmra.mrb[0].mxu0 %v344
    %v636 = vpop.f32.mrb[0].mxu0
    %v637 = vadd.f32 0.0, %v636
    %v638 = vpop.f32.mrb[0].mxu0
    %v639 = vadd.f32 0.0, %v638
    %640 = vmatprep.mubr.f32.mxu0 0.0
    %641 = vmatmul.mubr.f32.gmra.mrb[0].mxu0 %v346
    %v642 = vpop.f32.mrb[0].mxu0
    %v643 = vadd.f32 0.0, %v642
    %v644 = vpop.f32.mrb[0].mxu0
    %v645 = vadd.f32 0.0, %v644
    %646 = vmatprep.mubr.f32.mxu0 0.0
    %647 = vmatmul.mubr.f32.gmra.mrb[0].mxu0 %v348
    %v648 = vpop.f32.mrb[0].mxu0
    %v649 = vadd.f32 0.0, %v648
    %v650 = vpop.f32.mrb[0].mxu0
    %v651 = vadd.f32 0.0, %v650
    %652 = vmatprep.mubr.f32.mxu0 0.0
    %653 = vmatmul.mubr.f32.gmra.mrb[0].mxu0 %v350
    %v654 = vpop.f32.mrb[0].mxu0
    %v655 = vadd.f32 0.0, %v654
    %v656 = vpop.f32.mrb[0].mxu0
    %v657 = vadd.f32 0.0, %v656
    %658 = vmatprep.mubr.f32.mxu0 0.0
    %659 = vmatmul.mubr.f32.gmra.mrb[0].mxu0 %v352
    %v660 = vpop.f32.mrb[0].mxu0
    %v661 = vadd.f32 0.0, %v660
    %v662 = vpop.f32.mrb[0].mxu0
    %v663 = vadd.f32 0.0, %v662
    %664 = vmatprep.mubr.f32.mxu0 0.0
    %665 = vmatmul.mubr.f32.gmra.mrb[0].mxu0 %v354
    %v666 = vpop.f32.mrb[0].mxu0
    %v667 = vadd.f32 0.0, %v666
    %v668 = vpop.f32.mrb[0].mxu0
    %v669 = vadd.f32 0.0, %v668
    %670 = vmatprep.mubr.f32.mxu0 0.0
    %671 = vmatmul.mubr.f32.gmra.mrb[0].mxu0 %v356
    %v672 = vpop.f32.mrb[0].mxu0
    %v673 = vadd.f32 0.0, %v672
    %v674 = vpop.f32.mrb[0].mxu0
    %v675 = vadd.f32 0.0, %v674
    %676 = vmatprep.mubr.f32.mxu0 0.0
    %677 = vmatmul.mubr.f32.gmra.mrb[0].mxu0 %v359
    %v678 = vpop.f32.mrb[0].mxu0
    %v679 = vadd.f32 0.0, %v678
    %v680 = vpop.f32.mrb[0].mxu0
    %v681 = vadd.f32 0.0, %v680
    %682 = vdwg.mxu0
    %683 = vmatprep.subr.mxu0 0.0
    %684 = vmatpush1.msra.mxu0 %v291
    %685 = vmatprep.subr.mxu0 0.0
    %686 = vmatpush1.msra.mxu0 %v296
    %687 = vmatprep.subr.mxu0 0.0
    %688 = vmatpush1.msra.mxu0 %v301
    %689 = vmatprep.subr.mxu0 0.0
    %690 = vmatpush1.msra.mxu0 %v306
    %691 = vmatprep.subr.mxu0 0.0
    %692 = vmatpush1.msra.mxu0 %v311
    %693 = vmatprep.subr.mxu0 0.0
    %694 = vmatpush1.msra.mxu0 %v316
    %695 = vmatprep.subr.mxu0 0.0
    %696 = vmatpush1.msra.mxu0 %v321
    %697 = vmatprep.subr.mxu0 0.0
    %698 = vmatpush1.msra.mxu0 %v326
    %699 = vmatprep.subr.mxu0 0.0
    %700 = vmatpush1.msra.mxu0 0.0
    %701 = vmatprep.subr.mxu0 0.0
    %702 = vmatpush1.msra.mxu0 0.0
    %703 = vmatprep.subr.mxu0 0.0
    %704 = vmatpush1.msra.mxu0 0.0
    %705 = vmatprep.subr.mxu0 0.0
    %706 = vmatpush1.msra.mxu0 0.0
    %707 = vmatprep.subr.mxu0 0.0
    %708 = vmatpush1.msra.mxu0 0.0
    %709 = vmatprep.subr.mxu0 0.0
    %710 = vmatpush1.msra.mxu0 0.0
    %711 = vmatprep.subr.mxu0 0.0
    %712 = vmatpush1.msra.mxu0 0.0
    %713 = vmatprep.subr.mxu0 0.0
    %714 = vmatpush1.msra.mxu0 0.0
    %715 = vmatprep.subr.mxu0 0.0
    %716 = vmatpush1.msra.mxu0 0.0
    %717 = vmatprep.subr.mxu0 0.0
    %718 = vmatpush1.msra.mxu0 0.0
    %719 = vmatprep.subr.mxu0 0.0
    %720 = vmatpush1.msra.mxu0 0.0
    %721 = vmatprep.subr.mxu0 0.0
    %722 = vmatpush1.msra.mxu0 0.0
    %723 = vmatprep.subr.mxu0 0.0
    %724 = vmatpush1.msra.mxu0 0.0
    %725 = vmatprep.subr.mxu0 0.0
    %726 = vmatpush1.msra.mxu0 0.0
    %727 = vmatprep.subr.mxu0 0.0
    %728 = vmatpush1.msra.mxu0 0.0
    %729 = vmatprep.subr.mxu0 0.0
    %730 = vmatpush1.msra.mxu0 0.0
    %731 = vmatprep.subr.mxu0 0.0
    %732 = vmatpush1.msra.mxu0 0.0
    %733 = vmatprep.subr.mxu0 0.0
    %734 = vmatpush1.msra.mxu0 0.0
    %735 = vmatprep.subr.mxu0 0.0
    %736 = vmatpush1.msra.mxu0 0.0
    %737 = vmatprep.subr.mxu0 0.0
    %738 = vmatpush1.msra.mxu0 0.0
    %739 = vmatprep.subr.mxu0 0.0
    %740 = vmatpush1.msra.mxu0 0.0
    %741 = vmatprep.subr.mxu0 0.0
    %742 = vmatpush1.msra.mxu0 0.0
    %743 = vmatprep.subr.mxu0 0.0
    %744 = vmatpush1.msra.mxu0 0.0
    %745 = vmatprep.subr.mxu0 0.0
    %746 = vmatpush1.msra.mxu0 0.0
    %747 = vmatprep.mubr.f32.mxu0 0.0
    %748 = vmatmul.mubr.f32.gmra.mrb[0].mxu0 %v328
    %v749 = vpop.f32.mrb[0].mxu0
    %v750 = vadd.f32 0.0, %v749
    %v751 = vpop.f32.mrb[0].mxu0
    %752 = vmatprep.mubr.f32.mxu0 0.0
    %753 = vmatmul.mubr.f32.gmra.mrb[0].mxu0 %v330
    %v754 = vpop.f32.mrb[0].mxu0
    %v755 = vadd.f32 0.0, %v754
    %v756 = vpop.f32.mrb[0].mxu0
    %757 = vmatprep.mubr.f32.mxu0 0.0
    %758 = vmatmul.mubr.f32.gmra.mrb[0].mxu0 %v332
    %v759 = vpop.f32.mrb[0].mxu0
    %v760 = vadd.f32 0.0, %v759
    %v761 = vpop.f32.mrb[0].mxu0
    %762 = vmatprep.mubr.f32.mxu0 0.0
    %763 = vmatmul.mubr.f32.gmra.mrb[0].mxu0 %v334
    %v764 = vpop.f32.mrb[0].mxu0
    %v765 = vadd.f32 0.0, %v764
    %v766 = vpop.f32.mrb[0].mxu0
    %767 = vmatprep.mubr.f32.mxu0 0.0
    %768 = vmatmul.mubr.f32.gmra.mrb[0].mxu0 %v336
    %v769 = vpop.f32.mrb[0].mxu0
    %v770 = vadd.f32 0.0, %v769
    %v771 = vpop.f32.mrb[0].mxu0
    %772 = vmatprep.mubr.f32.mxu0 0.0
    %773 = vmatmul.mubr.f32.gmra.mrb[0].mxu0 %v338
    %v774 = vpop.f32.mrb[0].mxu0
    %v775 = vadd.f32 0.0, %v774
    %v776 = vpop.f32.mrb[0].mxu0
    %777 = vmatprep.mubr.f32.mxu0 0.0
    %778 = vmatmul.mubr.f32.gmra.mrb[0].mxu0 %v340
    %v779 = vpop.f32.mrb[0].mxu0
    %v780 = vadd.f32 0.0, %v779
    %v781 = vpop.f32.mrb[0].mxu0
    %782 = vmatprep.mubr.f32.mxu0 0.0
    %783 = vmatmul.mubr.f32.gmra.mrb[0].mxu0 %v342
    %v784 = vpop.f32.mrb[0].mxu0
    %v785 = vadd.f32 0.0, %v784
    %v786 = vpop.f32.mrb[0].mxu0
    %787 = vmatprep.mubr.f32.mxu0 0.0
    %788 = vmatmul.mubr.f32.gmra.mrb[0].mxu0 %v344
    %v789 = vpop.f32.mrb[0].mxu0
    %v790 = vadd.f32 0.0, %v789
    %v791 = vpop.f32.mrb[0].mxu0
    %792 = vmatprep.mubr.f32.mxu0 0.0
    %793 = vmatmul.mubr.f32.gmra.mrb[0].mxu0 %v346
    %v794 = vpop.f32.mrb[0].mxu0
    %v795 = vadd.f32 0.0, %v794
    %v796 = vpop.f32.mrb[0].mxu0
    %797 = vmatprep.mubr.f32.mxu0 0.0
    %798 = vmatmul.mubr.f32.gmra.mrb[0].mxu0 %v348
    %v799 = vpop.f32.mrb[0].mxu0
    %v800 = vadd.f32 0.0, %v799
    %v801 = vpop.f32.mrb[0].mxu0
    %802 = vmatprep.mubr.f32.mxu0 0.0
    %803 = vmatmul.mubr.f32.gmra.mrb[0].mxu0 %v350
    %v804 = vpop.f32.mrb[0].mxu0
    %v805 = vadd.f32 0.0, %v804
    %v806 = vpop.f32.mrb[0].mxu0
    %807 = vmatprep.mubr.f32.mxu0 0.0
    %808 = vmatmul.mubr.f32.gmra.mrb[0].mxu0 %v352
    %v809 = vpop.f32.mrb[0].mxu0
    %v810 = vadd.f32 0.0, %v809
    %v811 = vpop.f32.mrb[0].mxu0
    %812 = vmatprep.mubr.f32.mxu0 0.0
    %813 = vmatmul.mubr.f32.gmra.mrb[0].mxu0 %v354
    %v814 = vpop.f32.mrb[0].mxu0
    %v815 = vadd.f32 0.0, %v814
    %v816 = vpop.f32.mrb[0].mxu0
    %817 = vmatprep.mubr.f32.mxu0 0.0
    %818 = vmatmul.mubr.f32.gmra.mrb[0].mxu0 %v356
    %v819 = vpop.f32.mrb[0].mxu0
    %v820 = vadd.f32 0.0, %v819
    %v821 = vpop.f32.mrb[0].mxu0
    %822 = vmatprep.mubr.f32.mxu0 0.0
    %823 = vmatmul.mubr.f32.gmra.mrb[0].mxu0 %v359
    %v824 = vpop.f32.mrb[0].mxu0
    %v825 = vadd.f32 0.0, %v824
    %v826 = vpop.f32.mrb[0].mxu0
    %827 = vdwg.mxu0
    %v828 = vsel %vm327, %v179, 0
    %v830 = vsel %vm327, %v180, 0
    %v832 = vsel %vm327, %v181, 0
    %v834 = vsel %vm327, %v182, 0
    %v836 = vsel %vm327, %v183, 0
    %v838 = vsel %vm327, %v184, 0
    %v840 = vsel %vm327, %v185, 0
    %v842 = vsel %vm327, %v186, 0
    %v844 = vsel %vm327, %v187, 0
    %v846 = vsel %vm327, %v188, 0
    %v848 = vsel %vm327, %v189, 0
    %v850 = vsel %vm327, %v190, 0
    %v852 = vsel %vm327, %v191, 0
    %v854 = vsel %vm327, %v192, 0
    %v856 = vsel %vm327, %v193, 0
    %v858 = vsel %vm327, %v194, 0
    %860 = vmatprep.subr.mxu0 %v196
    %861 = vmatpush1.msra.mxu0 %v195
    %862 = vmatprep.subr.mxu0 %v201
    %863 = vmatpush1.msra.mxu0 %v200
    %864 = vmatprep.subr.mxu0 %v206
    %865 = vmatpush1.msra.mxu0 %v205
    %866 = vmatprep.subr.mxu0 %v211
    %867 = vmatpush1.msra.mxu0 %v210
    %868 = vmatprep.subr.mxu0 %v216
    %869 = vmatpush1.msra.mxu0 %v215
    %870 = vmatprep.subr.mxu0 %v221
    %871 = vmatpush1.msra.mxu0 %v220
    %872 = vmatprep.subr.mxu0 %v226
    %873 = vmatpush1.msra.mxu0 %v225
    %874 = vmatprep.subr.mxu0 %v231
    %875 = vmatpush1.msra.mxu0 %v230
    %876 = vmatprep.subr.mxu0 0.0
    %877 = vmatpush1.msra.mxu0 0.0
    %878 = vmatprep.subr.mxu0 0.0
    %879 = vmatpush1.msra.mxu0 0.0
    %880 = vmatprep.subr.mxu0 0.0
    %881 = vmatpush1.msra.mxu0 0.0
    %882 = vmatprep.subr.mxu0 0.0
    %883 = vmatpush1.msra.mxu0 0.0
    %884 = vmatprep.subr.mxu0 0.0
    %885 = vmatpush1.msra.mxu0 0.0
    %886 = vmatprep.subr.mxu0 0.0
    %887 = vmatpush1.msra.mxu0 0.0
    %888 = vmatprep.subr.mxu0 0.0
    %889 = vmatpush1.msra.mxu0 0.0
    %890 = vmatprep.subr.mxu0 0.0
    %891 = vmatpush1.msra.mxu0 0.0
    %892 = vmatprep.subr.mxu0 0.0
    %893 = vmatpush1.msra.mxu0 0.0
    %894 = vmatprep.subr.mxu0 0.0
    %895 = vmatpush1.msra.mxu0 0.0
    %896 = vmatprep.subr.mxu0 0.0
    %897 = vmatpush1.msra.mxu0 0.0
    %898 = vmatprep.subr.mxu0 0.0
    %899 = vmatpush1.msra.mxu0 0.0
    %900 = vmatprep.subr.mxu0 0.0
    %901 = vmatpush1.msra.mxu0 0.0
    %902 = vmatprep.subr.mxu0 0.0
    %903 = vmatpush1.msra.mxu0 0.0
    %904 = vmatprep.subr.mxu0 0.0
    %905 = vmatpush1.msra.mxu0 0.0
    %906 = vmatprep.subr.mxu0 0.0
    %907 = vmatpush1.msra.mxu0 0.0
    %908 = vmatprep.subr.mxu0 0.0
    %909 = vmatpush1.msra.mxu0 0.0
    %910 = vmatprep.subr.mxu0 0.0
    %911 = vmatpush1.msra.mxu0 0.0
    %912 = vmatprep.subr.mxu0 0.0
    %913 = vmatpush1.msra.mxu0 0.0
    %914 = vmatprep.subr.mxu0 0.0
    %915 = vmatpush1.msra.mxu0 0.0
    %916 = vmatprep.subr.mxu0 0.0
    %917 = vmatpush1.msra.mxu0 0.0
    %918 = vmatprep.subr.mxu0 0.0
    %919 = vmatpush1.msra.mxu0 0.0
    %920 = vmatprep.subr.mxu0 0.0
    %921 = vmatpush1.msra.mxu0 0.0
    %922 = vmatprep.subr.mxu0 0.0
    %923 = vmatpush1.msra.mxu0 0.0
    %924 = vmatprep.mubr.f32.mxu0 0.0
    %925 = vmatmul.mubr.f32.gmra.mrb[0].mxu0 %v828
    %v926 = vpop.f32.mrb[0].mxu0
    %v927 = vadd.f32 %v428, %v926
    %v928 = vpop.f32.mrb[0].mxu0
    %v929 = vadd.f32 %v430, %v928
    %930 = vmatprep.mubr.f32.mxu0 0.0
    %931 = vmatmul.mubr.f32.gmra.mrb[0].mxu0 %v830
    %v932 = vpop.f32.mrb[0].mxu0
    %v933 = vadd.f32 %v434, %v932
    %v934 = vpop.f32.mrb[0].mxu0
    %v935 = vadd.f32 %v436, %v934
    %936 = vmatprep.mubr.f32.mxu0 0.0
    %937 = vmatmul.mubr.f32.gmra.mrb[0].mxu0 %v832
    %v938 = vpop.f32.mrb[0].mxu0
    %v939 = vadd.f32 %v440, %v938
    %v940 = vpop.f32.mrb[0].mxu0
    %v941 = vadd.f32 %v442, %v940
    %942 = vmatprep.mubr.f32.mxu0 0.0
    %943 = vmatmul.mubr.f32.gmra.mrb[0].mxu0 %v834
    %v944 = vpop.f32.mrb[0].mxu0
    %v945 = vadd.f32 %v446, %v944
    %v946 = vpop.f32.mrb[0].mxu0
    %v947 = vadd.f32 %v448, %v946
    %948 = vmatprep.mubr.f32.mxu0 0.0
    %949 = vmatmul.mubr.f32.gmra.mrb[0].mxu0 %v836
    %v950 = vpop.f32.mrb[0].mxu0
    %v951 = vadd.f32 %v452, %v950
    %v952 = vpop.f32.mrb[0].mxu0
    %v953 = vadd.f32 %v454, %v952
    %954 = vmatprep.mubr.f32.mxu0 0.0
    %955 = vmatmul.mubr.f32.gmra.mrb[0].mxu0 %v838
    %v956 = vpop.f32.mrb[0].mxu0
    %v957 = vadd.f32 %v458, %v956
    %v958 = vpop.f32.mrb[0].mxu0
    %v959 = vadd.f32 %v460, %v958
    %960 = vmatprep.mubr.f32.mxu0 0.0
    %961 = vmatmul.mubr.f32.gmra.mrb[0].mxu0 %v840
    %v962 = vpop.f32.mrb[0].mxu0
    %v963 = vadd.f32 %v464, %v962
    %v964 = vpop.f32.mrb[0].mxu0
    %v965 = vadd.f32 %v466, %v964
    %966 = vmatprep.mubr.f32.mxu0 0.0
    %967 = vmatmul.mubr.f32.gmra.mrb[0].mxu0 %v842
    %v968 = vpop.f32.mrb[0].mxu0
    %v969 = vadd.f32 %v470, %v968
    %v970 = vpop.f32.mrb[0].mxu0
    %v971 = vadd.f32 %v472, %v970
    %972 = vmatprep.mubr.f32.mxu0 0.0
    %973 = vmatmul.mubr.f32.gmra.mrb[0].mxu0 %v844
    %v974 = vpop.f32.mrb[0].mxu0
    %v975 = vadd.f32 %v476, %v974
    %v976 = vpop.f32.mrb[0].mxu0
    %v977 = vadd.f32 %v478, %v976
    %978 = vmatprep.mubr.f32.mxu0 0.0
    %979 = vmatmul.mubr.f32.gmra.mrb[0].mxu0 %v846
    %v980 = vpop.f32.mrb[0].mxu0
    %v981 = vadd.f32 %v482, %v980
    %v982 = vpop.f32.mrb[0].mxu0
    %v983 = vadd.f32 %v484, %v982
    %984 = vmatprep.mubr.f32.mxu0 0.0
    %985 = vmatmul.mubr.f32.gmra.mrb[0].mxu0 %v848
    %v986 = vpop.f32.mrb[0].mxu0
    %v987 = vadd.f32 %v488, %v986
    %v988 = vpop.f32.mrb[0].mxu0
    %v989 = vadd.f32 %v490, %v988
    %990 = vmatprep.mubr.f32.mxu0 0.0
    %991 = vmatmul.mubr.f32.gmra.mrb[0].mxu0 %v850
    %v992 = vpop.f32.mrb[0].mxu0
    %v993 = vadd.f32 %v494, %v992
    %v994 = vpop.f32.mrb[0].mxu0
    %v995 = vadd.f32 %v496, %v994
    %996 = vmatprep.mubr.f32.mxu0 0.0
    %997 = vmatmul.mubr.f32.gmra.mrb[0].mxu0 %v852
    %v998 = vpop.f32.mrb[0].mxu0
    %v999 = vadd.f32 %v500, %v998
    %v1000 = vpop.f32.mrb[0].mxu0
    %v1001 = vadd.f32 %v502, %v1000
    %1002 = vmatprep.mubr.f32.mxu0 0.0
    %1003 = vmatmul.mubr.f32.gmra.mrb[0].mxu0 %v854
    %v1004 = vpop.f32.mrb[0].mxu0
    %v1005 = vadd.f32 %v506, %v1004
    %v1006 = vpop.f32.mrb[0].mxu0
    %v1007 = vadd.f32 %v508, %v1006
    %1008 = vmatprep.mubr.f32.mxu0 0.0
    %1009 = vmatmul.mubr.f32.gmra.mrb[0].mxu0 %v856
    %v1010 = vpop.f32.mrb[0].mxu0
    %v1011 = vadd.f32 %v512, %v1010
    %v1012 = vpop.f32.mrb[0].mxu0
    %v1013 = vadd.f32 %v514, %v1012
    %1014 = vmatprep.mubr.f32.mxu0 0.0
    %1015 = vmatmul.mubr.f32.gmra.mrb[0].mxu0 %v858
    %v1016 = vpop.f32.mrb[0].mxu0
    %v1017 = vadd.f32 %v518, %v1016
    %v1018 = vpop.f32.mrb[0].mxu0
    %v1019 = vadd.f32 %v520, %v1018
    %1020 = vdwg.mxu0
    %1021 = vmatprep.subr.mxu0 %v198
    %1022 = vmatpush1.msra.mxu0 %v197
    %1023 = vmatprep.subr.mxu0 %v203
    %1024 = vmatpush1.msra.mxu0 %v202
    %1025 = vmatprep.subr.mxu0 %v208
    %1026 = vmatpush1.msra.mxu0 %v207
    %1027 = vmatprep.subr.mxu0 %v213
    %1028 = vmatpush1.msra.mxu0 %v212
    %1029 = vmatprep.subr.mxu0 %v218
    %1030 = vmatpush1.msra.mxu0 %v217
    %1031 = vmatprep.subr.mxu0 %v223
    %1032 = vmatpush1.msra.mxu0 %v222
    %1033 = vmatprep.subr.mxu0 %v228
    %1034 = vmatpush1.msra.mxu0 %v227
    %1035 = vmatprep.subr.mxu0 %v233
    %1036 = vmatpush1.msra.mxu0 %v232
    %1037 = vmatprep.subr.mxu0 0.0
    %1038 = vmatpush1.msra.mxu0 0.0
    %1039 = vmatprep.subr.mxu0 0.0
    %1040 = vmatpush1.msra.mxu0 0.0
    %1041 = vmatprep.subr.mxu0 0.0
    %1042 = vmatpush1.msra.mxu0 0.0
    %1043 = vmatprep.subr.mxu0 0.0
    %1044 = vmatpush1.msra.mxu0 0.0
    %1045 = vmatprep.subr.mxu0 0.0
    %1046 = vmatpush1.msra.mxu0 0.0
    %1047 = vmatprep.subr.mxu0 0.0
    %1048 = vmatpush1.msra.mxu0 0.0
    %1049 = vmatprep.subr.mxu0 0.0
    %1050 = vmatpush1.msra.mxu0 0.0
    %1051 = vmatprep.subr.mxu0 0.0
    %1052 = vmatpush1.msra.mxu0 0.0
    %1053 = vmatprep.subr.mxu0 0.0
    %1054 = vmatpush1.msra.mxu0 0.0
    %1055 = vmatprep.subr.mxu0 0.0
    %1056 = vmatpush1.msra.mxu0 0.0
    %1057 = vmatprep.subr.mxu0 0.0
    %1058 = vmatpush1.msra.mxu0 0.0
    %1059 = vmatprep.subr.mxu0 0.0
    %1060 = vmatpush1.msra.mxu0 0.0
    %1061 = vmatprep.subr.mxu0 0.0
    %1062 = vmatpush1.msra.mxu0 0.0
    %1063 = vmatprep.subr.mxu0 0.0
    %1064 = vmatpush1.msra.mxu0 0.0
    %1065 = vmatprep.subr.mxu0 0.0
    %1066 = vmatpush1.msra.mxu0 0.0
    %1067 = vmatprep.subr.mxu0 0.0
    %1068 = vmatpush1.msra.mxu0 0.0
    %1069 = vmatprep.subr.mxu0 0.0
    %1070 = vmatpush1.msra.mxu0 0.0
    %1071 = vmatprep.subr.mxu0 0.0
    %1072 = vmatpush1.msra.mxu0 0.0
    %1073 = vmatprep.subr.mxu0 0.0
    %1074 = vmatpush1.msra.mxu0 0.0
    %1075 = vmatprep.subr.mxu0 0.0
    %1076 = vmatpush1.msra.mxu0 0.0
    %1077 = vmatprep.subr.mxu0 0.0
    %1078 = vmatpush1.msra.mxu0 0.0
    %1079 = vmatprep.subr.mxu0 0.0
    %1080 = vmatpush1.msra.mxu0 0.0
    %1081 = vmatprep.subr.mxu0 0.0
    %1082 = vmatpush1.msra.mxu0 0.0
    %1083 = vmatprep.subr.mxu0 0.0
    %1084 = vmatpush1.msra.mxu0 0.0
    %1085 = vmatprep.mubr.f32.mxu0 0.0
    %1086 = vmatmul.mubr.f32.gmra.mrb[0].mxu0 %v828
    %v1087 = vpop.f32.mrb[0].mxu0
    %v1088 = vadd.f32 %v589, %v1087
    %v1089 = vpop.f32.mrb[0].mxu0
    %v1090 = vadd.f32 %v591, %v1089
    %1091 = vmatprep.mubr.f32.mxu0 0.0
    %1092 = vmatmul.mubr.f32.gmra.mrb[0].mxu0 %v830
    %v1093 = vpop.f32.mrb[0].mxu0
    %v1094 = vadd.f32 %v595, %v1093
    %v1095 = vpop.f32.mrb[0].mxu0
    %v1096 = vadd.f32 %v597, %v1095
    %1097 = vmatprep.mubr.f32.mxu0 0.0
    %1098 = vmatmul.mubr.f32.gmra.mrb[0].mxu0 %v832
    %v1099 = vpop.f32.mrb[0].mxu0
    %v1100 = vadd.f32 %v601, %v1099
    %v1101 = vpop.f32.mrb[0].mxu0
    %v1102 = vadd.f32 %v603, %v1101
    %1103 = vmatprep.mubr.f32.mxu0 0.0
    %1104 = vmatmul.mubr.f32.gmra.mrb[0].mxu0 %v834
    %v1105 = vpop.f32.mrb[0].mxu0
    %v1106 = vadd.f32 %v607, %v1105
    %v1107 = vpop.f32.mrb[0].mxu0
    %v1108 = vadd.f32 %v609, %v1107
    %1109 = vmatprep.mubr.f32.mxu0 0.0
    %1110 = vmatmul.mubr.f32.gmra.mrb[0].mxu0 %v836
    %v1111 = vpop.f32.mrb[0].mxu0
    %v1112 = vadd.f32 %v613, %v1111
    %v1113 = vpop.f32.mrb[0].mxu0
    %v1114 = vadd.f32 %v615, %v1113
    %1115 = vmatprep.mubr.f32.mxu0 0.0
    %1116 = vmatmul.mubr.f32.gmra.mrb[0].mxu0 %v838
    %v1117 = vpop.f32.mrb[0].mxu0
    %v1118 = vadd.f32 %v619, %v1117
    %v1119 = vpop.f32.mrb[0].mxu0
    %v1120 = vadd.f32 %v621, %v1119
    %1121 = vmatprep.mubr.f32.mxu0 0.0
    %1122 = vmatmul.mubr.f32.gmra.mrb[0].mxu0 %v840
    %v1123 = vpop.f32.mrb[0].mxu0
    %v1124 = vadd.f32 %v625, %v1123
    %v1125 = vpop.f32.mrb[0].mxu0
    %v1126 = vadd.f32 %v627, %v1125
    %1127 = vmatprep.mubr.f32.mxu0 0.0
    %1128 = vmatmul.mubr.f32.gmra.mrb[0].mxu0 %v842
    %v1129 = vpop.f32.mrb[0].mxu0
    %v1130 = vadd.f32 %v631, %v1129
    %v1131 = vpop.f32.mrb[0].mxu0
    %v1132 = vadd.f32 %v633, %v1131
    %1133 = vmatprep.mubr.f32.mxu0 0.0
    %1134 = vmatmul.mubr.f32.gmra.mrb[0].mxu0 %v844
    %v1135 = vpop.f32.mrb[0].mxu0
    %v1136 = vadd.f32 %v637, %v1135
    %v1137 = vpop.f32.mrb[0].mxu0
    %v1138 = vadd.f32 %v639, %v1137
    %1139 = vmatprep.mubr.f32.mxu0 0.0
    %1140 = vmatmul.mubr.f32.gmra.mrb[0].mxu0 %v846
    %v1141 = vpop.f32.mrb[0].mxu0
    %v1142 = vadd.f32 %v643, %v1141
    %v1143 = vpop.f32.mrb[0].mxu0
    %v1144 = vadd.f32 %v645, %v1143
    %1145 = vmatprep.mubr.f32.mxu0 0.0
    %1146 = vmatmul.mubr.f32.gmra.mrb[0].mxu0 %v848
    %v1147 = vpop.f32.mrb[0].mxu0
    %v1148 = vadd.f32 %v649, %v1147
    %v1149 = vpop.f32.mrb[0].mxu0
    %v1150 = vadd.f32 %v651, %v1149
    %1151 = vmatprep.mubr.f32.mxu0 0.0
    %1152 = vmatmul.mubr.f32.gmra.mrb[0].mxu0 %v850
    %v1153 = vpop.f32.mrb[0].mxu0
    %v1154 = vadd.f32 %v655, %v1153
    %v1155 = vpop.f32.mrb[0].mxu0
    %v1156 = vadd.f32 %v657, %v1155
    %1157 = vmatprep.mubr.f32.mxu0 0.0
    %1158 = vmatmul.mubr.f32.gmra.mrb[0].mxu0 %v852
    %v1159 = vpop.f32.mrb[0].mxu0
    %v1160 = vadd.f32 %v661, %v1159
    %v1161 = vpop.f32.mrb[0].mxu0
    %v1162 = vadd.f32 %v663, %v1161
    %1163 = vmatprep.mubr.f32.mxu0 0.0
    %1164 = vmatmul.mubr.f32.gmra.mrb[0].mxu0 %v854
    %v1165 = vpop.f32.mrb[0].mxu0
    %v1166 = vadd.f32 %v667, %v1165
    %v1167 = vpop.f32.mrb[0].mxu0
    %v1168 = vadd.f32 %v669, %v1167
    %1169 = vmatprep.mubr.f32.mxu0 0.0
    %1170 = vmatmul.mubr.f32.gmra.mrb[0].mxu0 %v856
    %v1171 = vpop.f32.mrb[0].mxu0
    %v1172 = vadd.f32 %v673, %v1171
    %v1173 = vpop.f32.mrb[0].mxu0
    %v1174 = vadd.f32 %v675, %v1173
    %1175 = vmatprep.mubr.f32.mxu0 0.0
    %1176 = vmatmul.mubr.f32.gmra.mrb[0].mxu0 %v858
    %v1177 = vpop.f32.mrb[0].mxu0
    %v1178 = vadd.f32 %v679, %v1177
    %v1179 = vpop.f32.mrb[0].mxu0
    %v1180 = vadd.f32 %v681, %v1179
    %1181 = vdwg.mxu0
    %1182 = vmatprep.subr.mxu0 0.0
    %1183 = vmatpush1.msra.mxu0 %v199
    %1184 = vmatprep.subr.mxu0 0.0
    %1185 = vmatpush1.msra.mxu0 %v204
    %1186 = vmatprep.subr.mxu0 0.0
    %1187 = vmatpush1.msra.mxu0 %v209
    %1188 = vmatprep.subr.mxu0 0.0
    %1189 = vmatpush1.msra.mxu0 %v214
    %1190 = vmatprep.subr.mxu0 0.0
    %1191 = vmatpush1.msra.mxu0 %v219
    %1192 = vmatprep.subr.mxu0 0.0
    %1193 = vmatpush1.msra.mxu0 %v224
    %1194 = vmatprep.subr.mxu0 0.0
    %1195 = vmatpush1.msra.mxu0 %v229
    %1196 = vmatprep.subr.mxu0 0.0
    %1197 = vmatpush1.msra.mxu0 %v234
    %1198 = vmatprep.subr.mxu0 0.0
    %1199 = vmatpush1.msra.mxu0 0.0
    %1200 = vmatprep.subr.mxu0 0.0
    %1201 = vmatpush1.msra.mxu0 0.0
    %1202 = vmatprep.subr.mxu0 0.0
    %1203 = vmatpush1.msra.mxu0 0.0
    %1204 = vmatprep.subr.mxu0 0.0
    %1205 = vmatpush1.msra.mxu0 0.0
    %1206 = vmatprep.subr.mxu0 0.0
    %1207 = vmatpush1.msra.mxu0 0.0
    %1208 = vmatprep.subr.mxu0 0.0
    %1209 = vmatpush1.msra.mxu0 0.0
    %1210 = vmatprep.subr.mxu0 0.0
    %1211 = vmatpush1.msra.mxu0 0.0
    %1212 = vmatprep.subr.mxu0 0.0
    %1213 = vmatpush1.msra.mxu0 0.0
    %1214 = vmatprep.subr.mxu0 0.0
    %1215 = vmatpush1.msra.mxu0 0.0
    %1216 = vmatprep.subr.mxu0 0.0
    %1217 = vmatpush1.msra.mxu0 0.0
    %1218 = vmatprep.subr.mxu0 0.0
    %1219 = vmatpush1.msra.mxu0 0.0
    %1220 = vmatprep.subr.mxu0 0.0
    %1221 = vmatpush1.msra.mxu0 0.0
    %1222 = vmatprep.subr.mxu0 0.0
    %1223 = vmatpush1.msra.mxu0 0.0
    %1224 = vmatprep.subr.mxu0 0.0
    %1225 = vmatpush1.msra.mxu0 0.0
    %1226 = vmatprep.subr.mxu0 0.0
    %1227 = vmatpush1.msra.mxu0 0.0
    %1228 = vmatprep.subr.mxu0 0.0
    %1229 = vmatpush1.msra.mxu0 0.0
    %1230 = vmatprep.subr.mxu0 0.0
    %1231 = vmatpush1.msra.mxu0 0.0
    %1232 = vmatprep.subr.mxu0 0.0
    %1233 = vmatpush1.msra.mxu0 0.0
    %1234 = vmatprep.subr.mxu0 0.0
    %1235 = vmatpush1.msra.mxu0 0.0
    %1236 = vmatprep.subr.mxu0 0.0
    %1237 = vmatpush1.msra.mxu0 0.0
    %1238 = vmatprep.subr.mxu0 0.0
    %1239 = vmatpush1.msra.mxu0 0.0
    %1240 = vmatprep.subr.mxu0 0.0
    %1241 = vmatpush1.msra.mxu0 0.0
    %1242 = vmatprep.subr.mxu0 0.0
    %1243 = vmatpush1.msra.mxu0 0.0
    %1244 = vmatprep.subr.mxu0 0.0
    %1245 = vmatpush1.msra.mxu0 0.0
    %1246 = vmatprep.mubr.f32.mxu0 0.0
    %1247 = vmatmul.mubr.f32.gmra.mrb[0].mxu0 %v828
    %v1248 = vpop.f32.mrb[0].mxu0
    %v1249 = vadd.f32 %v750, %v1248
    %v1250 = vpop.f32.mrb[0].mxu0
    %1251 = vmatprep.mubr.f32.mxu0 0.0
    %1252 = vmatmul.mubr.f32.gmra.mrb[0].mxu0 %v830
    %v1253 = vpop.f32.mrb[0].mxu0
    %v1254 = vadd.f32 %v755, %v1253
    %v1255 = vpop.f32.mrb[0].mxu0
    %1256 = vmatprep.mubr.f32.mxu0 0.0
    %1257 = vmatmul.mubr.f32.gmra.mrb[0].mxu0 %v832
    %v1258 = vpop.f32.mrb[0].mxu0
    %v1259 = vadd.f32 %v760, %v1258
    %v1260 = vpop.f32.mrb[0].mxu0
    %1261 = vmatprep.mubr.f32.mxu0 0.0
    %1262 = vmatmul.mubr.f32.gmra.mrb[0].mxu0 %v834
    %v1263 = vpop.f32.mrb[0].mxu0
    %v1264 = vadd.f32 %v765, %v1263
    %v1265 = vpop.f32.mrb[0].mxu0
    %1266 = vmatprep.mubr.f32.mxu0 0.0
    %1267 = vmatmul.mubr.f32.gmra.mrb[0].mxu0 %v836
    %v1268 = vpop.f32.mrb[0].mxu0
    %v1269 = vadd.f32 %v770, %v1268
    %v1270 = vpop.f32.mrb[0].mxu0
    %1271 = vmatprep.mubr.f32.mxu0 0.0
    %1272 = vmatmul.mubr.f32.gmra.mrb[0].mxu0 %v838
    %v1273 = vpop.f32.mrb[0].mxu0
    %v1274 = vadd.f32 %v775, %v1273
    %v1275 = vpop.f32.mrb[0].mxu0
    %1276 = vmatprep.mubr.f32.mxu0 0.0
    %1277 = vmatmul.mubr.f32.gmra.mrb[0].mxu0 %v840
    %v1278 = vpop.f32.mrb[0].mxu0
    %v1279 = vadd.f32 %v780, %v1278
    %v1280 = vpop.f32.mrb[0].mxu0
    %1281 = vmatprep.mubr.f32.mxu0 0.0
    %1282 = vmatmul.mubr.f32.gmra.mrb[0].mxu0 %v842
    %v1283 = vpop.f32.mrb[0].mxu0
    %v1284 = vadd.f32 %v785, %v1283
    %v1285 = vpop.f32.mrb[0].mxu0
    %1286 = vmatprep.mubr.f32.mxu0 0.0
    %1287 = vmatmul.mubr.f32.gmra.mrb[0].mxu0 %v844
    %v1288 = vpop.f32.mrb[0].mxu0
    %v1289 = vadd.f32 %v790, %v1288
    %v1290 = vpop.f32.mrb[0].mxu0
    %1291 = vmatprep.mubr.f32.mxu0 0.0
    %1292 = vmatmul.mubr.f32.gmra.mrb[0].mxu0 %v846
    %v1293 = vpop.f32.mrb[0].mxu0
    %v1294 = vadd.f32 %v795, %v1293
    %v1295 = vpop.f32.mrb[0].mxu0
    %1296 = vmatprep.mubr.f32.mxu0 0.0
    %1297 = vmatmul.mubr.f32.gmra.mrb[0].mxu0 %v848
    %v1298 = vpop.f32.mrb[0].mxu0
    %v1299 = vadd.f32 %v800, %v1298
    %v1300 = vpop.f32.mrb[0].mxu0
    %1301 = vmatprep.mubr.f32.mxu0 0.0
    %1302 = vmatmul.mubr.f32.gmra.mrb[0].mxu0 %v850
    %v1303 = vpop.f32.mrb[0].mxu0
    %v1304 = vadd.f32 %v805, %v1303
    %v1305 = vpop.f32.mrb[0].mxu0
    %1306 = vmatprep.mubr.f32.mxu0 0.0
    %1307 = vmatmul.mubr.f32.gmra.mrb[0].mxu0 %v852
    %v1308 = vpop.f32.mrb[0].mxu0
    %v1309 = vadd.f32 %v810, %v1308
    %v1310 = vpop.f32.mrb[0].mxu0
    %1311 = vmatprep.mubr.f32.mxu0 0.0
    %1312 = vmatmul.mubr.f32.gmra.mrb[0].mxu0 %v854
    %v1313 = vpop.f32.mrb[0].mxu0
    %v1314 = vadd.f32 %v815, %v1313
    %v1315 = vpop.f32.mrb[0].mxu0
    %1316 = vmatprep.mubr.f32.mxu0 0.0
    %1317 = vmatmul.mubr.f32.gmra.mrb[0].mxu0 %v856
    %v1318 = vpop.f32.mrb[0].mxu0
    %v1319 = vadd.f32 %v820, %v1318
    %v1320 = vpop.f32.mrb[0].mxu0
    %1321 = vmatprep.mubr.f32.mxu0 0.0
    %1322 = vmatmul.mubr.f32.gmra.mrb[0].mxu0 %v858
    %v1323 = vpop.f32.mrb[0].mxu0
    %v1324 = vadd.f32 %v825, %v1323
    %v1325 = vpop.f32.mrb[0].mxu0
    %1326 = vdwg.mxu0
    %vm1327 = vcmask 1045504
    %v1328 = vrot.slane %v179, 2
    %v1329 = vrot.slane %v180, 2
    %v1330 = vsel %vm1327, %v1328, %v1329
    %v1331 = vrot.slane %v181, 2
    %v1332 = vsel %vm1327, %v1329, %v1331
    %v1333 = vrot.slane %v182, 2
    %v1334 = vsel %vm1327, %v1331, %v1333
    %v1335 = vrot.slane %v183, 2
    %v1336 = vsel %vm1327, %v1333, %v1335
    %v1337 = vrot.slane %v184, 2
    %v1338 = vsel %vm1327, %v1335, %v1337
    %v1339 = vrot.slane %v185, 2
    %v1340 = vsel %vm1327, %v1337, %v1339
    %v1341 = vrot.slane %v186, 2
    %v1342 = vsel %vm1327, %v1339, %v1341
    %v1343 = vrot.slane %v187, 2
    %v1344 = vsel %vm1327, %v1341, %v1343
    %v1345 = vrot.slane %v188, 2
    %v1346 = vsel %vm1327, %v1343, %v1345
    %v1347 = vrot.slane %v189, 2
    %v1348 = vsel %vm1327, %v1345, %v1347
    %v1349 = vrot.slane %v190, 2
    %v1350 = vsel %vm1327, %v1347, %v1349
    %v1351 = vrot.slane %v191, 2
    %v1352 = vsel %vm1327, %v1349, %v1351
    %v1353 = vrot.slane %v192, 2
    %v1354 = vsel %vm1327, %v1351, %v1353
    %v1355 = vrot.slane %v193, 2
    %v1356 = vsel %vm1327, %v1353, %v1355
    %v1357 = vrot.slane %v194, 2
    %v1358 = vsel %vm1327, %v1355, %v1357
    %v1361 = vsel %vm1327, %v1357, %v1328
    %s1362 = scalar_lea.vmem [#allocation4], 640
    %v1363 = vld [vmem:[%s1362] sm:$0xff]
    %v1364 = vld [vmem:[%s1362 + $0x8] sm:$0xff]
    %v1365 = vld [vmem:[%s1362 + $0x10] sm:$0xff]
    %v1366 = vld [vmem:[%s1362 + $0x18] sm:$0xff]
    %v1367 = vld [vmem:[%s1362 + $0x20] sm:$0xff]
    %v1368 = vld [vmem:[%s1362 + $0x28] sm:$0xff]
    %v1369 = vld [vmem:[%s1362 + $0x30] sm:$0xff]
    %v1370 = vld [vmem:[%s1362 + $0x38] sm:$0xff]
    %v1371 = vld [vmem:[%s1362 + $0x40] sm:$0xff]
    %v1372 = vld [vmem:[%s1362 + $0x48] sm:$0xff]
    %v1373 = vld [vmem:[%s1362 + $0x50] sm:$0xff]
    %v1374 = vld [vmem:[%s1362 + $0x58] sm:$0xff]
    %v1375 = vld [vmem:[%s1362 + $0x60] sm:$0xff]
    %v1376 = vld [vmem:[%s1362 + $0x68] sm:$0xff]
    %v1377 = vld [vmem:[%s1362 + $0x70] sm:$0xff]
    %v1378 = vld [vmem:[%s1362 + $0x78] sm:$0xff]
    %v1379 = vld [vmem:[%s1362 + $0x80] sm:$0xff]
    %v1380 = vld [vmem:[%s1362 + $0x88] sm:$0xff]
    %v1381 = vld [vmem:[%s1362 + $0x90] sm:$0xff]
    %v1382 = vld [vmem:[%s1362 + $0x98] sm:$0xff]
    %v1383 = vld [vmem:[%s1362 + $0xa0] sm:$0xff]
    %v1384 = vld [vmem:[%s1362 + $0xa8] sm:$0xff]
    %v1385 = vld [vmem:[%s1362 + $0xb0] sm:$0xff]
    %v1386 = vld [vmem:[%s1362 + $0xb8] sm:$0xff]
    %v1387 = vld [vmem:[%s1362 + $0xc0] sm:$0xff]
    %v1388 = vld [vmem:[%s1362 + $0xc8] sm:$0xff]
    %v1389 = vld [vmem:[%s1362 + $0xd0] sm:$0xff]
    %v1390 = vld [vmem:[%s1362 + $0xd8] sm:$0xff]
    %v1391 = vld [vmem:[%s1362 + $0xe0] sm:$0xff]
    %v1392 = vld [vmem:[%s1362 + $0xe8] sm:$0xff]
    %v1393 = vld [vmem:[%s1362 + $0xf0] sm:$0xff]
    %v1394 = vld [vmem:[%s1362 + $0xf8] sm:$0xff]
    %v1395 = vld [vmem:[%s1362 + $0x100] sm:$0xff]
    %v1396 = vld [vmem:[%s1362 + $0x108] sm:$0xff]
    %v1397 = vld [vmem:[%s1362 + $0x110] sm:$0xff]
    %v1398 = vld [vmem:[%s1362 + $0x118] sm:$0xff]
    %v1399 = vld [vmem:[%s1362 + $0x120] sm:$0xff]
    %v1400 = vld [vmem:[%s1362 + $0x128] sm:$0xff]
    %v1401 = vld [vmem:[%s1362 + $0x130] sm:$0xff]
    %v1402 = vld [vmem:[%s1362 + $0x138] sm:$0xff]
    %v1403 = vsel %vm327, %v1330, 0
    %v1405 = vsel %vm327, %v1332, 0
    %v1407 = vsel %vm327, %v1334, 0
    %v1409 = vsel %vm327, %v1336, 0
    %v1411 = vsel %vm327, %v1338, 0
    %v1413 = vsel %vm327, %v1340, 0
    %v1415 = vsel %vm327, %v1342, 0
    %v1417 = vsel %vm327, %v1344, 0
    %v1419 = vsel %vm327, %v1346, 0
    %v1421 = vsel %vm327, %v1348, 0
    %v1423 = vsel %vm327, %v1350, 0
    %v1425 = vsel %vm327, %v1352, 0
    %v1427 = vsel %vm327, %v1354, 0
    %v1429 = vsel %vm327, %v1356, 0
    %v1431 = vsel %vm327, %v1358, 0
    %v1434 = vsel %vm327, %v1361, 0
    %1436 = vmatprep.subr.mxu0 %v1364
    %1437 = vmatpush1.msra.mxu0 %v1363
    %1438 = vmatprep.subr.mxu0 %v1369
    %1439 = vmatpush1.msra.mxu0 %v1368
    %1440 = vmatprep.subr.mxu0 %v1374
    %1441 = vmatpush1.msra.mxu0 %v1373
    %1442 = vmatprep.subr.mxu0 %v1379
    %1443 = vmatpush1.msra.mxu0 %v1378
    %1444 = vmatprep.subr.mxu0 %v1384
    %1445 = vmatpush1.msra.mxu0 %v1383
    %1446 = vmatprep.subr.mxu0 %v1389
    %1447 = vmatpush1.msra.mxu0 %v1388
    %1448 = vmatprep.subr.mxu0 %v1394
    %1449 = vmatpush1.msra.mxu0 %v1393
    %1450 = vmatprep.subr.mxu0 %v1399
    %1451 = vmatpush1.msra.mxu0 %v1398
    %1452 = vmatprep.subr.mxu0 0.0
    %1453 = vmatpush1.msra.mxu0 0.0
    %1454 = vmatprep.subr.mxu0 0.0
    %1455 = vmatpush1.msra.mxu0 0.0
    %1456 = vmatprep.subr.mxu0 0.0
    %1457 = vmatpush1.msra.mxu0 0.0
    %1458 = vmatprep.subr.mxu0 0.0
    %1459 = vmatpush1.msra.mxu0 0.0
    %1460 = vmatprep.subr.mxu0 0.0
    %1461 = vmatpush1.msra.mxu0 0.0
    %1462 = vmatprep.subr.mxu0 0.0
    %1463 = vmatpush1.msra.mxu0 0.0
    %1464 = vmatprep.subr.mxu0 0.0
    %1465 = vmatpush1.msra.mxu0 0.0
    %1466 = vmatprep.subr.mxu0 0.0
    %1467 = vmatpush1.msra.mxu0 0.0
    %1468 = vmatprep.subr.mxu0 0.0
    %1469 = vmatpush1.msra.mxu0 0.0
    %1470 = vmatprep.subr.mxu0 0.0
    %1471 = vmatpush1.msra.mxu0 0.0
    %1472 = vmatprep.subr.mxu0 0.0
    %1473 = vmatpush1.msra.mxu0 0.0
    %1474 = vmatprep.subr.mxu0 0.0
    %1475 = vmatpush1.msra.mxu0 0.0
    %1476 = vmatprep.subr.mxu0 0.0
    %1477 = vmatpush1.msra.mxu0 0.0
    %1478 = vmatprep.subr.mxu0 0.0
    %1479 = vmatpush1.msra.mxu0 0.0
    %1480 = vmatprep.subr.mxu0 0.0
    %1481 = vmatpush1.msra.mxu0 0.0
    %1482 = vmatprep.subr.mxu0 0.0
    %1483 = vmatpush1.msra.mxu0 0.0
    %1484 = vmatprep.subr.mxu0 0.0
    %1485 = vmatpush1.msra.mxu0 0.0
    %1486 = vmatprep.subr.mxu0 0.0
    %1487 = vmatpush1.msra.mxu0 0.0
    %1488 = vmatprep.subr.mxu0 0.0
    %1489 = vmatpush1.msra.mxu0 0.0
    %1490 = vmatprep.subr.mxu0 0.0
    %1491 = vmatpush1.msra.mxu0 0.0
    %1492 = vmatprep.subr.mxu0 0.0
    %1493 = vmatpush1.msra.mxu0 0.0
    %1494 = vmatprep.subr.mxu0 0.0
    %1495 = vmatpush1.msra.mxu0 0.0
    %1496 = vmatprep.subr.mxu0 0.0
    %1497 = vmatpush1.msra.mxu0 0.0
    %1498 = vmatprep.subr.mxu0 0.0
    %1499 = vmatpush1.msra.mxu0 0.0
    %1500 = vmatprep.mubr.f32.mxu0 0.0
    %1501 = vmatmul.mubr.f32.gmra.mrb[0].mxu0 %v1403
    %v1502 = vpop.f32.mrb[0].mxu0
    %v1503 = vadd.f32 0.0, %v1502
    %v1504 = vpop.f32.mrb[0].mxu0
    %v1505 = vadd.f32 0.0, %v1504
    %1506 = vmatprep.mubr.f32.mxu0 0.0
    %1507 = vmatmul.mubr.f32.gmra.mrb[0].mxu0 %v1405
    %v1508 = vpop.f32.mrb[0].mxu0
    %v1509 = vadd.f32 0.0, %v1508
    %v1510 = vpop.f32.mrb[0].mxu0
    %v1511 = vadd.f32 0.0, %v1510
    %1512 = vmatprep.mubr.f32.mxu0 0.0
    %1513 = vmatmul.mubr.f32.gmra.mrb[0].mxu0 %v1407
    %v1514 = vpop.f32.mrb[0].mxu0
    %v1515 = vadd.f32 0.0, %v1514
    %v1516 = vpop.f32.mrb[0].mxu0
    %v1517 = vadd.f32 0.0, %v1516
    %1518 = vmatprep.mubr.f32.mxu0 0.0
    %1519 = vmatmul.mubr.f32.gmra.mrb[0].mxu0 %v1409
    %v1520 = vpop.f32.mrb[0].mxu0
    %v1521 = vadd.f32 0.0, %v1520
    %v1522 = vpop.f32.mrb[0].mxu0
    %v1523 = vadd.f32 0.0, %v1522
    %1524 = vmatprep.mubr.f32.mxu0 0.0
    %1525 = vmatmul.mubr.f32.gmra.mrb[0].mxu0 %v1411
    %v1526 = vpop.f32.mrb[0].mxu0
    %v1527 = vadd.f32 0.0, %v1526
    %v1528 = vpop.f32.mrb[0].mxu0
    %v1529 = vadd.f32 0.0, %v1528
    %1530 = vmatprep.mubr.f32.mxu0 0.0
    %1531 = vmatmul.mubr.f32.gmra.mrb[0].mxu0 %v1413
    %v1532 = vpop.f32.mrb[0].mxu0
    %v1533 = vadd.f32 0.0, %v1532
    %v1534 = vpop.f32.mrb[0].mxu0
    %v1535 = vadd.f32 0.0, %v1534
    %1536 = vmatprep.mubr.f32.mxu0 0.0
    %1537 = vmatmul.mubr.f32.gmra.mrb[0].mxu0 %v1415
    %v1538 = vpop.f32.mrb[0].mxu0
    %v1539 = vadd.f32 0.0, %v1538
    %v1540 = vpop.f32.mrb[0].mxu0
    %v1541 = vadd.f32 0.0, %v1540
    %1542 = vmatprep.mubr.f32.mxu0 0.0
    %1543 = vmatmul.mubr.f32.gmra.mrb[0].mxu0 %v1417
    %v1544 = vpop.f32.mrb[0].mxu0
    %v1545 = vadd.f32 0.0, %v1544
    %v1546 = vpop.f32.mrb[0].mxu0
    %v1547 = vadd.f32 0.0, %v1546
    %1548 = vmatprep.mubr.f32.mxu0 0.0
    %1549 = vmatmul.mubr.f32.gmra.mrb[0].mxu0 %v1419
    %v1550 = vpop.f32.mrb[0].mxu0
    %v1551 = vadd.f32 0.0, %v1550
    %v1552 = vpop.f32.mrb[0].mxu0
    %v1553 = vadd.f32 0.0, %v1552
    %1554 = vmatprep.mubr.f32.mxu0 0.0
    %1555 = vmatmul.mubr.f32.gmra.mrb[0].mxu0 %v1421
    %v1556 = vpop.f32.mrb[0].mxu0
    %v1557 = vadd.f32 0.0, %v1556
    %v1558 = vpop.f32.mrb[0].mxu0
    %v1559 = vadd.f32 0.0, %v1558
    %1560 = vmatprep.mubr.f32.mxu0 0.0
    %1561 = vmatmul.mubr.f32.gmra.mrb[0].mxu0 %v1423
    %v1562 = vpop.f32.mrb[0].mxu0
    %v1563 = vadd.f32 0.0, %v1562
    %v1564 = vpop.f32.mrb[0].mxu0
    %v1565 = vadd.f32 0.0, %v1564
    %1566 = vmatprep.mubr.f32.mxu0 0.0
    %1567 = vmatmul.mubr.f32.gmra.mrb[0].mxu0 %v1425
    %v1568 = vpop.f32.mrb[0].mxu0
    %v1569 = vadd.f32 0.0, %v1568
    %v1570 = vpop.f32.mrb[0].mxu0
    %v1571 = vadd.f32 0.0, %v1570
    %1572 = vmatprep.mubr.f32.mxu0 0.0
    %1573 = vmatmul.mubr.f32.gmra.mrb[0].mxu0 %v1427
    %v1574 = vpop.f32.mrb[0].mxu0
    %v1575 = vadd.f32 0.0, %v1574
    %v1576 = vpop.f32.mrb[0].mxu0
    %v1577 = vadd.f32 0.0, %v1576
    %1578 = vmatprep.mubr.f32.mxu0 0.0
    %1579 = vmatmul.mubr.f32.gmra.mrb[0].mxu0 %v1429
    %v1580 = vpop.f32.mrb[0].mxu0
    %v1581 = vadd.f32 0.0, %v1580
    %v1582 = vpop.f32.mrb[0].mxu0
    %v1583 = vadd.f32 0.0, %v1582
    %1584 = vmatprep.mubr.f32.mxu0 0.0
    %1585 = vmatmul.mubr.f32.gmra.mrb[0].mxu0 %v1431
    %v1586 = vpop.f32.mrb[0].mxu0
    %v1587 = vadd.f32 0.0, %v1586
    %v1588 = vpop.f32.mrb[0].mxu0
    %v1589 = vadd.f32 0.0, %v1588
    %1590 = vmatprep.mubr.f32.mxu0 0.0
    %1591 = vmatmul.mubr.f32.gmra.mrb[0].mxu0 %v1434
    %v1592 = vpop.f32.mrb[0].mxu0
    %v1593 = vadd.f32 0.0, %v1592
    %v1594 = vpop.f32.mrb[0].mxu0
    %v1595 = vadd.f32 0.0, %v1594
    %1596 = vdwg.mxu0
    %1597 = vmatprep.subr.mxu0 %v1366
    %1598 = vmatpush1.msra.mxu0 %v1365
    %1599 = vmatprep.subr.mxu0 %v1371
    %1600 = vmatpush1.msra.mxu0 %v1370
    %1601 = vmatprep.subr.mxu0 %v1376
    %1602 = vmatpush1.msra.mxu0 %v1375
    %1603 = vmatprep.subr.mxu0 %v1381
    %1604 = vmatpush1.msra.mxu0 %v1380
    %1605 = vmatprep.subr.mxu0 %v1386
    %1606 = vmatpush1.msra.mxu0 %v1385
    %1607 = vmatprep.subr.mxu0 %v1391
    %1608 = vmatpush1.msra.mxu0 %v1390
    %1609 = vmatprep.subr.mxu0 %v1396
    %1610 = vmatpush1.msra.mxu0 %v1395
    %1611 = vmatprep.subr.mxu0 %v1401
    %1612 = vmatpush1.msra.mxu0 %v1400
    %1613 = vmatprep.subr.mxu0 0.0
    %1614 = vmatpush1.msra.mxu0 0.0
    %1615 = vmatprep.subr.mxu0 0.0
    %1616 = vmatpush1.msra.mxu0 0.0
    %1617 = vmatprep.subr.mxu0 0.0
    %1618 = vmatpush1.msra.mxu0 0.0
    %1619 = vmatprep.subr.mxu0 0.0
    %1620 = vmatpush1.msra.mxu0 0.0
    %1621 = vmatprep.subr.mxu0 0.0
    %1622 = vmatpush1.msra.mxu0 0.0
    %1623 = vmatprep.subr.mxu0 0.0
    %1624 = vmatpush1.msra.mxu0 0.0
    %1625 = vmatprep.subr.mxu0 0.0
    %1626 = vmatpush1.msra.mxu0 0.0
    %1627 = vmatprep.subr.mxu0 0.0
    %1628 = vmatpush1.msra.mxu0 0.0
    %1629 = vmatprep.subr.mxu0 0.0
    %1630 = vmatpush1.msra.mxu0 0.0
    %1631 = vmatprep.subr.mxu0 0.0
    %1632 = vmatpush1.msra.mxu0 0.0
    %1633 = vmatprep.subr.mxu0 0.0
    %1634 = vmatpush1.msra.mxu0 0.0
    %1635 = vmatprep.subr.mxu0 0.0
    %1636 = vmatpush1.msra.mxu0 0.0
    %1637 = vmatprep.subr.mxu0 0.0
    %1638 = vmatpush1.msra.mxu0 0.0
    %1639 = vmatprep.subr.mxu0 0.0
    %1640 = vmatpush1.msra.mxu0 0.0
    %1641 = vmatprep.subr.mxu0 0.0
    %1642 = vmatpush1.msra.mxu0 0.0
    %1643 = vmatprep.subr.mxu0 0.0
    %1644 = vmatpush1.msra.mxu0 0.0
    %1645 = vmatprep.subr.mxu0 0.0
    %1646 = vmatpush1.msra.mxu0 0.0
    %1647 = vmatprep.subr.mxu0 0.0
    %1648 = vmatpush1.msra.mxu0 0.0
    %1649 = vmatprep.subr.mxu0 0.0
    %1650 = vmatpush1.msra.mxu0 0.0
    %1651 = vmatprep.subr.mxu0 0.0
    %1652 = vmatpush1.msra.mxu0 0.0
    %1653 = vmatprep.subr.mxu0 0.0
    %1654 = vmatpush1.msra.mxu0 0.0
    %1655 = vmatprep.subr.mxu0 0.0
    %1656 = vmatpush1.msra.mxu0 0.0
    %1657 = vmatprep.subr.mxu0 0.0
    %1658 = vmatpush1.msra.mxu0 0.0
    %1659 = vmatprep.subr.mxu0 0.0
    %1660 = vmatpush1.msra.mxu0 0.0
    %1661 = vmatprep.mubr.f32.mxu0 0.0
    %1662 = vmatmul.mubr.f32.gmra.mrb[0].mxu0 %v1403
    %v1663 = vpop.f32.mrb[0].mxu0
    %v1664 = vadd.f32 0.0, %v1663
    %v1665 = vpop.f32.mrb[0].mxu0
    %v1666 = vadd.f32 0.0, %v1665
    %1667 = vmatprep.mubr.f32.mxu0 0.0
    %1668 = vmatmul.mubr.f32.gmra.mrb[0].mxu0 %v1405
    %v1669 = vpop.f32.mrb[0].mxu0
    %v1670 = vadd.f32 0.0, %v1669
    %v1671 = vpop.f32.mrb[0].mxu0
    %v1672 = vadd.f32 0.0, %v1671
    %1673 = vmatprep.mubr.f32.mxu0 0.0
    %1674 = vmatmul.mubr.f32.gmra.mrb[0].mxu0 %v1407
    %v1675 = vpop.f32.mrb[0].mxu0
    %v1676 = vadd.f32 0.0, %v1675
    %v1677 = vpop.f32.mrb[0].mxu0
    %v1678 = vadd.f32 0.0, %v1677
    %1679 = vmatprep.mubr.f32.mxu0 0.0
    %1680 = vmatmul.mubr.f32.gmra.mrb[0].mxu0 %v1409
    %v1681 = vpop.f32.mrb[0].mxu0
    %v1682 = vadd.f32 0.0, %v1681
    %v1683 = vpop.f32.mrb[0].mxu0
    %v1684 = vadd.f32 0.0, %v1683
    %1685 = vmatprep.mubr.f32.mxu0 0.0
    %1686 = vmatmul.mubr.f32.gmra.mrb[0].mxu0 %v1411
    %v1687 = vpop.f32.mrb[0].mxu0
    %v1688 = vadd.f32 0.0, %v1687
    %v1689 = vpop.f32.mrb[0].mxu0
    %v1690 = vadd.f32 0.0, %v1689
    %1691 = vmatprep.mubr.f32.mxu0 0.0
    %1692 = vmatmul.mubr.f32.gmra.mrb[0].mxu0 %v1413
    %v1693 = vpop.f32.mrb[0].mxu0
    %v1694 = vadd.f32 0.0, %v1693
    %v1695 = vpop.f32.mrb[0].mxu0
    %v1696 = vadd.f32 0.0, %v1695
    %1697 = vmatprep.mubr.f32.mxu0 0.0
    %1698 = vmatmul.mubr.f32.gmra.mrb[0].mxu0 %v1415
    %v1699 = vpop.f32.mrb[0].mxu0
    %v1700 = vadd.f32 0.0, %v1699
    %v1701 = vpop.f32.mrb[0].mxu0
    %v1702 = vadd.f32 0.0, %v1701
    %1703 = vmatprep.mubr.f32.mxu0 0.0
    %1704 = vmatmul.mubr.f32.gmra.mrb[0].mxu0 %v1417
    %v1705 = vpop.f32.mrb[0].mxu0
    %v1706 = vadd.f32 0.0, %v1705
    %v1707 = vpop.f32.mrb[0].mxu0
    %v1708 = vadd.f32 0.0, %v1707
    %1709 = vmatprep.mubr.f32.mxu0 0.0
    %1710 = vmatmul.mubr.f32.gmra.mrb[0].mxu0 %v1419
    %v1711 = vpop.f32.mrb[0].mxu0
    %v1712 = vadd.f32 0.0, %v1711
    %v1713 = vpop.f32.mrb[0].mxu0
    %v1714 = vadd.f32 0.0, %v1713
    %1715 = vmatprep.mubr.f32.mxu0 0.0
    %1716 = vmatmul.mubr.f32.gmra.mrb[0].mxu0 %v1421
    %v1717 = vpop.f32.mrb[0].mxu0
    %v1718 = vadd.f32 0.0, %v1717
    %v1719 = vpop.f32.mrb[0].mxu0
    %v1720 = vadd.f32 0.0, %v1719
    %1721 = vmatprep.mubr.f32.mxu0 0.0
    %1722 = vmatmul.mubr.f32.gmra.mrb[0].mxu0 %v1423
    %v1723 = vpop.f32.mrb[0].mxu0
    %v1724 = vadd.f32 0.0, %v1723
    %v1725 = vpop.f32.mrb[0].mxu0
    %v1726 = vadd.f32 0.0, %v1725
    %1727 = vmatprep.mubr.f32.mxu0 0.0
    %1728 = vmatmul.mubr.f32.gmra.mrb[0].mxu0 %v1425
    %v1729 = vpop.f32.mrb[0].mxu0
    %v1730 = vadd.f32 0.0, %v1729
    %v1731 = vpop.f32.mrb[0].mxu0
    %v1732 = vadd.f32 0.0, %v1731
    %1733 = vmatprep.mubr.f32.mxu0 0.0
    %1734 = vmatmul.mubr.f32.gmra.mrb[0].mxu0 %v1427
    %v1735 = vpop.f32.mrb[0].mxu0
    %v1736 = vadd.f32 0.0, %v1735
    %v1737 = vpop.f32.mrb[0].mxu0
    %v1738 = vadd.f32 0.0, %v1737
    %1739 = vmatprep.mubr.f32.mxu0 0.0
    %1740 = vmatmul.mubr.f32.gmra.mrb[0].mxu0 %v1429
    %v1741 = vpop.f32.mrb[0].mxu0
    %v1742 = vadd.f32 0.0, %v1741
    %v1743 = vpop.f32.mrb[0].mxu0
    %v1744 = vadd.f32 0.0, %v1743
    %1745 = vmatprep.mubr.f32.mxu0 0.0
    %1746 = vmatmul.mubr.f32.gmra.mrb[0].mxu0 %v1431
    %v1747 = vpop.f32.mrb[0].mxu0
    %v1748 = vadd.f32 0.0, %v1747
    %v1749 = vpop.f32.mrb[0].mxu0
    %v1750 = vadd.f32 0.0, %v1749
    %1751 = vmatprep.mubr.f32.mxu0 0.0
    %1752 = vmatmul.mubr.f32.gmra.mrb[0].mxu0 %v1434
    %v1753 = vpop.f32.mrb[0].mxu0
    %v1754 = vadd.f32 0.0, %v1753
    %v1755 = vpop.f32.mrb[0].mxu0
    %v1756 = vadd.f32 0.0, %v1755
    %1757 = vdwg.mxu0
    %1758 = vmatprep.subr.mxu0 0.0
    %1759 = vmatpush1.msra.mxu0 %v1367
    %1760 = vmatprep.subr.mxu0 0.0
    %1761 = vmatpush1.msra.mxu0 %v1372
    %1762 = vmatprep.subr.mxu0 0.0
    %1763 = vmatpush1.msra.mxu0 %v1377
    %1764 = vmatprep.subr.mxu0 0.0
    %1765 = vmatpush1.msra.mxu0 %v1382
    %1766 = vmatprep.subr.mxu0 0.0
    %1767 = vmatpush1.msra.mxu0 %v1387
    %1768 = vmatprep.subr.mxu0 0.0
    %1769 = vmatpush1.msra.mxu0 %v1392
    %1770 = vmatprep.subr.mxu0 0.0
    %1771 = vmatpush1.msra.mxu0 %v1397
    %1772 = vmatprep.subr.mxu0 0.0
    %1773 = vmatpush1.msra.mxu0 %v1402
    %1774 = vmatprep.subr.mxu0 0.0
    %1775 = vmatpush1.msra.mxu0 0.0
    %1776 = vmatprep.subr.mxu0 0.0
    %1777 = vmatpush1.msra.mxu0 0.0
    %1778 = vmatprep.subr.mxu0 0.0
    %1779 = vmatpush1.msra.mxu0 0.0
    %1780 = vmatprep.subr.mxu0 0.0
    %1781 = vmatpush1.msra.mxu0 0.0
    %1782 = vmatprep.subr.mxu0 0.0
    %1783 = vmatpush1.msra.mxu0 0.0
    %1784 = vmatprep.subr.mxu0 0.0
    %1785 = vmatpush1.msra.mxu0 0.0
    %1786 = vmatprep.subr.mxu0 0.0
    %1787 = vmatpush1.msra.mxu0 0.0
    %1788 = vmatprep.subr.mxu0 0.0
    %1789 = vmatpush1.msra.mxu0 0.0
    %1790 = vmatprep.subr.mxu0 0.0
    %1791 = vmatpush1.msra.mxu0 0.0
    %1792 = vmatprep.subr.mxu0 0.0
    %1793 = vmatpush1.msra.mxu0 0.0
    %1794 = vmatprep.subr.mxu0 0.0
    %1795 = vmatpush1.msra.mxu0 0.0
    %1796 = vmatprep.subr.mxu0 0.0
    %1797 = vmatpush1.msra.mxu0 0.0
    %1798 = vmatprep.subr.mxu0 0.0
    %1799 = vmatpush1.msra.mxu0 0.0
    %1800 = vmatprep.subr.mxu0 0.0
    %1801 = vmatpush1.msra.mxu0 0.0
    %1802 = vmatprep.subr.mxu0 0.0
    %1803 = vmatpush1.msra.mxu0 0.0
    %1804 = vmatprep.subr.mxu0 0.0
    %1805 = vmatpush1.msra.mxu0 0.0
    %1806 = vmatprep.subr.mxu0 0.0
    %1807 = vmatpush1.msra.mxu0 0.0
    %1808 = vmatprep.subr.mxu0 0.0
    %1809 = vmatpush1.msra.mxu0 0.0
    %1810 = vmatprep.subr.mxu0 0.0
    %1811 = vmatpush1.msra.mxu0 0.0
    %1812 = vmatprep.subr.mxu0 0.0
    %1813 = vmatpush1.msra.mxu0 0.0
    %1814 = vmatprep.subr.mxu0 0.0
    %1815 = vmatpush1.msra.mxu0 0.0
    %1816 = vmatprep.subr.mxu0 0.0
    %1817 = vmatpush1.msra.mxu0 0.0
    %1818 = vmatprep.subr.mxu0 0.0
    %1819 = vmatpush1.msra.mxu0 0.0
    %1820 = vmatprep.subr.mxu0 0.0
    %1821 = vmatpush1.msra.mxu0 0.0
    %1822 = vmatprep.mubr.f32.mxu0 0.0
    %1823 = vmatmul.mubr.f32.gmra.mrb[0].mxu0 %v1403
    %v1824 = vpop.f32.mrb[0].mxu0
    %v1825 = vadd.f32 0.0, %v1824
    %v1826 = vpop.f32.mrb[0].mxu0
    %1827 = vmatprep.mubr.f32.mxu0 0.0
    %1828 = vmatmul.mubr.f32.gmra.mrb[0].mxu0 %v1405
    %v1829 = vpop.f32.mrb[0].mxu0
    %v1830 = vadd.f32 0.0, %v1829
    %v1831 = vpop.f32.mrb[0].mxu0
    %1832 = vmatprep.mubr.f32.mxu0 0.0
    %1833 = vmatmul.mubr.f32.gmra.mrb[0].mxu0 %v1407
    %v1834 = vpop.f32.mrb[0].mxu0
    %v1835 = vadd.f32 0.0, %v1834
    %v1836 = vpop.f32.mrb[0].mxu0
    %1837 = vmatprep.mubr.f32.mxu0 0.0
    %1838 = vmatmul.mubr.f32.gmra.mrb[0].mxu0 %v1409
    %v1839 = vpop.f32.mrb[0].mxu0
    %v1840 = vadd.f32 0.0, %v1839
    %v1841 = vpop.f32.mrb[0].mxu0
    %1842 = vmatprep.mubr.f32.mxu0 0.0
    %1843 = vmatmul.mubr.f32.gmra.mrb[0].mxu0 %v1411
    %v1844 = vpop.f32.mrb[0].mxu0
    %v1845 = vadd.f32 0.0, %v1844
    %v1846 = vpop.f32.mrb[0].mxu0
    %1847 = vmatprep.mubr.f32.mxu0 0.0
    %1848 = vmatmul.mubr.f32.gmra.mrb[0].mxu0 %v1413
    %v1849 = vpop.f32.mrb[0].mxu0
    %v1850 = vadd.f32 0.0, %v1849
    %v1851 = vpop.f32.mrb[0].mxu0
    %1852 = vmatprep.mubr.f32.mxu0 0.0
    %1853 = vmatmul.mubr.f32.gmra.mrb[0].mxu0 %v1415
    %v1854 = vpop.f32.mrb[0].mxu0
    %v1855 = vadd.f32 0.0, %v1854
    %v1856 = vpop.f32.mrb[0].mxu0
    %1857 = vmatprep.mubr.f32.mxu0 0.0
    %1858 = vmatmul.mubr.f32.gmra.mrb[0].mxu0 %v1417
    %v1859 = vpop.f32.mrb[0].mxu0
    %v1860 = vadd.f32 0.0, %v1859
    %v1861 = vpop.f32.mrb[0].mxu0
    %1862 = vmatprep.mubr.f32.mxu0 0.0
    %1863 = vmatmul.mubr.f32.gmra.mrb[0].mxu0 %v1419
    %v1864 = vpop.f32.mrb[0].mxu0
    %v1865 = vadd.f32 0.0, %v1864
    %v1866 = vpop.f32.mrb[0].mxu0
    %1867 = vmatprep.mubr.f32.mxu0 0.0
    %1868 = vmatmul.mubr.f32.gmra.mrb[0].mxu0 %v1421
    %v1869 = vpop.f32.mrb[0].mxu0
    %v1870 = vadd.f32 0.0, %v1869
    %v1871 = vpop.f32.mrb[0].mxu0
    %1872 = vmatprep.mubr.f32.mxu0 0.0
    %1873 = vmatmul.mubr.f32.gmra.mrb[0].mxu0 %v1423
    %v1874 = vpop.f32.mrb[0].mxu0
    %v1875 = vadd.f32 0.0, %v1874
    %v1876 = vpop.f32.mrb[0].mxu0
    %1877 = vmatprep.mubr.f32.mxu0 0.0
    %1878 = vmatmul.mubr.f32.gmra.mrb[0].mxu0 %v1425
    %v1879 = vpop.f32.mrb[0].mxu0
    %v1880 = vadd.f32 0.0, %v1879
    %v1881 = vpop.f32.mrb[0].mxu0
    %1882 = vmatprep.mubr.f32.mxu0 0.0
    %1883 = vmatmul.mubr.f32.gmra.mrb[0].mxu0 %v1427
    %v1884 = vpop.f32.mrb[0].mxu0
    %v1885 = vadd.f32 0.0, %v1884
    %v1886 = vpop.f32.mrb[0].mxu0
    %1887 = vmatprep.mubr.f32.mxu0 0.0
    %1888 = vmatmul.mubr.f32.gmra.mrb[0].mxu0 %v1429
    %v1889 = vpop.f32.mrb[0].mxu0
    %v1890 = vadd.f32 0.0, %v1889
    %v1891 = vpop.f32.mrb[0].mxu0
    %1892 = vmatprep.mubr.f32.mxu0 0.0
    %1893 = vmatmul.mubr.f32.gmra.mrb[0].mxu0 %v1431
    %v1894 = vpop.f32.mrb[0].mxu0
    %v1895 = vadd.f32 0.0, %v1894
    %v1896 = vpop.f32.mrb[0].mxu0
    %1897 = vmatprep.mubr.f32.mxu0 0.0
    %1898 = vmatmul.mubr.f32.gmra.mrb[0].mxu0 %v1434
    %v1899 = vpop.f32.mrb[0].mxu0
    %v1900 = vadd.f32 0.0, %v1899
    %v1901 = vpop.f32.mrb[0].mxu0
    %1902 = vdwg.mxu0
    %v1903 = vadd.f32 %v927, %v1503
    %v1904 = vadd.f32 %v929, %v1505
    %v1905 = vadd.f32 %v1088, %v1664
    %v1906 = vadd.f32 %v1090, %v1666
    %v1907 = vadd.f32 %v1249, %v1825
    %v1908 = vadd.f32 %v933, %v1509
    %v1909 = vadd.f32 %v935, %v1511
    %v1910 = vadd.f32 %v1094, %v1670
    %v1911 = vadd.f32 %v1096, %v1672
    %v1912 = vadd.f32 %v1254, %v1830
    %v1913 = vadd.f32 %v939, %v1515
    %v1914 = vadd.f32 %v941, %v1517
    %v1915 = vadd.f32 %v1100, %v1676
    %v1916 = vadd.f32 %v1102, %v1678
    %v1917 = vadd.f32 %v1259, %v1835
    %v1918 = vadd.f32 %v945, %v1521
    %v1919 = vadd.f32 %v947, %v1523
    %v1920 = vadd.f32 %v1106, %v1682
    %v1921 = vadd.f32 %v1108, %v1684
    %v1922 = vadd.f32 %v1264, %v1840
    %v1923 = vadd.f32 %v951, %v1527
    %v1924 = vadd.f32 %v953, %v1529
    %v1925 = vadd.f32 %v1112, %v1688
    %v1926 = vadd.f32 %v1114, %v1690
    %v1927 = vadd.f32 %v1269, %v1845
    %v1928 = vadd.f32 %v957, %v1533
    %v1929 = vadd.f32 %v959, %v1535
    %v1930 = vadd.f32 %v1118, %v1694
    %v1931 = vadd.f32 %v1120, %v1696
    %v1932 = vadd.f32 %v1274, %v1850
    %v1933 = vadd.f32 %v963, %v1539
    %v1934 = vadd.f32 %v965, %v1541
    %v1935 = vadd.f32 %v1124, %v1700
    %v1936 = vadd.f32 %v1126, %v1702
    %v1937 = vadd.f32 %v1279, %v1855
    %v1938 = vadd.f32 %v969, %v1545
    %v1939 = vadd.f32 %v971, %v1547
    %v1940 = vadd.f32 %v1130, %v1706
    %v1941 = vadd.f32 %v1132, %v1708
    %v1942 = vadd.f32 %v1284, %v1860
    %v1943 = vadd.f32 %v975, %v1551
    %v1944 = vadd.f32 %v977, %v1553
    %v1945 = vadd.f32 %v1136, %v1712
    %v1946 = vadd.f32 %v1138, %v1714
    %v1947 = vadd.f32 %v1289, %v1865
    %v1948 = vadd.f32 %v981, %v1557
    %v1949 = vadd.f32 %v983, %v1559
    %v1950 = vadd.f32 %v1142, %v1718
    %v1951 = vadd.f32 %v1144, %v1720
    %v1952 = vadd.f32 %v1294, %v1870
    %v1953 = vadd.f32 %v987, %v1563
    %v1954 = vadd.f32 %v989, %v1565
    %v1955 = vadd.f32 %v1148, %v1724
    %v1956 = vadd.f32 %v1150, %v1726
    %v1957 = vadd.f32 %v1299, %v1875
    %v1958 = vadd.f32 %v993, %v1569
    %v1959 = vadd.f32 %v995, %v1571
    %v1960 = vadd.f32 %v1154, %v1730
    %v1961 = vadd.f32 %v1156, %v1732
    %v1962 = vadd.f32 %v1304, %v1880
    %v1963 = vadd.f32 %v999, %v1575
    %v1964 = vadd.f32 %v1001, %v1577
    %v1965 = vadd.f32 %v1160, %v1736
    %v1966 = vadd.f32 %v1162, %v1738
    %v1967 = vadd.f32 %v1309, %v1885
    %v1968 = vadd.f32 %v1005, %v1581
    %v1969 = vadd.f32 %v1007, %v1583
    %v1970 = vadd.f32 %v1166, %v1742
    %v1971 = vadd.f32 %v1168, %v1744
    %v1972 = vadd.f32 %v1314, %v1890
    %v1973 = vadd.f32 %v1011, %v1587
    %v1974 = vadd.f32 %v1013, %v1589
    %v1975 = vadd.f32 %v1172, %v1748
    %v1976 = vadd.f32 %v1174, %v1750
    %v1977 = vadd.f32 %v1319, %v1895
    %v1978 = vadd.f32 %v1017, %v1593
    %v1979 = vadd.f32 %v1019, %v1595
    %v1980 = vadd.f32 %v1178, %v1754
    %v1981 = vadd.f32 %v1180, %v1756
    %v1982 = vadd.f32 %v1324, %v1900
    %vm1983 = vcmask 1044480
    %v1984 = vrot.slane %v179, 3
    %v1985 = vrot.slane %v180, 3
    %v1986 = vsel %vm1983, %v1984, %v1985
    %v1987 = vrot.slane %v181, 3
    %v1988 = vsel %vm1983, %v1985, %v1987
    %v1989 = vrot.slane %v182, 3
    %v1990 = vsel %vm1983, %v1987, %v1989
    %v1991 = vrot.slane %v183, 3
    %v1992 = vsel %vm1983, %v1989, %v1991
    %v1993 = vrot.slane %v184, 3
    %v1994 = vsel %vm1983, %v1991, %v1993
    %v1995 = vrot.slane %v185, 3
    %v1996 = vsel %vm1983, %v1993, %v1995
    %v1997 = vrot.slane %v186, 3
    %v1998 = vsel %vm1983, %v1995, %v1997
    %v1999 = vrot.slane %v187, 3
    %v2000 = vsel %vm1983, %v1997, %v1999
    %v2001 = vrot.slane %v188, 3
    %v2002 = vsel %vm1983, %v1999, %v2001
    %v2003 = vrot.slane %v189, 3
    %v2004 = vsel %vm1983, %v2001, %v2003
    %v2005 = vrot.slane %v190, 3
    %v2006 = vsel %vm1983, %v2003, %v2005
    %v2007 = vrot.slane %v191, 3
    %v2008 = vsel %vm1983, %v2005, %v2007
    %v2009 = vrot.slane %v192, 3
    %v2010 = vsel %vm1983, %v2007, %v2009
    %v2011 = vrot.slane %v193, 3
    %v2012 = vsel %vm1983, %v2009, %v2011
    %v2013 = vrot.slane %v194, 3
    %v2014 = vsel %vm1983, %v2011, %v2013
    %v2017 = vsel %vm1983, %v2013, %v1984
    %s2018 = scalar_lea.vmem [#allocation4], 960
    %v2019 = vld [vmem:[%s2018] sm:$0xff]
    %v2020 = vld [vmem:[%s2018 + $0x8] sm:$0xff]
    %v2021 = vld [vmem:[%s2018 + $0x10] sm:$0xff]
    %v2022 = vld [vmem:[%s2018 + $0x18] sm:$0xff]
    %v2023 = vld [vmem:[%s2018 + $0x20] sm:$0xff]
    %v2024 = vld [vmem:[%s2018 + $0x28] sm:$0xff]
    %v2025 = vld [vmem:[%s2018 + $0x30] sm:$0xff]
    %v2026 = vld [vmem:[%s2018 + $0x38] sm:$0xff]
    %v2027 = vld [vmem:[%s2018 + $0x40] sm:$0xff]
    %v2028 = vld [vmem:[%s2018 + $0x48] sm:$0xff]
    %v2029 = vld [vmem:[%s2018 + $0x50] sm:$0xff]
    %v2030 = vld [vmem:[%s2018 + $0x58] sm:$0xff]
    %v2031 = vld [vmem:[%s2018 + $0x60] sm:$0xff]
    %v2032 = vld [vmem:[%s2018 + $0x68] sm:$0xff]
    %v2033 = vld [vmem:[%s2018 + $0x70] sm:$0xff]
    %v2034 = vld [vmem:[%s2018 + $0x78] sm:$0xff]
    %v2035 = vld [vmem:[%s2018 + $0x80] sm:$0xff]
    %v2036 = vld [vmem:[%s2018 + $0x88] sm:$0xff]
    %v2037 = vld [vmem:[%s2018 + $0x90] sm:$0xff]
    %v2038 = vld [vmem:[%s2018 + $0x98] sm:$0xff]
    %v2039 = vld [vmem:[%s2018 + $0xa0] sm:$0xff]
    %v2040 = vld [vmem:[%s2018 + $0xa8] sm:$0xff]
    %v2041 = vld [vmem:[%s2018 + $0xb0] sm:$0xff]
    %v2042 = vld [vmem:[%s2018 + $0xb8] sm:$0xff]
    %v2043 = vld [vmem:[%s2018 + $0xc0] sm:$0xff]
    %v2044 = vld [vmem:[%s2018 + $0xc8] sm:$0xff]
    %v2045 = vld [vmem:[%s2018 + $0xd0] sm:$0xff]
    %v2046 = vld [vmem:[%s2018 + $0xd8] sm:$0xff]
    %v2047 = vld [vmem:[%s2018 + $0xe0] sm:$0xff]
    %v2048 = vld [vmem:[%s2018 + $0xe8] sm:$0xff]
    %v2049 = vld [vmem:[%s2018 + $0xf0] sm:$0xff]
    %v2050 = vld [vmem:[%s2018 + $0xf8] sm:$0xff]
    %v2051 = vld [vmem:[%s2018 + $0x100] sm:$0xff]
    %v2052 = vld [vmem:[%s2018 + $0x108] sm:$0xff]
    %v2053 = vld [vmem:[%s2018 + $0x110] sm:$0xff]
    %v2054 = vld [vmem:[%s2018 + $0x118] sm:$0xff]
    %v2055 = vld [vmem:[%s2018 + $0x120] sm:$0xff]
    %v2056 = vld [vmem:[%s2018 + $0x128] sm:$0xff]
    %v2057 = vld [vmem:[%s2018 + $0x130] sm:$0xff]
    %v2058 = vld [vmem:[%s2018 + $0x138] sm:$0xff]
    %v2059 = vsel %vm327, %v1986, 0
    %v2061 = vsel %vm327, %v1988, 0
    %v2063 = vsel %vm327, %v1990, 0
    %v2065 = vsel %vm327, %v1992, 0
    %v2067 = vsel %vm327, %v1994, 0
    %v2069 = vsel %vm327, %v1996, 0
    %v2071 = vsel %vm327, %v1998, 0
    %v2073 = vsel %vm327, %v2000, 0
    %v2075 = vsel %vm327, %v2002, 0
    %v2077 = vsel %vm327, %v2004, 0
    %v2079 = vsel %vm327, %v2006, 0
    %v2081 = vsel %vm327, %v2008, 0
    %v2083 = vsel %vm327, %v2010, 0
    %v2085 = vsel %vm327, %v2012, 0
    %v2087 = vsel %vm327, %v2014, 0
    %v2090 = vsel %vm327, %v2017, 0
    %2092 = vmatprep.subr.mxu0 %v2020
    %2093 = vmatpush1.msra.mxu0 %v2019
    %2094 = vmatprep.subr.mxu0 %v2025
    %2095 = vmatpush1.msra.mxu0 %v2024
    %2096 = vmatprep.subr.mxu0 %v2030
    %2097 = vmatpush1.msra.mxu0 %v2029
    %2098 = vmatprep.subr.mxu0 %v2035
    %2099 = vmatpush1.msra.mxu0 %v2034
    %2100 = vmatprep.subr.mxu0 %v2040
    %2101 = vmatpush1.msra.mxu0 %v2039
    %2102 = vmatprep.subr.mxu0 %v2045
    %2103 = vmatpush1.msra.mxu0 %v2044
    %2104 = vmatprep.subr.mxu0 %v2050
    %2105 = vmatpush1.msra.mxu0 %v2049
    %2106 = vmatprep.subr.mxu0 %v2055
    %2107 = vmatpush1.msra.mxu0 %v2054
    %2108 = vmatprep.subr.mxu0 0.0
    %2109 = vmatpush1.msra.mxu0 0.0
    %2110 = vmatprep.subr.mxu0 0.0
    %2111 = vmatpush1.msra.mxu0 0.0
    %2112 = vmatprep.subr.mxu0 0.0
    %2113 = vmatpush1.msra.mxu0 0.0
    %2114 = vmatprep.subr.mxu0 0.0
    %2115 = vmatpush1.msra.mxu0 0.0
    %2116 = vmatprep.subr.mxu0 0.0
    %2117 = vmatpush1.msra.mxu0 0.0
    %2118 = vmatprep.subr.mxu0 0.0
    %2119 = vmatpush1.msra.mxu0 0.0
    %2120 = vmatprep.subr.mxu0 0.0
    %2121 = vmatpush1.msra.mxu0 0.0
    %2122 = vmatprep.subr.mxu0 0.0
    %2123 = vmatpush1.msra.mxu0 0.0
    %2124 = vmatprep.subr.mxu0 0.0
    %2125 = vmatpush1.msra.mxu0 0.0
    %2126 = vmatprep.subr.mxu0 0.0
    %2127 = vmatpush1.msra.mxu0 0.0
    %2128 = vmatprep.subr.mxu0 0.0
    %2129 = vmatpush1.msra.mxu0 0.0
    %2130 = vmatprep.subr.mxu0 0.0
    %2131 = vmatpush1.msra.mxu0 0.0
    %2132 = vmatprep.subr.mxu0 0.0
    %2133 = vmatpush1.msra.mxu0 0.0
    %2134 = vmatprep.subr.mxu0 0.0
    %2135 = vmatpush1.msra.mxu0 0.0
    %2136 = vmatprep.subr.mxu0 0.0
    %2137 = vmatpush1.msra.mxu0 0.0
    %2138 = vmatprep.subr.mxu0 0.0
    %2139 = vmatpush1.msra.mxu0 0.0
    %2140 = vmatprep.subr.mxu0 0.0
    %2141 = vmatpush1.msra.mxu0 0.0
    %2142 = vmatprep.subr.mxu0 0.0
    %2143 = vmatpush1.msra.mxu0 0.0
    %2144 = vmatprep.subr.mxu0 0.0
    %2145 = vmatpush1.msra.mxu0 0.0
    %2146 = vmatprep.subr.mxu0 0.0
    %2147 = vmatpush1.msra.mxu0 0.0
    %2148 = vmatprep.subr.mxu0 0.0
    %2149 = vmatpush1.msra.mxu0 0.0
    %2150 = vmatprep.subr.mxu0 0.0
    %2151 = vmatpush1.msra.mxu0 0.0
    %2152 = vmatprep.subr.mxu0 0.0
    %2153 = vmatpush1.msra.mxu0 0.0
    %2154 = vmatprep.subr.mxu0 0.0
    %2155 = vmatpush1.msra.mxu0 0.0
    %2156 = vmatprep.mubr.f32.mxu0 0.0
    %2157 = vmatmul.mubr.f32.gmra.mrb[0].mxu0 %v2059
    %v2158 = vpop.f32.mrb[0].mxu0
    %v2159 = vadd.f32 0.0, %v2158
    %v2160 = vpop.f32.mrb[0].mxu0
    %v2161 = vadd.f32 0.0, %v2160
    %2162 = vmatprep.mubr.f32.mxu0 0.0
    %2163 = vmatmul.mubr.f32.gmra.mrb[0].mxu0 %v2061
    %v2164 = vpop.f32.mrb[0].mxu0
    %v2165 = vadd.f32 0.0, %v2164
    %v2166 = vpop.f32.mrb[0].mxu0
    %v2167 = vadd.f32 0.0, %v2166
    %2168 = vmatprep.mubr.f32.mxu0 0.0
    %2169 = vmatmul.mubr.f32.gmra.mrb[0].mxu0 %v2063
    %v2170 = vpop.f32.mrb[0].mxu0
    %v2171 = vadd.f32 0.0, %v2170
    %v2172 = vpop.f32.mrb[0].mxu0
    %v2173 = vadd.f32 0.0, %v2172
    %2174 = vmatprep.mubr.f32.mxu0 0.0
    %2175 = vmatmul.mubr.f32.gmra.mrb[0].mxu0 %v2065
    %v2176 = vpop.f32.mrb[0].mxu0
    %v2177 = vadd.f32 0.0, %v2176
    %v2178 = vpop.f32.mrb[0].mxu0
    %v2179 = vadd.f32 0.0, %v2178
    %2180 = vmatprep.mubr.f32.mxu0 0.0
    %2181 = vmatmul.mubr.f32.gmra.mrb[0].mxu0 %v2067
    %v2182 = vpop.f32.mrb[0].mxu0
    %v2183 = vadd.f32 0.0, %v2182
    %v2184 = vpop.f32.mrb[0].mxu0
    %v2185 = vadd.f32 0.0, %v2184
    %2186 = vmatprep.mubr.f32.mxu0 0.0
    %2187 = vmatmul.mubr.f32.gmra.mrb[0].mxu0 %v2069
    %v2188 = vpop.f32.mrb[0].mxu0
    %v2189 = vadd.f32 0.0, %v2188
    %v2190 = vpop.f32.mrb[0].mxu0
    %v2191 = vadd.f32 0.0, %v2190
    %2192 = vmatprep.mubr.f32.mxu0 0.0
    %2193 = vmatmul.mubr.f32.gmra.mrb[0].mxu0 %v2071
    %v2194 = vpop.f32.mrb[0].mxu0
    %v2195 = vadd.f32 0.0, %v2194
    %v2196 = vpop.f32.mrb[0].mxu0
    %v2197 = vadd.f32 0.0, %v2196
    %2198 = vmatprep.mubr.f32.mxu0 0.0
    %2199 = vmatmul.mubr.f32.gmra.mrb[0].mxu0 %v2073
    %v2200 = vpop.f32.mrb[0].mxu0
    %v2201 = vadd.f32 0.0, %v2200
    %v2202 = vpop.f32.mrb[0].mxu0
    %v2203 = vadd.f32 0.0, %v2202
    %2204 = vmatprep.mubr.f32.mxu0 0.0
    %2205 = vmatmul.mubr.f32.gmra.mrb[0].mxu0 %v2075
    %v2206 = vpop.f32.mrb[0].mxu0
    %v2207 = vadd.f32 0.0, %v2206
    %v2208 = vpop.f32.mrb[0].mxu0
    %v2209 = vadd.f32 0.0, %v2208
    %2210 = vmatprep.mubr.f32.mxu0 0.0
    %2211 = vmatmul.mubr.f32.gmra.mrb[0].mxu0 %v2077
    %v2212 = vpop.f32.mrb[0].mxu0
    %v2213 = vadd.f32 0.0, %v2212
    %v2214 = vpop.f32.mrb[0].mxu0
    %v2215 = vadd.f32 0.0, %v2214
    %2216 = vmatprep.mubr.f32.mxu0 0.0
    %2217 = vmatmul.mubr.f32.gmra.mrb[0].mxu0 %v2079
    %v2218 = vpop.f32.mrb[0].mxu0
    %v2219 = vadd.f32 0.0, %v2218
    %v2220 = vpop.f32.mrb[0].mxu0
    %v2221 = vadd.f32 0.0, %v2220
    %2222 = vmatprep.mubr.f32.mxu0 0.0
    %2223 = vmatmul.mubr.f32.gmra.mrb[0].mxu0 %v2081
    %v2224 = vpop.f32.mrb[0].mxu0
    %v2225 = vadd.f32 0.0, %v2224
    %v2226 = vpop.f32.mrb[0].mxu0
    %v2227 = vadd.f32 0.0, %v2226
    %2228 = vmatprep.mubr.f32.mxu0 0.0
    %2229 = vmatmul.mubr.f32.gmra.mrb[0].mxu0 %v2083
    %v2230 = vpop.f32.mrb[0].mxu0
    %v2231 = vadd.f32 0.0, %v2230
    %v2232 = vpop.f32.mrb[0].mxu0
    %v2233 = vadd.f32 0.0, %v2232
    %2234 = vmatprep.mubr.f32.mxu0 0.0
    %2235 = vmatmul.mubr.f32.gmra.mrb[0].mxu0 %v2085
    %v2236 = vpop.f32.mrb[0].mxu0
    %v2237 = vadd.f32 0.0, %v2236
    %v2238 = vpop.f32.mrb[0].mxu0
    %v2239 = vadd.f32 0.0, %v2238
    %2240 = vmatprep.mubr.f32.mxu0 0.0
    %2241 = vmatmul.mubr.f32.gmra.mrb[0].mxu0 %v2087
    %v2242 = vpop.f32.mrb[0].mxu0
    %v2243 = vadd.f32 0.0, %v2242
    %v2244 = vpop.f32.mrb[0].mxu0
    %v2245 = vadd.f32 0.0, %v2244
    %2246 = vmatprep.mubr.f32.mxu0 0.0
    %2247 = vmatmul.mubr.f32.gmra.mrb[0].mxu0 %v2090
    %v2248 = vpop.f32.mrb[0].mxu0
    %v2249 = vadd.f32 0.0, %v2248
    %v2250 = vpop.f32.mrb[0].mxu0
    %v2251 = vadd.f32 0.0, %v2250
    %2252 = vdwg.mxu0
    %2253 = vmatprep.subr.mxu0 %v2022
    %2254 = vmatpush1.msra.mxu0 %v2021
    %2255 = vmatprep.subr.mxu0 %v2027
    %2256 = vmatpush1.msra.mxu0 %v2026
    %2257 = vmatprep.subr.mxu0 %v2032
    %2258 = vmatpush1.msra.mxu0 %v2031
    %2259 = vmatprep.subr.mxu0 %v2037
    %2260 = vmatpush1.msra.mxu0 %v2036
    %2261 = vmatprep.subr.mxu0 %v2042
    %2262 = vmatpush1.msra.mxu0 %v2041
    %2263 = vmatprep.subr.mxu0 %v2047
    %2264 = vmatpush1.msra.mxu0 %v2046
    %2265 = vmatprep.subr.mxu0 %v2052
    %2266 = vmatpush1.msra.mxu0 %v2051
    %2267 = vmatprep.subr.mxu0 %v2057
    %2268 = vmatpush1.msra.mxu0 %v2056
    %2269 = vmatprep.subr.mxu0 0.0
    %2270 = vmatpush1.msra.mxu0 0.0
    %2271 = vmatprep.subr.mxu0 0.0
    %2272 = vmatpush1.msra.mxu0 0.0
    %2273 = vmatprep.subr.mxu0 0.0
    %2274 = vmatpush1.msra.mxu0 0.0
    %2275 = vmatprep.subr.mxu0 0.0
    %2276 = vmatpush1.msra.mxu0 0.0
    %2277 = vmatprep.subr.mxu0 0.0
    %2278 = vmatpush1.msra.mxu0 0.0
    %2279 = vmatprep.subr.mxu0 0.0
    %2280 = vmatpush1.msra.mxu0 0.0
    %2281 = vmatprep.subr.mxu0 0.0
    %2282 = vmatpush1.msra.mxu0 0.0
    %2283 = vmatprep.subr.mxu0 0.0
    %2284 = vmatpush1.msra.mxu0 0.0
    %2285 = vmatprep.subr.mxu0 0.0
    %2286 = vmatpush1.msra.mxu0 0.0
    %2287 = vmatprep.subr.mxu0 0.0
    %2288 = vmatpush1.msra.mxu0 0.0
    %2289 = vmatprep.subr.mxu0 0.0
    %2290 = vmatpush1.msra.mxu0 0.0
    %2291 = vmatprep.subr.mxu0 0.0
    %2292 = vmatpush1.msra.mxu0 0.0
    %2293 = vmatprep.subr.mxu0 0.0
    %2294 = vmatpush1.msra.mxu0 0.0
    %2295 = vmatprep.subr.mxu0 0.0
    %2296 = vmatpush1.msra.mxu0 0.0
    %2297 = vmatprep.subr.mxu0 0.0
    %2298 = vmatpush1.msra.mxu0 0.0
    %2299 = vmatprep.subr.mxu0 0.0
    %2300 = vmatpush1.msra.mxu0 0.0
    %2301 = vmatprep.subr.mxu0 0.0
    %2302 = vmatpush1.msra.mxu0 0.0
    %2303 = vmatprep.subr.mxu0 0.0
    %2304 = vmatpush1.msra.mxu0 0.0
    %2305 = vmatprep.subr.mxu0 0.0
    %2306 = vmatpush1.msra.mxu0 0.0
    %2307 = vmatprep.subr.mxu0 0.0
    %2308 = vmatpush1.msra.mxu0 0.0
    %2309 = vmatprep.subr.mxu0 0.0
    %2310 = vmatpush1.msra.mxu0 0.0
    %2311 = vmatprep.subr.mxu0 0.0
    %2312 = vmatpush1.msra.mxu0 0.0
    %2313 = vmatprep.subr.mxu0 0.0
    %2314 = vmatpush1.msra.mxu0 0.0
    %2315 = vmatprep.subr.mxu0 0.0
    %2316 = vmatpush1.msra.mxu0 0.0
    %2317 = vmatprep.mubr.f32.mxu0 0.0
    %2318 = vmatmul.mubr.f32.gmra.mrb[0].mxu0 %v2059
    %v2319 = vpop.f32.mrb[0].mxu0
    %v2320 = vadd.f32 0.0, %v2319
    %v2321 = vpop.f32.mrb[0].mxu0
    %v2322 = vadd.f32 0.0, %v2321
    %2323 = vmatprep.mubr.f32.mxu0 0.0
    %2324 = vmatmul.mubr.f32.gmra.mrb[0].mxu0 %v2061
    %v2325 = vpop.f32.mrb[0].mxu0
    %v2326 = vadd.f32 0.0, %v2325
    %v2327 = vpop.f32.mrb[0].mxu0
    %v2328 = vadd.f32 0.0, %v2327
    %2329 = vmatprep.mubr.f32.mxu0 0.0
    %2330 = vmatmul.mubr.f32.gmra.mrb[0].mxu0 %v2063
    %v2331 = vpop.f32.mrb[0].mxu0
    %v2332 = vadd.f32 0.0, %v2331
    %v2333 = vpop.f32.mrb[0].mxu0
    %v2334 = vadd.f32 0.0, %v2333
    %2335 = vmatprep.mubr.f32.mxu0 0.0
    %2336 = vmatmul.mubr.f32.gmra.mrb[0].mxu0 %v2065
    %v2337 = vpop.f32.mrb[0].mxu0
    %v2338 = vadd.f32 0.0, %v2337
    %v2339 = vpop.f32.mrb[0].mxu0
    %v2340 = vadd.f32 0.0, %v2339
    %2341 = vmatprep.mubr.f32.mxu0 0.0
    %2342 = vmatmul.mubr.f32.gmra.mrb[0].mxu0 %v2067
    %v2343 = vpop.f32.mrb[0].mxu0
    %v2344 = vadd.f32 0.0, %v2343
    %v2345 = vpop.f32.mrb[0].mxu0
    %v2346 = vadd.f32 0.0, %v2345
    %2347 = vmatprep.mubr.f32.mxu0 0.0
    %2348 = vmatmul.mubr.f32.gmra.mrb[0].mxu0 %v2069
    %v2349 = vpop.f32.mrb[0].mxu0
    %v2350 = vadd.f32 0.0, %v2349
    %v2351 = vpop.f32.mrb[0].mxu0
    %v2352 = vadd.f32 0.0, %v2351
    %2353 = vmatprep.mubr.f32.mxu0 0.0
    %2354 = vmatmul.mubr.f32.gmra.mrb[0].mxu0 %v2071
    %v2355 = vpop.f32.mrb[0].mxu0
    %v2356 = vadd.f32 0.0, %v2355
    %v2357 = vpop.f32.mrb[0].mxu0
    %v2358 = vadd.f32 0.0, %v2357
    %2359 = vmatprep.mubr.f32.mxu0 0.0
    %2360 = vmatmul.mubr.f32.gmra.mrb[0].mxu0 %v2073
    %v2361 = vpop.f32.mrb[0].mxu0
    %v2362 = vadd.f32 0.0, %v2361
    %v2363 = vpop.f32.mrb[0].mxu0
    %v2364 = vadd.f32 0.0, %v2363
    %2365 = vmatprep.mubr.f32.mxu0 0.0
    %2366 = vmatmul.mubr.f32.gmra.mrb[0].mxu0 %v2075
    %v2367 = vpop.f32.mrb[0].mxu0
    %v2368 = vadd.f32 0.0, %v2367
    %v2369 = vpop.f32.mrb[0].mxu0
    %v2370 = vadd.f32 0.0, %v2369
    %2371 = vmatprep.mubr.f32.mxu0 0.0
    %2372 = vmatmul.mubr.f32.gmra.mrb[0].mxu0 %v2077
    %v2373 = vpop.f32.mrb[0].mxu0
    %v2374 = vadd.f32 0.0, %v2373
    %v2375 = vpop.f32.mrb[0].mxu0
    %v2376 = vadd.f32 0.0, %v2375
    %2377 = vmatprep.mubr.f32.mxu0 0.0
    %2378 = vmatmul.mubr.f32.gmra.mrb[0].mxu0 %v2079
    %v2379 = vpop.f32.mrb[0].mxu0
    %v2380 = vadd.f32 0.0, %v2379
    %v2381 = vpop.f32.mrb[0].mxu0
    %v2382 = vadd.f32 0.0, %v2381
    %2383 = vmatprep.mubr.f32.mxu0 0.0
    %2384 = vmatmul.mubr.f32.gmra.mrb[0].mxu0 %v2081
    %v2385 = vpop.f32.mrb[0].mxu0
    %v2386 = vadd.f32 0.0, %v2385
    %v2387 = vpop.f32.mrb[0].mxu0
    %v2388 = vadd.f32 0.0, %v2387
    %2389 = vmatprep.mubr.f32.mxu0 0.0
    %2390 = vmatmul.mubr.f32.gmra.mrb[0].mxu0 %v2083
    %v2391 = vpop.f32.mrb[0].mxu0
    %v2392 = vadd.f32 0.0, %v2391
    %v2393 = vpop.f32.mrb[0].mxu0
    %v2394 = vadd.f32 0.0, %v2393
    %2395 = vmatprep.mubr.f32.mxu0 0.0
    %2396 = vmatmul.mubr.f32.gmra.mrb[0].mxu0 %v2085
    %v2397 = vpop.f32.mrb[0].mxu0
    %v2398 = vadd.f32 0.0, %v2397
    %v2399 = vpop.f32.mrb[0].mxu0
    %v2400 = vadd.f32 0.0, %v2399
    %2401 = vmatprep.mubr.f32.mxu0 0.0
    %2402 = vmatmul.mubr.f32.gmra.mrb[0].mxu0 %v2087
    %v2403 = vpop.f32.mrb[0].mxu0
    %v2404 = vadd.f32 0.0, %v2403
    %v2405 = vpop.f32.mrb[0].mxu0
    %v2406 = vadd.f32 0.0, %v2405
    %2407 = vmatprep.mubr.f32.mxu0 0.0
    %2408 = vmatmul.mubr.f32.gmra.mrb[0].mxu0 %v2090
    %v2409 = vpop.f32.mrb[0].mxu0
    %v2410 = vadd.f32 0.0, %v2409
    %v2411 = vpop.f32.mrb[0].mxu0
    %v2412 = vadd.f32 0.0, %v2411
    %2413 = vdwg.mxu0
    %2414 = vmatprep.subr.mxu0 0.0
    %2415 = vmatpush1.msra.mxu0 %v2023
    %2416 = vmatprep.subr.mxu0 0.0
    %2417 = vmatpush1.msra.mxu0 %v2028
    %2418 = vmatprep.subr.mxu0 0.0
    %2419 = vmatpush1.msra.mxu0 %v2033
    %2420 = vmatprep.subr.mxu0 0.0
    %2421 = vmatpush1.msra.mxu0 %v2038
    %2422 = vmatprep.subr.mxu0 0.0
    %2423 = vmatpush1.msra.mxu0 %v2043
    %2424 = vmatprep.subr.mxu0 0.0
    %2425 = vmatpush1.msra.mxu0 %v2048
    %2426 = vmatprep.subr.mxu0 0.0
    %2427 = vmatpush1.msra.mxu0 %v2053
    %2428 = vmatprep.subr.mxu0 0.0
    %2429 = vmatpush1.msra.mxu0 %v2058
    %2430 = vmatprep.subr.mxu0 0.0
    %2431 = vmatpush1.msra.mxu0 0.0
    %2432 = vmatprep.subr.mxu0 0.0
    %2433 = vmatpush1.msra.mxu0 0.0
    %2434 = vmatprep.subr.mxu0 0.0
    %2435 = vmatpush1.msra.mxu0 0.0
    %2436 = vmatprep.subr.mxu0 0.0
    %2437 = vmatpush1.msra.mxu0 0.0
    %2438 = vmatprep.subr.mxu0 0.0
    %2439 = vmatpush1.msra.mxu0 0.0
    %2440 = vmatprep.subr.mxu0 0.0
    %2441 = vmatpush1.msra.mxu0 0.0
    %2442 = vmatprep.subr.mxu0 0.0
    %2443 = vmatpush1.msra.mxu0 0.0
    %2444 = vmatprep.subr.mxu0 0.0
    %2445 = vmatpush1.msra.mxu0 0.0
    %2446 = vmatprep.subr.mxu0 0.0
    %2447 = vmatpush1.msra.mxu0 0.0
    %2448 = vmatprep.subr.mxu0 0.0
    %2449 = vmatpush1.msra.mxu0 0.0
    %2450 = vmatprep.subr.mxu0 0.0
    %2451 = vmatpush1.msra.mxu0 0.0
    %2452 = vmatprep.subr.mxu0 0.0
    %2453 = vmatpush1.msra.mxu0 0.0
    %2454 = vmatprep.subr.mxu0 0.0
    %2455 = vmatpush1.msra.mxu0 0.0
    %2456 = vmatprep.subr.mxu0 0.0
    %2457 = vmatpush1.msra.mxu0 0.0
    %2458 = vmatprep.subr.mxu0 0.0
    %2459 = vmatpush1.msra.mxu0 0.0
    %2460 = vmatprep.subr.mxu0 0.0
    %2461 = vmatpush1.msra.mxu0 0.0
    %2462 = vmatprep.subr.mxu0 0.0
    %2463 = vmatpush1.msra.mxu0 0.0
    %2464 = vmatprep.subr.mxu0 0.0
    %2465 = vmatpush1.msra.mxu0 0.0
    %2466 = vmatprep.subr.mxu0 0.0
    %2467 = vmatpush1.msra.mxu0 0.0
    %2468 = vmatprep.subr.mxu0 0.0
    %2469 = vmatpush1.msra.mxu0 0.0
    %2470 = vmatprep.subr.mxu0 0.0
    %2471 = vmatpush1.msra.mxu0 0.0
    %2472 = vmatprep.subr.mxu0 0.0
    %2473 = vmatpush1.msra.mxu0 0.0
    %2474 = vmatprep.subr.mxu0 0.0
    %2475 = vmatpush1.msra.mxu0 0.0
    %2476 = vmatprep.subr.mxu0 0.0
    %2477 = vmatpush1.msra.mxu0 0.0
    %2478 = vmatprep.mubr.f32.mxu0 0.0
    %2479 = vmatmul.mubr.f32.gmra.mrb[0].mxu0 %v2059
    %v2480 = vpop.f32.mrb[0].mxu0
    %v2481 = vadd.f32 0.0, %v2480
    %v2482 = vpop.f32.mrb[0].mxu0
    %2483 = vmatprep.mubr.f32.mxu0 0.0
    %2484 = vmatmul.mubr.f32.gmra.mrb[0].mxu0 %v2061
    %v2485 = vpop.f32.mrb[0].mxu0
    %v2486 = vadd.f32 0.0, %v2485
    %v2487 = vpop.f32.mrb[0].mxu0
    %2488 = vmatprep.mubr.f32.mxu0 0.0
    %2489 = vmatmul.mubr.f32.gmra.mrb[0].mxu0 %v2063
    %v2490 = vpop.f32.mrb[0].mxu0
    %v2491 = vadd.f32 0.0, %v2490
    %v2492 = vpop.f32.mrb[0].mxu0
    %2493 = vmatprep.mubr.f32.mxu0 0.0
    %2494 = vmatmul.mubr.f32.gmra.mrb[0].mxu0 %v2065
    %v2495 = vpop.f32.mrb[0].mxu0
    %v2496 = vadd.f32 0.0, %v2495
    %v2497 = vpop.f32.mrb[0].mxu0
    %2498 = vmatprep.mubr.f32.mxu0 0.0
    %2499 = vmatmul.mubr.f32.gmra.mrb[0].mxu0 %v2067
    %v2500 = vpop.f32.mrb[0].mxu0
    %v2501 = vadd.f32 0.0, %v2500
    %v2502 = vpop.f32.mrb[0].mxu0
    %2503 = vmatprep.mubr.f32.mxu0 0.0
    %2504 = vmatmul.mubr.f32.gmra.mrb[0].mxu0 %v2069
    %v2505 = vpop.f32.mrb[0].mxu0
    %v2506 = vadd.f32 0.0, %v2505
    %v2507 = vpop.f32.mrb[0].mxu0
    %2508 = vmatprep.mubr.f32.mxu0 0.0
    %2509 = vmatmul.mubr.f32.gmra.mrb[0].mxu0 %v2071
    %v2510 = vpop.f32.mrb[0].mxu0
    %v2511 = vadd.f32 0.0, %v2510
    %v2512 = vpop.f32.mrb[0].mxu0
    %2513 = vmatprep.mubr.f32.mxu0 0.0
    %2514 = vmatmul.mubr.f32.gmra.mrb[0].mxu0 %v2073
    %v2515 = vpop.f32.mrb[0].mxu0
    %v2516 = vadd.f32 0.0, %v2515
    %v2517 = vpop.f32.mrb[0].mxu0
    %2518 = vmatprep.mubr.f32.mxu0 0.0
    %2519 = vmatmul.mubr.f32.gmra.mrb[0].mxu0 %v2075
    %v2520 = vpop.f32.mrb[0].mxu0
    %v2521 = vadd.f32 0.0, %v2520
    %v2522 = vpop.f32.mrb[0].mxu0
    %2523 = vmatprep.mubr.f32.mxu0 0.0
    %2524 = vmatmul.mubr.f32.gmra.mrb[0].mxu0 %v2077
    %v2525 = vpop.f32.mrb[0].mxu0
    %v2526 = vadd.f32 0.0, %v2525
    %v2527 = vpop.f32.mrb[0].mxu0
    %2528 = vmatprep.mubr.f32.mxu0 0.0
    %2529 = vmatmul.mubr.f32.gmra.mrb[0].mxu0 %v2079
    %v2530 = vpop.f32.mrb[0].mxu0
    %v2531 = vadd.f32 0.0, %v2530
    %v2532 = vpop.f32.mrb[0].mxu0
    %2533 = vmatprep.mubr.f32.mxu0 0.0
    %2534 = vmatmul.mubr.f32.gmra.mrb[0].mxu0 %v2081
    %v2535 = vpop.f32.mrb[0].mxu0
    %v2536 = vadd.f32 0.0, %v2535
    %v2537 = vpop.f32.mrb[0].mxu0
    %2538 = vmatprep.mubr.f32.mxu0 0.0
    %2539 = vmatmul.mubr.f32.gmra.mrb[0].mxu0 %v2083
    %v2540 = vpop.f32.mrb[0].mxu0
    %v2541 = vadd.f32 0.0, %v2540
    %v2542 = vpop.f32.mrb[0].mxu0
    %2543 = vmatprep.mubr.f32.mxu0 0.0
    %2544 = vmatmul.mubr.f32.gmra.mrb[0].mxu0 %v2085
    %v2545 = vpop.f32.mrb[0].mxu0
    %v2546 = vadd.f32 0.0, %v2545
    %v2547 = vpop.f32.mrb[0].mxu0
    %2548 = vmatprep.mubr.f32.mxu0 0.0
    %2549 = vmatmul.mubr.f32.gmra.mrb[0].mxu0 %v2087
    %v2550 = vpop.f32.mrb[0].mxu0
    %v2551 = vadd.f32 0.0, %v2550
    %v2552 = vpop.f32.mrb[0].mxu0
    %2553 = vmatprep.mubr.f32.mxu0 0.0
    %2554 = vmatmul.mubr.f32.gmra.mrb[0].mxu0 %v2090
    %v2555 = vpop.f32.mrb[0].mxu0
    %v2556 = vadd.f32 0.0, %v2555
    %v2557 = vpop.f32.mrb[0].mxu0
    %2558 = vdwg.mxu0
    %v2559 = vadd.f32 %v1903, %v2159
    %v2560 = vadd.f32 %v1904, %v2161
    %v2561 = vadd.f32 %v1905, %v2320
    %v2562 = vadd.f32 %v1906, %v2322
    %v2563 = vadd.f32 %v1907, %v2481
    %v2564 = vadd.f32 %v1908, %v2165
    %v2565 = vadd.f32 %v1909, %v2167
    %v2566 = vadd.f32 %v1910, %v2326
    %v2567 = vadd.f32 %v1911, %v2328
    %v2568 = vadd.f32 %v1912, %v2486
    %v2569 = vadd.f32 %v1913, %v2171
    %v2570 = vadd.f32 %v1914, %v2173
    %v2571 = vadd.f32 %v1915, %v2332
    %v2572 = vadd.f32 %v1916, %v2334
    %v2573 = vadd.f32 %v1917, %v2491
    %v2574 = vadd.f32 %v1918, %v2177
    %v2575 = vadd.f32 %v1919, %v2179
    %v2576 = vadd.f32 %v1920, %v2338
    %v2577 = vadd.f32 %v1921, %v2340
    %v2578 = vadd.f32 %v1922, %v2496
    %v2579 = vadd.f32 %v1923, %v2183
    %v2580 = vadd.f32 %v1924, %v2185
    %v2581 = vadd.f32 %v1925, %v2344
    %v2582 = vadd.f32 %v1926, %v2346
    %v2583 = vadd.f32 %v1927, %v2501
    %v2584 = vadd.f32 %v1928, %v2189
    %v2585 = vadd.f32 %v1929, %v2191
    %v2586 = vadd.f32 %v1930, %v2350
    %v2587 = vadd.f32 %v1931, %v2352
    %v2588 = vadd.f32 %v1932, %v2506
    %v2589 = vadd.f32 %v1933, %v2195
    %v2590 = vadd.f32 %v1934, %v2197
    %v2591 = vadd.f32 %v1935, %v2356
    %v2592 = vadd.f32 %v1936, %v2358
    %v2593 = vadd.f32 %v1937, %v2511
    %v2594 = vadd.f32 %v1938, %v2201
    %v2595 = vadd.f32 %v1939, %v2203
    %v2596 = vadd.f32 %v1940, %v2362
    %v2597 = vadd.f32 %v1941, %v2364
    %v2598 = vadd.f32 %v1942, %v2516
    %v2599 = vadd.f32 %v1943, %v2207
    %v2600 = vadd.f32 %v1944, %v2209
    %v2601 = vadd.f32 %v1945, %v2368
    %v2602 = vadd.f32 %v1946, %v2370
    %v2603 = vadd.f32 %v1947, %v2521
    %v2604 = vadd.f32 %v1948, %v2213
    %v2605 = vadd.f32 %v1949, %v2215
    %v2606 = vadd.f32 %v1950, %v2374
    %v2607 = vadd.f32 %v1951, %v2376
    %v2608 = vadd.f32 %v1952, %v2526
    %v2609 = vadd.f32 %v1953, %v2219
    %v2610 = vadd.f32 %v1954, %v2221
    %v2611 = vadd.f32 %v1955, %v2380
    %v2612 = vadd.f32 %v1956, %v2382
    %v2613 = vadd.f32 %v1957, %v2531
    %v2614 = vadd.f32 %v1958, %v2225
    %v2615 = vadd.f32 %v1959, %v2227
    %v2616 = vadd.f32 %v1960, %v2386
    %v2617 = vadd.f32 %v1961, %v2388
    %v2618 = vadd.f32 %v1962, %v2536
    %v2619 = vadd.f32 %v1963, %v2231
    %v2620 = vadd.f32 %v1964, %v2233
    %v2621 = vadd.f32 %v1965, %v2392
    %v2622 = vadd.f32 %v1966, %v2394
    %v2623 = vadd.f32 %v1967, %v2541
    %v2624 = vadd.f32 %v1968, %v2237
    %v2625 = vadd.f32 %v1969, %v2239
    %v2626 = vadd.f32 %v1970, %v2398
    %v2627 = vadd.f32 %v1971, %v2400
    %v2628 = vadd.f32 %v1972, %v2546
    %v2629 = vadd.f32 %v1973, %v2243
    %v2630 = vadd.f32 %v1974, %v2245
    %v2631 = vadd.f32 %v1975, %v2404
    %v2632 = vadd.f32 %v1976, %v2406
    %v2633 = vadd.f32 %v1977, %v2551
    %v2634 = vadd.f32 %v1978, %v2249
    %v2635 = vadd.f32 %v1979, %v2251
    %v2636 = vadd.f32 %v1980, %v2410
    %v2637 = vadd.f32 %v1981, %v2412
    %v2638 = vadd.f32 %v1982, %v2556
    %vm2639 = vcmask 1043456
    %v2640 = vrot.slane %v179, 4
    %v2641 = vrot.slane %v180, 4
    %v2642 = vsel %vm2639, %v2640, %v2641
    %v2643 = vrot.slane %v181, 4
    %v2644 = vsel %vm2639, %v2641, %v2643
    %v2645 = vrot.slane %v182, 4
    %v2646 = vsel %vm2639, %v2643, %v2645
    %v2647 = vrot.slane %v183, 4
    %v2648 = vsel %vm2639, %v2645, %v2647
    %v2649 = vrot.slane %v184, 4
    %v2650 = vsel %vm2639, %v2647, %v2649
    %v2651 = vrot.slane %v185, 4
    %v2652 = vsel %vm2639, %v2649, %v2651
    %v2653 = vrot.slane %v186, 4
    %v2654 = vsel %vm2639, %v2651, %v2653
    %v2655 = vrot.slane %v187, 4
    %v2656 = vsel %vm2639, %v2653, %v2655
    %v2657 = vrot.slane %v188, 4
    %v2658 = vsel %vm2639, %v2655, %v2657
    %v2659 = vrot.slane %v189, 4
    %v2660 = vsel %vm2639, %v2657, %v2659
    %v2661 = vrot.slane %v190, 4
    %v2662 = vsel %vm2639, %v2659, %v2661
    %v2663 = vrot.slane %v191, 4
    %v2664 = vsel %vm2639, %v2661, %v2663
    %v2665 = vrot.slane %v192, 4
    %v2666 = vsel %vm2639, %v2663, %v2665
    %v2667 = vrot.slane %v193, 4
    %v2668 = vsel %vm2639, %v2665, %v2667
    %v2669 = vrot.slane %v194, 4
    %v2670 = vsel %vm2639, %v2667, %v2669
    %v2673 = vsel %vm2639, %v2669, %v2640
    %s2674 = scalar_lea.vmem [#allocation4], 1280
    %v2675 = vld [vmem:[%s2674] sm:$0xff]
    %v2676 = vld [vmem:[%s2674 + $0x8] sm:$0xff]
    %v2677 = vld [vmem:[%s2674 + $0x10] sm:$0xff]
    %v2678 = vld [vmem:[%s2674 + $0x18] sm:$0xff]
    %v2679 = vld [vmem:[%s2674 + $0x20] sm:$0xff]
    %v2680 = vld [vmem:[%s2674 + $0x28] sm:$0xff]
    %v2681 = vld [vmem:[%s2674 + $0x30] sm:$0xff]
    %v2682 = vld [vmem:[%s2674 + $0x38] sm:$0xff]
    %v2683 = vld [vmem:[%s2674 + $0x40] sm:$0xff]
    %v2684 = vld [vmem:[%s2674 + $0x48] sm:$0xff]
    %v2685 = vld [vmem:[%s2674 + $0x50] sm:$0xff]
    %v2686 = vld [vmem:[%s2674 + $0x58] sm:$0xff]
    %v2687 = vld [vmem:[%s2674 + $0x60] sm:$0xff]
    %v2688 = vld [vmem:[%s2674 + $0x68] sm:$0xff]
    %v2689 = vld [vmem:[%s2674 + $0x70] sm:$0xff]
    %v2690 = vld [vmem:[%s2674 + $0x78] sm:$0xff]
    %v2691 = vld [vmem:[%s2674 + $0x80] sm:$0xff]
    %v2692 = vld [vmem:[%s2674 + $0x88] sm:$0xff]
    %v2693 = vld [vmem:[%s2674 + $0x90] sm:$0xff]
    %v2694 = vld [vmem:[%s2674 + $0x98] sm:$0xff]
    %v2695 = vld [vmem:[%s2674 + $0xa0] sm:$0xff]
    %v2696 = vld [vmem:[%s2674 + $0xa8] sm:$0xff]
    %v2697 = vld [vmem:[%s2674 + $0xb0] sm:$0xff]
    %v2698 = vld [vmem:[%s2674 + $0xb8] sm:$0xff]
    %v2699 = vld [vmem:[%s2674 + $0xc0] sm:$0xff]
    %v2700 = vld [vmem:[%s2674 + $0xc8] sm:$0xff]
    %v2701 = vld [vmem:[%s2674 + $0xd0] sm:$0xff]
    %v2702 = vld [vmem:[%s2674 + $0xd8] sm:$0xff]
    %v2703 = vld [vmem:[%s2674 + $0xe0] sm:$0xff]
    %v2704 = vld [vmem:[%s2674 + $0xe8] sm:$0xff]
    %v2705 = vld [vmem:[%s2674 + $0xf0] sm:$0xff]
    %v2706 = vld [vmem:[%s2674 + $0xf8] sm:$0xff]
    %v2707 = vld [vmem:[%s2674 + $0x100] sm:$0xff]
    %v2708 = vld [vmem:[%s2674 + $0x108] sm:$0xff]
    %v2709 = vld [vmem:[%s2674 + $0x110] sm:$0xff]
    %v2710 = vld [vmem:[%s2674 + $0x118] sm:$0xff]
    %v2711 = vld [vmem:[%s2674 + $0x120] sm:$0xff]
    %v2712 = vld [vmem:[%s2674 + $0x128] sm:$0xff]
    %v2713 = vld [vmem:[%s2674 + $0x130] sm:$0xff]
    %v2714 = vld [vmem:[%s2674 + $0x138] sm:$0xff]
    %v2715 = vsel %vm327, %v2642, 0
    %v2717 = vsel %vm327, %v2644, 0
    %v2719 = vsel %vm327, %v2646, 0
    %v2721 = vsel %vm327, %v2648, 0
    %v2723 = vsel %vm327, %v2650, 0
    %v2725 = vsel %vm327, %v2652, 0
    %v2727 = vsel %vm327, %v2654, 0
    %v2729 = vsel %vm327, %v2656, 0
    %v2731 = vsel %vm327, %v2658, 0
    %v2733 = vsel %vm327, %v2660, 0
    %v2735 = vsel %vm327, %v2662, 0
    %v2737 = vsel %vm327, %v2664, 0
    %v2739 = vsel %vm327, %v2666, 0
    %v2741 = vsel %vm327, %v2668, 0
    %v2743 = vsel %vm327, %v2670, 0
    %v2746 = vsel %vm327, %v2673, 0
    %2748 = vmatprep.subr.mxu0 %v2676
    %2749 = vmatpush1.msra.mxu0 %v2675
    %2750 = vmatprep.subr.mxu0 %v2681
    %2751 = vmatpush1.msra.mxu0 %v2680
    %2752 = vmatprep.subr.mxu0 %v2686
    %2753 = vmatpush1.msra.mxu0 %v2685
    %2754 = vmatprep.subr.mxu0 %v2691
    %2755 = vmatpush1.msra.mxu0 %v2690
    %2756 = vmatprep.subr.mxu0 %v2696
    %2757 = vmatpush1.msra.mxu0 %v2695
    %2758 = vmatprep.subr.mxu0 %v2701
    %2759 = vmatpush1.msra.mxu0 %v2700
    %2760 = vmatprep.subr.mxu0 %v2706
    %2761 = vmatpush1.msra.mxu0 %v2705
    %2762 = vmatprep.subr.mxu0 %v2711
    %2763 = vmatpush1.msra.mxu0 %v2710
    %2764 = vmatprep.subr.mxu0 0.0
    %2765 = vmatpush1.msra.mxu0 0.0
    %2766 = vmatprep.subr.mxu0 0.0
    %2767 = vmatpush1.msra.mxu0 0.0
    %2768 = vmatprep.subr.mxu0 0.0
    %2769 = vmatpush1.msra.mxu0 0.0
    %2770 = vmatprep.subr.mxu0 0.0
    %2771 = vmatpush1.msra.mxu0 0.0
    %2772 = vmatprep.subr.mxu0 0.0
    %2773 = vmatpush1.msra.mxu0 0.0
    %2774 = vmatprep.subr.mxu0 0.0
    %2775 = vmatpush1.msra.mxu0 0.0
    %2776 = vmatprep.subr.mxu0 0.0
    %2777 = vmatpush1.msra.mxu0 0.0
    %2778 = vmatprep.subr.mxu0 0.0
    %2779 = vmatpush1.msra.mxu0 0.0
    %2780 = vmatprep.subr.mxu0 0.0
    %2781 = vmatpush1.msra.mxu0 0.0
    %2782 = vmatprep.subr.mxu0 0.0
    %2783 = vmatpush1.msra.mxu0 0.0
    %2784 = vmatprep.subr.mxu0 0.0
    %2785 = vmatpush1.msra.mxu0 0.0
    %2786 = vmatprep.subr.mxu0 0.0
    %2787 = vmatpush1.msra.mxu0 0.0
    %2788 = vmatprep.subr.mxu0 0.0
    %2789 = vmatpush1.msra.mxu0 0.0
    %2790 = vmatprep.subr.mxu0 0.0
    %2791 = vmatpush1.msra.mxu0 0.0
    %2792 = vmatprep.subr.mxu0 0.0
    %2793 = vmatpush1.msra.mxu0 0.0
    %2794 = vmatprep.subr.mxu0 0.0
    %2795 = vmatpush1.msra.mxu0 0.0
    %2796 = vmatprep.subr.mxu0 0.0
    %2797 = vmatpush1.msra.mxu0 0.0
    %2798 = vmatprep.subr.mxu0 0.0
    %2799 = vmatpush1.msra.mxu0 0.0
    %2800 = vmatprep.subr.mxu0 0.0
    %2801 = vmatpush1.msra.mxu0 0.0
    %2802 = vmatprep.subr.mxu0 0.0
    %2803 = vmatpush1.msra.mxu0 0.0
    %2804 = vmatprep.subr.mxu0 0.0
    %2805 = vmatpush1.msra.mxu0 0.0
    %2806 = vmatprep.subr.mxu0 0.0
    %2807 = vmatpush1.msra.mxu0 0.0
    %2808 = vmatprep.subr.mxu0 0.0
    %2809 = vmatpush1.msra.mxu0 0.0
    %2810 = vmatprep.subr.mxu0 0.0
    %2811 = vmatpush1.msra.mxu0 0.0
    %2812 = vmatprep.mubr.f32.mxu0 0.0
    %2813 = vmatmul.mubr.f32.gmra.mrb[0].mxu0 %v2715
    %v2814 = vpop.f32.mrb[0].mxu0
    %v2815 = vadd.f32 0.0, %v2814
    %v2816 = vpop.f32.mrb[0].mxu0
    %v2817 = vadd.f32 0.0, %v2816
    %2818 = vmatprep.mubr.f32.mxu0 0.0
    %2819 = vmatmul.mubr.f32.gmra.mrb[0].mxu0 %v2717
    %v2820 = vpop.f32.mrb[0].mxu0
    %v2821 = vadd.f32 0.0, %v2820
    %v2822 = vpop.f32.mrb[0].mxu0
    %v2823 = vadd.f32 0.0, %v2822
    %2824 = vmatprep.mubr.f32.mxu0 0.0
    %2825 = vmatmul.mubr.f32.gmra.mrb[0].mxu0 %v2719
    %v2826 = vpop.f32.mrb[0].mxu0
    %v2827 = vadd.f32 0.0, %v2826
    %v2828 = vpop.f32.mrb[0].mxu0
    %v2829 = vadd.f32 0.0, %v2828
    %2830 = vmatprep.mubr.f32.mxu0 0.0
    %2831 = vmatmul.mubr.f32.gmra.mrb[0].mxu0 %v2721
    %v2832 = vpop.f32.mrb[0].mxu0
    %v2833 = vadd.f32 0.0, %v2832
    %v2834 = vpop.f32.mrb[0].mxu0
    %v2835 = vadd.f32 0.0, %v2834
    %2836 = vmatprep.mubr.f32.mxu0 0.0
    %2837 = vmatmul.mubr.f32.gmra.mrb[0].mxu0 %v2723
    %v2838 = vpop.f32.mrb[0].mxu0
    %v2839 = vadd.f32 0.0, %v2838
    %v2840 = vpop.f32.mrb[0].mxu0
    %v2841 = vadd.f32 0.0, %v2840
    %2842 = vmatprep.mubr.f32.mxu0 0.0
    %2843 = vmatmul.mubr.f32.gmra.mrb[0].mxu0 %v2725
    %v2844 = vpop.f32.mrb[0].mxu0
    %v2845 = vadd.f32 0.0, %v2844
    %v2846 = vpop.f32.mrb[0].mxu0
    %v2847 = vadd.f32 0.0, %v2846
    %2848 = vmatprep.mubr.f32.mxu0 0.0
    %2849 = vmatmul.mubr.f32.gmra.mrb[0].mxu0 %v2727
    %v2850 = vpop.f32.mrb[0].mxu0
    %v2851 = vadd.f32 0.0, %v2850
    %v2852 = vpop.f32.mrb[0].mxu0
    %v2853 = vadd.f32 0.0, %v2852
    %2854 = vmatprep.mubr.f32.mxu0 0.0
    %2855 = vmatmul.mubr.f32.gmra.mrb[0].mxu0 %v2729
    %v2856 = vpop.f32.mrb[0].mxu0
    %v2857 = vadd.f32 0.0, %v2856
    %v2858 = vpop.f32.mrb[0].mxu0
    %v2859 = vadd.f32 0.0, %v2858
    %2860 = vmatprep.mubr.f32.mxu0 0.0
    %2861 = vmatmul.mubr.f32.gmra.mrb[0].mxu0 %v2731
    %v2862 = vpop.f32.mrb[0].mxu0
    %v2863 = vadd.f32 0.0, %v2862
    %v2864 = vpop.f32.mrb[0].mxu0
    %v2865 = vadd.f32 0.0, %v2864
    %2866 = vmatprep.mubr.f32.mxu0 0.0
    %2867 = vmatmul.mubr.f32.gmra.mrb[0].mxu0 %v2733
    %v2868 = vpop.f32.mrb[0].mxu0
    %v2869 = vadd.f32 0.0, %v2868
    %v2870 = vpop.f32.mrb[0].mxu0
    %v2871 = vadd.f32 0.0, %v2870
    %2872 = vmatprep.mubr.f32.mxu0 0.0
    %2873 = vmatmul.mubr.f32.gmra.mrb[0].mxu0 %v2735
    %v2874 = vpop.f32.mrb[0].mxu0
    %v2875 = vadd.f32 0.0, %v2874
    %v2876 = vpop.f32.mrb[0].mxu0
    %v2877 = vadd.f32 0.0, %v2876
    %2878 = vmatprep.mubr.f32.mxu0 0.0
    %2879 = vmatmul.mubr.f32.gmra.mrb[0].mxu0 %v2737
    %v2880 = vpop.f32.mrb[0].mxu0
    %v2881 = vadd.f32 0.0, %v2880
    %v2882 = vpop.f32.mrb[0].mxu0
    %v2883 = vadd.f32 0.0, %v2882
    %2884 = vmatprep.mubr.f32.mxu0 0.0
    %2885 = vmatmul.mubr.f32.gmra.mrb[0].mxu0 %v2739
    %v2886 = vpop.f32.mrb[0].mxu0
    %v2887 = vadd.f32 0.0, %v2886
    %v2888 = vpop.f32.mrb[0].mxu0
    %v2889 = vadd.f32 0.0, %v2888
    %2890 = vmatprep.mubr.f32.mxu0 0.0
    %2891 = vmatmul.mubr.f32.gmra.mrb[0].mxu0 %v2741
    %v2892 = vpop.f32.mrb[0].mxu0
    %v2893 = vadd.f32 0.0, %v2892
    %v2894 = vpop.f32.mrb[0].mxu0
    %v2895 = vadd.f32 0.0, %v2894
    %2896 = vmatprep.mubr.f32.mxu0 0.0
    %2897 = vmatmul.mubr.f32.gmra.mrb[0].mxu0 %v2743
    %v2898 = vpop.f32.mrb[0].mxu0
    %v2899 = vadd.f32 0.0, %v2898
    %v2900 = vpop.f32.mrb[0].mxu0
    %v2901 = vadd.f32 0.0, %v2900
    %2902 = vmatprep.mubr.f32.mxu0 0.0
    %2903 = vmatmul.mubr.f32.gmra.mrb[0].mxu0 %v2746
    %v2904 = vpop.f32.mrb[0].mxu0
    %v2905 = vadd.f32 0.0, %v2904
    %v2906 = vpop.f32.mrb[0].mxu0
    %v2907 = vadd.f32 0.0, %v2906
    %2908 = vdwg.mxu0
    %2909 = vmatprep.subr.mxu0 %v2678
    %2910 = vmatpush1.msra.mxu0 %v2677
    %2911 = vmatprep.subr.mxu0 %v2683
    %2912 = vmatpush1.msra.mxu0 %v2682
    %2913 = vmatprep.subr.mxu0 %v2688
    %2914 = vmatpush1.msra.mxu0 %v2687
    %2915 = vmatprep.subr.mxu0 %v2693
    %2916 = vmatpush1.msra.mxu0 %v2692
    %2917 = vmatprep.subr.mxu0 %v2698
    %2918 = vmatpush1.msra.mxu0 %v2697
    %2919 = vmatprep.subr.mxu0 %v2703
    %2920 = vmatpush1.msra.mxu0 %v2702
    %2921 = vmatprep.subr.mxu0 %v2708
    %2922 = vmatpush1.msra.mxu0 %v2707
    %2923 = vmatprep.subr.mxu0 %v2713
    %2924 = vmatpush1.msra.mxu0 %v2712
    %2925 = vmatprep.subr.mxu0 0.0
    %2926 = vmatpush1.msra.mxu0 0.0
    %2927 = vmatprep.subr.mxu0 0.0
    %2928 = vmatpush1.msra.mxu0 0.0
    %2929 = vmatprep.subr.mxu0 0.0
    %2930 = vmatpush1.msra.mxu0 0.0
    %2931 = vmatprep.subr.mxu0 0.0
    %2932 = vmatpush1.msra.mxu0 0.0
    %2933 = vmatprep.subr.mxu0 0.0
    %2934 = vmatpush1.msra.mxu0 0.0
    %2935 = vmatprep.subr.mxu0 0.0
    %2936 = vmatpush1.msra.mxu0 0.0
    %2937 = vmatprep.subr.mxu0 0.0
    %2938 = vmatpush1.msra.mxu0 0.0
    %2939 = vmatprep.subr.mxu0 0.0
    %2940 = vmatpush1.msra.mxu0 0.0
    %2941 = vmatprep.subr.mxu0 0.0
    %2942 = vmatpush1.msra.mxu0 0.0
    %2943 = vmatprep.subr.mxu0 0.0
    %2944 = vmatpush1.msra.mxu0 0.0
    %2945 = vmatprep.subr.mxu0 0.0
    %2946 = vmatpush1.msra.mxu0 0.0
    %2947 = vmatprep.subr.mxu0 0.0
    %2948 = vmatpush1.msra.mxu0 0.0
    %2949 = vmatprep.subr.mxu0 0.0
    %2950 = vmatpush1.msra.mxu0 0.0
    %2951 = vmatprep.subr.mxu0 0.0
    %2952 = vmatpush1.msra.mxu0 0.0
    %2953 = vmatprep.subr.mxu0 0.0
    %2954 = vmatpush1.msra.mxu0 0.0
    %2955 = vmatprep.subr.mxu0 0.0
    %2956 = vmatpush1.msra.mxu0 0.0
    %2957 = vmatprep.subr.mxu0 0.0
    %2958 = vmatpush1.msra.mxu0 0.0
    %2959 = vmatprep.subr.mxu0 0.0
    %2960 = vmatpush1.msra.mxu0 0.0
    %2961 = vmatprep.subr.mxu0 0.0
    %2962 = vmatpush1.msra.mxu0 0.0
    %2963 = vmatprep.subr.mxu0 0.0
    %2964 = vmatpush1.msra.mxu0 0.0
    %2965 = vmatprep.subr.mxu0 0.0
    %2966 = vmatpush1.msra.mxu0 0.0
    %2967 = vmatprep.subr.mxu0 0.0
    %2968 = vmatpush1.msra.mxu0 0.0
    %2969 = vmatprep.subr.mxu0 0.0
    %2970 = vmatpush1.msra.mxu0 0.0
    %2971 = vmatprep.subr.mxu0 0.0
    %2972 = vmatpush1.msra.mxu0 0.0
    %2973 = vmatprep.mubr.f32.mxu0 0.0
    %2974 = vmatmul.mubr.f32.gmra.mrb[0].mxu0 %v2715
    %v2975 = vpop.f32.mrb[0].mxu0
    %v2976 = vadd.f32 0.0, %v2975
    %v2977 = vpop.f32.mrb[0].mxu0
    %v2978 = vadd.f32 0.0, %v2977
    %2979 = vmatprep.mubr.f32.mxu0 0.0
    %2980 = vmatmul.mubr.f32.gmra.mrb[0].mxu0 %v2717
    %v2981 = vpop.f32.mrb[0].mxu0
    %v2982 = vadd.f32 0.0, %v2981
    %v2983 = vpop.f32.mrb[0].mxu0
    %v2984 = vadd.f32 0.0, %v2983
    %2985 = vmatprep.mubr.f32.mxu0 0.0
    %2986 = vmatmul.mubr.f32.gmra.mrb[0].mxu0 %v2719
    %v2987 = vpop.f32.mrb[0].mxu0
    %v2988 = vadd.f32 0.0, %v2987
    %v2989 = vpop.f32.mrb[0].mxu0
    %v2990 = vadd.f32 0.0, %v2989
    %2991 = vmatprep.mubr.f32.mxu0 0.0
    %2992 = vmatmul.mubr.f32.gmra.mrb[0].mxu0 %v2721
    %v2993 = vpop.f32.mrb[0].mxu0
    %v2994 = vadd.f32 0.0, %v2993
    %v2995 = vpop.f32.mrb[0].mxu0
    %v2996 = vadd.f32 0.0, %v2995
    %2997 = vmatprep.mubr.f32.mxu0 0.0
    %2998 = vmatmul.mubr.f32.gmra.mrb[0].mxu0 %v2723
    %v2999 = vpop.f32.mrb[0].mxu0
    %v3000 = vadd.f32 0.0, %v2999
    %v3001 = vpop.f32.mrb[0].mxu0
    %v3002 = vadd.f32 0.0, %v3001
    %3003 = vmatprep.mubr.f32.mxu0 0.0
    %3004 = vmatmul.mubr.f32.gmra.mrb[0].mxu0 %v2725
    %v3005 = vpop.f32.mrb[0].mxu0
    %v3006 = vadd.f32 0.0, %v3005
    %v3007 = vpop.f32.mrb[0].mxu0
    %v3008 = vadd.f32 0.0, %v3007
    %3009 = vmatprep.mubr.f32.mxu0 0.0
    %3010 = vmatmul.mubr.f32.gmra.mrb[0].mxu0 %v2727
    %v3011 = vpop.f32.mrb[0].mxu0
    %v3012 = vadd.f32 0.0, %v3011
    %v3013 = vpop.f32.mrb[0].mxu0
    %v3014 = vadd.f32 0.0, %v3013
    %3015 = vmatprep.mubr.f32.mxu0 0.0
    %3016 = vmatmul.mubr.f32.gmra.mrb[0].mxu0 %v2729
    %v3017 = vpop.f32.mrb[0].mxu0
    %v3018 = vadd.f32 0.0, %v3017
    %v3019 = vpop.f32.mrb[0].mxu0
    %v3020 = vadd.f32 0.0, %v3019
    %3021 = vmatprep.mubr.f32.mxu0 0.0
    %3022 = vmatmul.mubr.f32.gmra.mrb[0].mxu0 %v2731
    %v3023 = vpop.f32.mrb[0].mxu0
    %v3024 = vadd.f32 0.0, %v3023
    %v3025 = vpop.f32.mrb[0].mxu0
    %v3026 = vadd.f32 0.0, %v3025
    %3027 = vmatprep.mubr.f32.mxu0 0.0
    %3028 = vmatmul.mubr.f32.gmra.mrb[0].mxu0 %v2733
    %v3029 = vpop.f32.mrb[0].mxu0
    %v3030 = vadd.f32 0.0, %v3029
    %v3031 = vpop.f32.mrb[0].mxu0
    %v3032 = vadd.f32 0.0, %v3031
    %3033 = vmatprep.mubr.f32.mxu0 0.0
    %3034 = vmatmul.mubr.f32.gmra.mrb[0].mxu0 %v2735
    %v3035 = vpop.f32.mrb[0].mxu0
    %v3036 = vadd.f32 0.0, %v3035
    %v3037 = vpop.f32.mrb[0].mxu0
    %v3038 = vadd.f32 0.0, %v3037
    %3039 = vmatprep.mubr.f32.mxu0 0.0
    %3040 = vmatmul.mubr.f32.gmra.mrb[0].mxu0 %v2737
    %v3041 = vpop.f32.mrb[0].mxu0
    %v3042 = vadd.f32 0.0, %v3041
    %v3043 = vpop.f32.mrb[0].mxu0
    %v3044 = vadd.f32 0.0, %v3043
    %3045 = vmatprep.mubr.f32.mxu0 0.0
    %3046 = vmatmul.mubr.f32.gmra.mrb[0].mxu0 %v2739
    %v3047 = vpop.f32.mrb[0].mxu0
    %v3048 = vadd.f32 0.0, %v3047
    %v3049 = vpop.f32.mrb[0].mxu0
    %v3050 = vadd.f32 0.0, %v3049
    %3051 = vmatprep.mubr.f32.mxu0 0.0
    %3052 = vmatmul.mubr.f32.gmra.mrb[0].mxu0 %v2741
    %v3053 = vpop.f32.mrb[0].mxu0
    %v3054 = vadd.f32 0.0, %v3053
    %v3055 = vpop.f32.mrb[0].mxu0
    %v3056 = vadd.f32 0.0, %v3055
    %3057 = vmatprep.mubr.f32.mxu0 0.0
    %3058 = vmatmul.mubr.f32.gmra.mrb[0].mxu0 %v2743
    %v3059 = vpop.f32.mrb[0].mxu0
    %v3060 = vadd.f32 0.0, %v3059
    %v3061 = vpop.f32.mrb[0].mxu0
    %v3062 = vadd.f32 0.0, %v3061
    %3063 = vmatprep.mubr.f32.mxu0 0.0
    %3064 = vmatmul.mubr.f32.gmra.mrb[0].mxu0 %v2746
    %v3065 = vpop.f32.mrb[0].mxu0
    %v3066 = vadd.f32 0.0, %v3065
    %v3067 = vpop.f32.mrb[0].mxu0
    %v3068 = vadd.f32 0.0, %v3067
    %3069 = vdwg.mxu0
    %3070 = vmatprep.subr.mxu0 0.0
    %3071 = vmatpush1.msra.mxu0 %v2679
    %3072 = vmatprep.subr.mxu0 0.0
    %3073 = vmatpush1.msra.mxu0 %v2684
    %3074 = vmatprep.subr.mxu0 0.0
    %3075 = vmatpush1.msra.mxu0 %v2689
    %3076 = vmatprep.subr.mxu0 0.0
    %3077 = vmatpush1.msra.mxu0 %v2694
    %3078 = vmatprep.subr.mxu0 0.0
    %3079 = vmatpush1.msra.mxu0 %v2699
    %3080 = vmatprep.subr.mxu0 0.0
    %3081 = vmatpush1.msra.mxu0 %v2704
    %3082 = vmatprep.subr.mxu0 0.0
    %3083 = vmatpush1.msra.mxu0 %v2709
    %3084 = vmatprep.subr.mxu0 0.0
    %3085 = vmatpush1.msra.mxu0 %v2714
    %3086 = vmatprep.subr.mxu0 0.0
    %3087 = vmatpush1.msra.mxu0 0.0
    %3088 = vmatprep.subr.mxu0 0.0
    %3089 = vmatpush1.msra.mxu0 0.0
    %3090 = vmatprep.subr.mxu0 0.0
    %3091 = vmatpush1.msra.mxu0 0.0
    %3092 = vmatprep.subr.mxu0 0.0
    %3093 = vmatpush1.msra.mxu0 0.0
    %3094 = vmatprep.subr.mxu0 0.0
    %3095 = vmatpush1.msra.mxu0 0.0
    %3096 = vmatprep.subr.mxu0 0.0
    %3097 = vmatpush1.msra.mxu0 0.0
    %3098 = vmatprep.subr.mxu0 0.0
    %3099 = vmatpush1.msra.mxu0 0.0
    %3100 = vmatprep.subr.mxu0 0.0
    %3101 = vmatpush1.msra.mxu0 0.0
    %3102 = vmatprep.subr.mxu0 0.0
    %3103 = vmatpush1.msra.mxu0 0.0
    %3104 = vmatprep.subr.mxu0 0.0
    %3105 = vmatpush1.msra.mxu0 0.0
    %3106 = vmatprep.subr.mxu0 0.0
    %3107 = vmatpush1.msra.mxu0 0.0
    %3108 = vmatprep.subr.mxu0 0.0
    %3109 = vmatpush1.msra.mxu0 0.0
    %3110 = vmatprep.subr.mxu0 0.0
    %3111 = vmatpush1.msra.mxu0 0.0
    %3112 = vmatprep.subr.mxu0 0.0
    %3113 = vmatpush1.msra.mxu0 0.0
    %3114 = vmatprep.subr.mxu0 0.0
    %3115 = vmatpush1.msra.mxu0 0.0
    %3116 = vmatprep.subr.mxu0 0.0
    %3117 = vmatpush1.msra.mxu0 0.0
    %3118 = vmatprep.subr.mxu0 0.0
    %3119 = vmatpush1.msra.mxu0 0.0
    %3120 = vmatprep.subr.mxu0 0.0
    %3121 = vmatpush1.msra.mxu0 0.0
    %3122 = vmatprep.subr.mxu0 0.0
    %3123 = vmatpush1.msra.mxu0 0.0
    %3124 = vmatprep.subr.mxu0 0.0
    %3125 = vmatpush1.msra.mxu0 0.0
    %3126 = vmatprep.subr.mxu0 0.0
    %3127 = vmatpush1.msra.mxu0 0.0
    %3128 = vmatprep.subr.mxu0 0.0
    %3129 = vmatpush1.msra.mxu0 0.0
    %3130 = vmatprep.subr.mxu0 0.0
    %3131 = vmatpush1.msra.mxu0 0.0
    %3132 = vmatprep.subr.mxu0 0.0
    %3133 = vmatpush1.msra.mxu0 0.0
    %3134 = vmatprep.mubr.f32.mxu0 0.0
    %3135 = vmatmul.mubr.f32.gmra.mrb[0].mxu0 %v2715
    %v3136 = vpop.f32.mrb[0].mxu0
    %v3137 = vadd.f32 0.0, %v3136
    %v3138 = vpop.f32.mrb[0].mxu0
    %3139 = vmatprep.mubr.f32.mxu0 0.0
    %3140 = vmatmul.mubr.f32.gmra.mrb[0].mxu0 %v2717
    %v3141 = vpop.f32.mrb[0].mxu0
    %v3142 = vadd.f32 0.0, %v3141
    %v3143 = vpop.f32.mrb[0].mxu0
    %3144 = vmatprep.mubr.f32.mxu0 0.0
    %3145 = vmatmul.mubr.f32.gmra.mrb[0].mxu0 %v2719
    %v3146 = vpop.f32.mrb[0].mxu0
    %v3147 = vadd.f32 0.0, %v3146
    %v3148 = vpop.f32.mrb[0].mxu0
    %3149 = vmatprep.mubr.f32.mxu0 0.0
    %3150 = vmatmul.mubr.f32.gmra.mrb[0].mxu0 %v2721
    %v3151 = vpop.f32.mrb[0].mxu0
    %v3152 = vadd.f32 0.0, %v3151
    %v3153 = vpop.f32.mrb[0].mxu0
    %3154 = vmatprep.mubr.f32.mxu0 0.0
    %3155 = vmatmul.mubr.f32.gmra.mrb[0].mxu0 %v2723
    %v3156 = vpop.f32.mrb[0].mxu0
    %v3157 = vadd.f32 0.0, %v3156
    %v3158 = vpop.f32.mrb[0].mxu0
    %3159 = vmatprep.mubr.f32.mxu0 0.0
    %3160 = vmatmul.mubr.f32.gmra.mrb[0].mxu0 %v2725
    %v3161 = vpop.f32.mrb[0].mxu0
    %v3162 = vadd.f32 0.0, %v3161
    %v3163 = vpop.f32.mrb[0].mxu0
    %3164 = vmatprep.mubr.f32.mxu0 0.0
    %3165 = vmatmul.mubr.f32.gmra.mrb[0].mxu0 %v2727
    %v3166 = vpop.f32.mrb[0].mxu0
    %v3167 = vadd.f32 0.0, %v3166
    %v3168 = vpop.f32.mrb[0].mxu0
    %3169 = vmatprep.mubr.f32.mxu0 0.0
    %3170 = vmatmul.mubr.f32.gmra.mrb[0].mxu0 %v2729
    %v3171 = vpop.f32.mrb[0].mxu0
    %v3172 = vadd.f32 0.0, %v3171
    %v3173 = vpop.f32.mrb[0].mxu0
    %3174 = vmatprep.mubr.f32.mxu0 0.0
    %3175 = vmatmul.mubr.f32.gmra.mrb[0].mxu0 %v2731
    %v3176 = vpop.f32.mrb[0].mxu0
    %v3177 = vadd.f32 0.0, %v3176
    %v3178 = vpop.f32.mrb[0].mxu0
    %3179 = vmatprep.mubr.f32.mxu0 0.0
    %3180 = vmatmul.mubr.f32.gmra.mrb[0].mxu0 %v2733
    %v3181 = vpop.f32.mrb[0].mxu0
    %v3182 = vadd.f32 0.0, %v3181
    %v3183 = vpop.f32.mrb[0].mxu0
    %3184 = vmatprep.mubr.f32.mxu0 0.0
    %3185 = vmatmul.mubr.f32.gmra.mrb[0].mxu0 %v2735
    %v3186 = vpop.f32.mrb[0].mxu0
    %v3187 = vadd.f32 0.0, %v3186
    %v3188 = vpop.f32.mrb[0].mxu0
    %3189 = vmatprep.mubr.f32.mxu0 0.0
    %3190 = vmatmul.mubr.f32.gmra.mrb[0].mxu0 %v2737
    %v3191 = vpop.f32.mrb[0].mxu0
    %v3192 = vadd.f32 0.0, %v3191
    %v3193 = vpop.f32.mrb[0].mxu0
    %3194 = vmatprep.mubr.f32.mxu0 0.0
    %3195 = vmatmul.mubr.f32.gmra.mrb[0].mxu0 %v2739
    %v3196 = vpop.f32.mrb[0].mxu0
    %v3197 = vadd.f32 0.0, %v3196
    %v3198 = vpop.f32.mrb[0].mxu0
    %3199 = vmatprep.mubr.f32.mxu0 0.0
    %3200 = vmatmul.mubr.f32.gmra.mrb[0].mxu0 %v2741
    %v3201 = vpop.f32.mrb[0].mxu0
    %v3202 = vadd.f32 0.0, %v3201
    %v3203 = vpop.f32.mrb[0].mxu0
    %3204 = vmatprep.mubr.f32.mxu0 0.0
    %3205 = vmatmul.mubr.f32.gmra.mrb[0].mxu0 %v2743
    %v3206 = vpop.f32.mrb[0].mxu0
    %v3207 = vadd.f32 0.0, %v3206
    %v3208 = vpop.f32.mrb[0].mxu0
    %3209 = vmatprep.mubr.f32.mxu0 0.0
    %3210 = vmatmul.mubr.f32.gmra.mrb[0].mxu0 %v2746
    %v3211 = vpop.f32.mrb[0].mxu0
    %v3212 = vadd.f32 0.0, %v3211
    %v3213 = vpop.f32.mrb[0].mxu0
    %3214 = vdwg.mxu0
    %v3215 = vadd.f32 %v2559, %v2815
    %v3216 = vadd.f32 %v2560, %v2817
    %v3217 = vadd.f32 %v2561, %v2976
    %v3218 = vadd.f32 %v2562, %v2978
    %v3219 = vadd.f32 %v2563, %v3137
    %v3220 = vadd.f32 %v2564, %v2821
    %v3221 = vadd.f32 %v2565, %v2823
    %v3222 = vadd.f32 %v2566, %v2982
    %v3223 = vadd.f32 %v2567, %v2984
    %v3224 = vadd.f32 %v2568, %v3142
    %v3225 = vadd.f32 %v2569, %v2827
    %v3226 = vadd.f32 %v2570, %v2829
    %v3227 = vadd.f32 %v2571, %v2988
    %v3228 = vadd.f32 %v2572, %v2990
    %v3229 = vadd.f32 %v2573, %v3147
    %v3230 = vadd.f32 %v2574, %v2833
    %v3231 = vadd.f32 %v2575, %v2835
    %v3232 = vadd.f32 %v2576, %v2994
    %v3233 = vadd.f32 %v2577, %v2996
    %v3234 = vadd.f32 %v2578, %v3152
    %v3235 = vadd.f32 %v2579, %v2839
    %v3236 = vadd.f32 %v2580, %v2841
    %v3237 = vadd.f32 %v2581, %v3000
    %v3238 = vadd.f32 %v2582, %v3002
    %v3239 = vadd.f32 %v2583, %v3157
    %v3240 = vadd.f32 %v2584, %v2845
    %v3241 = vadd.f32 %v2585, %v2847
    %v3242 = vadd.f32 %v2586, %v3006
    %v3243 = vadd.f32 %v2587, %v3008
    %v3244 = vadd.f32 %v2588, %v3162
    %v3245 = vadd.f32 %v2589, %v2851
    %v3246 = vadd.f32 %v2590, %v2853
    %v3247 = vadd.f32 %v2591, %v3012
    %v3248 = vadd.f32 %v2592, %v3014
    %v3249 = vadd.f32 %v2593, %v3167
    %v3250 = vadd.f32 %v2594, %v2857
    %v3251 = vadd.f32 %v2595, %v2859
    %v3252 = vadd.f32 %v2596, %v3018
    %v3253 = vadd.f32 %v2597, %v3020
    %v3254 = vadd.f32 %v2598, %v3172
    %v3255 = vadd.f32 %v2599, %v2863
    %v3256 = vadd.f32 %v2600, %v2865
    %v3257 = vadd.f32 %v2601, %v3024
    %v3258 = vadd.f32 %v2602, %v3026
    %v3259 = vadd.f32 %v2603, %v3177
    %v3260 = vadd.f32 %v2604, %v2869
    %v3261 = vadd.f32 %v2605, %v2871
    %v3262 = vadd.f32 %v2606, %v3030
    %v3263 = vadd.f32 %v2607, %v3032
    %v3264 = vadd.f32 %v2608, %v3182
    %v3265 = vadd.f32 %v2609, %v2875
    %v3266 = vadd.f32 %v2610, %v2877
    %v3267 = vadd.f32 %v2611, %v3036
    %v3268 = vadd.f32 %v2612, %v3038
    %v3269 = vadd.f32 %v2613, %v3187
    %v3270 = vadd.f32 %v2614, %v2881
    %v3271 = vadd.f32 %v2615, %v2883
    %v3272 = vadd.f32 %v2616, %v3042
    %v3273 = vadd.f32 %v2617, %v3044
    %v3274 = vadd.f32 %v2618, %v3192
    %v3275 = vadd.f32 %v2619, %v2887
    %v3276 = vadd.f32 %v2620, %v2889
    %v3277 = vadd.f32 %v2621, %v3048
    %v3278 = vadd.f32 %v2622, %v3050
    %v3279 = vadd.f32 %v2623, %v3197
    %v3280 = vadd.f32 %v2624, %v2893
    %v3281 = vadd.f32 %v2625, %v2895
    %v3282 = vadd.f32 %v2626, %v3054
    %v3283 = vadd.f32 %v2627, %v3056
    %v3284 = vadd.f32 %v2628, %v3202
    %v3285 = vadd.f32 %v2629, %v2899
    %v3286 = vadd.f32 %v2630, %v2901
    %v3287 = vadd.f32 %v2631, %v3060
    %v3288 = vadd.f32 %v2632, %v3062
    %v3289 = vadd.f32 %v2633, %v3207
    %v3290 = vadd.f32 %v2634, %v2905
    %v3291 = vadd.f32 %v2635, %v2907
    %v3292 = vadd.f32 %v2636, %v3066
    %v3293 = vadd.f32 %v2637, %v3068
    %v3294 = vadd.f32 %v2638, %v3212
    %v3295 = vld [vmem:[#allocation6] sm:$0x1f]
    %v3297 = vlaneseq
    %v3298 = vshrl.u32 %v3297, 7
    %v3299 = vsub.s32 0, %v3298
    %v3300 = vrot.slane %v3295, %v3299
    %v3301 = vlaneseq
    %v3302 = vshrl.u32 %v3301, 7
    %v3303 = vsub.s32 1, %v3302
    %v3304 = vrot.slane %v3295, %v3303
    %v3305 = vlaneseq
    %v3306 = vshrl.u32 %v3305, 7
    %v3307 = vsub.s32 2, %v3306
    %v3308 = vrot.slane %v3295, %v3307
    %v3309 = vlaneseq
    %v3310 = vshrl.u32 %v3309, 7
    %v3311 = vsub.s32 3, %v3310
    %v3312 = vrot.slane %v3295, %v3311
    %v3313 = vlaneseq
    %v3314 = vshrl.u32 %v3313, 7
    %v3315 = vsub.s32 4, %v3314
    %v3316 = vrot.slane %v3295, %v3315
    %v3322 = vadd.f32 %v3215, %v3300
    %v3323 = vadd.f32 %v3216, %v3304
    %v3324 = vadd.f32 %v3217, %v3308
    %v3325 = vadd.f32 %v3218, %v3312
    %v3326 = vadd.f32 %v3219, %v3316
    %v3327 = vadd.f32 %v3220, %v3300
    %v3328 = vadd.f32 %v3221, %v3304
    %v3329 = vadd.f32 %v3222, %v3308
    %v3330 = vadd.f32 %v3223, %v3312
    %v3331 = vadd.f32 %v3224, %v3316
    %v3332 = vadd.f32 %v3225, %v3300
    %v3333 = vadd.f32 %v3226, %v3304
    %v3334 = vadd.f32 %v3227, %v3308
    %v3335 = vadd.f32 %v3228, %v3312
    %v3336 = vadd.f32 %v3229, %v3316
    %v3337 = vadd.f32 %v3230, %v3300
    %v3338 = vadd.f32 %v3231, %v3304
    %v3339 = vadd.f32 %v3232, %v3308
    %v3340 = vadd.f32 %v3233, %v3312
    %v3341 = vadd.f32 %v3234, %v3316
    %v3342 = vadd.f32 %v3235, %v3300
    %v3343 = vadd.f32 %v3236, %v3304
    %v3344 = vadd.f32 %v3237, %v3308
    %v3345 = vadd.f32 %v3238, %v3312
    %v3346 = vadd.f32 %v3239, %v3316
    %v3347 = vadd.f32 %v3240, %v3300
    %v3348 = vadd.f32 %v3241, %v3304
    %v3349 = vadd.f32 %v3242, %v3308
    %v3350 = vadd.f32 %v3243, %v3312
    %v3351 = vadd.f32 %v3244, %v3316
    %v3352 = vadd.f32 %v3245, %v3300
    %v3353 = vadd.f32 %v3246, %v3304
    %v3354 = vadd.f32 %v3247, %v3308
    %v3355 = vadd.f32 %v3248, %v3312
    %v3356 = vadd.f32 %v3249, %v3316
    %v3357 = vadd.f32 %v3250, %v3300
    %v3358 = vadd.f32 %v3251, %v3304
    %v3359 = vadd.f32 %v3252, %v3308
    %v3360 = vadd.f32 %v3253, %v3312
    %v3361 = vadd.f32 %v3254, %v3316
    %v3362 = vadd.f32 %v3255, %v3300
    %v3363 = vadd.f32 %v3256, %v3304
    %v3364 = vadd.f32 %v3257, %v3308
    %v3365 = vadd.f32 %v3258, %v3312
    %v3366 = vadd.f32 %v3259, %v3316
    %v3367 = vadd.f32 %v3260, %v3300
    %v3368 = vadd.f32 %v3261, %v3304
    %v3369 = vadd.f32 %v3262, %v3308
    %v3370 = vadd.f32 %v3263, %v3312
    %v3371 = vadd.f32 %v3264, %v3316
    %v3372 = vadd.f32 %v3265, %v3300
    %v3373 = vadd.f32 %v3266, %v3304
    %v3374 = vadd.f32 %v3267, %v3308
    %v3375 = vadd.f32 %v3268, %v3312
    %v3376 = vadd.f32 %v3269, %v3316
    %v3377 = vadd.f32 %v3270, %v3300
    %v3378 = vadd.f32 %v3271, %v3304
    %v3379 = vadd.f32 %v3272, %v3308
    %v3380 = vadd.f32 %v3273, %v3312
    %v3381 = vadd.f32 %v3274, %v3316
    %v3382 = vadd.f32 %v3275, %v3300
    %v3383 = vadd.f32 %v3276, %v3304
    %v3384 = vadd.f32 %v3277, %v3308
    %v3385 = vadd.f32 %v3278, %v3312
    %v3386 = vadd.f32 %v3279, %v3316
    %v3387 = vadd.f32 %v3280, %v3300
    %v3388 = vadd.f32 %v3281, %v3304
    %v3389 = vadd.f32 %v3282, %v3308
    %v3390 = vadd.f32 %v3283, %v3312
    %v3391 = vadd.f32 %v3284, %v3316
    %v3392 = vadd.f32 %v3285, %v3300
    %v3393 = vadd.f32 %v3286, %v3304
    %v3394 = vadd.f32 %v3287, %v3308
    %v3395 = vadd.f32 %v3288, %v3312
    %v3396 = vadd.f32 %v3289, %v3316
    %v3397 = vadd.f32 %v3290, %v3300
    %v3398 = vadd.f32 %v3291, %v3304
    %v3399 = vadd.f32 %v3292, %v3308
    %v3400 = vadd.f32 %v3293, %v3312
    %v3401 = vadd.f32 %v3294, %v3316
    %v3402 = vmax.f32 %v3322, 0.0
    %v3403 = vmax.f32 %v3323, 0.0
    %v3404 = vmax.f32 %v3324, 0.0
    %v3405 = vmax.f32 %v3325, 0.0
    %v3406 = vmax.f32 %v3326, 0.0
    %v3407 = vmax.f32 %v3327, 0.0
    %v3408 = vmax.f32 %v3328, 0.0
    %v3409 = vmax.f32 %v3329, 0.0
    %v3410 = vmax.f32 %v3330, 0.0
    %v3411 = vmax.f32 %v3331, 0.0
    %v3412 = vmax.f32 %v3332, 0.0
    %v3413 = vmax.f32 %v3333, 0.0
    %v3414 = vmax.f32 %v3334, 0.0
    %v3415 = vmax.f32 %v3335, 0.0
    %v3416 = vmax.f32 %v3336, 0.0
    %v3417 = vmax.f32 %v3337, 0.0
    %v3418 = vmax.f32 %v3338, 0.0
    %v3419 = vmax.f32 %v3339, 0.0
    %v3420 = vmax.f32 %v3340, 0.0
    %v3421 = vmax.f32 %v3341, 0.0
    %v3422 = vmax.f32 %v3342, 0.0
    %v3423 = vmax.f32 %v3343, 0.0
    %v3424 = vmax.f32 %v3344, 0.0
    %v3425 = vmax.f32 %v3345, 0.0
    %v3426 = vmax.f32 %v3346, 0.0
    %v3427 = vmax.f32 %v3347, 0.0
    %v3428 = vmax.f32 %v3348, 0.0
    %v3429 = vmax.f32 %v3349, 0.0
    %v3430 = vmax.f32 %v3350, 0.0
    %v3431 = vmax.f32 %v3351, 0.0
    %v3432 = vmax.f32 %v3352, 0.0
    %v3433 = vmax.f32 %v3353, 0.0
    %v3434 = vmax.f32 %v3354, 0.0
    %v3435 = vmax.f32 %v3355, 0.0
    %v3436 = vmax.f32 %v3356, 0.0
    %v3437 = vmax.f32 %v3357, 0.0
    %v3438 = vmax.f32 %v3358, 0.0
    %v3439 = vmax.f32 %v3359, 0.0
    %v3440 = vmax.f32 %v3360, 0.0
    %v3441 = vmax.f32 %v3361, 0.0
    %v3442 = vmax.f32 %v3362, 0.0
    %v3443 = vmax.f32 %v3363, 0.0
    %v3444 = vmax.f32 %v3364, 0.0
    %v3445 = vmax.f32 %v3365, 0.0
    %v3446 = vmax.f32 %v3366, 0.0
    %v3447 = vmax.f32 %v3367, 0.0
    %v3448 = vmax.f32 %v3368, 0.0
    %v3449 = vmax.f32 %v3369, 0.0
    %v3450 = vmax.f32 %v3370, 0.0
    %v3451 = vmax.f32 %v3371, 0.0
    %v3452 = vmax.f32 %v3372, 0.0
    %v3453 = vmax.f32 %v3373, 0.0
    %v3454 = vmax.f32 %v3374, 0.0
    %v3455 = vmax.f32 %v3375, 0.0
    %v3456 = vmax.f32 %v3376, 0.0
    %v3457 = vmax.f32 %v3377, 0.0
    %v3458 = vmax.f32 %v3378, 0.0
    %v3459 = vmax.f32 %v3379, 0.0
    %v3460 = vmax.f32 %v3380, 0.0
    %v3461 = vmax.f32 %v3381, 0.0
    %v3462 = vmax.f32 %v3382, 0.0
    %v3463 = vmax.f32 %v3383, 0.0
    %v3464 = vmax.f32 %v3384, 0.0
    %v3465 = vmax.f32 %v3385, 0.0
    %v3466 = vmax.f32 %v3386, 0.0
    %v3467 = vmax.f32 %v3387, 0.0
    %v3468 = vmax.f32 %v3388, 0.0
    %v3469 = vmax.f32 %v3389, 0.0
    %v3470 = vmax.f32 %v3390, 0.0
    %v3471 = vmax.f32 %v3391, 0.0
    %v3472 = vmax.f32 %v3392, 0.0
    %v3473 = vmax.f32 %v3393, 0.0
    %v3474 = vmax.f32 %v3394, 0.0
    %v3475 = vmax.f32 %v3395, 0.0
    %v3476 = vmax.f32 %v3396, 0.0
    %v3477 = vmax.f32 %v3397, 0.0
    %v3478 = vmax.f32 %v3398, 0.0
    %v3479 = vmax.f32 %v3399, 0.0
    %v3480 = vmax.f32 %v3400, 0.0
    %v3481 = vmax.f32 %v3401, 0.0
    %3562 = vrot.lane.b32.xlu0 %v3402, 118
    %v3563 = vpop.permute.xlu0 %3562
    %3564 = vrot.lane.b32.xlu0 %v3403, 118
    %v3565 = vpop.permute.xlu0 %3564
    %3566 = vrot.lane.b32.xlu0 %v3404, 118
    %v3567 = vpop.permute.xlu0 %3566
    %3568 = vrot.lane.b32.xlu0 %v3405, 118
    %v3569 = vpop.permute.xlu0 %3568
    %3570 = vrot.lane.b32.xlu0 %v3406, 118
    %v3571 = vpop.permute.xlu0 %3570
    %3572 = vrot.lane.b32.xlu0 %v3407, 118
    %v3573 = vpop.permute.xlu0 %3572
    %3574 = vrot.lane.b32.xlu0 %v3408, 118
    %v3575 = vpop.permute.xlu0 %3574
    %3576 = vrot.lane.b32.xlu0 %v3409, 118
    %v3577 = vpop.permute.xlu0 %3576
    %3578 = vrot.lane.b32.xlu0 %v3410, 118
    %v3579 = vpop.permute.xlu0 %3578
    %3580 = vrot.lane.b32.xlu0 %v3411, 118
    %v3581 = vpop.permute.xlu0 %3580
    %3582 = vrot.lane.b32.xlu0 %v3412, 118
    %v3583 = vpop.permute.xlu0 %3582
    %3584 = vrot.lane.b32.xlu0 %v3413, 118
    %v3585 = vpop.permute.xlu0 %3584
    %3586 = vrot.lane.b32.xlu0 %v3414, 118
    %v3587 = vpop.permute.xlu0 %3586
    %3588 = vrot.lane.b32.xlu0 %v3415, 118
    %v3589 = vpop.permute.xlu0 %3588
    %3590 = vrot.lane.b32.xlu0 %v3416, 118
    %v3591 = vpop.permute.xlu0 %3590
    %3592 = vrot.lane.b32.xlu0 %v3417, 118
    %v3593 = vpop.permute.xlu0 %3592
    %3594 = vrot.lane.b32.xlu0 %v3418, 118
    %v3595 = vpop.permute.xlu0 %3594
    %3596 = vrot.lane.b32.xlu0 %v3419, 118
    %v3597 = vpop.permute.xlu0 %3596
    %3598 = vrot.lane.b32.xlu0 %v3420, 118
    %v3599 = vpop.permute.xlu0 %3598
    %3600 = vrot.lane.b32.xlu0 %v3421, 118
    %v3601 = vpop.permute.xlu0 %3600
    %3602 = vrot.lane.b32.xlu0 %v3422, 118
    %v3603 = vpop.permute.xlu0 %3602
    %3604 = vrot.lane.b32.xlu0 %v3423, 118
    %v3605 = vpop.permute.xlu0 %3604
    %3606 = vrot.lane.b32.xlu0 %v3424, 118
    %v3607 = vpop.permute.xlu0 %3606
    %3608 = vrot.lane.b32.xlu0 %v3425, 118
    %v3609 = vpop.permute.xlu0 %3608
    %3610 = vrot.lane.b32.xlu0 %v3426, 118
    %v3611 = vpop.permute.xlu0 %3610
    %3612 = vrot.lane.b32.xlu0 %v3427, 118
    %v3613 = vpop.permute.xlu0 %3612
    %3614 = vrot.lane.b32.xlu0 %v3428, 118
    %v3615 = vpop.permute.xlu0 %3614
    %3616 = vrot.lane.b32.xlu0 %v3429, 118
    %v3617 = vpop.permute.xlu0 %3616
    %3618 = vrot.lane.b32.xlu0 %v3430, 118
    %v3619 = vpop.permute.xlu0 %3618
    %3620 = vrot.lane.b32.xlu0 %v3431, 118
    %v3621 = vpop.permute.xlu0 %3620
    %3622 = vrot.lane.b32.xlu0 %v3432, 118
    %v3623 = vpop.permute.xlu0 %3622
    %3624 = vrot.lane.b32.xlu0 %v3433, 118
    %v3625 = vpop.permute.xlu0 %3624
    %3626 = vrot.lane.b32.xlu0 %v3434, 118
    %v3627 = vpop.permute.xlu0 %3626
    %3628 = vrot.lane.b32.xlu0 %v3435, 118
    %v3629 = vpop.permute.xlu0 %3628
    %3630 = vrot.lane.b32.xlu0 %v3436, 118
    %v3631 = vpop.permute.xlu0 %3630
    %3632 = vrot.lane.b32.xlu0 %v3437, 118
    %v3633 = vpop.permute.xlu0 %3632
    %3634 = vrot.lane.b32.xlu0 %v3438, 118
    %v3635 = vpop.permute.xlu0 %3634
    %3636 = vrot.lane.b32.xlu0 %v3439, 118
    %v3637 = vpop.permute.xlu0 %3636
    %3638 = vrot.lane.b32.xlu0 %v3440, 118
    %v3639 = vpop.permute.xlu0 %3638
    %3640 = vrot.lane.b32.xlu0 %v3441, 118
    %v3641 = vpop.permute.xlu0 %3640
    %3642 = vrot.lane.b32.xlu0 %v3442, 118
    %v3643 = vpop.permute.xlu0 %3642
    %3644 = vrot.lane.b32.xlu0 %v3443, 118
    %v3645 = vpop.permute.xlu0 %3644
    %3646 = vrot.lane.b32.xlu0 %v3444, 118
    %v3647 = vpop.permute.xlu0 %3646
    %3648 = vrot.lane.b32.xlu0 %v3445, 118
    %v3649 = vpop.permute.xlu0 %3648
    %3650 = vrot.lane.b32.xlu0 %v3446, 118
    %v3651 = vpop.permute.xlu0 %3650
    %3652 = vrot.lane.b32.xlu0 %v3447, 118
    %v3653 = vpop.permute.xlu0 %3652
    %3654 = vrot.lane.b32.xlu0 %v3448, 118
    %v3655 = vpop.permute.xlu0 %3654
    %3656 = vrot.lane.b32.xlu0 %v3449, 118
    %v3657 = vpop.permute.xlu0 %3656
    %3658 = vrot.lane.b32.xlu0 %v3450, 118
    %v3659 = vpop.permute.xlu0 %3658
    %3660 = vrot.lane.b32.xlu0 %v3451, 118
    %v3661 = vpop.permute.xlu0 %3660
    %3662 = vrot.lane.b32.xlu0 %v3452, 118
    %v3663 = vpop.permute.xlu0 %3662
    %3664 = vrot.lane.b32.xlu0 %v3453, 118
    %v3665 = vpop.permute.xlu0 %3664
    %3666 = vrot.lane.b32.xlu0 %v3454, 118
    %v3667 = vpop.permute.xlu0 %3666
    %3668 = vrot.lane.b32.xlu0 %v3455, 118
    %v3669 = vpop.permute.xlu0 %3668
    %3670 = vrot.lane.b32.xlu0 %v3456, 118
    %v3671 = vpop.permute.xlu0 %3670
    %3672 = vrot.lane.b32.xlu0 %v3457, 118
    %v3673 = vpop.permute.xlu0 %3672
    %3674 = vrot.lane.b32.xlu0 %v3458, 118
    %v3675 = vpop.permute.xlu0 %3674
    %3676 = vrot.lane.b32.xlu0 %v3459, 118
    %v3677 = vpop.permute.xlu0 %3676
    %3678 = vrot.lane.b32.xlu0 %v3460, 118
    %v3679 = vpop.permute.xlu0 %3678
    %3680 = vrot.lane.b32.xlu0 %v3461, 118
    %v3681 = vpop.permute.xlu0 %3680
    %3682 = vrot.lane.b32.xlu0 %v3462, 118
    %v3683 = vpop.permute.xlu0 %3682
    %3684 = vrot.lane.b32.xlu0 %v3463, 118
    %v3685 = vpop.permute.xlu0 %3684
    %3686 = vrot.lane.b32.xlu0 %v3464, 118
    %v3687 = vpop.permute.xlu0 %3686
    %3688 = vrot.lane.b32.xlu0 %v3465, 118
    %v3689 = vpop.permute.xlu0 %3688
    %3690 = vrot.lane.b32.xlu0 %v3466, 118
    %v3691 = vpop.permute.xlu0 %3690
    %3692 = vrot.lane.b32.xlu0 %v3467, 118
    %v3693 = vpop.permute.xlu0 %3692
    %3694 = vrot.lane.b32.xlu0 %v3468, 118
    %v3695 = vpop.permute.xlu0 %3694
    %3696 = vrot.lane.b32.xlu0 %v3469, 118
    %v3697 = vpop.permute.xlu0 %3696
    %3698 = vrot.lane.b32.xlu0 %v3470, 118
    %v3699 = vpop.permute.xlu0 %3698
    %3700 = vrot.lane.b32.xlu0 %v3471, 118
    %v3701 = vpop.permute.xlu0 %3700
    %3702 = vrot.lane.b32.xlu0 %v3472, 118
    %v3703 = vpop.permute.xlu0 %3702
    %3704 = vrot.lane.b32.xlu0 %v3473, 118
    %v3705 = vpop.permute.xlu0 %3704
    %3706 = vrot.lane.b32.xlu0 %v3474, 118
    %v3707 = vpop.permute.xlu0 %3706
    %3708 = vrot.lane.b32.xlu0 %v3475, 118
    %v3709 = vpop.permute.xlu0 %3708
    %3710 = vrot.lane.b32.xlu0 %v3476, 118
    %v3711 = vpop.permute.xlu0 %3710
    %3712 = vrot.lane.b32.xlu0 %v3477, 118
    %v3713 = vpop.permute.xlu0 %3712
    %3714 = vrot.lane.b32.xlu0 %v3478, 118
    %v3715 = vpop.permute.xlu0 %3714
    %3716 = vrot.lane.b32.xlu0 %v3479, 118
    %v3717 = vpop.permute.xlu0 %3716
    %3718 = vrot.lane.b32.xlu0 %v3480, 118
    %v3719 = vpop.permute.xlu0 %3718
    %3720 = vrot.lane.b32.xlu0 %v3481, 118
    %v3721 = vpop.permute.xlu0 %3720
    %vm3722 = vcmask 965632
    %v3723 = vsel %vm3722, %v3563, %v3565
    %v3724 = vsel %vm3722, %v3565, %v3567
    %v3725 = vsel %vm3722, %v3567, %v3569
    %v3726 = vsel %vm3722, %v3569, %v3571
    %v3727 = vsel %vm3722, %v3573, %v3575
    %v3728 = vsel %vm3722, %v3575, %v3577
    %v3729 = vsel %vm3722, %v3577, %v3579
    %v3730 = vsel %vm3722, %v3579, %v3581
    %v3731 = vsel %vm3722, %v3583, %v3585
    %v3732 = vsel %vm3722, %v3585, %v3587
    %v3733 = vsel %vm3722, %v3587, %v3589
    %v3734 = vsel %vm3722, %v3589, %v3591
    %v3735 = vsel %vm3722, %v3593, %v3595
    %v3736 = vsel %vm3722, %v3595, %v3597
    %v3737 = vsel %vm3722, %v3597, %v3599
    %v3738 = vsel %vm3722, %v3599, %v3601
    %v3739 = vsel %vm3722, %v3603, %v3605
    %v3740 = vsel %vm3722, %v3605, %v3607
    %v3741 = vsel %vm3722, %v3607, %v3609
    %v3742 = vsel %vm3722, %v3609, %v3611
    %v3743 = vsel %vm3722, %v3613, %v3615
    %v3744 = vsel %vm3722, %v3615, %v3617
    %v3745 = vsel %vm3722, %v3617, %v3619
    %v3746 = vsel %vm3722, %v3619, %v3621
    %v3747 = vsel %vm3722, %v3623, %v3625
    %v3748 = vsel %vm3722, %v3625, %v3627
    %v3749 = vsel %vm3722, %v3627, %v3629
    %v3750 = vsel %vm3722, %v3629, %v3631
    %v3751 = vsel %vm3722, %v3633, %v3635
    %v3752 = vsel %vm3722, %v3635, %v3637
    %v3753 = vsel %vm3722, %v3637, %v3639
    %v3754 = vsel %vm3722, %v3639, %v3641
    %v3755 = vsel %vm3722, %v3643, %v3645
    %v3756 = vsel %vm3722, %v3645, %v3647
    %v3757 = vsel %vm3722, %v3647, %v3649
    %v3758 = vsel %vm3722, %v3649, %v3651
    %v3759 = vsel %vm3722, %v3653, %v3655
    %v3760 = vsel %vm3722, %v3655, %v3657
    %v3761 = vsel %vm3722, %v3657, %v3659
    %v3762 = vsel %vm3722, %v3659, %v3661
    %v3763 = vsel %vm3722, %v3663, %v3665
    %v3764 = vsel %vm3722, %v3665, %v3667
    %v3765 = vsel %vm3722, %v3667, %v3669
    %v3766 = vsel %vm3722, %v3669, %v3671
    %v3767 = vsel %vm3722, %v3673, %v3675
    %v3768 = vsel %vm3722, %v3675, %v3677
    %v3769 = vsel %vm3722, %v3677, %v3679
    %v3770 = vsel %vm3722, %v3679, %v3681
    %v3771 = vsel %vm3722, %v3683, %v3685
    %v3772 = vsel %vm3722, %v3685, %v3687
    %v3773 = vsel %vm3722, %v3687, %v3689
    %v3774 = vsel %vm3722, %v3689, %v3691
    %v3775 = vsel %vm3722, %v3693, %v3695
    %v3776 = vsel %vm3722, %v3695, %v3697
    %v3777 = vsel %vm3722, %v3697, %v3699
    %v3778 = vsel %vm3722, %v3699, %v3701
    %v3779 = vsel %vm3722, %v3703, %v3705
    %v3780 = vsel %vm3722, %v3705, %v3707
    %v3781 = vsel %vm3722, %v3707, %v3709
    %v3782 = vsel %vm3722, %v3709, %v3711
    %v3783 = vsel %vm3722, %v3713, %v3715
    %v3784 = vsel %vm3722, %v3715, %v3717
    %v3785 = vsel %vm3722, %v3717, %v3719
    %v3786 = vsel %vm3722, %v3719, %v3721
    %v3883 = vsel %vm3722, %v3571, %v3563
    %v3884 = vsel %vm3722, %v3581, %v3573
    %v3885 = vsel %vm3722, %v3591, %v3583
    %v3886 = vsel %vm3722, %v3601, %v3593
    %v3887 = vsel %vm3722, %v3611, %v3603
    %v3888 = vsel %vm3722, %v3621, %v3613
    %v3889 = vsel %vm3722, %v3631, %v3623
    %v3890 = vsel %vm3722, %v3641, %v3633
    %v3891 = vsel %vm3722, %v3651, %v3643
    %v3892 = vsel %vm3722, %v3661, %v3653
    %v3893 = vsel %vm3722, %v3671, %v3663
    %v3894 = vsel %vm3722, %v3681, %v3673
    %v3895 = vsel %vm3722, %v3691, %v3683
    %v3896 = vsel %vm3722, %v3701, %v3693
    %v3897 = vsel %vm3722, %v3711, %v3703
    %v3898 = vsel %vm3722, %v3721, %v3713
    %v3899 = vmax.f32 %v3402, %v3723
    %v3900 = vmax.f32 %v3403, %v3724
    %v3901 = vmax.f32 %v3404, %v3725
    %v3902 = vmax.f32 %v3405, %v3726
    %v3903 = vmax.f32 %v3406, %v3883
    %v3904 = vmax.f32 %v3407, %v3727
    %v3905 = vmax.f32 %v3408, %v3728
    %v3906 = vmax.f32 %v3409, %v3729
    %v3907 = vmax.f32 %v3410, %v3730
    %v3908 = vmax.f32 %v3411, %v3884
    %v3909 = vmax.f32 %v3412, %v3731
    %v3910 = vmax.f32 %v3413, %v3732
    %v3911 = vmax.f32 %v3414, %v3733
    %v3912 = vmax.f32 %v3415, %v3734
    %v3913 = vmax.f32 %v3416, %v3885
    %v3914 = vmax.f32 %v3417, %v3735
    %v3915 = vmax.f32 %v3418, %v3736
    %v3916 = vmax.f32 %v3419, %v3737
    %v3917 = vmax.f32 %v3420, %v3738
    %v3918 = vmax.f32 %v3421, %v3886
    %v3919 = vmax.f32 %v3422, %v3739
    %v3920 = vmax.f32 %v3423, %v3740
    %v3921 = vmax.f32 %v3424, %v3741
    %v3922 = vmax.f32 %v3425, %v3742
    %v3923 = vmax.f32 %v3426, %v3887
    %v3924 = vmax.f32 %v3427, %v3743
    %v3925 = vmax.f32 %v3428, %v3744
    %v3926 = vmax.f32 %v3429, %v3745
    %v3927 = vmax.f32 %v3430, %v3746
    %v3928 = vmax.f32 %v3431, %v3888
    %v3929 = vmax.f32 %v3432, %v3747
    %v3930 = vmax.f32 %v3433, %v3748
    %v3931 = vmax.f32 %v3434, %v3749
    %v3932 = vmax.f32 %v3435, %v3750
    %v3933 = vmax.f32 %v3436, %v3889
    %v3934 = vmax.f32 %v3437, %v3751
    %v3935 = vmax.f32 %v3438, %v3752
    %v3936 = vmax.f32 %v3439, %v3753
    %v3937 = vmax.f32 %v3440, %v3754
    %v3938 = vmax.f32 %v3441, %v3890
    %v3939 = vmax.f32 %v3442, %v3755
    %v3940 = vmax.f32 %v3443, %v3756
    %v3941 = vmax.f32 %v3444, %v3757
    %v3942 = vmax.f32 %v3445, %v3758
    %v3943 = vmax.f32 %v3446, %v3891
    %v3944 = vmax.f32 %v3447, %v3759
    %v3945 = vmax.f32 %v3448, %v3760
    %v3946 = vmax.f32 %v3449, %v3761
    %v3947 = vmax.f32 %v3450, %v3762
    %v3948 = vmax.f32 %v3451, %v3892
    %v3949 = vmax.f32 %v3452, %v3763
    %v3950 = vmax.f32 %v3453, %v3764
    %v3951 = vmax.f32 %v3454, %v3765
    %v3952 = vmax.f32 %v3455, %v3766
    %v3953 = vmax.f32 %v3456, %v3893
    %v3954 = vmax.f32 %v3457, %v3767
    %v3955 = vmax.f32 %v3458, %v3768
    %v3956 = vmax.f32 %v3459, %v3769
    %v3957 = vmax.f32 %v3460, %v3770
    %v3958 = vmax.f32 %v3461, %v3894
    %v3959 = vmax.f32 %v3462, %v3771
    %v3960 = vmax.f32 %v3463, %v3772
    %v3961 = vmax.f32 %v3464, %v3773
    %v3962 = vmax.f32 %v3465, %v3774
    %v3963 = vmax.f32 %v3466, %v3895
    %v3964 = vmax.f32 %v3467, %v3775
    %v3965 = vmax.f32 %v3468, %v3776
    %v3966 = vmax.f32 %v3469, %v3777
    %v3967 = vmax.f32 %v3470, %v3778
    %v3968 = vmax.f32 %v3471, %v3896
    %v3969 = vmax.f32 %v3472, %v3779
    %v3970 = vmax.f32 %v3473, %v3780
    %v3971 = vmax.f32 %v3474, %v3781
    %v3972 = vmax.f32 %v3475, %v3782
    %v3973 = vmax.f32 %v3476, %v3897
    %v3974 = vmax.f32 %v3477, %v3783
    %v3975 = vmax.f32 %v3478, %v3784
    %v3976 = vmax.f32 %v3479, %v3785
    %v3977 = vmax.f32 %v3480, %v3786
    %v3978 = vmax.f32 %v3481, %v3898
    %3979 = vrot.lane.b32.xlu0 %v3402, 108
    %v3980 = vpop.permute.xlu0 %3979
    %3981 = vrot.lane.b32.xlu0 %v3403, 108
    %v3982 = vpop.permute.xlu0 %3981
    %3983 = vrot.lane.b32.xlu0 %v3404, 108
    %v3984 = vpop.permute.xlu0 %3983
    %3985 = vrot.lane.b32.xlu0 %v3405, 108
    %v3986 = vpop.permute.xlu0 %3985
    %3987 = vrot.lane.b32.xlu0 %v3406, 108
    %v3988 = vpop.permute.xlu0 %3987
    %3989 = vrot.lane.b32.xlu0 %v3407, 108
    %v3990 = vpop.permute.xlu0 %3989
    %3991 = vrot.lane.b32.xlu0 %v3408, 108
    %v3992 = vpop.permute.xlu0 %3991
    %3993 = vrot.lane.b32.xlu0 %v3409, 108
    %v3994 = vpop.permute.xlu0 %3993
    %3995 = vrot.lane.b32.xlu0 %v3410, 108
    %v3996 = vpop.permute.xlu0 %3995
    %3997 = vrot.lane.b32.xlu0 %v3411, 108
    %v3998 = vpop.permute.xlu0 %3997
    %3999 = vrot.lane.b32.xlu0 %v3412, 108
    %v4000 = vpop.permute.xlu0 %3999
    %4001 = vrot.lane.b32.xlu0 %v3413, 108
    %v4002 = vpop.permute.xlu0 %4001
    %4003 = vrot.lane.b32.xlu0 %v3414, 108
    %v4004 = vpop.permute.xlu0 %4003
    %4005 = vrot.lane.b32.xlu0 %v3415, 108
    %v4006 = vpop.permute.xlu0 %4005
    %4007 = vrot.lane.b32.xlu0 %v3416, 108
    %v4008 = vpop.permute.xlu0 %4007
    %4009 = vrot.lane.b32.xlu0 %v3417, 108
    %v4010 = vpop.permute.xlu0 %4009
    %4011 = vrot.lane.b32.xlu0 %v3418, 108
    %v4012 = vpop.permute.xlu0 %4011
    %4013 = vrot.lane.b32.xlu0 %v3419, 108
    %v4014 = vpop.permute.xlu0 %4013
    %4015 = vrot.lane.b32.xlu0 %v3420, 108
    %v4016 = vpop.permute.xlu0 %4015
    %4017 = vrot.lane.b32.xlu0 %v3421, 108
    %v4018 = vpop.permute.xlu0 %4017
    %4019 = vrot.lane.b32.xlu0 %v3422, 108
    %v4020 = vpop.permute.xlu0 %4019
    %4021 = vrot.lane.b32.xlu0 %v3423, 108
    %v4022 = vpop.permute.xlu0 %4021
    %4023 = vrot.lane.b32.xlu0 %v3424, 108
    %v4024 = vpop.permute.xlu0 %4023
    %4025 = vrot.lane.b32.xlu0 %v3425, 108
    %v4026 = vpop.permute.xlu0 %4025
    %4027 = vrot.lane.b32.xlu0 %v3426, 108
    %v4028 = vpop.permute.xlu0 %4027
    %4029 = vrot.lane.b32.xlu0 %v3427, 108
    %v4030 = vpop.permute.xlu0 %4029
    %4031 = vrot.lane.b32.xlu0 %v3428, 108
    %v4032 = vpop.permute.xlu0 %4031
    %4033 = vrot.lane.b32.xlu0 %v3429, 108
    %v4034 = vpop.permute.xlu0 %4033
    %4035 = vrot.lane.b32.xlu0 %v3430, 108
    %v4036 = vpop.permute.xlu0 %4035
    %4037 = vrot.lane.b32.xlu0 %v3431, 108
    %v4038 = vpop.permute.xlu0 %4037
    %4039 = vrot.lane.b32.xlu0 %v3432, 108
    %v4040 = vpop.permute.xlu0 %4039
    %4041 = vrot.lane.b32.xlu0 %v3433, 108
    %v4042 = vpop.permute.xlu0 %4041
    %4043 = vrot.lane.b32.xlu0 %v3434, 108
    %v4044 = vpop.permute.xlu0 %4043
    %4045 = vrot.lane.b32.xlu0 %v3435, 108
    %v4046 = vpop.permute.xlu0 %4045
    %4047 = vrot.lane.b32.xlu0 %v3436, 108
    %v4048 = vpop.permute.xlu0 %4047
    %4049 = vrot.lane.b32.xlu0 %v3437, 108
    %v4050 = vpop.permute.xlu0 %4049
    %4051 = vrot.lane.b32.xlu0 %v3438, 108
    %v4052 = vpop.permute.xlu0 %4051
    %4053 = vrot.lane.b32.xlu0 %v3439, 108
    %v4054 = vpop.permute.xlu0 %4053
    %4055 = vrot.lane.b32.xlu0 %v3440, 108
    %v4056 = vpop.permute.xlu0 %4055
    %4057 = vrot.lane.b32.xlu0 %v3441, 108
    %v4058 = vpop.permute.xlu0 %4057
    %4059 = vrot.lane.b32.xlu0 %v3442, 108
    %v4060 = vpop.permute.xlu0 %4059
    %4061 = vrot.lane.b32.xlu0 %v3443, 108
    %v4062 = vpop.permute.xlu0 %4061
    %4063 = vrot.lane.b32.xlu0 %v3444, 108
    %v4064 = vpop.permute.xlu0 %4063
    %4065 = vrot.lane.b32.xlu0 %v3445, 108
    %v4066 = vpop.permute.xlu0 %4065
    %4067 = vrot.lane.b32.xlu0 %v3446, 108
    %v4068 = vpop.permute.xlu0 %4067
    %4069 = vrot.lane.b32.xlu0 %v3447, 108
    %v4070 = vpop.permute.xlu0 %4069
    %4071 = vrot.lane.b32.xlu0 %v3448, 108
    %v4072 = vpop.permute.xlu0 %4071
    %4073 = vrot.lane.b32.xlu0 %v3449, 108
    %v4074 = vpop.permute.xlu0 %4073
    %4075 = vrot.lane.b32.xlu0 %v3450, 108
    %v4076 = vpop.permute.xlu0 %4075
    %4077 = vrot.lane.b32.xlu0 %v3451, 108
    %v4078 = vpop.permute.xlu0 %4077
    %4079 = vrot.lane.b32.xlu0 %v3452, 108
    %v4080 = vpop.permute.xlu0 %4079
    %4081 = vrot.lane.b32.xlu0 %v3453, 108
    %v4082 = vpop.permute.xlu0 %4081
    %4083 = vrot.lane.b32.xlu0 %v3454, 108
    %v4084 = vpop.permute.xlu0 %4083
    %4085 = vrot.lane.b32.xlu0 %v3455, 108
    %v4086 = vpop.permute.xlu0 %4085
    %4087 = vrot.lane.b32.xlu0 %v3456, 108
    %v4088 = vpop.permute.xlu0 %4087
    %4089 = vrot.lane.b32.xlu0 %v3457, 108
    %v4090 = vpop.permute.xlu0 %4089
    %4091 = vrot.lane.b32.xlu0 %v3458, 108
    %v4092 = vpop.permute.xlu0 %4091
    %4093 = vrot.lane.b32.xlu0 %v3459, 108
    %v4094 = vpop.permute.xlu0 %4093
    %4095 = vrot.lane.b32.xlu0 %v3460, 108
    %v4096 = vpop.permute.xlu0 %4095
    %4097 = vrot.lane.b32.xlu0 %v3461, 108
    %v4098 = vpop.permute.xlu0 %4097
    %4099 = vrot.lane.b32.xlu0 %v3462, 108
    %v4100 = vpop.permute.xlu0 %4099
    %4101 = vrot.lane.b32.xlu0 %v3463, 108
    %v4102 = vpop.permute.xlu0 %4101
    %4103 = vrot.lane.b32.xlu0 %v3464, 108
    %v4104 = vpop.permute.xlu0 %4103
    %4105 = vrot.lane.b32.xlu0 %v3465, 108
    %v4106 = vpop.permute.xlu0 %4105
    %4107 = vrot.lane.b32.xlu0 %v3466, 108
    %v4108 = vpop.permute.xlu0 %4107
    %4109 = vrot.lane.b32.xlu0 %v3467, 108
    %v4110 = vpop.permute.xlu0 %4109
    %4111 = vrot.lane.b32.xlu0 %v3468, 108
    %v4112 = vpop.permute.xlu0 %4111
    %4113 = vrot.lane.b32.xlu0 %v3469, 108
    %v4114 = vpop.permute.xlu0 %4113
    %4115 = vrot.lane.b32.xlu0 %v3470, 108
    %v4116 = vpop.permute.xlu0 %4115
    %4117 = vrot.lane.b32.xlu0 %v3471, 108
    %v4118 = vpop.permute.xlu0 %4117
    %4119 = vrot.lane.b32.xlu0 %v3472, 108
    %v4120 = vpop.permute.xlu0 %4119
    %4121 = vrot.lane.b32.xlu0 %v3473, 108
    %v4122 = vpop.permute.xlu0 %4121
    %4123 = vrot.lane.b32.xlu0 %v3474, 108
    %v4124 = vpop.permute.xlu0 %4123
    %4125 = vrot.lane.b32.xlu0 %v3475, 108
    %v4126 = vpop.permute.xlu0 %4125
    %4127 = vrot.lane.b32.xlu0 %v3476, 108
    %v4128 = vpop.permute.xlu0 %4127
    %4129 = vrot.lane.b32.xlu0 %v3477, 108
    %v4130 = vpop.permute.xlu0 %4129
    %4131 = vrot.lane.b32.xlu0 %v3478, 108
    %v4132 = vpop.permute.xlu0 %4131
    %4133 = vrot.lane.b32.xlu0 %v3479, 108
    %v4134 = vpop.permute.xlu0 %4133
    %4135 = vrot.lane.b32.xlu0 %v3480, 108
    %v4136 = vpop.permute.xlu0 %4135
    %4137 = vrot.lane.b32.xlu0 %v3481, 108
    %v4138 = vpop.permute.xlu0 %4137
    %vm4139 = vcmask 883712
    %v4140 = vsel %vm4139, %v3980, %v3982
    %v4141 = vsel %vm4139, %v3982, %v3984
    %v4142 = vsel %vm4139, %v3984, %v3986
    %v4143 = vsel %vm4139, %v3986, %v3988
    %v4144 = vsel %vm4139, %v3990, %v3992
    %v4145 = vsel %vm4139, %v3992, %v3994
    %v4146 = vsel %vm4139, %v3994, %v3996
    %v4147 = vsel %vm4139, %v3996, %v3998
    %v4148 = vsel %vm4139, %v4000, %v4002
    %v4149 = vsel %vm4139, %v4002, %v4004
    %v4150 = vsel %vm4139, %v4004, %v4006
    %v4151 = vsel %vm4139, %v4006, %v4008
    %v4152 = vsel %vm4139, %v4010, %v4012
    %v4153 = vsel %vm4139, %v4012, %v4014
    %v4154 = vsel %vm4139, %v4014, %v4016
    %v4155 = vsel %vm4139, %v4016, %v4018
    %v4156 = vsel %vm4139, %v4020, %v4022
    %v4157 = vsel %vm4139, %v4022, %v4024
    %v4158 = vsel %vm4139, %v4024, %v4026
    %v4159 = vsel %vm4139, %v4026, %v4028
    %v4160 = vsel %vm4139, %v4030, %v4032
    %v4161 = vsel %vm4139, %v4032, %v4034
    %v4162 = vsel %vm4139, %v4034, %v4036
    %v4163 = vsel %vm4139, %v4036, %v4038
    %v4164 = vsel %vm4139, %v4040, %v4042
    %v4165 = vsel %vm4139, %v4042, %v4044
    %v4166 = vsel %vm4139, %v4044, %v4046
    %v4167 = vsel %vm4139, %v4046, %v4048
    %v4168 = vsel %vm4139, %v4050, %v4052
    %v4169 = vsel %vm4139, %v4052, %v4054
    %v4170 = vsel %vm4139, %v4054, %v4056
    %v4171 = vsel %vm4139, %v4056, %v4058
    %v4172 = vsel %vm4139, %v4060, %v4062
    %v4173 = vsel %vm4139, %v4062, %v4064
    %v4174 = vsel %vm4139, %v4064, %v4066
    %v4175 = vsel %vm4139, %v4066, %v4068
    %v4176 = vsel %vm4139, %v4070, %v4072
    %v4177 = vsel %vm4139, %v4072, %v4074
    %v4178 = vsel %vm4139, %v4074, %v4076
    %v4179 = vsel %vm4139, %v4076, %v4078
    %v4180 = vsel %vm4139, %v4080, %v4082
    %v4181 = vsel %vm4139, %v4082, %v4084
    %v4182 = vsel %vm4139, %v4084, %v4086
    %v4183 = vsel %vm4139, %v4086, %v4088
    %v4184 = vsel %vm4139, %v4090, %v4092
    %v4185 = vsel %vm4139, %v4092, %v4094
    %v4186 = vsel %vm4139, %v4094, %v4096
    %v4187 = vsel %vm4139, %v4096, %v4098
    %v4188 = vsel %vm4139, %v4100, %v4102
    %v4189 = vsel %vm4139, %v4102, %v4104
    %v4190 = vsel %vm4139, %v4104, %v4106
    %v4191 = vsel %vm4139, %v4106, %v4108
    %v4192 = vsel %vm4139, %v4110, %v4112
    %v4193 = vsel %vm4139, %v4112, %v4114
    %v4194 = vsel %vm4139, %v4114, %v4116
    %v4195 = vsel %vm4139, %v4116, %v4118
    %v4196 = vsel %vm4139, %v4120, %v4122
    %v4197 = vsel %vm4139, %v4122, %v4124
    %v4198 = vsel %vm4139, %v4124, %v4126
    %v4199 = vsel %vm4139, %v4126, %v4128
    %v4200 = vsel %vm4139, %v4130, %v4132
    %v4201 = vsel %vm4139, %v4132, %v4134
    %v4202 = vsel %vm4139, %v4134, %v4136
    %v4203 = vsel %vm4139, %v4136, %v4138
    %v4300 = vsel %vm4139, %v3988, %v3980
    %v4301 = vsel %vm4139, %v3998, %v3990
    %v4302 = vsel %vm4139, %v4008, %v4000
    %v4303 = vsel %vm4139, %v4018, %v4010
    %v4304 = vsel %vm4139, %v4028, %v4020
    %v4305 = vsel %vm4139, %v4038, %v4030
    %v4306 = vsel %vm4139, %v4048, %v4040
    %v4307 = vsel %vm4139, %v4058, %v4050
    %v4308 = vsel %vm4139, %v4068, %v4060
    %v4309 = vsel %vm4139, %v4078, %v4070
    %v4310 = vsel %vm4139, %v4088, %v4080
    %v4311 = vsel %vm4139, %v4098, %v4090
    %v4312 = vsel %vm4139, %v4108, %v4100
    %v4313 = vsel %vm4139, %v4118, %v4110
    %v4314 = vsel %vm4139, %v4128, %v4120
    %v4315 = vsel %vm4139, %v4138, %v4130
    %v4316 = vmax.f32 %v3899, %v4140
    %v4317 = vmax.f32 %v3900, %v4141
    %v4318 = vmax.f32 %v3901, %v4142
    %v4319 = vmax.f32 %v3902, %v4143
    %v4320 = vmax.f32 %v3903, %v4300
    %v4321 = vmax.f32 %v3904, %v4144
    %v4322 = vmax.f32 %v3905, %v4145
    %v4323 = vmax.f32 %v3906, %v4146
    %v4324 = vmax.f32 %v3907, %v4147
    %v4325 = vmax.f32 %v3908, %v4301
    %v4326 = vmax.f32 %v3909, %v4148
    %v4327 = vmax.f32 %v3910, %v4149
    %v4328 = vmax.f32 %v3911, %v4150
    %v4329 = vmax.f32 %v3912, %v4151
    %v4330 = vmax.f32 %v3913, %v4302
    %v4331 = vmax.f32 %v3914, %v4152
    %v4332 = vmax.f32 %v3915, %v4153
    %v4333 = vmax.f32 %v3916, %v4154
    %v4334 = vmax.f32 %v3917, %v4155
    %v4335 = vmax.f32 %v3918, %v4303
    %v4336 = vmax.f32 %v3919, %v4156
    %v4337 = vmax.f32 %v3920, %v4157
    %v4338 = vmax.f32 %v3921, %v4158
    %v4339 = vmax.f32 %v3922, %v4159
    %v4340 = vmax.f32 %v3923, %v4304
    %v4341 = vmax.f32 %v3924, %v4160
    %v4342 = vmax.f32 %v3925, %v4161
    %v4343 = vmax.f32 %v3926, %v4162
    %v4344 = vmax.f32 %v3927, %v4163
    %v4345 = vmax.f32 %v3928, %v4305
    %v4346 = vmax.f32 %v3929, %v4164
    %v4347 = vmax.f32 %v3930, %v4165
    %v4348 = vmax.f32 %v3931, %v4166
    %v4349 = vmax.f32 %v3932, %v4167
    %v4350 = vmax.f32 %v3933, %v4306
    %v4351 = vmax.f32 %v3934, %v4168
    %v4352 = vmax.f32 %v3935, %v4169
    %v4353 = vmax.f32 %v3936, %v4170
    %v4354 = vmax.f32 %v3937, %v4171
    %v4355 = vmax.f32 %v3938, %v4307
    %v4356 = vmax.f32 %v3939, %v4172
    %v4357 = vmax.f32 %v3940, %v4173
    %v4358 = vmax.f32 %v3941, %v4174
    %v4359 = vmax.f32 %v3942, %v4175
    %v4360 = vmax.f32 %v3943, %v4308
    %v4361 = vmax.f32 %v3944, %v4176
    %v4362 = vmax.f32 %v3945, %v4177
    %v4363 = vmax.f32 %v3946, %v4178
    %v4364 = vmax.f32 %v3947, %v4179
    %v4365 = vmax.f32 %v3948, %v4309
    %v4366 = vmax.f32 %v3949, %v4180
    %v4367 = vmax.f32 %v3950, %v4181
    %v4368 = vmax.f32 %v3951, %v4182
    %v4369 = vmax.f32 %v3952, %v4183
    %v4370 = vmax.f32 %v3953, %v4310
    %v4371 = vmax.f32 %v3954, %v4184
    %v4372 = vmax.f32 %v3955, %v4185
    %v4373 = vmax.f32 %v3956, %v4186
    %v4374 = vmax.f32 %v3957, %v4187
    %v4375 = vmax.f32 %v3958, %v4311
    %v4376 = vmax.f32 %v3959, %v4188
    %v4377 = vmax.f32 %v3960, %v4189
    %v4378 = vmax.f32 %v3961, %v4190
    %v4379 = vmax.f32 %v3962, %v4191
    %v4380 = vmax.f32 %v3963, %v4312
    %v4381 = vmax.f32 %v3964, %v4192
    %v4382 = vmax.f32 %v3965, %v4193
    %v4383 = vmax.f32 %v3966, %v4194
    %v4384 = vmax.f32 %v3967, %v4195
    %v4385 = vmax.f32 %v3968, %v4313
    %v4386 = vmax.f32 %v3969, %v4196
    %v4387 = vmax.f32 %v3970, %v4197
    %v4388 = vmax.f32 %v3971, %v4198
    %v4389 = vmax.f32 %v3972, %v4199
    %v4390 = vmax.f32 %v3973, %v4314
    %v4391 = vmax.f32 %v3974, %v4200
    %v4392 = vmax.f32 %v3975, %v4201
    %v4393 = vmax.f32 %v3976, %v4202
    %v4394 = vmax.f32 %v3977, %v4203
    %v4395 = vmax.f32 %v3978, %v4315
    %v4396 = vld [vmem:[#allocation7] sm:$0xff]
    %v4397 = vld [vmem:[#allocation7 + $0x8] sm:$0xff]
    %v4398 = vld [vmem:[#allocation7 + $0x10] sm:$0xff]
    %v4399 = vld [vmem:[#allocation7 + $0x18] sm:$0xff]
    %v4400 = vld [vmem:[#allocation7 + $0x20] sm:$0xff]
    %v4401 = vld [vmem:[#allocation7 + $0x28] sm:$0xff]
    %v4402 = vld [vmem:[#allocation7 + $0x30] sm:$0xff]
    %v4403 = vld [vmem:[#allocation7 + $0x38] sm:$0xff]
    %v4404 = vld [vmem:[#allocation7 + $0x40] sm:$0xff]
    %v4405 = vld [vmem:[#allocation7 + $0x48] sm:$0xff]
    %v4406 = vld [vmem:[#allocation7 + $0x50] sm:$0xff]
    %v4407 = vld [vmem:[#allocation7 + $0x58] sm:$0xff]
    %v4408 = vld [vmem:[#allocation7 + $0x60] sm:$0xff]
    %v4409 = vld [vmem:[#allocation7 + $0x68] sm:$0xff]
    %v4410 = vld [vmem:[#allocation7 + $0x70] sm:$0xff]
    %v4411 = vld [vmem:[#allocation7 + $0x78] sm:$0xff]
    %v4412 = vld [vmem:[#allocation7 + $0x80] sm:$0xff]
    %v4413 = vld [vmem:[#allocation7 + $0x88] sm:$0xff]
    %v4414 = vld [vmem:[#allocation7 + $0x90] sm:$0xff]
    %v4415 = vld [vmem:[#allocation7 + $0x98] sm:$0xff]
    %v4416 = vld [vmem:[#allocation7 + $0xa0] sm:$0xff]
    %v4417 = vld [vmem:[#allocation7 + $0xa8] sm:$0xff]
    %v4418 = vld [vmem:[#allocation7 + $0xb0] sm:$0xff]
    %v4419 = vld [vmem:[#allocation7 + $0xb8] sm:$0xff]
    %v4420 = vld [vmem:[#allocation7 + $0xc0] sm:$0xff]
    %v4421 = vld [vmem:[#allocation7 + $0xc8] sm:$0xff]
    %v4422 = vld [vmem:[#allocation7 + $0xd0] sm:$0xff]
    %v4423 = vld [vmem:[#allocation7 + $0xd8] sm:$0xff]
    %v4424 = vld [vmem:[#allocation7 + $0xe0] sm:$0xff]
    %v4425 = vld [vmem:[#allocation7 + $0xe8] sm:$0xff]
    %v4426 = vld [vmem:[#allocation7 + $0xf0] sm:$0xff]
    %v4427 = vld [vmem:[#allocation7 + $0xf8] sm:$0xff]
    %v4428 = vld [vmem:[#allocation7 + $0x100] sm:$0xff]
    %v4429 = vld [vmem:[#allocation7 + $0x108] sm:$0xff]
    %v4430 = vld [vmem:[#allocation7 + $0x110] sm:$0xff]
    %v4431 = vld [vmem:[#allocation7 + $0x118] sm:$0xff]
    %v4432 = vld [vmem:[#allocation7 + $0x120] sm:$0xff]
    %v4433 = vld [vmem:[#allocation7 + $0x128] sm:$0xff]
    %v4434 = vld [vmem:[#allocation7 + $0x130] sm:$0xff]
    %v4435 = vld [vmem:[#allocation7 + $0x138] sm:$0xff]
    %v4436 = vld [vmem:[#allocation7 + $0x140] sm:$0xff]
    %v4437 = vld [vmem:[#allocation7 + $0x148] sm:$0xff]
    %v4438 = vld [vmem:[#allocation7 + $0x150] sm:$0xff]
    %v4439 = vld [vmem:[#allocation7 + $0x158] sm:$0xff]
    %v4440 = vld [vmem:[#allocation7 + $0x160] sm:$0xff]
    %v4441 = vld [vmem:[#allocation7 + $0x168] sm:$0xff]
    %v4442 = vld [vmem:[#allocation7 + $0x170] sm:$0xff]
    %v4443 = vld [vmem:[#allocation7 + $0x178] sm:$0xff]
    %v4444 = vld [vmem:[#allocation7 + $0x180] sm:$0xff]
    %v4445 = vld [vmem:[#allocation7 + $0x188] sm:$0xff]
    %v4446 = vld [vmem:[#allocation7 + $0x190] sm:$0xff]
    %v4447 = vld [vmem:[#allocation7 + $0x198] sm:$0xff]
    %v4448 = vld [vmem:[#allocation7 + $0x1a0] sm:$0xff]
    %v4449 = vld [vmem:[#allocation7 + $0x1a8] sm:$0xff]
    %v4450 = vld [vmem:[#allocation7 + $0x1b0] sm:$0xff]
    %v4451 = vld [vmem:[#allocation7 + $0x1b8] sm:$0xff]
    %v4452 = vld [vmem:[#allocation7 + $0x1c0] sm:$0xff]
    %v4453 = vld [vmem:[#allocation7 + $0x1c8] sm:$0xff]
    %v4454 = vld [vmem:[#allocation7 + $0x1d0] sm:$0xff]
    %v4455 = vld [vmem:[#allocation7 + $0x1d8] sm:$0xff]
    %v4456 = vld [vmem:[#allocation7 + $0x1e0] sm:$0xff]
    %v4457 = vld [vmem:[#allocation7 + $0x1e8] sm:$0xff]
    %v4458 = vld [vmem:[#allocation7 + $0x1f0] sm:$0xff]
    %v4459 = vld [vmem:[#allocation7 + $0x1f8] sm:$0xff]
    %v4460 = vld [vmem:[#allocation7 + $0x200] sm:$0xff]
    %v4461 = vld [vmem:[#allocation7 + $0x208] sm:$0xff]
    %v4462 = vld [vmem:[#allocation7 + $0x210] sm:$0xff]
    %v4463 = vld [vmem:[#allocation7 + $0x218] sm:$0xff]
    %v4464 = vld [vmem:[#allocation7 + $0x220] sm:$0xff]
    %v4465 = vld [vmem:[#allocation7 + $0x228] sm:$0xff]
    %v4466 = vld [vmem:[#allocation7 + $0x230] sm:$0xff]
    %v4467 = vld [vmem:[#allocation7 + $0x238] sm:$0xff]
    %v4468 = vld [vmem:[#allocation7 + $0x240] sm:$0xff]
    %v4469 = vld [vmem:[#allocation7 + $0x248] sm:$0xff]
    %v4470 = vld [vmem:[#allocation7 + $0x250] sm:$0xff]
    %v4471 = vld [vmem:[#allocation7 + $0x258] sm:$0xff]
    %v4472 = vld [vmem:[#allocation7 + $0x260] sm:$0xff]
    %v4473 = vld [vmem:[#allocation7 + $0x268] sm:$0xff]
    %v4474 = vld [vmem:[#allocation7 + $0x270] sm:$0xff]
    %v4475 = vld [vmem:[#allocation7 + $0x278] sm:$0xff]
    %v4476 = vld [vmem:[#allocation7 + $0x280] sm:$0xff]
    %v4477 = vld [vmem:[#allocation7 + $0x288] sm:$0xff]
    %v4478 = vld [vmem:[#allocation7 + $0x290] sm:$0xff]
    %v4479 = vld [vmem:[#allocation7 + $0x298] sm:$0xff]
    %v4480 = vld [vmem:[#allocation7 + $0x2a0] sm:$0xff]
    %v4481 = vld [vmem:[#allocation7 + $0x2a8] sm:$0xff]
    %v4482 = vld [vmem:[#allocation7 + $0x2b0] sm:$0xff]
    %v4483 = vld [vmem:[#allocation7 + $0x2b8] sm:$0xff]
    %v4484 = vld [vmem:[#allocation7 + $0x2c0] sm:$0xff]
    %v4485 = vld [vmem:[#allocation7 + $0x2c8] sm:$0xff]
    %v4486 = vld [vmem:[#allocation7 + $0x2d0] sm:$0xff]
    %v4487 = vld [vmem:[#allocation7 + $0x2d8] sm:$0xff]
    %v4488 = vld [vmem:[#allocation7 + $0x2e0] sm:$0xff]
    %v4489 = vld [vmem:[#allocation7 + $0x2e8] sm:$0xff]
    %v4490 = vld [vmem:[#allocation7 + $0x2f0] sm:$0xff]
    %v4491 = vld [vmem:[#allocation7 + $0x2f8] sm:$0xff]
    %v4492 = vld [vmem:[#allocation7 + $0x300] sm:$0xff]
    %v4493 = vld [vmem:[#allocation7 + $0x308] sm:$0xff]
    %v4494 = vld [vmem:[#allocation7 + $0x310] sm:$0xff]
    %v4495 = vld [vmem:[#allocation7 + $0x318] sm:$0xff]
    %v4496 = vld [vmem:[#allocation7 + $0x320] sm:$0xff]
    %v4497 = vld [vmem:[#allocation7 + $0x328] sm:$0xff]
    %v4498 = vld [vmem:[#allocation7 + $0x330] sm:$0xff]
    %v4499 = vld [vmem:[#allocation7 + $0x338] sm:$0xff]
    %v4500 = vld [vmem:[#allocation7 + $0x340] sm:$0xff]
    %v4501 = vld [vmem:[#allocation7 + $0x348] sm:$0xff]
    %v4502 = vld [vmem:[#allocation7 + $0x350] sm:$0xff]
    %v4503 = vld [vmem:[#allocation7 + $0x358] sm:$0xff]
    %v4504 = vld [vmem:[#allocation7 + $0x360] sm:$0xff]
    %v4505 = vld [vmem:[#allocation7 + $0x368] sm:$0xff]
    %v4506 = vld [vmem:[#allocation7 + $0x370] sm:$0xff]
    %v4507 = vld [vmem:[#allocation7 + $0x378] sm:$0xff]
    %v4508 = vld [vmem:[#allocation7 + $0x380] sm:$0xff]
    %v4509 = vld [vmem:[#allocation7 + $0x388] sm:$0xff]
    %v4510 = vld [vmem:[#allocation7 + $0x390] sm:$0xff]
    %v4511 = vld [vmem:[#allocation7 + $0x398] sm:$0xff]
    %v4512 = vld [vmem:[#allocation7 + $0x3a0] sm:$0xff]
    %v4513 = vld [vmem:[#allocation7 + $0x3a8] sm:$0xff]
    %v4514 = vld [vmem:[#allocation7 + $0x3b0] sm:$0xff]
    %v4515 = vld [vmem:[#allocation7 + $0x3b8] sm:$0xff]
    %v4516 = vld [vmem:[#allocation7 + $0x3c0] sm:$0xff]
    %v4517 = vld [vmem:[#allocation7 + $0x3c8] sm:$0xff]
    %v4518 = vld [vmem:[#allocation7 + $0x3d0] sm:$0xff]
    %v4519 = vld [vmem:[#allocation7 + $0x3d8] sm:$0xff]
    %v4520 = vld [vmem:[#allocation7 + $0x3e0] sm:$0xff]
    %v4521 = vld [vmem:[#allocation7 + $0x3e8] sm:$0xff]
    %v4522 = vld [vmem:[#allocation7 + $0x3f0] sm:$0xff]
    %v4523 = vld [vmem:[#allocation7 + $0x3f8] sm:$0xff]
    %v4524 = vld [vmem:[#allocation7 + $0x400] sm:$0xff]
    %v4525 = vld [vmem:[#allocation7 + $0x408] sm:$0xff]
    %v4526 = vld [vmem:[#allocation7 + $0x410] sm:$0xff]
    %v4527 = vld [vmem:[#allocation7 + $0x418] sm:$0xff]
    %v4528 = vld [vmem:[#allocation7 + $0x420] sm:$0xff]
    %v4529 = vld [vmem:[#allocation7 + $0x428] sm:$0xff]
    %v4530 = vld [vmem:[#allocation7 + $0x430] sm:$0xff]
    %v4531 = vld [vmem:[#allocation7 + $0x438] sm:$0xff]
    %v4532 = vld [vmem:[#allocation7 + $0x440] sm:$0xff]
    %v4533 = vld [vmem:[#allocation7 + $0x448] sm:$0xff]
    %v4534 = vld [vmem:[#allocation7 + $0x450] sm:$0xff]
    %v4535 = vld [vmem:[#allocation7 + $0x458] sm:$0xff]
    %v4536 = vld [vmem:[#allocation7 + $0x460] sm:$0xff]
    %v4537 = vld [vmem:[#allocation7 + $0x468] sm:$0xff]
    %v4538 = vld [vmem:[#allocation7 + $0x470] sm:$0xff]
    %v4539 = vld [vmem:[#allocation7 + $0x478] sm:$0xff]
    %v4540 = vld [vmem:[#allocation7 + $0x480] sm:$0xff]
    %v4541 = vld [vmem:[#allocation7 + $0x488] sm:$0xff]
    %v4542 = vld [vmem:[#allocation7 + $0x490] sm:$0xff]
    %v4543 = vld [vmem:[#allocation7 + $0x498] sm:$0xff]
    %v4544 = vld [vmem:[#allocation7 + $0x4a0] sm:$0xff]
    %v4545 = vld [vmem:[#allocation7 + $0x4a8] sm:$0xff]
    %v4546 = vld [vmem:[#allocation7 + $0x4b0] sm:$0xff]
    %v4547 = vld [vmem:[#allocation7 + $0x4b8] sm:$0xff]
    %v4548 = vld [vmem:[#allocation7 + $0x4c0] sm:$0xff]
    %v4549 = vld [vmem:[#allocation7 + $0x4c8] sm:$0xff]
    %v4550 = vld [vmem:[#allocation7 + $0x4d0] sm:$0xff]
    %v4551 = vld [vmem:[#allocation7 + $0x4d8] sm:$0xff]
    %v4552 = vld [vmem:[#allocation7 + $0x4e0] sm:$0xff]
    %v4553 = vld [vmem:[#allocation7 + $0x4e8] sm:$0xff]
    %v4554 = vld [vmem:[#allocation7 + $0x4f0] sm:$0xff]
    %v4555 = vld [vmem:[#allocation7 + $0x4f8] sm:$0xff]
    %4556 = vmatprep.subr.mxu0 %v4397
    %4557 = vmatpush1.msra.mxu0 %v4396
    %4558 = vmatprep.subr.mxu0 %v4399
    %4559 = vmatpush1.msra.mxu0 %v4398
    %4560 = vmatprep.subr.mxu0 %v4401
    %4561 = vmatpush1.msra.mxu0 %v4400
    %4562 = vmatprep.subr.mxu0 %v4403
    %4563 = vmatpush1.msra.mxu0 %v4402
    %4564 = vmatprep.subr.mxu0 %v4405
    %4565 = vmatpush1.msra.mxu0 %v4404
    %4566 = vmatprep.subr.mxu0 %v4407
    %4567 = vmatpush1.msra.mxu0 %v4406
    %4568 = vmatprep.subr.mxu0 %v4409
    %4569 = vmatpush1.msra.mxu0 %v4408
    %4570 = vmatprep.subr.mxu0 %v4411
    %4571 = vmatpush1.msra.mxu0 %v4410
    %4572 = vmatprep.subr.mxu0 %v4413
    %4573 = vmatpush1.msra.mxu0 %v4412
    %4574 = vmatprep.subr.mxu0 %v4415
    %4575 = vmatpush1.msra.mxu0 %v4414
    %4576 = vmatprep.subr.mxu0 %v4417
    %4577 = vmatpush1.msra.mxu0 %v4416
    %4578 = vmatprep.subr.mxu0 %v4419
    %4579 = vmatpush1.msra.mxu0 %v4418
    %4580 = vmatprep.subr.mxu0 %v4421
    %4581 = vmatpush1.msra.mxu0 %v4420
    %4582 = vmatprep.subr.mxu0 %v4423
    %4583 = vmatpush1.msra.mxu0 %v4422
    %4584 = vmatprep.subr.mxu0 %v4425
    %4585 = vmatpush1.msra.mxu0 %v4424
    %4586 = vmatprep.subr.mxu0 %v4427
    %4587 = vmatpush1.msra.mxu0 %v4426
    %4588 = vmatprep.subr.mxu0 %v4429
    %4589 = vmatpush1.msra.mxu0 %v4428
    %4590 = vmatprep.subr.mxu0 %v4431
    %4591 = vmatpush1.msra.mxu0 %v4430
    %4592 = vmatprep.subr.mxu0 %v4433
    %4593 = vmatpush1.msra.mxu0 %v4432
    %4594 = vmatprep.subr.mxu0 %v4435
    %4595 = vmatpush1.msra.mxu0 %v4434
    %4596 = vmatprep.subr.mxu0 %v4437
    %4597 = vmatpush1.msra.mxu0 %v4436
    %4598 = vmatprep.subr.mxu0 %v4439
    %4599 = vmatpush1.msra.mxu0 %v4438
    %4600 = vmatprep.subr.mxu0 %v4441
    %4601 = vmatpush1.msra.mxu0 %v4440
    %4602 = vmatprep.subr.mxu0 %v4443
    %4603 = vmatpush1.msra.mxu0 %v4442
    %4604 = vmatprep.subr.mxu0 %v4445
    %4605 = vmatpush1.msra.mxu0 %v4444
    %4606 = vmatprep.subr.mxu0 %v4447
    %4607 = vmatpush1.msra.mxu0 %v4446
    %4608 = vmatprep.subr.mxu0 %v4449
    %4609 = vmatpush1.msra.mxu0 %v4448
    %4610 = vmatprep.subr.mxu0 %v4451
    %4611 = vmatpush1.msra.mxu0 %v4450
    %4612 = vmatprep.subr.mxu0 %v4453
    %4613 = vmatpush1.msra.mxu0 %v4452
    %4614 = vmatprep.subr.mxu0 %v4455
    %4615 = vmatpush1.msra.mxu0 %v4454
    %4616 = vmatprep.subr.mxu0 %v4457
    %4617 = vmatpush1.msra.mxu0 %v4456
    %4618 = vmatprep.subr.mxu0 %v4459
    %4619 = vmatpush1.msra.mxu0 %v4458
    %4620 = vmatprep.mubr.f32.mxu0 %v4317
    %4621 = vmatmul.mubr.f32.gmra.mrb[0].mxu0 %v4316
    %v4622 = vpop.f32.mrb[0].mxu0
    %v4623 = vadd.f32 0.0, %v4622
    %v4624 = vpop.f32.mrb[0].mxu0
    %v4625 = vadd.f32 0.0, %v4624
    %4626 = vmatprep.mubr.f32.mxu0 %v4322
    %4627 = vmatmul.mubr.f32.gmra.mrb[0].mxu0 %v4321
    %v4628 = vpop.f32.mrb[0].mxu0
    %v4629 = vadd.f32 0.0, %v4628
    %v4630 = vpop.f32.mrb[0].mxu0
    %v4631 = vadd.f32 0.0, %v4630
    %4632 = vmatprep.mubr.f32.mxu0 %v4327
    %4633 = vmatmul.mubr.f32.gmra.mrb[0].mxu0 %v4326
    %v4634 = vpop.f32.mrb[0].mxu0
    %v4635 = vadd.f32 0.0, %v4634
    %v4636 = vpop.f32.mrb[0].mxu0
    %v4637 = vadd.f32 0.0, %v4636
    %4638 = vmatprep.mubr.f32.mxu0 %v4332
    %4639 = vmatmul.mubr.f32.gmra.mrb[0].mxu0 %v4331
    %v4640 = vpop.f32.mrb[0].mxu0
    %v4641 = vadd.f32 0.0, %v4640
    %v4642 = vpop.f32.mrb[0].mxu0
    %v4643 = vadd.f32 0.0, %v4642
    %4644 = vmatprep.mubr.f32.mxu0 %v4337
    %4645 = vmatmul.mubr.f32.gmra.mrb[0].mxu0 %v4336
    %v4646 = vpop.f32.mrb[0].mxu0
    %v4647 = vadd.f32 0.0, %v4646
    %v4648 = vpop.f32.mrb[0].mxu0
    %v4649 = vadd.f32 0.0, %v4648
    %4650 = vmatprep.mubr.f32.mxu0 %v4342
    %4651 = vmatmul.mubr.f32.gmra.mrb[0].mxu0 %v4341
    %v4652 = vpop.f32.mrb[0].mxu0
    %v4653 = vadd.f32 0.0, %v4652
    %v4654 = vpop.f32.mrb[0].mxu0
    %v4655 = vadd.f32 0.0, %v4654
    %4656 = vmatprep.mubr.f32.mxu0 %v4347
    %4657 = vmatmul.mubr.f32.gmra.mrb[0].mxu0 %v4346
    %v4658 = vpop.f32.mrb[0].mxu0
    %v4659 = vadd.f32 0.0, %v4658
    %v4660 = vpop.f32.mrb[0].mxu0
    %v4661 = vadd.f32 0.0, %v4660
    %4662 = vmatprep.mubr.f32.mxu0 %v4352
    %4663 = vmatmul.mubr.f32.gmra.mrb[0].mxu0 %v4351
    %v4664 = vpop.f32.mrb[0].mxu0
    %v4665 = vadd.f32 0.0, %v4664
    %v4666 = vpop.f32.mrb[0].mxu0
    %v4667 = vadd.f32 0.0, %v4666
    %4668 = vmatprep.mubr.f32.mxu0 %v4357
    %4669 = vmatmul.mubr.f32.gmra.mrb[0].mxu0 %v4356
    %v4670 = vpop.f32.mrb[0].mxu0
    %v4671 = vadd.f32 0.0, %v4670
    %v4672 = vpop.f32.mrb[0].mxu0
    %v4673 = vadd.f32 0.0, %v4672
    %4674 = vmatprep.mubr.f32.mxu0 %v4362
    %4675 = vmatmul.mubr.f32.gmra.mrb[0].mxu0 %v4361
    %v4676 = vpop.f32.mrb[0].mxu0
    %v4677 = vadd.f32 0.0, %v4676
    %v4678 = vpop.f32.mrb[0].mxu0
    %v4679 = vadd.f32 0.0, %v4678
    %4680 = vmatprep.mubr.f32.mxu0 %v4367
    %4681 = vmatmul.mubr.f32.gmra.mrb[0].mxu0 %v4366
    %v4682 = vpop.f32.mrb[0].mxu0
    %v4683 = vadd.f32 0.0, %v4682
    %v4684 = vpop.f32.mrb[0].mxu0
    %v4685 = vadd.f32 0.0, %v4684
    %4686 = vmatprep.mubr.f32.mxu0 %v4372
    %4687 = vmatmul.mubr.f32.gmra.mrb[0].mxu0 %v4371
    %v4688 = vpop.f32.mrb[0].mxu0
    %v4689 = vadd.f32 0.0, %v4688
    %v4690 = vpop.f32.mrb[0].mxu0
    %v4691 = vadd.f32 0.0, %v4690
    %4692 = vmatprep.mubr.f32.mxu0 %v4377
    %4693 = vmatmul.mubr.f32.gmra.mrb[0].mxu0 %v4376
    %v4694 = vpop.f32.mrb[0].mxu0
    %v4695 = vadd.f32 0.0, %v4694
    %v4696 = vpop.f32.mrb[0].mxu0
    %v4697 = vadd.f32 0.0, %v4696
    %4698 = vmatprep.mubr.f32.mxu0 %v4382
    %4699 = vmatmul.mubr.f32.gmra.mrb[0].mxu0 %v4381
    %v4700 = vpop.f32.mrb[0].mxu0
    %v4701 = vadd.f32 0.0, %v4700
    %v4702 = vpop.f32.mrb[0].mxu0
    %v4703 = vadd.f32 0.0, %v4702
    %4704 = vmatprep.mubr.f32.mxu0 %v4387
    %4705 = vmatmul.mubr.f32.gmra.mrb[0].mxu0 %v4386
    %v4706 = vpop.f32.mrb[0].mxu0
    %v4707 = vadd.f32 0.0, %v4706
    %v4708 = vpop.f32.mrb[0].mxu0
    %v4709 = vadd.f32 0.0, %v4708
    %4710 = vmatprep.mubr.f32.mxu0 %v4392
    %4711 = vmatmul.mubr.f32.gmra.mrb[0].mxu0 %v4391
    %v4712 = vpop.f32.mrb[0].mxu0
    %v4713 = vadd.f32 0.0, %v4712
    %v4714 = vpop.f32.mrb[0].mxu0
    %v4715 = vadd.f32 0.0, %v4714
    %4716 = vdwg.mxu0
    %4717 = vmatprep.subr.mxu0 %v4461
    %4718 = vmatpush1.msra.mxu0 %v4460
    %4719 = vmatprep.subr.mxu0 %v4463
    %4720 = vmatpush1.msra.mxu0 %v4462
    %4721 = vmatprep.subr.mxu0 %v4465
    %4722 = vmatpush1.msra.mxu0 %v4464
    %4723 = vmatprep.subr.mxu0 %v4467
    %4724 = vmatpush1.msra.mxu0 %v4466
    %4725 = vmatprep.subr.mxu0 %v4469
    %4726 = vmatpush1.msra.mxu0 %v4468
    %4727 = vmatprep.subr.mxu0 %v4471
    %4728 = vmatpush1.msra.mxu0 %v4470
    %4729 = vmatprep.subr.mxu0 %v4473
    %4730 = vmatpush1.msra.mxu0 %v4472
    %4731 = vmatprep.subr.mxu0 %v4475
    %4732 = vmatpush1.msra.mxu0 %v4474
    %4733 = vmatprep.subr.mxu0 %v4477
    %4734 = vmatpush1.msra.mxu0 %v4476
    %4735 = vmatprep.subr.mxu0 %v4479
    %4736 = vmatpush1.msra.mxu0 %v4478
    %4737 = vmatprep.subr.mxu0 %v4481
    %4738 = vmatpush1.msra.mxu0 %v4480
    %4739 = vmatprep.subr.mxu0 %v4483
    %4740 = vmatpush1.msra.mxu0 %v4482
    %4741 = vmatprep.subr.mxu0 %v4485
    %4742 = vmatpush1.msra.mxu0 %v4484
    %4743 = vmatprep.subr.mxu0 %v4487
    %4744 = vmatpush1.msra.mxu0 %v4486
    %4745 = vmatprep.subr.mxu0 %v4489
    %4746 = vmatpush1.msra.mxu0 %v4488
    %4747 = vmatprep.subr.mxu0 %v4491
    %4748 = vmatpush1.msra.mxu0 %v4490
    %4749 = vmatprep.subr.mxu0 %v4493
    %4750 = vmatpush1.msra.mxu0 %v4492
    %4751 = vmatprep.subr.mxu0 %v4495
    %4752 = vmatpush1.msra.mxu0 %v4494
    %4753 = vmatprep.subr.mxu0 %v4497
    %4754 = vmatpush1.msra.mxu0 %v4496
    %4755 = vmatprep.subr.mxu0 %v4499
    %4756 = vmatpush1.msra.mxu0 %v4498
    %4757 = vmatprep.subr.mxu0 %v4501
    %4758 = vmatpush1.msra.mxu0 %v4500
    %4759 = vmatprep.subr.mxu0 %v4503
    %4760 = vmatpush1.msra.mxu0 %v4502
    %4761 = vmatprep.subr.mxu0 %v4505
    %4762 = vmatpush1.msra.mxu0 %v4504
    %4763 = vmatprep.subr.mxu0 %v4507
    %4764 = vmatpush1.msra.mxu0 %v4506
    %4765 = vmatprep.subr.mxu0 %v4509
    %4766 = vmatpush1.msra.mxu0 %v4508
    %4767 = vmatprep.subr.mxu0 %v4511
    %4768 = vmatpush1.msra.mxu0 %v4510
    %4769 = vmatprep.subr.mxu0 %v4513
    %4770 = vmatpush1.msra.mxu0 %v4512
    %4771 = vmatprep.subr.mxu0 %v4515
    %4772 = vmatpush1.msra.mxu0 %v4514
    %4773 = vmatprep.subr.mxu0 %v4517
    %4774 = vmatpush1.msra.mxu0 %v4516
    %4775 = vmatprep.subr.mxu0 %v4519
    %4776 = vmatpush1.msra.mxu0 %v4518
    %4777 = vmatprep.subr.mxu0 %v4521
    %4778 = vmatpush1.msra.mxu0 %v4520
    %4779 = vmatprep.subr.mxu0 %v4523
    %4780 = vmatpush1.msra.mxu0 %v4522
    %4781 = vmatprep.mubr.f32.mxu0 %v4319
    %4782 = vmatmul.mubr.f32.gmra.mrb[0].mxu0 %v4318
    %v4783 = vpop.f32.mrb[0].mxu0
    %v4784 = vadd.f32 %v4623, %v4783
    %v4785 = vpop.f32.mrb[0].mxu0
    %v4786 = vadd.f32 %v4625, %v4785
    %4787 = vmatprep.mubr.f32.mxu0 %v4324
    %4788 = vmatmul.mubr.f32.gmra.mrb[0].mxu0 %v4323
    %v4789 = vpop.f32.mrb[0].mxu0
    %v4790 = vadd.f32 %v4629, %v4789
    %v4791 = vpop.f32.mrb[0].mxu0
    %v4792 = vadd.f32 %v4631, %v4791
    %4793 = vmatprep.mubr.f32.mxu0 %v4329
    %4794 = vmatmul.mubr.f32.gmra.mrb[0].mxu0 %v4328
    %v4795 = vpop.f32.mrb[0].mxu0
    %v4796 = vadd.f32 %v4635, %v4795
    %v4797 = vpop.f32.mrb[0].mxu0
    %v4798 = vadd.f32 %v4637, %v4797
    %4799 = vmatprep.mubr.f32.mxu0 %v4334
    %4800 = vmatmul.mubr.f32.gmra.mrb[0].mxu0 %v4333
    %v4801 = vpop.f32.mrb[0].mxu0
    %v4802 = vadd.f32 %v4641, %v4801
    %v4803 = vpop.f32.mrb[0].mxu0
    %v4804 = vadd.f32 %v4643, %v4803
    %4805 = vmatprep.mubr.f32.mxu0 %v4339
    %4806 = vmatmul.mubr.f32.gmra.mrb[0].mxu0 %v4338
    %v4807 = vpop.f32.mrb[0].mxu0
    %v4808 = vadd.f32 %v4647, %v4807
    %v4809 = vpop.f32.mrb[0].mxu0
    %v4810 = vadd.f32 %v4649, %v4809
    %4811 = vmatprep.mubr.f32.mxu0 %v4344
    %4812 = vmatmul.mubr.f32.gmra.mrb[0].mxu0 %v4343
    %v4813 = vpop.f32.mrb[0].mxu0
    %v4814 = vadd.f32 %v4653, %v4813
    %v4815 = vpop.f32.mrb[0].mxu0
    %v4816 = vadd.f32 %v4655, %v4815
    %4817 = vmatprep.mubr.f32.mxu0 %v4349
    %4818 = vmatmul.mubr.f32.gmra.mrb[0].mxu0 %v4348
    %v4819 = vpop.f32.mrb[0].mxu0
    %v4820 = vadd.f32 %v4659, %v4819
    %v4821 = vpop.f32.mrb[0].mxu0
    %v4822 = vadd.f32 %v4661, %v4821
    %4823 = vmatprep.mubr.f32.mxu0 %v4354
    %4824 = vmatmul.mubr.f32.gmra.mrb[0].mxu0 %v4353
    %v4825 = vpop.f32.mrb[0].mxu0
    %v4826 = vadd.f32 %v4665, %v4825
    %v4827 = vpop.f32.mrb[0].mxu0
    %v4828 = vadd.f32 %v4667, %v4827
    %4829 = vmatprep.mubr.f32.mxu0 %v4359
    %4830 = vmatmul.mubr.f32.gmra.mrb[0].mxu0 %v4358
    %v4831 = vpop.f32.mrb[0].mxu0
    %v4832 = vadd.f32 %v4671, %v4831
    %v4833 = vpop.f32.mrb[0].mxu0
    %v4834 = vadd.f32 %v4673, %v4833
    %4835 = vmatprep.mubr.f32.mxu0 %v4364
    %4836 = vmatmul.mubr.f32.gmra.mrb[0].mxu0 %v4363
    %v4837 = vpop.f32.mrb[0].mxu0
    %v4838 = vadd.f32 %v4677, %v4837
    %v4839 = vpop.f32.mrb[0].mxu0
    %v4840 = vadd.f32 %v4679, %v4839
    %4841 = vmatprep.mubr.f32.mxu0 %v4369
    %4842 = vmatmul.mubr.f32.gmra.mrb[0].mxu0 %v4368
    %v4843 = vpop.f32.mrb[0].mxu0
    %v4844 = vadd.f32 %v4683, %v4843
    %v4845 = vpop.f32.mrb[0].mxu0
    %v4846 = vadd.f32 %v4685, %v4845
    %4847 = vmatprep.mubr.f32.mxu0 %v4374
    %4848 = vmatmul.mubr.f32.gmra.mrb[0].mxu0 %v4373
    %v4849 = vpop.f32.mrb[0].mxu0
    %v4850 = vadd.f32 %v4689, %v4849
    %v4851 = vpop.f32.mrb[0].mxu0
    %v4852 = vadd.f32 %v4691, %v4851
    %4853 = vmatprep.mubr.f32.mxu0 %v4379
    %4854 = vmatmul.mubr.f32.gmra.mrb[0].mxu0 %v4378
    %v4855 = vpop.f32.mrb[0].mxu0
    %v4856 = vadd.f32 %v4695, %v4855
    %v4857 = vpop.f32.mrb[0].mxu0
    %v4858 = vadd.f32 %v4697, %v4857
    %4859 = vmatprep.mubr.f32.mxu0 %v4384
    %4860 = vmatmul.mubr.f32.gmra.mrb[0].mxu0 %v4383
    %v4861 = vpop.f32.mrb[0].mxu0
    %v4862 = vadd.f32 %v4701, %v4861
    %v4863 = vpop.f32.mrb[0].mxu0
    %v4864 = vadd.f32 %v4703, %v4863
    %4865 = vmatprep.mubr.f32.mxu0 %v4389
    %4866 = vmatmul.mubr.f32.gmra.mrb[0].mxu0 %v4388
    %v4867 = vpop.f32.mrb[0].mxu0
    %v4868 = vadd.f32 %v4707, %v4867
    %v4869 = vpop.f32.mrb[0].mxu0
    %v4870 = vadd.f32 %v4709, %v4869
    %4871 = vmatprep.mubr.f32.mxu0 %v4394
    %4872 = vmatmul.mubr.f32.gmra.mrb[0].mxu0 %v4393
    %v4873 = vpop.f32.mrb[0].mxu0
    %v4874 = vadd.f32 %v4713, %v4873
    %v4875 = vpop.f32.mrb[0].mxu0
    %v4876 = vadd.f32 %v4715, %v4875
    %4877 = vdwg.mxu0
    %4878 = vmatprep.subr.mxu0 %v4525
    %4879 = vmatpush1.msra.mxu0 %v4524
    %4880 = vmatprep.subr.mxu0 %v4527
    %4881 = vmatpush1.msra.mxu0 %v4526
    %4882 = vmatprep.subr.mxu0 %v4529
    %4883 = vmatpush1.msra.mxu0 %v4528
    %4884 = vmatprep.subr.mxu0 %v4531
    %4885 = vmatpush1.msra.mxu0 %v4530
    %4886 = vmatprep.subr.mxu0 %v4533
    %4887 = vmatpush1.msra.mxu0 %v4532
    %4888 = vmatprep.subr.mxu0 %v4535
    %4889 = vmatpush1.msra.mxu0 %v4534
    %4890 = vmatprep.subr.mxu0 %v4537
    %4891 = vmatpush1.msra.mxu0 %v4536
    %4892 = vmatprep.subr.mxu0 %v4539
    %4893 = vmatpush1.msra.mxu0 %v4538
    %4894 = vmatprep.subr.mxu0 %v4541
    %4895 = vmatpush1.msra.mxu0 %v4540
    %4896 = vmatprep.subr.mxu0 %v4543
    %4897 = vmatpush1.msra.mxu0 %v4542
    %4898 = vmatprep.subr.mxu0 %v4545
    %4899 = vmatpush1.msra.mxu0 %v4544
    %4900 = vmatprep.subr.mxu0 %v4547
    %4901 = vmatpush1.msra.mxu0 %v4546
    %4902 = vmatprep.subr.mxu0 %v4549
    %4903 = vmatpush1.msra.mxu0 %v4548
    %4904 = vmatprep.subr.mxu0 %v4551
    %4905 = vmatpush1.msra.mxu0 %v4550
    %4906 = vmatprep.subr.mxu0 %v4553
    %4907 = vmatpush1.msra.mxu0 %v4552
    %4908 = vmatprep.subr.mxu0 %v4555
    %4909 = vmatpush1.msra.mxu0 %v4554
    %4910 = vmatprep.subr.mxu0 0.0
    %4911 = vmatpush1.msra.mxu0 0.0
    %4912 = vmatprep.subr.mxu0 0.0
    %4913 = vmatpush1.msra.mxu0 0.0
    %4914 = vmatprep.subr.mxu0 0.0
    %4915 = vmatpush1.msra.mxu0 0.0
    %4916 = vmatprep.subr.mxu0 0.0
    %4917 = vmatpush1.msra.mxu0 0.0
    %4918 = vmatprep.subr.mxu0 0.0
    %4919 = vmatpush1.msra.mxu0 0.0
    %4920 = vmatprep.subr.mxu0 0.0
    %4921 = vmatpush1.msra.mxu0 0.0
    %4922 = vmatprep.subr.mxu0 0.0
    %4923 = vmatpush1.msra.mxu0 0.0
    %4924 = vmatprep.subr.mxu0 0.0
    %4925 = vmatpush1.msra.mxu0 0.0
    %4926 = vmatprep.subr.mxu0 0.0
    %4927 = vmatpush1.msra.mxu0 0.0
    %4928 = vmatprep.subr.mxu0 0.0
    %4929 = vmatpush1.msra.mxu0 0.0
    %4930 = vmatprep.subr.mxu0 0.0
    %4931 = vmatpush1.msra.mxu0 0.0
    %4932 = vmatprep.subr.mxu0 0.0
    %4933 = vmatpush1.msra.mxu0 0.0
    %4934 = vmatprep.subr.mxu0 0.0
    %4935 = vmatpush1.msra.mxu0 0.0
    %4936 = vmatprep.subr.mxu0 0.0
    %4937 = vmatpush1.msra.mxu0 0.0
    %4938 = vmatprep.subr.mxu0 0.0
    %4939 = vmatpush1.msra.mxu0 0.0
    %4940 = vmatprep.subr.mxu0 0.0
    %4941 = vmatpush1.msra.mxu0 0.0
    %4942 = vmatprep.mubr.f32.mxu0 0.0
    %4943 = vmatmul.mubr.f32.gmra.mrb[0].mxu0 %v4320
    %v4944 = vpop.f32.mrb[0].mxu0
    %v4945 = vadd.f32 %v4784, %v4944
    %v4946 = vpop.f32.mrb[0].mxu0
    %v4947 = vadd.f32 %v4786, %v4946
    %4948 = vmatprep.mubr.f32.mxu0 0.0
    %4949 = vmatmul.mubr.f32.gmra.mrb[0].mxu0 %v4325
    %v4950 = vpop.f32.mrb[0].mxu0
    %v4951 = vadd.f32 %v4790, %v4950
    %v4952 = vpop.f32.mrb[0].mxu0
    %v4953 = vadd.f32 %v4792, %v4952
    %4954 = vmatprep.mubr.f32.mxu0 0.0
    %4955 = vmatmul.mubr.f32.gmra.mrb[0].mxu0 %v4330
    %v4956 = vpop.f32.mrb[0].mxu0
    %v4957 = vadd.f32 %v4796, %v4956
    %v4958 = vpop.f32.mrb[0].mxu0
    %v4959 = vadd.f32 %v4798, %v4958
    %4960 = vmatprep.mubr.f32.mxu0 0.0
    %4961 = vmatmul.mubr.f32.gmra.mrb[0].mxu0 %v4335
    %v4962 = vpop.f32.mrb[0].mxu0
    %v4963 = vadd.f32 %v4802, %v4962
    %v4964 = vpop.f32.mrb[0].mxu0
    %v4965 = vadd.f32 %v4804, %v4964
    %4966 = vmatprep.mubr.f32.mxu0 0.0
    %4967 = vmatmul.mubr.f32.gmra.mrb[0].mxu0 %v4340
    %v4968 = vpop.f32.mrb[0].mxu0
    %v4969 = vadd.f32 %v4808, %v4968
    %v4970 = vpop.f32.mrb[0].mxu0
    %v4971 = vadd.f32 %v4810, %v4970
    %4972 = vmatprep.mubr.f32.mxu0 0.0
    %4973 = vmatmul.mubr.f32.gmra.mrb[0].mxu0 %v4345
    %v4974 = vpop.f32.mrb[0].mxu0
    %v4975 = vadd.f32 %v4814, %v4974
    %v4976 = vpop.f32.mrb[0].mxu0
    %v4977 = vadd.f32 %v4816, %v4976
    %4978 = vmatprep.mubr.f32.mxu0 0.0
    %4979 = vmatmul.mubr.f32.gmra.mrb[0].mxu0 %v4350
    %v4980 = vpop.f32.mrb[0].mxu0
    %v4981 = vadd.f32 %v4820, %v4980
    %v4982 = vpop.f32.mrb[0].mxu0
    %v4983 = vadd.f32 %v4822, %v4982
    %4984 = vmatprep.mubr.f32.mxu0 0.0
    %4985 = vmatmul.mubr.f32.gmra.mrb[0].mxu0 %v4355
    %v4986 = vpop.f32.mrb[0].mxu0
    %v4987 = vadd.f32 %v4826, %v4986
    %v4988 = vpop.f32.mrb[0].mxu0
    %v4989 = vadd.f32 %v4828, %v4988
    %4990 = vmatprep.mubr.f32.mxu0 0.0
    %4991 = vmatmul.mubr.f32.gmra.mrb[0].mxu0 %v4360
    %v4992 = vpop.f32.mrb[0].mxu0
    %v4993 = vadd.f32 %v4832, %v4992
    %v4994 = vpop.f32.mrb[0].mxu0
    %v4995 = vadd.f32 %v4834, %v4994
    %4996 = vmatprep.mubr.f32.mxu0 0.0
    %4997 = vmatmul.mubr.f32.gmra.mrb[0].mxu0 %v4365
    %v4998 = vpop.f32.mrb[0].mxu0
    %v4999 = vadd.f32 %v4838, %v4998
    %v5000 = vpop.f32.mrb[0].mxu0
    %v5001 = vadd.f32 %v4840, %v5000
    %5002 = vmatprep.mubr.f32.mxu0 0.0
    %5003 = vmatmul.mubr.f32.gmra.mrb[0].mxu0 %v4370
    %v5004 = vpop.f32.mrb[0].mxu0
    %v5005 = vadd.f32 %v4844, %v5004
    %v5006 = vpop.f32.mrb[0].mxu0
    %v5007 = vadd.f32 %v4846, %v5006
    %5008 = vmatprep.mubr.f32.mxu0 0.0
    %5009 = vmatmul.mubr.f32.gmra.mrb[0].mxu0 %v4375
    %v5010 = vpop.f32.mrb[0].mxu0
    %v5011 = vadd.f32 %v4850, %v5010
    %v5012 = vpop.f32.mrb[0].mxu0
    %v5013 = vadd.f32 %v4852, %v5012
    %5014 = vmatprep.mubr.f32.mxu0 0.0
    %5015 = vmatmul.mubr.f32.gmra.mrb[0].mxu0 %v4380
    %v5016 = vpop.f32.mrb[0].mxu0
    %v5017 = vadd.f32 %v4856, %v5016
    %v5018 = vpop.f32.mrb[0].mxu0
    %v5019 = vadd.f32 %v4858, %v5018
    %5020 = vmatprep.mubr.f32.mxu0 0.0
    %5021 = vmatmul.mubr.f32.gmra.mrb[0].mxu0 %v4385
    %v5022 = vpop.f32.mrb[0].mxu0
    %v5023 = vadd.f32 %v4862, %v5022
    %v5024 = vpop.f32.mrb[0].mxu0
    %v5025 = vadd.f32 %v4864, %v5024
    %5026 = vmatprep.mubr.f32.mxu0 0.0
    %5027 = vmatmul.mubr.f32.gmra.mrb[0].mxu0 %v4390
    %v5028 = vpop.f32.mrb[0].mxu0
    %v5029 = vadd.f32 %v4868, %v5028
    %v5030 = vpop.f32.mrb[0].mxu0
    %v5031 = vadd.f32 %v4870, %v5030
    %5032 = vmatprep.mubr.f32.mxu0 0.0
    %5033 = vmatmul.mubr.f32.gmra.mrb[0].mxu0 %v4395
    %v5034 = vpop.f32.mrb[0].mxu0
    %v5035 = vadd.f32 %v4874, %v5034
    %v5036 = vpop.f32.mrb[0].mxu0
    %v5037 = vadd.f32 %v4876, %v5036
    %5038 = vdwg.mxu0
    %v5071 = vrot.slane %v4945, 1
    %v5072 = vrot.slane %v4951, 1
    %v5073 = vsel %vm251, %v5071, %v5072
    %v5074 = vrot.slane %v4947, 1
    %v5075 = vrot.slane %v4953, 1
    %v5076 = vsel %vm251, %v5074, %v5075
    %v5077 = vrot.slane %v4957, 1
    %v5078 = vsel %vm251, %v5072, %v5077
    %v5079 = vrot.slane %v4959, 1
    %v5080 = vsel %vm251, %v5075, %v5079
    %v5081 = vrot.slane %v4963, 1
    %v5082 = vsel %vm251, %v5077, %v5081
    %v5083 = vrot.slane %v4965, 1
    %v5084 = vsel %vm251, %v5079, %v5083
    %v5085 = vrot.slane %v4969, 1
    %v5086 = vsel %vm251, %v5081, %v5085
    %v5087 = vrot.slane %v4971, 1
    %v5088 = vsel %vm251, %v5083, %v5087
    %v5089 = vrot.slane %v4975, 1
    %v5090 = vsel %vm251, %v5085, %v5089
    %v5091 = vrot.slane %v4977, 1
    %v5092 = vsel %vm251, %v5087, %v5091
    %v5093 = vrot.slane %v4981, 1
    %v5094 = vsel %vm251, %v5089, %v5093
    %v5095 = vrot.slane %v4983, 1
    %v5096 = vsel %vm251, %v5091, %v5095
    %v5097 = vrot.slane %v4987, 1
    %v5098 = vsel %vm251, %v5093, %v5097
    %v5099 = vrot.slane %v4989, 1
    %v5100 = vsel %vm251, %v5095, %v5099
    %v5101 = vrot.slane %v4993, 1
    %v5102 = vsel %vm251, %v5097, %v5101
    %v5103 = vrot.slane %v4995, 1
    %v5104 = vsel %vm251, %v5099, %v5103
    %v5105 = vrot.slane %v4999, 1
    %v5106 = vsel %vm251, %v5101, %v5105
    %v5107 = vrot.slane %v5001, 1
    %v5108 = vsel %vm251, %v5103, %v5107
    %v5109 = vrot.slane %v5005, 1
    %v5110 = vsel %vm251, %v5105, %v5109
    %v5111 = vrot.slane %v5007, 1
    %v5112 = vsel %vm251, %v5107, %v5111
    %v5113 = vrot.slane %v5011, 1
    %v5114 = vsel %vm251, %v5109, %v5113
    %v5115 = vrot.slane %v5013, 1
    %v5116 = vsel %vm251, %v5111, %v5115
    %v5117 = vrot.slane %v5017, 1
    %v5118 = vsel %vm251, %v5113, %v5117
    %v5119 = vrot.slane %v5019, 1
    %v5120 = vsel %vm251, %v5115, %v5119
    %v5121 = vrot.slane %v5023, 1
    %v5122 = vsel %vm251, %v5117, %v5121
    %v5123 = vrot.slane %v5025, 1
    %v5124 = vsel %vm251, %v5119, %v5123
    %v5125 = vrot.slane %v5029, 1
    %v5126 = vsel %vm251, %v5121, %v5125
    %v5127 = vrot.slane %v5031, 1
    %v5128 = vsel %vm251, %v5123, %v5127
    %v5129 = vrot.slane %v5035, 1
    %v5130 = vsel %vm251, %v5125, %v5129
    %v5131 = vrot.slane %v5037, 1
    %v5132 = vsel %vm251, %v5127, %v5131
    %v5167 = vsel %vm251, %v5129, %v5071
    %v5168 = vsel %vm251, %v5131, %v5074
    %v5169 = vmax.f32 %v4945, %v5073
    %v5170 = vmax.f32 %v4947, %v5076
    %v5171 = vmax.f32 %v4951, %v5078
    %v5172 = vmax.f32 %v4953, %v5080
    %v5173 = vmax.f32 %v4957, %v5082
    %v5174 = vmax.f32 %v4959, %v5084
    %v5175 = vmax.f32 %v4963, %v5086
    %v5176 = vmax.f32 %v4965, %v5088
    %v5177 = vmax.f32 %v4969, %v5090
    %v5178 = vmax.f32 %v4971, %v5092
    %v5179 = vmax.f32 %v4975, %v5094
    %v5180 = vmax.f32 %v4977, %v5096
    %v5181 = vmax.f32 %v4981, %v5098
    %v5182 = vmax.f32 %v4983, %v5100
    %v5183 = vmax.f32 %v4987, %v5102
    %v5184 = vmax.f32 %v4989, %v5104
    %v5185 = vmax.f32 %v4993, %v5106
    %v5186 = vmax.f32 %v4995, %v5108
    %v5187 = vmax.f32 %v4999, %v5110
    %v5188 = vmax.f32 %v5001, %v5112
    %v5189 = vmax.f32 %v5005, %v5114
    %v5190 = vmax.f32 %v5007, %v5116
    %v5191 = vmax.f32 %v5011, %v5118
    %v5192 = vmax.f32 %v5013, %v5120
    %v5193 = vmax.f32 %v5017, %v5122
    %v5194 = vmax.f32 %v5019, %v5124
    %v5195 = vmax.f32 %v5023, %v5126
    %v5196 = vmax.f32 %v5025, %v5128
    %v5197 = vmax.f32 %v5029, %v5130
    %v5198 = vmax.f32 %v5031, %v5132
    %v5199 = vmax.f32 %v5035, %v5167
    %v5200 = vmax.f32 %v5037, %v5168
    %v5201 = vrot.slane %v4945, 2
    %v5202 = vrot.slane %v4951, 2
    %v5203 = vsel %vm1327, %v5201, %v5202
    %v5204 = vrot.slane %v4947, 2
    %v5205 = vrot.slane %v4953, 2
    %v5206 = vsel %vm1327, %v5204, %v5205
    %v5207 = vrot.slane %v4957, 2
    %v5208 = vsel %vm1327, %v5202, %v5207
    %v5209 = vrot.slane %v4959, 2
    %v5210 = vsel %vm1327, %v5205, %v5209
    %v5211 = vrot.slane %v4963, 2
    %v5212 = vsel %vm1327, %v5207, %v5211
    %v5213 = vrot.slane %v4965, 2
    %v5214 = vsel %vm1327, %v5209, %v5213
    %v5215 = vrot.slane %v4969, 2
    %v5216 = vsel %vm1327, %v5211, %v5215
    %v5217 = vrot.slane %v4971, 2
    %v5218 = vsel %vm1327, %v5213, %v5217
    %v5219 = vrot.slane %v4975, 2
    %v5220 = vsel %vm1327, %v5215, %v5219
    %v5221 = vrot.slane %v4977, 2
    %v5222 = vsel %vm1327, %v5217, %v5221
    %v5223 = vrot.slane %v4981, 2
    %v5224 = vsel %vm1327, %v5219, %v5223
    %v5225 = vrot.slane %v4983, 2
    %v5226 = vsel %vm1327, %v5221, %v5225
    %v5227 = vrot.slane %v4987, 2
    %v5228 = vsel %vm1327, %v5223, %v5227
    %v5229 = vrot.slane %v4989, 2
    %v5230 = vsel %vm1327, %v5225, %v5229
    %v5231 = vrot.slane %v4993, 2
    %v5232 = vsel %vm1327, %v5227, %v5231
    %v5233 = vrot.slane %v4995, 2
    %v5234 = vsel %vm1327, %v5229, %v5233
    %v5235 = vrot.slane %v4999, 2
    %v5236 = vsel %vm1327, %v5231, %v5235
    %v5237 = vrot.slane %v5001, 2
    %v5238 = vsel %vm1327, %v5233, %v5237
    %v5239 = vrot.slane %v5005, 2
    %v5240 = vsel %vm1327, %v5235, %v5239
    %v5241 = vrot.slane %v5007, 2
    %v5242 = vsel %vm1327, %v5237, %v5241
    %v5243 = vrot.slane %v5011, 2
    %v5244 = vsel %vm1327, %v5239, %v5243
    %v5245 = vrot.slane %v5013, 2
    %v5246 = vsel %vm1327, %v5241, %v5245
    %v5247 = vrot.slane %v5017, 2
    %v5248 = vsel %vm1327, %v5243, %v5247
    %v5249 = vrot.slane %v5019, 2
    %v5250 = vsel %vm1327, %v5245, %v5249
    %v5251 = vrot.slane %v5023, 2
    %v5252 = vsel %vm1327, %v5247, %v5251
    %v5253 = vrot.slane %v5025, 2
    %v5254 = vsel %vm1327, %v5249, %v5253
    %v5255 = vrot.slane %v5029, 2
    %v5256 = vsel %vm1327, %v5251, %v5255
    %v5257 = vrot.slane %v5031, 2
    %v5258 = vsel %vm1327, %v5253, %v5257
    %v5259 = vrot.slane %v5035, 2
    %v5260 = vsel %vm1327, %v5255, %v5259
    %v5261 = vrot.slane %v5037, 2
    %v5262 = vsel %vm1327, %v5257, %v5261
    %v5297 = vsel %vm1327, %v5259, %v5201
    %v5298 = vsel %vm1327, %v5261, %v5204
    %v5299 = vmax.f32 %v5169, %v5203
    %v5300 = vmax.f32 %v5170, %v5206
    %v5301 = vmax.f32 %v5171, %v5208
    %v5302 = vmax.f32 %v5172, %v5210
    %v5303 = vmax.f32 %v5173, %v5212
    %v5304 = vmax.f32 %v5174, %v5214
    %v5305 = vmax.f32 %v5175, %v5216
    %v5306 = vmax.f32 %v5176, %v5218
    %v5307 = vmax.f32 %v5177, %v5220
    %v5308 = vmax.f32 %v5178, %v5222
    %v5309 = vmax.f32 %v5179, %v5224
    %v5310 = vmax.f32 %v5180, %v5226
    %v5311 = vmax.f32 %v5181, %v5228
    %v5312 = vmax.f32 %v5182, %v5230
    %v5313 = vmax.f32 %v5183, %v5232
    %v5314 = vmax.f32 %v5184, %v5234
    %v5315 = vmax.f32 %v5185, %v5236
    %v5316 = vmax.f32 %v5186, %v5238
    %v5317 = vmax.f32 %v5187, %v5240
    %v5318 = vmax.f32 %v5188, %v5242
    %v5319 = vmax.f32 %v5189, %v5244
    %v5320 = vmax.f32 %v5190, %v5246
    %v5321 = vmax.f32 %v5191, %v5248
    %v5322 = vmax.f32 %v5192, %v5250
    %v5323 = vmax.f32 %v5193, %v5252
    %v5324 = vmax.f32 %v5194, %v5254
    %v5325 = vmax.f32 %v5195, %v5256
    %v5326 = vmax.f32 %v5196, %v5258
    %v5327 = vmax.f32 %v5197, %v5260
    %v5328 = vmax.f32 %v5198, %v5262
    %v5329 = vmax.f32 %v5199, %v5297
    %v5330 = vmax.f32 %v5200, %v5298
    %v5331 = vld [vmem:[#allocation9] sm:$0xff]
    %v5332 = vld [vmem:[#allocation9 + $0x8] sm:$0xff]
    %v5333 = vld [vmem:[#allocation9 + $0x10] sm:$0xff]
    %v5334 = vld [vmem:[#allocation9 + $0x18] sm:$0xff]
    %v5335 = vld [vmem:[#allocation9 + $0x20] sm:$0xff]
    %v5336 = vld [vmem:[#allocation9 + $0x28] sm:$0xff]
    %v5337 = vld [vmem:[#allocation9 + $0x30] sm:$0xff]
    %v5338 = vld [vmem:[#allocation9 + $0x38] sm:$0xff]
    %v5339 = vld [vmem:[#allocation9 + $0x40] sm:$0xff]
    %v5340 = vld [vmem:[#allocation9 + $0x48] sm:$0xff]
    %v5341 = vld [vmem:[#allocation9 + $0x50] sm:$0xff]
    %v5342 = vld [vmem:[#allocation9 + $0x58] sm:$0xff]
    %v5343 = vld [vmem:[#allocation9 + $0x60] sm:$0xff]
    %v5344 = vld [vmem:[#allocation9 + $0x68] sm:$0xff]
    %v5345 = vld [vmem:[#allocation9 + $0x70] sm:$0xff]
    %v5346 = vld [vmem:[#allocation9 + $0x78] sm:$0xff]
    %v5347 = vld [vmem:[#allocation9 + $0x80] sm:$0xff]
    %v5348 = vld [vmem:[#allocation9 + $0x88] sm:$0xff]
    %v5349 = vld [vmem:[#allocation9 + $0x90] sm:$0xff]
    %v5350 = vld [vmem:[#allocation9 + $0x98] sm:$0xff]
    %v5351 = vld [vmem:[#allocation9 + $0xa0] sm:$0xff]
    %v5352 = vld [vmem:[#allocation9 + $0xa8] sm:$0xff]
    %v5353 = vld [vmem:[#allocation9 + $0xb0] sm:$0xff]
    %v5354 = vld [vmem:[#allocation9 + $0xb8] sm:$0xff]
    %v5355 = vld [vmem:[#allocation9 + $0xc0] sm:$0xff]
    %v5356 = vld [vmem:[#allocation9 + $0xc8] sm:$0xff]
    %v5357 = vld [vmem:[#allocation9 + $0xd0] sm:$0xff]
    %v5358 = vld [vmem:[#allocation9 + $0xd8] sm:$0xff]
    %v5359 = vld [vmem:[#allocation9 + $0xe0] sm:$0xff]
    %v5360 = vld [vmem:[#allocation9 + $0xe8] sm:$0xff]
    %v5361 = vld [vmem:[#allocation9 + $0xf0] sm:$0xff]
    %v5362 = vld [vmem:[#allocation9 + $0xf8] sm:$0xff]
    %v5363 = vld [vmem:[#allocation9 + $0x100] sm:$0xff]
    %v5364 = vld [vmem:[#allocation9 + $0x108] sm:$0xff]
    %v5365 = vld [vmem:[#allocation9 + $0x110] sm:$0xff]
    %v5366 = vld [vmem:[#allocation9 + $0x118] sm:$0xff]
    %v5367 = vld [vmem:[#allocation9 + $0x120] sm:$0xff]
    %v5368 = vld [vmem:[#allocation9 + $0x128] sm:$0xff]
    %v5369 = vld [vmem:[#allocation9 + $0x130] sm:$0xff]
    %v5370 = vld [vmem:[#allocation9 + $0x138] sm:$0xff]
    %v5371 = vld [vmem:[#allocation9 + $0x140] sm:$0xff]
    %v5372 = vld [vmem:[#allocation9 + $0x148] sm:$0xff]
    %v5373 = vld [vmem:[#allocation9 + $0x150] sm:$0xff]
    %v5374 = vld [vmem:[#allocation9 + $0x158] sm:$0xff]
    %v5375 = vld [vmem:[#allocation9 + $0x160] sm:$0xff]
    %v5376 = vld [vmem:[#allocation9 + $0x168] sm:$0xff]
    %v5377 = vld [vmem:[#allocation9 + $0x170] sm:$0xff]
    %v5378 = vld [vmem:[#allocation9 + $0x178] sm:$0xff]
    %v5379 = vld [vmem:[#allocation9 + $0x180] sm:$0xff]
    %v5380 = vld [vmem:[#allocation9 + $0x188] sm:$0xff]
    %v5381 = vld [vmem:[#allocation9 + $0x190] sm:$0xff]
    %v5382 = vld [vmem:[#allocation9 + $0x198] sm:$0xff]
    %v5383 = vld [vmem:[#allocation9 + $0x1a0] sm:$0xff]
    %v5384 = vld [vmem:[#allocation9 + $0x1a8] sm:$0xff]
    %v5385 = vld [vmem:[#allocation9 + $0x1b0] sm:$0xff]
    %v5386 = vld [vmem:[#allocation9 + $0x1b8] sm:$0xff]
    %v5387 = vld [vmem:[#allocation9 + $0x1c0] sm:$0xff]
    %v5388 = vld [vmem:[#allocation9 + $0x1c8] sm:$0xff]
    %v5389 = vld [vmem:[#allocation9 + $0x1d0] sm:$0xff]
    %v5390 = vld [vmem:[#allocation9 + $0x1d8] sm:$0xff]
    %v5391 = vld [vmem:[#allocation9 + $0x1e0] sm:$0xff]
    %v5392 = vld [vmem:[#allocation9 + $0x1e8] sm:$0xff]
    %v5393 = vld [vmem:[#allocation9 + $0x1f0] sm:$0xff]
    %v5394 = vld [vmem:[#allocation9 + $0x1f8] sm:$0xff]
    %v5395 = vld [vmem:[#allocation9 + $0x200] sm:$0xff]
    %v5396 = vld [vmem:[#allocation9 + $0x208] sm:$0xff]
    %v5397 = vld [vmem:[#allocation9 + $0x210] sm:$0xff]
    %v5398 = vld [vmem:[#allocation9 + $0x218] sm:$0xff]
    %v5399 = vld [vmem:[#allocation9 + $0x220] sm:$0xff]
    %v5400 = vld [vmem:[#allocation9 + $0x228] sm:$0xff]
    %v5401 = vld [vmem:[#allocation9 + $0x230] sm:$0xff]
    %v5402 = vld [vmem:[#allocation9 + $0x238] sm:$0xff]
    %v5403 = vld [vmem:[#allocation9 + $0x240] sm:$0xff]
    %v5404 = vld [vmem:[#allocation9 + $0x248] sm:$0xff]
    %v5405 = vld [vmem:[#allocation9 + $0x250] sm:$0xff]
    %v5406 = vld [vmem:[#allocation9 + $0x258] sm:$0xff]
    %v5407 = vld [vmem:[#allocation9 + $0x260] sm:$0xff]
    %v5408 = vld [vmem:[#allocation9 + $0x268] sm:$0xff]
    %v5409 = vld [vmem:[#allocation9 + $0x270] sm:$0xff]
    %v5410 = vld [vmem:[#allocation9 + $0x278] sm:$0xff]
    %v5411 = vld [vmem:[#allocation9 + $0x280] sm:$0xff]
    %v5412 = vld [vmem:[#allocation9 + $0x288] sm:$0xff]
    %v5413 = vld [vmem:[#allocation9 + $0x290] sm:$0xff]
    %v5414 = vld [vmem:[#allocation9 + $0x298] sm:$0xff]
    %v5415 = vld [vmem:[#allocation9 + $0x2a0] sm:$0xff]
    %v5416 = vld [vmem:[#allocation9 + $0x2a8] sm:$0xff]
    %v5417 = vld [vmem:[#allocation9 + $0x2b0] sm:$0xff]
    %v5418 = vld [vmem:[#allocation9 + $0x2b8] sm:$0xff]
    %v5419 = vld [vmem:[#allocation9 + $0x2c0] sm:$0xff]
    %v5420 = vld [vmem:[#allocation9 + $0x2c8] sm:$0xff]
    %v5421 = vld [vmem:[#allocation9 + $0x2d0] sm:$0xff]
    %v5422 = vld [vmem:[#allocation9 + $0x2d8] sm:$0xff]
    %v5423 = vld [vmem:[#allocation9 + $0x2e0] sm:$0xff]
    %v5424 = vld [vmem:[#allocation9 + $0x2e8] sm:$0xff]
    %v5425 = vld [vmem:[#allocation9 + $0x2f0] sm:$0xff]
    %v5426 = vld [vmem:[#allocation9 + $0x2f8] sm:$0xff]
    %v5459 = vrot.slane %v5299, 3
    %v5460 = vrot.slane %v5301, 3
    %v5461 = vsel %vm1983, %v5459, %v5460
    %v5462 = vrot.slane %v5300, 3
    %v5463 = vrot.slane %v5302, 3
    %v5464 = vsel %vm1983, %v5462, %v5463
    %v5465 = vrot.slane %v5303, 3
    %v5466 = vsel %vm1983, %v5460, %v5465
    %v5467 = vrot.slane %v5304, 3
    %v5468 = vsel %vm1983, %v5463, %v5467
    %v5469 = vrot.slane %v5305, 3
    %v5470 = vsel %vm1983, %v5465, %v5469
    %v5471 = vrot.slane %v5306, 3
    %v5472 = vsel %vm1983, %v5467, %v5471
    %v5473 = vrot.slane %v5307, 3
    %v5474 = vsel %vm1983, %v5469, %v5473
    %v5475 = vrot.slane %v5308, 3
    %v5476 = vsel %vm1983, %v5471, %v5475
    %v5477 = vrot.slane %v5309, 3
    %v5478 = vsel %vm1983, %v5473, %v5477
    %v5479 = vrot.slane %v5310, 3
    %v5480 = vsel %vm1983, %v5475, %v5479
    %v5481 = vrot.slane %v5311, 3
    %v5482 = vsel %vm1983, %v5477, %v5481
    %v5483 = vrot.slane %v5312, 3
    %v5484 = vsel %vm1983, %v5479, %v5483
    %v5485 = vrot.slane %v5313, 3
    %v5486 = vsel %vm1983, %v5481, %v5485
    %v5487 = vrot.slane %v5314, 3
    %v5488 = vsel %vm1983, %v5483, %v5487
    %v5489 = vrot.slane %v5315, 3
    %v5490 = vsel %vm1983, %v5485, %v5489
    %v5491 = vrot.slane %v5316, 3
    %v5492 = vsel %vm1983, %v5487, %v5491
    %v5493 = vrot.slane %v5317, 3
    %v5494 = vsel %vm1983, %v5489, %v5493
    %v5495 = vrot.slane %v5318, 3
    %v5496 = vsel %vm1983, %v5491, %v5495
    %v5497 = vrot.slane %v5319, 3
    %v5498 = vsel %vm1983, %v5493, %v5497
    %v5499 = vrot.slane %v5320, 3
    %v5500 = vsel %vm1983, %v5495, %v5499
    %v5501 = vrot.slane %v5321, 3
    %v5502 = vsel %vm1983, %v5497, %v5501
    %v5503 = vrot.slane %v5322, 3
    %v5504 = vsel %vm1983, %v5499, %v5503
    %v5505 = vrot.slane %v5323, 3
    %v5506 = vsel %vm1983, %v5501, %v5505
    %v5507 = vrot.slane %v5324, 3
    %v5508 = vsel %vm1983, %v5503, %v5507
    %v5509 = vrot.slane %v5325, 3
    %v5510 = vsel %vm1983, %v5505, %v5509
    %v5511 = vrot.slane %v5326, 3
    %v5512 = vsel %vm1983, %v5507, %v5511
    %v5513 = vrot.slane %v5327, 3
    %v5514 = vsel %vm1983, %v5509, %v5513
    %v5515 = vrot.slane %v5328, 3
    %v5516 = vsel %vm1983, %v5511, %v5515
    %v5517 = vrot.slane %v5329, 3
    %v5518 = vsel %vm1983, %v5513, %v5517
    %v5519 = vrot.slane %v5330, 3
    %v5520 = vsel %vm1983, %v5515, %v5519
    %v5555 = vsel %vm1983, %v5517, %v5459
    %v5556 = vsel %vm1983, %v5519, %v5462
    %s5557 = scalar_lea.vmem [#allocation9], 768
    %v5558 = vld [vmem:[%s5557] sm:$0xff]
    %v5559 = vld [vmem:[%s5557 + $0x8] sm:$0xff]
    %v5560 = vld [vmem:[%s5557 + $0x10] sm:$0xff]
    %v5561 = vld [vmem:[%s5557 + $0x18] sm:$0xff]
    %v5562 = vld [vmem:[%s5557 + $0x20] sm:$0xff]
    %v5563 = vld [vmem:[%s5557 + $0x28] sm:$0xff]
    %v5564 = vld [vmem:[%s5557 + $0x30] sm:$0xff]
    %v5565 = vld [vmem:[%s5557 + $0x38] sm:$0xff]
    %v5566 = vld [vmem:[%s5557 + $0x40] sm:$0xff]
    %v5567 = vld [vmem:[%s5557 + $0x48] sm:$0xff]
    %v5568 = vld [vmem:[%s5557 + $0x50] sm:$0xff]
    %v5569 = vld [vmem:[%s5557 + $0x58] sm:$0xff]
    %v5570 = vld [vmem:[%s5557 + $0x60] sm:$0xff]
    %v5571 = vld [vmem:[%s5557 + $0x68] sm:$0xff]
    %v5572 = vld [vmem:[%s5557 + $0x70] sm:$0xff]
    %v5573 = vld [vmem:[%s5557 + $0x78] sm:$0xff]
    %v5574 = vld [vmem:[%s5557 + $0x80] sm:$0xff]
    %v5575 = vld [vmem:[%s5557 + $0x88] sm:$0xff]
    %v5576 = vld [vmem:[%s5557 + $0x90] sm:$0xff]
    %v5577 = vld [vmem:[%s5557 + $0x98] sm:$0xff]
    %v5578 = vld [vmem:[%s5557 + $0xa0] sm:$0xff]
    %v5579 = vld [vmem:[%s5557 + $0xa8] sm:$0xff]
    %v5580 = vld [vmem:[%s5557 + $0xb0] sm:$0xff]
    %v5581 = vld [vmem:[%s5557 + $0xb8] sm:$0xff]
    %v5582 = vld [vmem:[%s5557 + $0xc0] sm:$0xff]
    %v5583 = vld [vmem:[%s5557 + $0xc8] sm:$0xff]
    %v5584 = vld [vmem:[%s5557 + $0xd0] sm:$0xff]
    %v5585 = vld [vmem:[%s5557 + $0xd8] sm:$0xff]
    %v5586 = vld [vmem:[%s5557 + $0xe0] sm:$0xff]
    %v5587 = vld [vmem:[%s5557 + $0xe8] sm:$0xff]
    %v5588 = vld [vmem:[%s5557 + $0xf0] sm:$0xff]
    %v5589 = vld [vmem:[%s5557 + $0xf8] sm:$0xff]
    %v5590 = vld [vmem:[%s5557 + $0x100] sm:$0xff]
    %v5591 = vld [vmem:[%s5557 + $0x108] sm:$0xff]
    %v5592 = vld [vmem:[%s5557 + $0x110] sm:$0xff]
    %v5593 = vld [vmem:[%s5557 + $0x118] sm:$0xff]
    %v5594 = vld [vmem:[%s5557 + $0x120] sm:$0xff]
    %v5595 = vld [vmem:[%s5557 + $0x128] sm:$0xff]
    %v5596 = vld [vmem:[%s5557 + $0x130] sm:$0xff]
    %v5597 = vld [vmem:[%s5557 + $0x138] sm:$0xff]
    %v5598 = vld [vmem:[%s5557 + $0x140] sm:$0xff]
    %v5599 = vld [vmem:[%s5557 + $0x148] sm:$0xff]
    %v5600 = vld [vmem:[%s5557 + $0x150] sm:$0xff]
    %v5601 = vld [vmem:[%s5557 + $0x158] sm:$0xff]
    %v5602 = vld [vmem:[%s5557 + $0x160] sm:$0xff]
    %v5603 = vld [vmem:[%s5557 + $0x168] sm:$0xff]
    %v5604 = vld [vmem:[%s5557 + $0x170] sm:$0xff]
    %v5605 = vld [vmem:[%s5557 + $0x178] sm:$0xff]
    %v5606 = vld [vmem:[%s5557 + $0x180] sm:$0xff]
    %v5607 = vld [vmem:[%s5557 + $0x188] sm:$0xff]
    %v5608 = vld [vmem:[%s5557 + $0x190] sm:$0xff]
    %v5609 = vld [vmem:[%s5557 + $0x198] sm:$0xff]
    %v5610 = vld [vmem:[%s5557 + $0x1a0] sm:$0xff]
    %v5611 = vld [vmem:[%s5557 + $0x1a8] sm:$0xff]
    %v5612 = vld [vmem:[%s5557 + $0x1b0] sm:$0xff]
    %v5613 = vld [vmem:[%s5557 + $0x1b8] sm:$0xff]
    %v5614 = vld [vmem:[%s5557 + $0x1c0] sm:$0xff]
    %v5615 = vld [vmem:[%s5557 + $0x1c8] sm:$0xff]
    %v5616 = vld [vmem:[%s5557 + $0x1d0] sm:$0xff]
    %v5617 = vld [vmem:[%s5557 + $0x1d8] sm:$0xff]
    %v5618 = vld [vmem:[%s5557 + $0x1e0] sm:$0xff]
    %v5619 = vld [vmem:[%s5557 + $0x1e8] sm:$0xff]
    %v5620 = vld [vmem:[%s5557 + $0x1f0] sm:$0xff]
    %v5621 = vld [vmem:[%s5557 + $0x1f8] sm:$0xff]
    %v5622 = vld [vmem:[%s5557 + $0x200] sm:$0xff]
    %v5623 = vld [vmem:[%s5557 + $0x208] sm:$0xff]
    %v5624 = vld [vmem:[%s5557 + $0x210] sm:$0xff]
    %v5625 = vld [vmem:[%s5557 + $0x218] sm:$0xff]
    %v5626 = vld [vmem:[%s5557 + $0x220] sm:$0xff]
    %v5627 = vld [vmem:[%s5557 + $0x228] sm:$0xff]
    %v5628 = vld [vmem:[%s5557 + $0x230] sm:$0xff]
    %v5629 = vld [vmem:[%s5557 + $0x238] sm:$0xff]
    %v5630 = vld [vmem:[%s5557 + $0x240] sm:$0xff]
    %v5631 = vld [vmem:[%s5557 + $0x248] sm:$0xff]
    %v5632 = vld [vmem:[%s5557 + $0x250] sm:$0xff]
    %v5633 = vld [vmem:[%s5557 + $0x258] sm:$0xff]
    %v5634 = vld [vmem:[%s5557 + $0x260] sm:$0xff]
    %v5635 = vld [vmem:[%s5557 + $0x268] sm:$0xff]
    %v5636 = vld [vmem:[%s5557 + $0x270] sm:$0xff]
    %v5637 = vld [vmem:[%s5557 + $0x278] sm:$0xff]
    %v5638 = vld [vmem:[%s5557 + $0x280] sm:$0xff]
    %v5639 = vld [vmem:[%s5557 + $0x288] sm:$0xff]
    %v5640 = vld [vmem:[%s5557 + $0x290] sm:$0xff]
    %v5641 = vld [vmem:[%s5557 + $0x298] sm:$0xff]
    %v5642 = vld [vmem:[%s5557 + $0x2a0] sm:$0xff]
    %v5643 = vld [vmem:[%s5557 + $0x2a8] sm:$0xff]
    %v5644 = vld [vmem:[%s5557 + $0x2b0] sm:$0xff]
    %v5645 = vld [vmem:[%s5557 + $0x2b8] sm:$0xff]
    %v5646 = vld [vmem:[%s5557 + $0x2c0] sm:$0xff]
    %v5647 = vld [vmem:[%s5557 + $0x2c8] sm:$0xff]
    %v5648 = vld [vmem:[%s5557 + $0x2d0] sm:$0xff]
    %v5649 = vld [vmem:[%s5557 + $0x2d8] sm:$0xff]
    %v5650 = vld [vmem:[%s5557 + $0x2e0] sm:$0xff]
    %v5651 = vld [vmem:[%s5557 + $0x2e8] sm:$0xff]
    %v5652 = vld [vmem:[%s5557 + $0x2f0] sm:$0xff]
    %v5653 = vld [vmem:[%s5557 + $0x2f8] sm:$0xff]
    %5654 = vmatprep.subr.mxu0 %v5559
    %5655 = vmatpush1.msra.mxu0 %v5558
    %5656 = vmatprep.subr.mxu0 %v5562
    %5657 = vmatpush1.msra.mxu0 %v5561
    %5658 = vmatprep.subr.mxu0 %v5565
    %5659 = vmatpush1.msra.mxu0 %v5564
    %5660 = vmatprep.subr.mxu0 %v5568
    %5661 = vmatpush1.msra.mxu0 %v5567
    %5662 = vmatprep.subr.mxu0 %v5571
    %5663 = vmatpush1.msra.mxu0 %v5570
    %5664 = vmatprep.subr.mxu0 %v5574
    %5665 = vmatpush1.msra.mxu0 %v5573
    %5666 = vmatprep.subr.mxu0 %v5577
    %5667 = vmatpush1.msra.mxu0 %v5576
    %5668 = vmatprep.subr.mxu0 %v5580
    %5669 = vmatpush1.msra.mxu0 %v5579
    %5670 = vmatprep.subr.mxu0 %v5583
    %5671 = vmatpush1.msra.mxu0 %v5582
    %5672 = vmatprep.subr.mxu0 %v5586
    %5673 = vmatpush1.msra.mxu0 %v5585
    %5674 = vmatprep.subr.mxu0 %v5589
    %5675 = vmatpush1.msra.mxu0 %v5588
    %5676 = vmatprep.subr.mxu0 %v5592
    %5677 = vmatpush1.msra.mxu0 %v5591
    %5678 = vmatprep.subr.mxu0 %v5595
    %5679 = vmatpush1.msra.mxu0 %v5594
    %5680 = vmatprep.subr.mxu0 %v5598
    %5681 = vmatpush1.msra.mxu0 %v5597
    %5682 = vmatprep.subr.mxu0 %v5601
    %5683 = vmatpush1.msra.mxu0 %v5600
    %5684 = vmatprep.subr.mxu0 %v5604
    %5685 = vmatpush1.msra.mxu0 %v5603
    %5686 = vmatprep.subr.mxu0 %v5607
    %5687 = vmatpush1.msra.mxu0 %v5606
    %5688 = vmatprep.subr.mxu0 %v5610
    %5689 = vmatpush1.msra.mxu0 %v5609
    %5690 = vmatprep.subr.mxu0 %v5613
    %5691 = vmatpush1.msra.mxu0 %v5612
    %5692 = vmatprep.subr.mxu0 %v5616
    %5693 = vmatpush1.msra.mxu0 %v5615
    %5694 = vmatprep.subr.mxu0 %v5619
    %5695 = vmatpush1.msra.mxu0 %v5618
    %5696 = vmatprep.subr.mxu0 %v5622
    %5697 = vmatpush1.msra.mxu0 %v5621
    %5698 = vmatprep.subr.mxu0 %v5625
    %5699 = vmatpush1.msra.mxu0 %v5624
    %5700 = vmatprep.subr.mxu0 %v5628
    %5701 = vmatpush1.msra.mxu0 %v5627
    %5702 = vmatprep.subr.mxu0 %v5631
    %5703 = vmatpush1.msra.mxu0 %v5630
    %5704 = vmatprep.subr.mxu0 %v5634
    %5705 = vmatpush1.msra.mxu0 %v5633
    %5706 = vmatprep.subr.mxu0 %v5637
    %5707 = vmatpush1.msra.mxu0 %v5636
    %5708 = vmatprep.subr.mxu0 %v5640
    %5709 = vmatpush1.msra.mxu0 %v5639
    %5710 = vmatprep.subr.mxu0 %v5643
    %5711 = vmatpush1.msra.mxu0 %v5642
    %5712 = vmatprep.subr.mxu0 %v5646
    %5713 = vmatpush1.msra.mxu0 %v5645
    %5714 = vmatprep.subr.mxu0 %v5649
    %5715 = vmatpush1.msra.mxu0 %v5648
    %5716 = vmatprep.subr.mxu0 %v5652
    %5717 = vmatpush1.msra.mxu0 %v5651
    %5718 = vmatprep.mubr.f32.mxu0 %v5464
    %5719 = vmatmul.mubr.f32.gmra.mrb[0].mxu0 %v5461
    %v5720 = vpop.f32.mrb[0].mxu0
    %v5721 = vadd.f32 0.0, %v5720
    %v5722 = vpop.f32.mrb[0].mxu0
    %v5723 = vadd.f32 0.0, %v5722
    %5724 = vmatprep.mubr.f32.mxu0 %v5468
    %5725 = vmatmul.mubr.f32.gmra.mrb[0].mxu0 %v5466
    %v5726 = vpop.f32.mrb[0].mxu0
    %v5727 = vadd.f32 0.0, %v5726
    %v5728 = vpop.f32.mrb[0].mxu0
    %v5729 = vadd.f32 0.0, %v5728
    %5730 = vmatprep.mubr.f32.mxu0 %v5472
    %5731 = vmatmul.mubr.f32.gmra.mrb[0].mxu0 %v5470
    %v5732 = vpop.f32.mrb[0].mxu0
    %v5733 = vadd.f32 0.0, %v5732
    %v5734 = vpop.f32.mrb[0].mxu0
    %v5735 = vadd.f32 0.0, %v5734
    %5736 = vmatprep.mubr.f32.mxu0 %v5476
    %5737 = vmatmul.mubr.f32.gmra.mrb[0].mxu0 %v5474
    %v5738 = vpop.f32.mrb[0].mxu0
    %v5739 = vadd.f32 0.0, %v5738
    %v5740 = vpop.f32.mrb[0].mxu0
    %v5741 = vadd.f32 0.0, %v5740
    %5742 = vmatprep.mubr.f32.mxu0 %v5480
    %5743 = vmatmul.mubr.f32.gmra.mrb[0].mxu0 %v5478
    %v5744 = vpop.f32.mrb[0].mxu0
    %v5745 = vadd.f32 0.0, %v5744
    %v5746 = vpop.f32.mrb[0].mxu0
    %v5747 = vadd.f32 0.0, %v5746
    %5748 = vmatprep.mubr.f32.mxu0 %v5484
    %5749 = vmatmul.mubr.f32.gmra.mrb[0].mxu0 %v5482
    %v5750 = vpop.f32.mrb[0].mxu0
    %v5751 = vadd.f32 0.0, %v5750
    %v5752 = vpop.f32.mrb[0].mxu0
    %v5753 = vadd.f32 0.0, %v5752
    %5754 = vmatprep.mubr.f32.mxu0 %v5488
    %5755 = vmatmul.mubr.f32.gmra.mrb[0].mxu0 %v5486
    %v5756 = vpop.f32.mrb[0].mxu0
    %v5757 = vadd.f32 0.0, %v5756
    %v5758 = vpop.f32.mrb[0].mxu0
    %v5759 = vadd.f32 0.0, %v5758
    %5760 = vmatprep.mubr.f32.mxu0 %v5492
    %5761 = vmatmul.mubr.f32.gmra.mrb[0].mxu0 %v5490
    %v5762 = vpop.f32.mrb[0].mxu0
    %v5763 = vadd.f32 0.0, %v5762
    %v5764 = vpop.f32.mrb[0].mxu0
    %v5765 = vadd.f32 0.0, %v5764
    %5766 = vmatprep.mubr.f32.mxu0 %v5496
    %5767 = vmatmul.mubr.f32.gmra.mrb[0].mxu0 %v5494
    %v5768 = vpop.f32.mrb[0].mxu0
    %v5769 = vadd.f32 0.0, %v5768
    %v5770 = vpop.f32.mrb[0].mxu0
    %v5771 = vadd.f32 0.0, %v5770
    %5772 = vmatprep.mubr.f32.mxu0 %v5500
    %5773 = vmatmul.mubr.f32.gmra.mrb[0].mxu0 %v5498
    %v5774 = vpop.f32.mrb[0].mxu0
    %v5775 = vadd.f32 0.0, %v5774
    %v5776 = vpop.f32.mrb[0].mxu0
    %v5777 = vadd.f32 0.0, %v5776
    %5778 = vmatprep.mubr.f32.mxu0 %v5504
    %5779 = vmatmul.mubr.f32.gmra.mrb[0].mxu0 %v5502
    %v5780 = vpop.f32.mrb[0].mxu0
    %v5781 = vadd.f32 0.0, %v5780
    %v5782 = vpop.f32.mrb[0].mxu0
    %v5783 = vadd.f32 0.0, %v5782
    %5784 = vmatprep.mubr.f32.mxu0 %v5508
    %5785 = vmatmul.mubr.f32.gmra.mrb[0].mxu0 %v5506
    %v5786 = vpop.f32.mrb[0].mxu0
    %v5787 = vadd.f32 0.0, %v5786
    %v5788 = vpop.f32.mrb[0].mxu0
    %v5789 = vadd.f32 0.0, %v5788
    %5790 = vmatprep.mubr.f32.mxu0 %v5512
    %5791 = vmatmul.mubr.f32.gmra.mrb[0].mxu0 %v5510
    %v5792 = vpop.f32.mrb[0].mxu0
    %v5793 = vadd.f32 0.0, %v5792
    %v5794 = vpop.f32.mrb[0].mxu0
    %v5795 = vadd.f32 0.0, %v5794
    %5796 = vmatprep.mubr.f32.mxu0 %v5516
    %5797 = vmatmul.mubr.f32.gmra.mrb[0].mxu0 %v5514
    %v5798 = vpop.f32.mrb[0].mxu0
    %v5799 = vadd.f32 0.0, %v5798
    %v5800 = vpop.f32.mrb[0].mxu0
    %v5801 = vadd.f32 0.0, %v5800
    %5802 = vmatprep.mubr.f32.mxu0 %v5520
    %5803 = vmatmul.mubr.f32.gmra.mrb[0].mxu0 %v5518
    %v5804 = vpop.f32.mrb[0].mxu0
    %v5805 = vadd.f32 0.0, %v5804
    %v5806 = vpop.f32.mrb[0].mxu0
    %v5807 = vadd.f32 0.0, %v5806
    %5808 = vmatprep.mubr.f32.mxu0 %v5556
    %5809 = vmatmul.mubr.f32.gmra.mrb[0].mxu0 %v5555
    %v5810 = vpop.f32.mrb[0].mxu0
    %v5811 = vadd.f32 0.0, %v5810
    %v5812 = vpop.f32.mrb[0].mxu0
    %v5813 = vadd.f32 0.0, %v5812
    %5814 = vdwg.mxu0
    %5815 = vmatprep.subr.mxu0 0.0
    %5816 = vmatpush1.msra.mxu0 %v5560
    %5817 = vmatprep.subr.mxu0 0.0
    %5818 = vmatpush1.msra.mxu0 %v5563
    %5819 = vmatprep.subr.mxu0 0.0
    %5820 = vmatpush1.msra.mxu0 %v5566
    %5821 = vmatprep.subr.mxu0 0.0
    %5822 = vmatpush1.msra.mxu0 %v5569
    %5823 = vmatprep.subr.mxu0 0.0
    %5824 = vmatpush1.msra.mxu0 %v5572
    %5825 = vmatprep.subr.mxu0 0.0
    %5826 = vmatpush1.msra.mxu0 %v5575
    %5827 = vmatprep.subr.mxu0 0.0
    %5828 = vmatpush1.msra.mxu0 %v5578
    %5829 = vmatprep.subr.mxu0 0.0
    %5830 = vmatpush1.msra.mxu0 %v5581
    %5831 = vmatprep.subr.mxu0 0.0
    %5832 = vmatpush1.msra.mxu0 %v5584
    %5833 = vmatprep.subr.mxu0 0.0
    %5834 = vmatpush1.msra.mxu0 %v5587
    %5835 = vmatprep.subr.mxu0 0.0
    %5836 = vmatpush1.msra.mxu0 %v5590
    %5837 = vmatprep.subr.mxu0 0.0
    %5838 = vmatpush1.msra.mxu0 %v5593
    %5839 = vmatprep.subr.mxu0 0.0
    %5840 = vmatpush1.msra.mxu0 %v5596
    %5841 = vmatprep.subr.mxu0 0.0
    %5842 = vmatpush1.msra.mxu0 %v5599
    %5843 = vmatprep.subr.mxu0 0.0
    %5844 = vmatpush1.msra.mxu0 %v5602
    %5845 = vmatprep.subr.mxu0 0.0
    %5846 = vmatpush1.msra.mxu0 %v5605
    %5847 = vmatprep.subr.mxu0 0.0
    %5848 = vmatpush1.msra.mxu0 %v5608
    %5849 = vmatprep.subr.mxu0 0.0
    %5850 = vmatpush1.msra.mxu0 %v5611
    %5851 = vmatprep.subr.mxu0 0.0
    %5852 = vmatpush1.msra.mxu0 %v5614
    %5853 = vmatprep.subr.mxu0 0.0
    %5854 = vmatpush1.msra.mxu0 %v5617
    %5855 = vmatprep.subr.mxu0 0.0
    %5856 = vmatpush1.msra.mxu0 %v5620
    %5857 = vmatprep.subr.mxu0 0.0
    %5858 = vmatpush1.msra.mxu0 %v5623
    %5859 = vmatprep.subr.mxu0 0.0
    %5860 = vmatpush1.msra.mxu0 %v5626
    %5861 = vmatprep.subr.mxu0 0.0
    %5862 = vmatpush1.msra.mxu0 %v5629
    %5863 = vmatprep.subr.mxu0 0.0
    %5864 = vmatpush1.msra.mxu0 %v5632
    %5865 = vmatprep.subr.mxu0 0.0
    %5866 = vmatpush1.msra.mxu0 %v5635
    %5867 = vmatprep.subr.mxu0 0.0
    %5868 = vmatpush1.msra.mxu0 %v5638
    %5869 = vmatprep.subr.mxu0 0.0
    %5870 = vmatpush1.msra.mxu0 %v5641
    %5871 = vmatprep.subr.mxu0 0.0
    %5872 = vmatpush1.msra.mxu0 %v5644
    %5873 = vmatprep.subr.mxu0 0.0
    %5874 = vmatpush1.msra.mxu0 %v5647
    %5875 = vmatprep.subr.mxu0 0.0
    %5876 = vmatpush1.msra.mxu0 %v5650
    %5877 = vmatprep.subr.mxu0 0.0
    %5878 = vmatpush1.msra.mxu0 %v5653
    %5879 = vmatprep.mubr.f32.mxu0 %v5464
    %5880 = vmatmul.mubr.f32.gmra.mrb[0].mxu0 %v5461
    %v5881 = vpop.f32.mrb[0].mxu0
    %v5882 = vadd.f32 0.0, %v5881
    %v5883 = vpop.f32.mrb[0].mxu0
    %5884 = vmatprep.mubr.f32.mxu0 %v5468
    %5885 = vmatmul.mubr.f32.gmra.mrb[0].mxu0 %v5466
    %v5886 = vpop.f32.mrb[0].mxu0
    %v5887 = vadd.f32 0.0, %v5886
    %v5888 = vpop.f32.mrb[0].mxu0
    %5889 = vmatprep.mubr.f32.mxu0 %v5472
    %5890 = vmatmul.mubr.f32.gmra.mrb[0].mxu0 %v5470
    %v5891 = vpop.f32.mrb[0].mxu0
    %v5892 = vadd.f32 0.0, %v5891
    %v5893 = vpop.f32.mrb[0].mxu0
    %5894 = vmatprep.mubr.f32.mxu0 %v5476
    %5895 = vmatmul.mubr.f32.gmra.mrb[0].mxu0 %v5474
    %v5896 = vpop.f32.mrb[0].mxu0
    %v5897 = vadd.f32 0.0, %v5896
    %v5898 = vpop.f32.mrb[0].mxu0
    %5899 = vmatprep.mubr.f32.mxu0 %v5480
    %5900 = vmatmul.mubr.f32.gmra.mrb[0].mxu0 %v5478
    %v5901 = vpop.f32.mrb[0].mxu0
    %v5902 = vadd.f32 0.0, %v5901
    %v5903 = vpop.f32.mrb[0].mxu0
    %5904 = vmatprep.mubr.f32.mxu0 %v5484
    %5905 = vmatmul.mubr.f32.gmra.mrb[0].mxu0 %v5482
    %v5906 = vpop.f32.mrb[0].mxu0
    %v5907 = vadd.f32 0.0, %v5906
    %v5908 = vpop.f32.mrb[0].mxu0
    %5909 = vmatprep.mubr.f32.mxu0 %v5488
    %5910 = vmatmul.mubr.f32.gmra.mrb[0].mxu0 %v5486
    %v5911 = vpop.f32.mrb[0].mxu0
    %v5912 = vadd.f32 0.0, %v5911
    %v5913 = vpop.f32.mrb[0].mxu0
    %5914 = vmatprep.mubr.f32.mxu0 %v5492
    %5915 = vmatmul.mubr.f32.gmra.mrb[0].mxu0 %v5490
    %v5916 = vpop.f32.mrb[0].mxu0
    %v5917 = vadd.f32 0.0, %v5916
    %v5918 = vpop.f32.mrb[0].mxu0
    %5919 = vmatprep.mubr.f32.mxu0 %v5496
    %5920 = vmatmul.mubr.f32.gmra.mrb[0].mxu0 %v5494
    %v5921 = vpop.f32.mrb[0].mxu0
    %v5922 = vadd.f32 0.0, %v5921
    %v5923 = vpop.f32.mrb[0].mxu0
    %5924 = vmatprep.mubr.f32.mxu0 %v5500
    %5925 = vmatmul.mubr.f32.gmra.mrb[0].mxu0 %v5498
    %v5926 = vpop.f32.mrb[0].mxu0
    %v5927 = vadd.f32 0.0, %v5926
    %v5928 = vpop.f32.mrb[0].mxu0
    %5929 = vmatprep.mubr.f32.mxu0 %v5504
    %5930 = vmatmul.mubr.f32.gmra.mrb[0].mxu0 %v5502
    %v5931 = vpop.f32.mrb[0].mxu0
    %v5932 = vadd.f32 0.0, %v5931
    %v5933 = vpop.f32.mrb[0].mxu0
    %5934 = vmatprep.mubr.f32.mxu0 %v5508
    %5935 = vmatmul.mubr.f32.gmra.mrb[0].mxu0 %v5506
    %v5936 = vpop.f32.mrb[0].mxu0
    %v5937 = vadd.f32 0.0, %v5936
    %v5938 = vpop.f32.mrb[0].mxu0
    %5939 = vmatprep.mubr.f32.mxu0 %v5512
    %5940 = vmatmul.mubr.f32.gmra.mrb[0].mxu0 %v5510
    %v5941 = vpop.f32.mrb[0].mxu0
    %v5942 = vadd.f32 0.0, %v5941
    %v5943 = vpop.f32.mrb[0].mxu0
    %5944 = vmatprep.mubr.f32.mxu0 %v5516
    %5945 = vmatmul.mubr.f32.gmra.mrb[0].mxu0 %v5514
    %v5946 = vpop.f32.mrb[0].mxu0
    %v5947 = vadd.f32 0.0, %v5946
    %v5948 = vpop.f32.mrb[0].mxu0
    %5949 = vmatprep.mubr.f32.mxu0 %v5520
    %5950 = vmatmul.mubr.f32.gmra.mrb[0].mxu0 %v5518
    %v5951 = vpop.f32.mrb[0].mxu0
    %v5952 = vadd.f32 0.0, %v5951
    %v5953 = vpop.f32.mrb[0].mxu0
    %5954 = vmatprep.mubr.f32.mxu0 %v5556
    %5955 = vmatmul.mubr.f32.gmra.mrb[0].mxu0 %v5555
    %v5956 = vpop.f32.mrb[0].mxu0
    %v5957 = vadd.f32 0.0, %v5956
    %v5958 = vpop.f32.mrb[0].mxu0
    %5959 = vdwg.mxu0
    %5960 = vmatprep.subr.mxu0 %v5332
    %5961 = vmatpush1.msra.mxu0 %v5331
    %5962 = vmatprep.subr.mxu0 %v5335
    %5963 = vmatpush1.msra.mxu0 %v5334
    %5964 = vmatprep.subr.mxu0 %v5338
    %5965 = vmatpush1.msra.mxu0 %v5337
    %5966 = vmatprep.subr.mxu0 %v5341
    %5967 = vmatpush1.msra.mxu0 %v5340
    %5968 = vmatprep.subr.mxu0 %v5344
    %5969 = vmatpush1.msra.mxu0 %v5343
    %5970 = vmatprep.subr.mxu0 %v5347
    %5971 = vmatpush1.msra.mxu0 %v5346
    %5972 = vmatprep.subr.mxu0 %v5350
    %5973 = vmatpush1.msra.mxu0 %v5349
    %5974 = vmatprep.subr.mxu0 %v5353
    %5975 = vmatpush1.msra.mxu0 %v5352
    %5976 = vmatprep.subr.mxu0 %v5356
    %5977 = vmatpush1.msra.mxu0 %v5355
    %5978 = vmatprep.subr.mxu0 %v5359
    %5979 = vmatpush1.msra.mxu0 %v5358
    %5980 = vmatprep.subr.mxu0 %v5362
    %5981 = vmatpush1.msra.mxu0 %v5361
    %5982 = vmatprep.subr.mxu0 %v5365
    %5983 = vmatpush1.msra.mxu0 %v5364
    %5984 = vmatprep.subr.mxu0 %v5368
    %5985 = vmatpush1.msra.mxu0 %v5367
    %5986 = vmatprep.subr.mxu0 %v5371
    %5987 = vmatpush1.msra.mxu0 %v5370
    %5988 = vmatprep.subr.mxu0 %v5374
    %5989 = vmatpush1.msra.mxu0 %v5373
    %5990 = vmatprep.subr.mxu0 %v5377
    %5991 = vmatpush1.msra.mxu0 %v5376
    %5992 = vmatprep.subr.mxu0 %v5380
    %5993 = vmatpush1.msra.mxu0 %v5379
    %5994 = vmatprep.subr.mxu0 %v5383
    %5995 = vmatpush1.msra.mxu0 %v5382
    %5996 = vmatprep.subr.mxu0 %v5386
    %5997 = vmatpush1.msra.mxu0 %v5385
    %5998 = vmatprep.subr.mxu0 %v5389
    %5999 = vmatpush1.msra.mxu0 %v5388
    %6000 = vmatprep.subr.mxu0 %v5392
    %6001 = vmatpush1.msra.mxu0 %v5391
    %6002 = vmatprep.subr.mxu0 %v5395
    %6003 = vmatpush1.msra.mxu0 %v5394
    %6004 = vmatprep.subr.mxu0 %v5398
    %6005 = vmatpush1.msra.mxu0 %v5397
    %6006 = vmatprep.subr.mxu0 %v5401
    %6007 = vmatpush1.msra.mxu0 %v5400
    %6008 = vmatprep.subr.mxu0 %v5404
    %6009 = vmatpush1.msra.mxu0 %v5403
    %6010 = vmatprep.subr.mxu0 %v5407
    %6011 = vmatpush1.msra.mxu0 %v5406
    %6012 = vmatprep.subr.mxu0 %v5410
    %6013 = vmatpush1.msra.mxu0 %v5409
    %6014 = vmatprep.subr.mxu0 %v5413
    %6015 = vmatpush1.msra.mxu0 %v5412
    %6016 = vmatprep.subr.mxu0 %v5416
    %6017 = vmatpush1.msra.mxu0 %v5415
    %6018 = vmatprep.subr.mxu0 %v5419
    %6019 = vmatpush1.msra.mxu0 %v5418
    %6020 = vmatprep.subr.mxu0 %v5422
    %6021 = vmatpush1.msra.mxu0 %v5421
    %6022 = vmatprep.subr.mxu0 %v5425
    %6023 = vmatpush1.msra.mxu0 %v5424
    %6024 = vmatprep.mubr.f32.mxu0 %v5300
    %6025 = vmatmul.mubr.f32.gmra.mrb[0].mxu0 %v5299
    %v6026 = vpop.f32.mrb[0].mxu0
    %v6027 = vadd.f32 %v5721, %v6026
    %v6028 = vpop.f32.mrb[0].mxu0
    %v6029 = vadd.f32 %v5723, %v6028
    %6030 = vmatprep.mubr.f32.mxu0 %v5302
    %6031 = vmatmul.mubr.f32.gmra.mrb[0].mxu0 %v5301
    %v6032 = vpop.f32.mrb[0].mxu0
    %v6033 = vadd.f32 %v5727, %v6032
    %v6034 = vpop.f32.mrb[0].mxu0
    %v6035 = vadd.f32 %v5729, %v6034
    %6036 = vmatprep.mubr.f32.mxu0 %v5304
    %6037 = vmatmul.mubr.f32.gmra.mrb[0].mxu0 %v5303
    %v6038 = vpop.f32.mrb[0].mxu0
    %v6039 = vadd.f32 %v5733, %v6038
    %v6040 = vpop.f32.mrb[0].mxu0
    %v6041 = vadd.f32 %v5735, %v6040
    %6042 = vmatprep.mubr.f32.mxu0 %v5306
    %6043 = vmatmul.mubr.f32.gmra.mrb[0].mxu0 %v5305
    %v6044 = vpop.f32.mrb[0].mxu0
    %v6045 = vadd.f32 %v5739, %v6044
    %v6046 = vpop.f32.mrb[0].mxu0
    %v6047 = vadd.f32 %v5741, %v6046
    %6048 = vmatprep.mubr.f32.mxu0 %v5308
    %6049 = vmatmul.mubr.f32.gmra.mrb[0].mxu0 %v5307
    %v6050 = vpop.f32.mrb[0].mxu0
    %v6051 = vadd.f32 %v5745, %v6050
    %v6052 = vpop.f32.mrb[0].mxu0
    %v6053 = vadd.f32 %v5747, %v6052
    %6054 = vmatprep.mubr.f32.mxu0 %v5310
    %6055 = vmatmul.mubr.f32.gmra.mrb[0].mxu0 %v5309
    %v6056 = vpop.f32.mrb[0].mxu0
    %v6057 = vadd.f32 %v5751, %v6056
    %v6058 = vpop.f32.mrb[0].mxu0
    %v6059 = vadd.f32 %v5753, %v6058
    %6060 = vmatprep.mubr.f32.mxu0 %v5312
    %6061 = vmatmul.mubr.f32.gmra.mrb[0].mxu0 %v5311
    %v6062 = vpop.f32.mrb[0].mxu0
    %v6063 = vadd.f32 %v5757, %v6062
    %v6064 = vpop.f32.mrb[0].mxu0
    %v6065 = vadd.f32 %v5759, %v6064
    %6066 = vmatprep.mubr.f32.mxu0 %v5314
    %6067 = vmatmul.mubr.f32.gmra.mrb[0].mxu0 %v5313
    %v6068 = vpop.f32.mrb[0].mxu0
    %v6069 = vadd.f32 %v5763, %v6068
    %v6070 = vpop.f32.mrb[0].mxu0
    %v6071 = vadd.f32 %v5765, %v6070
    %6072 = vmatprep.mubr.f32.mxu0 %v5316
    %6073 = vmatmul.mubr.f32.gmra.mrb[0].mxu0 %v5315
    %v6074 = vpop.f32.mrb[0].mxu0
    %v6075 = vadd.f32 %v5769, %v6074
    %v6076 = vpop.f32.mrb[0].mxu0
    %v6077 = vadd.f32 %v5771, %v6076
    %6078 = vmatprep.mubr.f32.mxu0 %v5318
    %6079 = vmatmul.mubr.f32.gmra.mrb[0].mxu0 %v5317
    %v6080 = vpop.f32.mrb[0].mxu0
    %v6081 = vadd.f32 %v5775, %v6080
    %v6082 = vpop.f32.mrb[0].mxu0
    %v6083 = vadd.f32 %v5777, %v6082
    %6084 = vmatprep.mubr.f32.mxu0 %v5320
    %6085 = vmatmul.mubr.f32.gmra.mrb[0].mxu0 %v5319
    %v6086 = vpop.f32.mrb[0].mxu0
    %v6087 = vadd.f32 %v5781, %v6086
    %v6088 = vpop.f32.mrb[0].mxu0
    %v6089 = vadd.f32 %v5783, %v6088
    %6090 = vmatprep.mubr.f32.mxu0 %v5322
    %6091 = vmatmul.mubr.f32.gmra.mrb[0].mxu0 %v5321
    %v6092 = vpop.f32.mrb[0].mxu0
    %v6093 = vadd.f32 %v5787, %v6092
    %v6094 = vpop.f32.mrb[0].mxu0
    %v6095 = vadd.f32 %v5789, %v6094
    %6096 = vmatprep.mubr.f32.mxu0 %v5324
    %6097 = vmatmul.mubr.f32.gmra.mrb[0].mxu0 %v5323
    %v6098 = vpop.f32.mrb[0].mxu0
    %v6099 = vadd.f32 %v5793, %v6098
    %v6100 = vpop.f32.mrb[0].mxu0
    %v6101 = vadd.f32 %v5795, %v6100
    %6102 = vmatprep.mubr.f32.mxu0 %v5326
    %6103 = vmatmul.mubr.f32.gmra.mrb[0].mxu0 %v5325
    %v6104 = vpop.f32.mrb[0].mxu0
    %v6105 = vadd.f32 %v5799, %v6104
    %v6106 = vpop.f32.mrb[0].mxu0
    %v6107 = vadd.f32 %v5801, %v6106
    %6108 = vmatprep.mubr.f32.mxu0 %v5328
    %6109 = vmatmul.mubr.f32.gmra.mrb[0].mxu0 %v5327
    %v6110 = vpop.f32.mrb[0].mxu0
    %v6111 = vadd.f32 %v5805, %v6110
    %v6112 = vpop.f32.mrb[0].mxu0
    %v6113 = vadd.f32 %v5807, %v6112
    %6114 = vmatprep.mubr.f32.mxu0 %v5330
    %6115 = vmatmul.mubr.f32.gmra.mrb[0].mxu0 %v5329
    %v6116 = vpop.f32.mrb[0].mxu0
    %v6117 = vadd.f32 %v5811, %v6116
    %v6118 = vpop.f32.mrb[0].mxu0
    %v6119 = vadd.f32 %v5813, %v6118
    %6120 = vdwg.mxu0
    %6121 = vmatprep.subr.mxu0 0.0
    %6122 = vmatpush1.msra.mxu0 %v5333
    %6123 = vmatprep.subr.mxu0 0.0
    %6124 = vmatpush1.msra.mxu0 %v5336
    %6125 = vmatprep.subr.mxu0 0.0
    %6126 = vmatpush1.msra.mxu0 %v5339
    %6127 = vmatprep.subr.mxu0 0.0
    %6128 = vmatpush1.msra.mxu0 %v5342
    %6129 = vmatprep.subr.mxu0 0.0
    %6130 = vmatpush1.msra.mxu0 %v5345
    %6131 = vmatprep.subr.mxu0 0.0
    %6132 = vmatpush1.msra.mxu0 %v5348
    %6133 = vmatprep.subr.mxu0 0.0
    %6134 = vmatpush1.msra.mxu0 %v5351
    %6135 = vmatprep.subr.mxu0 0.0
    %6136 = vmatpush1.msra.mxu0 %v5354
    %6137 = vmatprep.subr.mxu0 0.0
    %6138 = vmatpush1.msra.mxu0 %v5357
    %6139 = vmatprep.subr.mxu0 0.0
    %6140 = vmatpush1.msra.mxu0 %v5360
    %6141 = vmatprep.subr.mxu0 0.0
    %6142 = vmatpush1.msra.mxu0 %v5363
    %6143 = vmatprep.subr.mxu0 0.0
    %6144 = vmatpush1.msra.mxu0 %v5366
    %6145 = vmatprep.subr.mxu0 0.0
    %6146 = vmatpush1.msra.mxu0 %v5369
    %6147 = vmatprep.subr.mxu0 0.0
    %6148 = vmatpush1.msra.mxu0 %v5372
    %6149 = vmatprep.subr.mxu0 0.0
    %6150 = vmatpush1.msra.mxu0 %v5375
    %6151 = vmatprep.subr.mxu0 0.0
    %6152 = vmatpush1.msra.mxu0 %v5378
    %6153 = vmatprep.subr.mxu0 0.0
    %6154 = vmatpush1.msra.mxu0 %v5381
    %6155 = vmatprep.subr.mxu0 0.0
    %6156 = vmatpush1.msra.mxu0 %v5384
    %6157 = vmatprep.subr.mxu0 0.0
    %6158 = vmatpush1.msra.mxu0 %v5387
    %6159 = vmatprep.subr.mxu0 0.0
    %6160 = vmatpush1.msra.mxu0 %v5390
    %6161 = vmatprep.subr.mxu0 0.0
    %6162 = vmatpush1.msra.mxu0 %v5393
    %6163 = vmatprep.subr.mxu0 0.0
    %6164 = vmatpush1.msra.mxu0 %v5396
    %6165 = vmatprep.subr.mxu0 0.0
    %6166 = vmatpush1.msra.mxu0 %v5399
    %6167 = vmatprep.subr.mxu0 0.0
    %6168 = vmatpush1.msra.mxu0 %v5402
    %6169 = vmatprep.subr.mxu0 0.0
    %6170 = vmatpush1.msra.mxu0 %v5405
    %6171 = vmatprep.subr.mxu0 0.0
    %6172 = vmatpush1.msra.mxu0 %v5408
    %6173 = vmatprep.subr.mxu0 0.0
    %6174 = vmatpush1.msra.mxu0 %v5411
    %6175 = vmatprep.subr.mxu0 0.0
    %6176 = vmatpush1.msra.mxu0 %v5414
    %6177 = vmatprep.subr.mxu0 0.0
    %6178 = vmatpush1.msra.mxu0 %v5417
    %6179 = vmatprep.subr.mxu0 0.0
    %6180 = vmatpush1.msra.mxu0 %v5420
    %6181 = vmatprep.subr.mxu0 0.0
    %6182 = vmatpush1.msra.mxu0 %v5423
    %6183 = vmatprep.subr.mxu0 0.0
    %6184 = vmatpush1.msra.mxu0 %v5426
    %6185 = vmatprep.mubr.f32.mxu0 %v5300
    %6186 = vmatmul.mubr.f32.gmra.mrb[0].mxu0 %v5299
    %v6187 = vpop.f32.mrb[0].mxu0
    %v6188 = vadd.f32 %v5882, %v6187
    %v6189 = vpop.f32.mrb[0].mxu0
    %6190 = vmatprep.mubr.f32.mxu0 %v5302
    %6191 = vmatmul.mubr.f32.gmra.mrb[0].mxu0 %v5301
    %v6192 = vpop.f32.mrb[0].mxu0
    %v6193 = vadd.f32 %v5887, %v6192
    %v6194 = vpop.f32.mrb[0].mxu0
    %6195 = vmatprep.mubr.f32.mxu0 %v5304
    %6196 = vmatmul.mubr.f32.gmra.mrb[0].mxu0 %v5303
    %v6197 = vpop.f32.mrb[0].mxu0
    %v6198 = vadd.f32 %v5892, %v6197
    %v6199 = vpop.f32.mrb[0].mxu0
    %6200 = vmatprep.mubr.f32.mxu0 %v5306
    %6201 = vmatmul.mubr.f32.gmra.mrb[0].mxu0 %v5305
    %v6202 = vpop.f32.mrb[0].mxu0
    %v6203 = vadd.f32 %v5897, %v6202
    %v6204 = vpop.f32.mrb[0].mxu0
    %6205 = vmatprep.mubr.f32.mxu0 %v5308
    %6206 = vmatmul.mubr.f32.gmra.mrb[0].mxu0 %v5307
    %v6207 = vpop.f32.mrb[0].mxu0
    %v6208 = vadd.f32 %v5902, %v6207
    %v6209 = vpop.f32.mrb[0].mxu0
    %6210 = vmatprep.mubr.f32.mxu0 %v5310
    %6211 = vmatmul.mubr.f32.gmra.mrb[0].mxu0 %v5309
    %v6212 = vpop.f32.mrb[0].mxu0
    %v6213 = vadd.f32 %v5907, %v6212
    %v6214 = vpop.f32.mrb[0].mxu0
    %6215 = vmatprep.mubr.f32.mxu0 %v5312
    %6216 = vmatmul.mubr.f32.gmra.mrb[0].mxu0 %v5311
    %v6217 = vpop.f32.mrb[0].mxu0
    %v6218 = vadd.f32 %v5912, %v6217
    %v6219 = vpop.f32.mrb[0].mxu0
    %6220 = vmatprep.mubr.f32.mxu0 %v5314
    %6221 = vmatmul.mubr.f32.gmra.mrb[0].mxu0 %v5313
    %v6222 = vpop.f32.mrb[0].mxu0
    %v6223 = vadd.f32 %v5917, %v6222
    %v6224 = vpop.f32.mrb[0].mxu0
    %6225 = vmatprep.mubr.f32.mxu0 %v5316
    %6226 = vmatmul.mubr.f32.gmra.mrb[0].mxu0 %v5315
    %v6227 = vpop.f32.mrb[0].mxu0
    %v6228 = vadd.f32 %v5922, %v6227
    %v6229 = vpop.f32.mrb[0].mxu0
    %6230 = vmatprep.mubr.f32.mxu0 %v5318
    %6231 = vmatmul.mubr.f32.gmra.mrb[0].mxu0 %v5317
    %v6232 = vpop.f32.mrb[0].mxu0
    %v6233 = vadd.f32 %v5927, %v6232
    %v6234 = vpop.f32.mrb[0].mxu0
    %6235 = vmatprep.mubr.f32.mxu0 %v5320
    %6236 = vmatmul.mubr.f32.gmra.mrb[0].mxu0 %v5319
    %v6237 = vpop.f32.mrb[0].mxu0
    %v6238 = vadd.f32 %v5932, %v6237
    %v6239 = vpop.f32.mrb[0].mxu0
    %6240 = vmatprep.mubr.f32.mxu0 %v5322
    %6241 = vmatmul.mubr.f32.gmra.mrb[0].mxu0 %v5321
    %v6242 = vpop.f32.mrb[0].mxu0
    %v6243 = vadd.f32 %v5937, %v6242
    %v6244 = vpop.f32.mrb[0].mxu0
    %6245 = vmatprep.mubr.f32.mxu0 %v5324
    %6246 = vmatmul.mubr.f32.gmra.mrb[0].mxu0 %v5323
    %v6247 = vpop.f32.mrb[0].mxu0
    %v6248 = vadd.f32 %v5942, %v6247
    %v6249 = vpop.f32.mrb[0].mxu0
    %6250 = vmatprep.mubr.f32.mxu0 %v5326
    %6251 = vmatmul.mubr.f32.gmra.mrb[0].mxu0 %v5325
    %v6252 = vpop.f32.mrb[0].mxu0
    %v6253 = vadd.f32 %v5947, %v6252
    %v6254 = vpop.f32.mrb[0].mxu0
    %6255 = vmatprep.mubr.f32.mxu0 %v5328
    %6256 = vmatmul.mubr.f32.gmra.mrb[0].mxu0 %v5327
    %v6257 = vpop.f32.mrb[0].mxu0
    %v6258 = vadd.f32 %v5952, %v6257
    %v6259 = vpop.f32.mrb[0].mxu0
    %6260 = vmatprep.mubr.f32.mxu0 %v5330
    %6261 = vmatmul.mubr.f32.gmra.mrb[0].mxu0 %v5329
    %v6262 = vpop.f32.mrb[0].mxu0
    %v6263 = vadd.f32 %v5957, %v6262
    %v6264 = vpop.f32.mrb[0].mxu0
    %6265 = vdwg.mxu0
    %vm6266 = vcmask 1041408
    %v6267 = vrot.slane %v5299, 6
    %v6268 = vrot.slane %v5301, 6
    %v6269 = vsel %vm6266, %v6267, %v6268
    %v6270 = vrot.slane %v5300, 6
    %v6271 = vrot.slane %v5302, 6
    %v6272 = vsel %vm6266, %v6270, %v6271
    %v6273 = vrot.slane %v5303, 6
    %v6274 = vsel %vm6266, %v6268, %v6273
    %v6275 = vrot.slane %v5304, 6
    %v6276 = vsel %vm6266, %v6271, %v6275
    %v6277 = vrot.slane %v5305, 6
    %v6278 = vsel %vm6266, %v6273, %v6277
    %v6279 = vrot.slane %v5306, 6
    %v6280 = vsel %vm6266, %v6275, %v6279
    %v6281 = vrot.slane %v5307, 6
    %v6282 = vsel %vm6266, %v6277, %v6281
    %v6283 = vrot.slane %v5308, 6
    %v6284 = vsel %vm6266, %v6279, %v6283
    %v6285 = vrot.slane %v5309, 6
    %v6286 = vsel %vm6266, %v6281, %v6285
    %v6287 = vrot.slane %v5310, 6
    %v6288 = vsel %vm6266, %v6283, %v6287
    %v6289 = vrot.slane %v5311, 6
    %v6290 = vsel %vm6266, %v6285, %v6289
    %v6291 = vrot.slane %v5312, 6
    %v6292 = vsel %vm6266, %v6287, %v6291
    %v6293 = vrot.slane %v5313, 6
    %v6294 = vsel %vm6266, %v6289, %v6293
    %v6295 = vrot.slane %v5314, 6
    %v6296 = vsel %vm6266, %v6291, %v6295
    %v6297 = vrot.slane %v5315, 6
    %v6298 = vsel %vm6266, %v6293, %v6297
    %v6299 = vrot.slane %v5316, 6
    %v6300 = vsel %vm6266, %v6295, %v6299
    %v6301 = vrot.slane %v5317, 6
    %v6302 = vsel %vm6266, %v6297, %v6301
    %v6303 = vrot.slane %v5318, 6
    %v6304 = vsel %vm6266, %v6299, %v6303
    %v6305 = vrot.slane %v5319, 6
    %v6306 = vsel %vm6266, %v6301, %v6305
    %v6307 = vrot.slane %v5320, 6
    %v6308 = vsel %vm6266, %v6303, %v6307
    %v6309 = vrot.slane %v5321, 6
    %v6310 = vsel %vm6266, %v6305, %v6309
    %v6311 = vrot.slane %v5322, 6
    %v6312 = vsel %vm6266, %v6307, %v6311
    %v6313 = vrot.slane %v5323, 6
    %v6314 = vsel %vm6266, %v6309, %v6313
    %v6315 = vrot.slane %v5324, 6
    %v6316 = vsel %vm6266, %v6311, %v6315
    %v6317 = vrot.slane %v5325, 6
    %v6318 = vsel %vm6266, %v6313, %v6317
    %v6319 = vrot.slane %v5326, 6
    %v6320 = vsel %vm6266, %v6315, %v6319
    %v6321 = vrot.slane %v5327, 6
    %v6322 = vsel %vm6266, %v6317, %v6321
    %v6323 = vrot.slane %v5328, 6
    %v6324 = vsel %vm6266, %v6319, %v6323
    %v6325 = vrot.slane %v5329, 6
    %v6326 = vsel %vm6266, %v6321, %v6325
    %v6327 = vrot.slane %v5330, 6
    %v6328 = vsel %vm6266, %v6323, %v6327
    %v6363 = vsel %vm6266, %v6325, %v6267
    %v6364 = vsel %vm6266, %v6327, %v6270
    %s6365 = scalar_lea.vmem [#allocation9], 1536
    %v6366 = vld [vmem:[%s6365] sm:$0xff]
    %v6367 = vld [vmem:[%s6365 + $0x8] sm:$0xff]
    %v6368 = vld [vmem:[%s6365 + $0x10] sm:$0xff]
    %v6369 = vld [vmem:[%s6365 + $0x18] sm:$0xff]
    %v6370 = vld [vmem:[%s6365 + $0x20] sm:$0xff]
    %v6371 = vld [vmem:[%s6365 + $0x28] sm:$0xff]
    %v6372 = vld [vmem:[%s6365 + $0x30] sm:$0xff]
    %v6373 = vld [vmem:[%s6365 + $0x38] sm:$0xff]
    %v6374 = vld [vmem:[%s6365 + $0x40] sm:$0xff]
    %v6375 = vld [vmem:[%s6365 + $0x48] sm:$0xff]
    %v6376 = vld [vmem:[%s6365 + $0x50] sm:$0xff]
    %v6377 = vld [vmem:[%s6365 + $0x58] sm:$0xff]
    %v6378 = vld [vmem:[%s6365 + $0x60] sm:$0xff]
    %v6379 = vld [vmem:[%s6365 + $0x68] sm:$0xff]
    %v6380 = vld [vmem:[%s6365 + $0x70] sm:$0xff]
    %v6381 = vld [vmem:[%s6365 + $0x78] sm:$0xff]
    %v6382 = vld [vmem:[%s6365 + $0x80] sm:$0xff]
    %v6383 = vld [vmem:[%s6365 + $0x88] sm:$0xff]
    %v6384 = vld [vmem:[%s6365 + $0x90] sm:$0xff]
    %v6385 = vld [vmem:[%s6365 + $0x98] sm:$0xff]
    %v6386 = vld [vmem:[%s6365 + $0xa0] sm:$0xff]
    %v6387 = vld [vmem:[%s6365 + $0xa8] sm:$0xff]
    %v6388 = vld [vmem:[%s6365 + $0xb0] sm:$0xff]
    %v6389 = vld [vmem:[%s6365 + $0xb8] sm:$0xff]
    %v6390 = vld [vmem:[%s6365 + $0xc0] sm:$0xff]
    %v6391 = vld [vmem:[%s6365 + $0xc8] sm:$0xff]
    %v6392 = vld [vmem:[%s6365 + $0xd0] sm:$0xff]
    %v6393 = vld [vmem:[%s6365 + $0xd8] sm:$0xff]
    %v6394 = vld [vmem:[%s6365 + $0xe0] sm:$0xff]
    %v6395 = vld [vmem:[%s6365 + $0xe8] sm:$0xff]
    %v6396 = vld [vmem:[%s6365 + $0xf0] sm:$0xff]
    %v6397 = vld [vmem:[%s6365 + $0xf8] sm:$0xff]
    %v6398 = vld [vmem:[%s6365 + $0x100] sm:$0xff]
    %v6399 = vld [vmem:[%s6365 + $0x108] sm:$0xff]
    %v6400 = vld [vmem:[%s6365 + $0x110] sm:$0xff]
    %v6401 = vld [vmem:[%s6365 + $0x118] sm:$0xff]
    %v6402 = vld [vmem:[%s6365 + $0x120] sm:$0xff]
    %v6403 = vld [vmem:[%s6365 + $0x128] sm:$0xff]
    %v6404 = vld [vmem:[%s6365 + $0x130] sm:$0xff]
    %v6405 = vld [vmem:[%s6365 + $0x138] sm:$0xff]
    %v6406 = vld [vmem:[%s6365 + $0x140] sm:$0xff]
    %v6407 = vld [vmem:[%s6365 + $0x148] sm:$0xff]
    %v6408 = vld [vmem:[%s6365 + $0x150] sm:$0xff]
    %v6409 = vld [vmem:[%s6365 + $0x158] sm:$0xff]
    %v6410 = vld [vmem:[%s6365 + $0x160] sm:$0xff]
    %v6411 = vld [vmem:[%s6365 + $0x168] sm:$0xff]
    %v6412 = vld [vmem:[%s6365 + $0x170] sm:$0xff]
    %v6413 = vld [vmem:[%s6365 + $0x178] sm:$0xff]
    %v6414 = vld [vmem:[%s6365 + $0x180] sm:$0xff]
    %v6415 = vld [vmem:[%s6365 + $0x188] sm:$0xff]
    %v6416 = vld [vmem:[%s6365 + $0x190] sm:$0xff]
    %v6417 = vld [vmem:[%s6365 + $0x198] sm:$0xff]
    %v6418 = vld [vmem:[%s6365 + $0x1a0] sm:$0xff]
    %v6419 = vld [vmem:[%s6365 + $0x1a8] sm:$0xff]
    %v6420 = vld [vmem:[%s6365 + $0x1b0] sm:$0xff]
    %v6421 = vld [vmem:[%s6365 + $0x1b8] sm:$0xff]
    %v6422 = vld [vmem:[%s6365 + $0x1c0] sm:$0xff]
    %v6423 = vld [vmem:[%s6365 + $0x1c8] sm:$0xff]
    %v6424 = vld [vmem:[%s6365 + $0x1d0] sm:$0xff]
    %v6425 = vld [vmem:[%s6365 + $0x1d8] sm:$0xff]
    %v6426 = vld [vmem:[%s6365 + $0x1e0] sm:$0xff]
    %v6427 = vld [vmem:[%s6365 + $0x1e8] sm:$0xff]
    %v6428 = vld [vmem:[%s6365 + $0x1f0] sm:$0xff]
    %v6429 = vld [vmem:[%s6365 + $0x1f8] sm:$0xff]
    %v6430 = vld [vmem:[%s6365 + $0x200] sm:$0xff]
    %v6431 = vld [vmem:[%s6365 + $0x208] sm:$0xff]
    %v6432 = vld [vmem:[%s6365 + $0x210] sm:$0xff]
    %v6433 = vld [vmem:[%s6365 + $0x218] sm:$0xff]
    %v6434 = vld [vmem:[%s6365 + $0x220] sm:$0xff]
    %v6435 = vld [vmem:[%s6365 + $0x228] sm:$0xff]
    %v6436 = vld [vmem:[%s6365 + $0x230] sm:$0xff]
    %v6437 = vld [vmem:[%s6365 + $0x238] sm:$0xff]
    %v6438 = vld [vmem:[%s6365 + $0x240] sm:$0xff]
    %v6439 = vld [vmem:[%s6365 + $0x248] sm:$0xff]
    %v6440 = vld [vmem:[%s6365 + $0x250] sm:$0xff]
    %v6441 = vld [vmem:[%s6365 + $0x258] sm:$0xff]
    %v6442 = vld [vmem:[%s6365 + $0x260] sm:$0xff]
    %v6443 = vld [vmem:[%s6365 + $0x268] sm:$0xff]
    %v6444 = vld [vmem:[%s6365 + $0x270] sm:$0xff]
    %v6445 = vld [vmem:[%s6365 + $0x278] sm:$0xff]
    %v6446 = vld [vmem:[%s6365 + $0x280] sm:$0xff]
    %v6447 = vld [vmem:[%s6365 + $0x288] sm:$0xff]
    %v6448 = vld [vmem:[%s6365 + $0x290] sm:$0xff]
    %v6449 = vld [vmem:[%s6365 + $0x298] sm:$0xff]
    %v6450 = vld [vmem:[%s6365 + $0x2a0] sm:$0xff]
    %v6451 = vld [vmem:[%s6365 + $0x2a8] sm:$0xff]
    %v6452 = vld [vmem:[%s6365 + $0x2b0] sm:$0xff]
    %v6453 = vld [vmem:[%s6365 + $0x2b8] sm:$0xff]
    %v6454 = vld [vmem:[%s6365 + $0x2c0] sm:$0xff]
    %v6455 = vld [vmem:[%s6365 + $0x2c8] sm:$0xff]
    %v6456 = vld [vmem:[%s6365 + $0x2d0] sm:$0xff]
    %v6457 = vld [vmem:[%s6365 + $0x2d8] sm:$0xff]
    %v6458 = vld [vmem:[%s6365 + $0x2e0] sm:$0xff]
    %v6459 = vld [vmem:[%s6365 + $0x2e8] sm:$0xff]
    %v6460 = vld [vmem:[%s6365 + $0x2f0] sm:$0xff]
    %v6461 = vld [vmem:[%s6365 + $0x2f8] sm:$0xff]
    %6462 = vmatprep.subr.mxu0 %v6367
    %6463 = vmatpush1.msra.mxu0 %v6366
    %6464 = vmatprep.subr.mxu0 %v6370
    %6465 = vmatpush1.msra.mxu0 %v6369
    %6466 = vmatprep.subr.mxu0 %v6373
    %6467 = vmatpush1.msra.mxu0 %v6372
    %6468 = vmatprep.subr.mxu0 %v6376
    %6469 = vmatpush1.msra.mxu0 %v6375
    %6470 = vmatprep.subr.mxu0 %v6379
    %6471 = vmatpush1.msra.mxu0 %v6378
    %6472 = vmatprep.subr.mxu0 %v6382
    %6473 = vmatpush1.msra.mxu0 %v6381
    %6474 = vmatprep.subr.mxu0 %v6385
    %6475 = vmatpush1.msra.mxu0 %v6384
    %6476 = vmatprep.subr.mxu0 %v6388
    %6477 = vmatpush1.msra.mxu0 %v6387
    %6478 = vmatprep.subr.mxu0 %v6391
    %6479 = vmatpush1.msra.mxu0 %v6390
    %6480 = vmatprep.subr.mxu0 %v6394
    %6481 = vmatpush1.msra.mxu0 %v6393
    %6482 = vmatprep.subr.mxu0 %v6397
    %6483 = vmatpush1.msra.mxu0 %v6396
    %6484 = vmatprep.subr.mxu0 %v6400
    %6485 = vmatpush1.msra.mxu0 %v6399
    %6486 = vmatprep.subr.mxu0 %v6403
    %6487 = vmatpush1.msra.mxu0 %v6402
    %6488 = vmatprep.subr.mxu0 %v6406
    %6489 = vmatpush1.msra.mxu0 %v6405
    %6490 = vmatprep.subr.mxu0 %v6409
    %6491 = vmatpush1.msra.mxu0 %v6408
    %6492 = vmatprep.subr.mxu0 %v6412
    %6493 = vmatpush1.msra.mxu0 %v6411
    %6494 = vmatprep.subr.mxu0 %v6415
    %6495 = vmatpush1.msra.mxu0 %v6414
    %6496 = vmatprep.subr.mxu0 %v6418
    %6497 = vmatpush1.msra.mxu0 %v6417
    %6498 = vmatprep.subr.mxu0 %v6421
    %6499 = vmatpush1.msra.mxu0 %v6420
    %6500 = vmatprep.subr.mxu0 %v6424
    %6501 = vmatpush1.msra.mxu0 %v6423
    %6502 = vmatprep.subr.mxu0 %v6427
    %6503 = vmatpush1.msra.mxu0 %v6426
    %6504 = vmatprep.subr.mxu0 %v6430
    %6505 = vmatpush1.msra.mxu0 %v6429
    %6506 = vmatprep.subr.mxu0 %v6433
    %6507 = vmatpush1.msra.mxu0 %v6432
    %6508 = vmatprep.subr.mxu0 %v6436
    %6509 = vmatpush1.msra.mxu0 %v6435
    %6510 = vmatprep.subr.mxu0 %v6439
    %6511 = vmatpush1.msra.mxu0 %v6438
    %6512 = vmatprep.subr.mxu0 %v6442
    %6513 = vmatpush1.msra.mxu0 %v6441
    %6514 = vmatprep.subr.mxu0 %v6445
    %6515 = vmatpush1.msra.mxu0 %v6444
    %6516 = vmatprep.subr.mxu0 %v6448
    %6517 = vmatpush1.msra.mxu0 %v6447
    %6518 = vmatprep.subr.mxu0 %v6451
    %6519 = vmatpush1.msra.mxu0 %v6450
    %6520 = vmatprep.subr.mxu0 %v6454
    %6521 = vmatpush1.msra.mxu0 %v6453
    %6522 = vmatprep.subr.mxu0 %v6457
    %6523 = vmatpush1.msra.mxu0 %v6456
    %6524 = vmatprep.subr.mxu0 %v6460
    %6525 = vmatpush1.msra.mxu0 %v6459
    %6526 = vmatprep.mubr.f32.mxu0 %v6272
    %6527 = vmatmul.mubr.f32.gmra.mrb[0].mxu0 %v6269
    %v6528 = vpop.f32.mrb[0].mxu0
    %v6529 = vadd.f32 0.0, %v6528
    %v6530 = vpop.f32.mrb[0].mxu0
    %v6531 = vadd.f32 0.0, %v6530
    %6532 = vmatprep.mubr.f32.mxu0 %v6276
    %6533 = vmatmul.mubr.f32.gmra.mrb[0].mxu0 %v6274
    %v6534 = vpop.f32.mrb[0].mxu0
    %v6535 = vadd.f32 0.0, %v6534
    %v6536 = vpop.f32.mrb[0].mxu0
    %v6537 = vadd.f32 0.0, %v6536
    %6538 = vmatprep.mubr.f32.mxu0 %v6280
    %6539 = vmatmul.mubr.f32.gmra.mrb[0].mxu0 %v6278
    %v6540 = vpop.f32.mrb[0].mxu0
    %v6541 = vadd.f32 0.0, %v6540
    %v6542 = vpop.f32.mrb[0].mxu0
    %v6543 = vadd.f32 0.0, %v6542
    %6544 = vmatprep.mubr.f32.mxu0 %v6284
    %6545 = vmatmul.mubr.f32.gmra.mrb[0].mxu0 %v6282
    %v6546 = vpop.f32.mrb[0].mxu0
    %v6547 = vadd.f32 0.0, %v6546
    %v6548 = vpop.f32.mrb[0].mxu0
    %v6549 = vadd.f32 0.0, %v6548
    %6550 = vmatprep.mubr.f32.mxu0 %v6288
    %6551 = vmatmul.mubr.f32.gmra.mrb[0].mxu0 %v6286
    %v6552 = vpop.f32.mrb[0].mxu0
    %v6553 = vadd.f32 0.0, %v6552
    %v6554 = vpop.f32.mrb[0].mxu0
    %v6555 = vadd.f32 0.0, %v6554
    %6556 = vmatprep.mubr.f32.mxu0 %v6292
    %6557 = vmatmul.mubr.f32.gmra.mrb[0].mxu0 %v6290
    %v6558 = vpop.f32.mrb[0].mxu0
    %v6559 = vadd.f32 0.0, %v6558
    %v6560 = vpop.f32.mrb[0].mxu0
    %v6561 = vadd.f32 0.0, %v6560
    %6562 = vmatprep.mubr.f32.mxu0 %v6296
    %6563 = vmatmul.mubr.f32.gmra.mrb[0].mxu0 %v6294
    %v6564 = vpop.f32.mrb[0].mxu0
    %v6565 = vadd.f32 0.0, %v6564
    %v6566 = vpop.f32.mrb[0].mxu0
    %v6567 = vadd.f32 0.0, %v6566
    %6568 = vmatprep.mubr.f32.mxu0 %v6300
    %6569 = vmatmul.mubr.f32.gmra.mrb[0].mxu0 %v6298
    %v6570 = vpop.f32.mrb[0].mxu0
    %v6571 = vadd.f32 0.0, %v6570
    %v6572 = vpop.f32.mrb[0].mxu0
    %v6573 = vadd.f32 0.0, %v6572
    %6574 = vmatprep.mubr.f32.mxu0 %v6304
    %6575 = vmatmul.mubr.f32.gmra.mrb[0].mxu0 %v6302
    %v6576 = vpop.f32.mrb[0].mxu0
    %v6577 = vadd.f32 0.0, %v6576
    %v6578 = vpop.f32.mrb[0].mxu0
    %v6579 = vadd.f32 0.0, %v6578
    %6580 = vmatprep.mubr.f32.mxu0 %v6308
    %6581 = vmatmul.mubr.f32.gmra.mrb[0].mxu0 %v6306
    %v6582 = vpop.f32.mrb[0].mxu0
    %v6583 = vadd.f32 0.0, %v6582
    %v6584 = vpop.f32.mrb[0].mxu0
    %v6585 = vadd.f32 0.0, %v6584
    %6586 = vmatprep.mubr.f32.mxu0 %v6312
    %6587 = vmatmul.mubr.f32.gmra.mrb[0].mxu0 %v6310
    %v6588 = vpop.f32.mrb[0].mxu0
    %v6589 = vadd.f32 0.0, %v6588
    %v6590 = vpop.f32.mrb[0].mxu0
    %v6591 = vadd.f32 0.0, %v6590
    %6592 = vmatprep.mubr.f32.mxu0 %v6316
    %6593 = vmatmul.mubr.f32.gmra.mrb[0].mxu0 %v6314
    %v6594 = vpop.f32.mrb[0].mxu0
    %v6595 = vadd.f32 0.0, %v6594
    %v6596 = vpop.f32.mrb[0].mxu0
    %v6597 = vadd.f32 0.0, %v6596
    %6598 = vmatprep.mubr.f32.mxu0 %v6320
    %6599 = vmatmul.mubr.f32.gmra.mrb[0].mxu0 %v6318
    %v6600 = vpop.f32.mrb[0].mxu0
    %v6601 = vadd.f32 0.0, %v6600
    %v6602 = vpop.f32.mrb[0].mxu0
    %v6603 = vadd.f32 0.0, %v6602
    %6604 = vmatprep.mubr.f32.mxu0 %v6324
    %6605 = vmatmul.mubr.f32.gmra.mrb[0].mxu0 %v6322
    %v6606 = vpop.f32.mrb[0].mxu0
    %v6607 = vadd.f32 0.0, %v6606
    %v6608 = vpop.f32.mrb[0].mxu0
    %v6609 = vadd.f32 0.0, %v6608
    %6610 = vmatprep.mubr.f32.mxu0 %v6328
    %6611 = vmatmul.mubr.f32.gmra.mrb[0].mxu0 %v6326
    %v6612 = vpop.f32.mrb[0].mxu0
    %v6613 = vadd.f32 0.0, %v6612
    %v6614 = vpop.f32.mrb[0].mxu0
    %v6615 = vadd.f32 0.0, %v6614
    %6616 = vmatprep.mubr.f32.mxu0 %v6364
    %6617 = vmatmul.mubr.f32.gmra.mrb[0].mxu0 %v6363
    %v6618 = vpop.f32.mrb[0].mxu0
    %v6619 = vadd.f32 0.0, %v6618
    %v6620 = vpop.f32.mrb[0].mxu0
    %v6621 = vadd.f32 0.0, %v6620
    %6622 = vdwg.mxu0
    %6623 = vmatprep.subr.mxu0 0.0
    %6624 = vmatpush1.msra.mxu0 %v6368
    %6625 = vmatprep.subr.mxu0 0.0
    %6626 = vmatpush1.msra.mxu0 %v6371
    %6627 = vmatprep.subr.mxu0 0.0
    %6628 = vmatpush1.msra.mxu0 %v6374
    %6629 = vmatprep.subr.mxu0 0.0
    %6630 = vmatpush1.msra.mxu0 %v6377
    %6631 = vmatprep.subr.mxu0 0.0
    %6632 = vmatpush1.msra.mxu0 %v6380
    %6633 = vmatprep.subr.mxu0 0.0
    %6634 = vmatpush1.msra.mxu0 %v6383
    %6635 = vmatprep.subr.mxu0 0.0
    %6636 = vmatpush1.msra.mxu0 %v6386
    %6637 = vmatprep.subr.mxu0 0.0
    %6638 = vmatpush1.msra.mxu0 %v6389
    %6639 = vmatprep.subr.mxu0 0.0
    %6640 = vmatpush1.msra.mxu0 %v6392
    %6641 = vmatprep.subr.mxu0 0.0
    %6642 = vmatpush1.msra.mxu0 %v6395
    %6643 = vmatprep.subr.mxu0 0.0
    %6644 = vmatpush1.msra.mxu0 %v6398
    %6645 = vmatprep.subr.mxu0 0.0
    %6646 = vmatpush1.msra.mxu0 %v6401
    %6647 = vmatprep.subr.mxu0 0.0
    %6648 = vmatpush1.msra.mxu0 %v6404
    %6649 = vmatprep.subr.mxu0 0.0
    %6650 = vmatpush1.msra.mxu0 %v6407
    %6651 = vmatprep.subr.mxu0 0.0
    %6652 = vmatpush1.msra.mxu0 %v6410
    %6653 = vmatprep.subr.mxu0 0.0
    %6654 = vmatpush1.msra.mxu0 %v6413
    %6655 = vmatprep.subr.mxu0 0.0
    %6656 = vmatpush1.msra.mxu0 %v6416
    %6657 = vmatprep.subr.mxu0 0.0
    %6658 = vmatpush1.msra.mxu0 %v6419
    %6659 = vmatprep.subr.mxu0 0.0
    %6660 = vmatpush1.msra.mxu0 %v6422
    %6661 = vmatprep.subr.mxu0 0.0
    %6662 = vmatpush1.msra.mxu0 %v6425
    %6663 = vmatprep.subr.mxu0 0.0
    %6664 = vmatpush1.msra.mxu0 %v6428
    %6665 = vmatprep.subr.mxu0 0.0
    %6666 = vmatpush1.msra.mxu0 %v6431
    %6667 = vmatprep.subr.mxu0 0.0
    %6668 = vmatpush1.msra.mxu0 %v6434
    %6669 = vmatprep.subr.mxu0 0.0
    %6670 = vmatpush1.msra.mxu0 %v6437
    %6671 = vmatprep.subr.mxu0 0.0
    %6672 = vmatpush1.msra.mxu0 %v6440
    %6673 = vmatprep.subr.mxu0 0.0
    %6674 = vmatpush1.msra.mxu0 %v6443
    %6675 = vmatprep.subr.mxu0 0.0
    %6676 = vmatpush1.msra.mxu0 %v6446
    %6677 = vmatprep.subr.mxu0 0.0
    %6678 = vmatpush1.msra.mxu0 %v6449
    %6679 = vmatprep.subr.mxu0 0.0
    %6680 = vmatpush1.msra.mxu0 %v6452
    %6681 = vmatprep.subr.mxu0 0.0
    %6682 = vmatpush1.msra.mxu0 %v6455
    %6683 = vmatprep.subr.mxu0 0.0
    %6684 = vmatpush1.msra.mxu0 %v6458
    %6685 = vmatprep.subr.mxu0 0.0
    %6686 = vmatpush1.msra.mxu0 %v6461
    %6687 = vmatprep.mubr.f32.mxu0 %v6272
    %6688 = vmatmul.mubr.f32.gmra.mrb[0].mxu0 %v6269
    %v6689 = vpop.f32.mrb[0].mxu0
    %v6690 = vadd.f32 0.0, %v6689
    %v6691 = vpop.f32.mrb[0].mxu0
    %6692 = vmatprep.mubr.f32.mxu0 %v6276
    %6693 = vmatmul.mubr.f32.gmra.mrb[0].mxu0 %v6274
    %v6694 = vpop.f32.mrb[0].mxu0
    %v6695 = vadd.f32 0.0, %v6694
    %v6696 = vpop.f32.mrb[0].mxu0
    %6697 = vmatprep.mubr.f32.mxu0 %v6280
    %6698 = vmatmul.mubr.f32.gmra.mrb[0].mxu0 %v6278
    %v6699 = vpop.f32.mrb[0].mxu0
    %v6700 = vadd.f32 0.0, %v6699
    %v6701 = vpop.f32.mrb[0].mxu0
    %6702 = vmatprep.mubr.f32.mxu0 %v6284
    %6703 = vmatmul.mubr.f32.gmra.mrb[0].mxu0 %v6282
    %v6704 = vpop.f32.mrb[0].mxu0
    %v6705 = vadd.f32 0.0, %v6704
    %v6706 = vpop.f32.mrb[0].mxu0
    %6707 = vmatprep.mubr.f32.mxu0 %v6288
    %6708 = vmatmul.mubr.f32.gmra.mrb[0].mxu0 %v6286
    %v6709 = vpop.f32.mrb[0].mxu0
    %v6710 = vadd.f32 0.0, %v6709
    %v6711 = vpop.f32.mrb[0].mxu0
    %6712 = vmatprep.mubr.f32.mxu0 %v6292
    %6713 = vmatmul.mubr.f32.gmra.mrb[0].mxu0 %v6290
    %v6714 = vpop.f32.mrb[0].mxu0
    %v6715 = vadd.f32 0.0, %v6714
    %v6716 = vpop.f32.mrb[0].mxu0
    %6717 = vmatprep.mubr.f32.mxu0 %v6296
    %6718 = vmatmul.mubr.f32.gmra.mrb[0].mxu0 %v6294
    %v6719 = vpop.f32.mrb[0].mxu0
    %v6720 = vadd.f32 0.0, %v6719
    %v6721 = vpop.f32.mrb[0].mxu0
    %6722 = vmatprep.mubr.f32.mxu0 %v6300
    %6723 = vmatmul.mubr.f32.gmra.mrb[0].mxu0 %v6298
    %v6724 = vpop.f32.mrb[0].mxu0
    %v6725 = vadd.f32 0.0, %v6724
    %v6726 = vpop.f32.mrb[0].mxu0
    %6727 = vmatprep.mubr.f32.mxu0 %v6304
    %6728 = vmatmul.mubr.f32.gmra.mrb[0].mxu0 %v6302
    %v6729 = vpop.f32.mrb[0].mxu0
    %v6730 = vadd.f32 0.0, %v6729
    %v6731 = vpop.f32.mrb[0].mxu0
    %6732 = vmatprep.mubr.f32.mxu0 %v6308
    %6733 = vmatmul.mubr.f32.gmra.mrb[0].mxu0 %v6306
    %v6734 = vpop.f32.mrb[0].mxu0
    %v6735 = vadd.f32 0.0, %v6734
    %v6736 = vpop.f32.mrb[0].mxu0
    %6737 = vmatprep.mubr.f32.mxu0 %v6312
    %6738 = vmatmul.mubr.f32.gmra.mrb[0].mxu0 %v6310
    %v6739 = vpop.f32.mrb[0].mxu0
    %v6740 = vadd.f32 0.0, %v6739
    %v6741 = vpop.f32.mrb[0].mxu0
    %6742 = vmatprep.mubr.f32.mxu0 %v6316
    %6743 = vmatmul.mubr.f32.gmra.mrb[0].mxu0 %v6314
    %v6744 = vpop.f32.mrb[0].mxu0
    %v6745 = vadd.f32 0.0, %v6744
    %v6746 = vpop.f32.mrb[0].mxu0
    %6747 = vmatprep.mubr.f32.mxu0 %v6320
    %6748 = vmatmul.mubr.f32.gmra.mrb[0].mxu0 %v6318
    %v6749 = vpop.f32.mrb[0].mxu0
    %v6750 = vadd.f32 0.0, %v6749
    %v6751 = vpop.f32.mrb[0].mxu0
    %6752 = vmatprep.mubr.f32.mxu0 %v6324
    %6753 = vmatmul.mubr.f32.gmra.mrb[0].mxu0 %v6322
    %v6754 = vpop.f32.mrb[0].mxu0
    %v6755 = vadd.f32 0.0, %v6754
    %v6756 = vpop.f32.mrb[0].mxu0
    %6757 = vmatprep.mubr.f32.mxu0 %v6328
    %6758 = vmatmul.mubr.f32.gmra.mrb[0].mxu0 %v6326
    %v6759 = vpop.f32.mrb[0].mxu0
    %v6760 = vadd.f32 0.0, %v6759
    %v6761 = vpop.f32.mrb[0].mxu0
    %6762 = vmatprep.mubr.f32.mxu0 %v6364
    %6763 = vmatmul.mubr.f32.gmra.mrb[0].mxu0 %v6363
    %v6764 = vpop.f32.mrb[0].mxu0
    %v6765 = vadd.f32 0.0, %v6764
    %v6766 = vpop.f32.mrb[0].mxu0
    %6767 = vdwg.mxu0
    %v6768 = vadd.f32 %v6027, %v6529
    %v6769 = vadd.f32 %v6029, %v6531
    %v6770 = vadd.f32 %v6188, %v6690
    %v6771 = vadd.f32 %v6033, %v6535
    %v6772 = vadd.f32 %v6035, %v6537
    %v6773 = vadd.f32 %v6193, %v6695
    %v6774 = vadd.f32 %v6039, %v6541
    %v6775 = vadd.f32 %v6041, %v6543
    %v6776 = vadd.f32 %v6198, %v6700
    %v6777 = vadd.f32 %v6045, %v6547
    %v6778 = vadd.f32 %v6047, %v6549
    %v6779 = vadd.f32 %v6203, %v6705
    %v6780 = vadd.f32 %v6051, %v6553
    %v6781 = vadd.f32 %v6053, %v6555
    %v6782 = vadd.f32 %v6208, %v6710
    %v6783 = vadd.f32 %v6057, %v6559
    %v6784 = vadd.f32 %v6059, %v6561
    %v6785 = vadd.f32 %v6213, %v6715
    %v6786 = vadd.f32 %v6063, %v6565
    %v6787 = vadd.f32 %v6065, %v6567
    %v6788 = vadd.f32 %v6218, %v6720
    %v6789 = vadd.f32 %v6069, %v6571
    %v6790 = vadd.f32 %v6071, %v6573
    %v6791 = vadd.f32 %v6223, %v6725
    %v6792 = vadd.f32 %v6075, %v6577
    %v6793 = vadd.f32 %v6077, %v6579
    %v6794 = vadd.f32 %v6228, %v6730
    %v6795 = vadd.f32 %v6081, %v6583
    %v6796 = vadd.f32 %v6083, %v6585
    %v6797 = vadd.f32 %v6233, %v6735
    %v6798 = vadd.f32 %v6087, %v6589
    %v6799 = vadd.f32 %v6089, %v6591
    %v6800 = vadd.f32 %v6238, %v6740
    %v6801 = vadd.f32 %v6093, %v6595
    %v6802 = vadd.f32 %v6095, %v6597
    %v6803 = vadd.f32 %v6243, %v6745
    %v6804 = vadd.f32 %v6099, %v6601
    %v6805 = vadd.f32 %v6101, %v6603
    %v6806 = vadd.f32 %v6248, %v6750
    %v6807 = vadd.f32 %v6105, %v6607
    %v6808 = vadd.f32 %v6107, %v6609
    %v6809 = vadd.f32 %v6253, %v6755
    %v6810 = vadd.f32 %v6111, %v6613
    %v6811 = vadd.f32 %v6113, %v6615
    %v6812 = vadd.f32 %v6258, %v6760
    %v6813 = vadd.f32 %v6117, %v6619
    %v6814 = vadd.f32 %v6119, %v6621
    %v6815 = vadd.f32 %v6263, %v6765
    %v6816 = vrot.slane %v5301, 1
    %v6817 = vrot.slane %v5303, 1
    %v6818 = vsel %vm251, %v6816, %v6817
    %v6819 = vrot.slane %v5302, 1
    %v6820 = vrot.slane %v5304, 1
    %v6821 = vsel %vm251, %v6819, %v6820
    %v6822 = vrot.slane %v5305, 1
    %v6823 = vsel %vm251, %v6817, %v6822
    %v6824 = vrot.slane %v5306, 1
    %v6825 = vsel %vm251, %v6820, %v6824
    %v6826 = vrot.slane %v5307, 1
    %v6827 = vsel %vm251, %v6822, %v6826
    %v6828 = vrot.slane %v5308, 1
    %v6829 = vsel %vm251, %v6824, %v6828
    %v6830 = vrot.slane %v5309, 1
    %v6831 = vsel %vm251, %v6826, %v6830
    %v6832 = vrot.slane %v5310, 1
    %v6833 = vsel %vm251, %v6828, %v6832
    %v6834 = vrot.slane %v5311, 1
    %v6835 = vsel %vm251, %v6830, %v6834
    %v6836 = vrot.slane %v5312, 1
    %v6837 = vsel %vm251, %v6832, %v6836
    %v6838 = vrot.slane %v5313, 1
    %v6839 = vsel %vm251, %v6834, %v6838
    %v6840 = vrot.slane %v5314, 1
    %v6841 = vsel %vm251, %v6836, %v6840
    %v6842 = vrot.slane %v5315, 1
    %v6843 = vsel %vm251, %v6838, %v6842
    %v6844 = vrot.slane %v5316, 1
    %v6845 = vsel %vm251, %v6840, %v6844
    %v6846 = vrot.slane %v5317, 1
    %v6847 = vsel %vm251, %v6842, %v6846
    %v6848 = vrot.slane %v5318, 1
    %v6849 = vsel %vm251, %v6844, %v6848
    %v6850 = vrot.slane %v5319, 1
    %v6851 = vsel %vm251, %v6846, %v6850
    %v6852 = vrot.slane %v5320, 1
    %v6853 = vsel %vm251, %v6848, %v6852
    %v6854 = vrot.slane %v5321, 1
    %v6855 = vsel %vm251, %v6850, %v6854
    %v6856 = vrot.slane %v5322, 1
    %v6857 = vsel %vm251, %v6852, %v6856
    %v6858 = vrot.slane %v5323, 1
    %v6859 = vsel %vm251, %v6854, %v6858
    %v6860 = vrot.slane %v5324, 1
    %v6861 = vsel %vm251, %v6856, %v6860
    %v6862 = vrot.slane %v5325, 1
    %v6863 = vsel %vm251, %v6858, %v6862
    %v6864 = vrot.slane %v5326, 1
    %v6865 = vsel %vm251, %v6860, %v6864
    %v6866 = vrot.slane %v5327, 1
    %v6867 = vsel %vm251, %v6862, %v6866
    %v6868 = vrot.slane %v5328, 1
    %v6869 = vsel %vm251, %v6864, %v6868
    %v6870 = vrot.slane %v5329, 1
    %v6871 = vsel %vm251, %v6866, %v6870
    %v6872 = vrot.slane %v5330, 1
    %v6873 = vsel %vm251, %v6868, %v6872
    %v6904 = vrot.slane %v5299, 1
    %v6905 = vrot.slane %v5300, 1
    %v6906 = vsel %vm251, %v6904, %v6816
    %v6907 = vsel %vm251, %v6905, %v6819
    %v6912 = vsel %vm251, %v6870, %v6904
    %v6913 = vsel %vm251, %v6872, %v6905
    %s6914 = scalar_lea.vmem [#allocation9], 2304
    %v6915 = vld [vmem:[%s6914] sm:$0xff]
    %v6916 = vld [vmem:[%s6914 + $0x8] sm:$0xff]
    %v6917 = vld [vmem:[%s6914 + $0x10] sm:$0xff]
    %v6918 = vld [vmem:[%s6914 + $0x18] sm:$0xff]
    %v6919 = vld [vmem:[%s6914 + $0x20] sm:$0xff]
    %v6920 = vld [vmem:[%s6914 + $0x28] sm:$0xff]
    %v6921 = vld [vmem:[%s6914 + $0x30] sm:$0xff]
    %v6922 = vld [vmem:[%s6914 + $0x38] sm:$0xff]
    %v6923 = vld [vmem:[%s6914 + $0x40] sm:$0xff]
    %v6924 = vld [vmem:[%s6914 + $0x48] sm:$0xff]
    %v6925 = vld [vmem:[%s6914 + $0x50] sm:$0xff]
    %v6926 = vld [vmem:[%s6914 + $0x58] sm:$0xff]
    %v6927 = vld [vmem:[%s6914 + $0x60] sm:$0xff]
    %v6928 = vld [vmem:[%s6914 + $0x68] sm:$0xff]
    %v6929 = vld [vmem:[%s6914 + $0x70] sm:$0xff]
    %v6930 = vld [vmem:[%s6914 + $0x78] sm:$0xff]
    %v6931 = vld [vmem:[%s6914 + $0x80] sm:$0xff]
    %v6932 = vld [vmem:[%s6914 + $0x88] sm:$0xff]
    %v6933 = vld [vmem:[%s6914 + $0x90] sm:$0xff]
    %v6934 = vld [vmem:[%s6914 + $0x98] sm:$0xff]
    %v6935 = vld [vmem:[%s6914 + $0xa0] sm:$0xff]
    %v6936 = vld [vmem:[%s6914 + $0xa8] sm:$0xff]
    %v6937 = vld [vmem:[%s6914 + $0xb0] sm:$0xff]
    %v6938 = vld [vmem:[%s6914 + $0xb8] sm:$0xff]
    %v6939 = vld [vmem:[%s6914 + $0xc0] sm:$0xff]
    %v6940 = vld [vmem:[%s6914 + $0xc8] sm:$0xff]
    %v6941 = vld [vmem:[%s6914 + $0xd0] sm:$0xff]
    %v6942 = vld [vmem:[%s6914 + $0xd8] sm:$0xff]
    %v6943 = vld [vmem:[%s6914 + $0xe0] sm:$0xff]
    %v6944 = vld [vmem:[%s6914 + $0xe8] sm:$0xff]
    %v6945 = vld [vmem:[%s6914 + $0xf0] sm:$0xff]
    %v6946 = vld [vmem:[%s6914 + $0xf8] sm:$0xff]
    %v6947 = vld [vmem:[%s6914 + $0x100] sm:$0xff]
    %v6948 = vld [vmem:[%s6914 + $0x108] sm:$0xff]
    %v6949 = vld [vmem:[%s6914 + $0x110] sm:$0xff]
    %v6950 = vld [vmem:[%s6914 + $0x118] sm:$0xff]
    %v6951 = vld [vmem:[%s6914 + $0x120] sm:$0xff]
    %v6952 = vld [vmem:[%s6914 + $0x128] sm:$0xff]
    %v6953 = vld [vmem:[%s6914 + $0x130] sm:$0xff]
    %v6954 = vld [vmem:[%s6914 + $0x138] sm:$0xff]
    %v6955 = vld [vmem:[%s6914 + $0x140] sm:$0xff]
    %v6956 = vld [vmem:[%s6914 + $0x148] sm:$0xff]
    %v6957 = vld [vmem:[%s6914 + $0x150] sm:$0xff]
    %v6958 = vld [vmem:[%s6914 + $0x158] sm:$0xff]
    %v6959 = vld [vmem:[%s6914 + $0x160] sm:$0xff]
    %v6960 = vld [vmem:[%s6914 + $0x168] sm:$0xff]
    %v6961 = vld [vmem:[%s6914 + $0x170] sm:$0xff]
    %v6962 = vld [vmem:[%s6914 + $0x178] sm:$0xff]
    %v6963 = vld [vmem:[%s6914 + $0x180] sm:$0xff]
    %v6964 = vld [vmem:[%s6914 + $0x188] sm:$0xff]
    %v6965 = vld [vmem:[%s6914 + $0x190] sm:$0xff]
    %v6966 = vld [vmem:[%s6914 + $0x198] sm:$0xff]
    %v6967 = vld [vmem:[%s6914 + $0x1a0] sm:$0xff]
    %v6968 = vld [vmem:[%s6914 + $0x1a8] sm:$0xff]
    %v6969 = vld [vmem:[%s6914 + $0x1b0] sm:$0xff]
    %v6970 = vld [vmem:[%s6914 + $0x1b8] sm:$0xff]
    %v6971 = vld [vmem:[%s6914 + $0x1c0] sm:$0xff]
    %v6972 = vld [vmem:[%s6914 + $0x1c8] sm:$0xff]
    %v6973 = vld [vmem:[%s6914 + $0x1d0] sm:$0xff]
    %v6974 = vld [vmem:[%s6914 + $0x1d8] sm:$0xff]
    %v6975 = vld [vmem:[%s6914 + $0x1e0] sm:$0xff]
    %v6976 = vld [vmem:[%s6914 + $0x1e8] sm:$0xff]
    %v6977 = vld [vmem:[%s6914 + $0x1f0] sm:$0xff]
    %v6978 = vld [vmem:[%s6914 + $0x1f8] sm:$0xff]
    %v6979 = vld [vmem:[%s6914 + $0x200] sm:$0xff]
    %v6980 = vld [vmem:[%s6914 + $0x208] sm:$0xff]
    %v6981 = vld [vmem:[%s6914 + $0x210] sm:$0xff]
    %v6982 = vld [vmem:[%s6914 + $0x218] sm:$0xff]
    %v6983 = vld [vmem:[%s6914 + $0x220] sm:$0xff]
    %v6984 = vld [vmem:[%s6914 + $0x228] sm:$0xff]
    %v6985 = vld [vmem:[%s6914 + $0x230] sm:$0xff]
    %v6986 = vld [vmem:[%s6914 + $0x238] sm:$0xff]
    %v6987 = vld [vmem:[%s6914 + $0x240] sm:$0xff]
    %v6988 = vld [vmem:[%s6914 + $0x248] sm:$0xff]
    %v6989 = vld [vmem:[%s6914 + $0x250] sm:$0xff]
    %v6990 = vld [vmem:[%s6914 + $0x258] sm:$0xff]
    %v6991 = vld [vmem:[%s6914 + $0x260] sm:$0xff]
    %v6992 = vld [vmem:[%s6914 + $0x268] sm:$0xff]
    %v6993 = vld [vmem:[%s6914 + $0x270] sm:$0xff]
    %v6994 = vld [vmem:[%s6914 + $0x278] sm:$0xff]
    %v6995 = vld [vmem:[%s6914 + $0x280] sm:$0xff]
    %v6996 = vld [vmem:[%s6914 + $0x288] sm:$0xff]
    %v6997 = vld [vmem:[%s6914 + $0x290] sm:$0xff]
    %v6998 = vld [vmem:[%s6914 + $0x298] sm:$0xff]
    %v6999 = vld [vmem:[%s6914 + $0x2a0] sm:$0xff]
    %v7000 = vld [vmem:[%s6914 + $0x2a8] sm:$0xff]
    %v7001 = vld [vmem:[%s6914 + $0x2b0] sm:$0xff]
    %v7002 = vld [vmem:[%s6914 + $0x2b8] sm:$0xff]
    %v7003 = vld [vmem:[%s6914 + $0x2c0] sm:$0xff]
    %v7004 = vld [vmem:[%s6914 + $0x2c8] sm:$0xff]
    %v7005 = vld [vmem:[%s6914 + $0x2d0] sm:$0xff]
    %v7006 = vld [vmem:[%s6914 + $0x2d8] sm:$0xff]
    %v7007 = vld [vmem:[%s6914 + $0x2e0] sm:$0xff]
    %v7008 = vld [vmem:[%s6914 + $0x2e8] sm:$0xff]
    %v7009 = vld [vmem:[%s6914 + $0x2f0] sm:$0xff]
    %v7010 = vld [vmem:[%s6914 + $0x2f8] sm:$0xff]
    %7011 = vmatprep.subr.mxu0 %v6916
    %7012 = vmatpush1.msra.mxu0 %v6915
    %7013 = vmatprep.subr.mxu0 %v6919
    %7014 = vmatpush1.msra.mxu0 %v6918
    %7015 = vmatprep.subr.mxu0 %v6922
    %7016 = vmatpush1.msra.mxu0 %v6921
    %7017 = vmatprep.subr.mxu0 %v6925
    %7018 = vmatpush1.msra.mxu0 %v6924
    %7019 = vmatprep.subr.mxu0 %v6928
    %7020 = vmatpush1.msra.mxu0 %v6927
    %7021 = vmatprep.subr.mxu0 %v6931
    %7022 = vmatpush1.msra.mxu0 %v6930
    %7023 = vmatprep.subr.mxu0 %v6934
    %7024 = vmatpush1.msra.mxu0 %v6933
    %7025 = vmatprep.subr.mxu0 %v6937
    %7026 = vmatpush1.msra.mxu0 %v6936
    %7027 = vmatprep.subr.mxu0 %v6940
    %7028 = vmatpush1.msra.mxu0 %v6939
    %7029 = vmatprep.subr.mxu0 %v6943
    %7030 = vmatpush1.msra.mxu0 %v6942
    %7031 = vmatprep.subr.mxu0 %v6946
    %7032 = vmatpush1.msra.mxu0 %v6945
    %7033 = vmatprep.subr.mxu0 %v6949
    %7034 = vmatpush1.msra.mxu0 %v6948
    %7035 = vmatprep.subr.mxu0 %v6952
    %7036 = vmatpush1.msra.mxu0 %v6951
    %7037 = vmatprep.subr.mxu0 %v6955
    %7038 = vmatpush1.msra.mxu0 %v6954
    %7039 = vmatprep.subr.mxu0 %v6958
    %7040 = vmatpush1.msra.mxu0 %v6957
    %7041 = vmatprep.subr.mxu0 %v6961
    %7042 = vmatpush1.msra.mxu0 %v6960
    %7043 = vmatprep.subr.mxu0 %v6964
    %7044 = vmatpush1.msra.mxu0 %v6963
    %7045 = vmatprep.subr.mxu0 %v6967
    %7046 = vmatpush1.msra.mxu0 %v6966
    %7047 = vmatprep.subr.mxu0 %v6970
    %7048 = vmatpush1.msra.mxu0 %v6969
    %7049 = vmatprep.subr.mxu0 %v6973
    %7050 = vmatpush1.msra.mxu0 %v6972
    %7051 = vmatprep.subr.mxu0 %v6976
    %7052 = vmatpush1.msra.mxu0 %v6975
    %7053 = vmatprep.subr.mxu0 %v6979
    %7054 = vmatpush1.msra.mxu0 %v6978
    %7055 = vmatprep.subr.mxu0 %v6982
    %7056 = vmatpush1.msra.mxu0 %v6981
    %7057 = vmatprep.subr.mxu0 %v6985
    %7058 = vmatpush1.msra.mxu0 %v6984
    %7059 = vmatprep.subr.mxu0 %v6988
    %7060 = vmatpush1.msra.mxu0 %v6987
    %7061 = vmatprep.subr.mxu0 %v6991
    %7062 = vmatpush1.msra.mxu0 %v6990
    %7063 = vmatprep.subr.mxu0 %v6994
    %7064 = vmatpush1.msra.mxu0 %v6993
    %7065 = vmatprep.subr.mxu0 %v6997
    %7066 = vmatpush1.msra.mxu0 %v6996
    %7067 = vmatprep.subr.mxu0 %v7000
    %7068 = vmatpush1.msra.mxu0 %v6999
    %7069 = vmatprep.subr.mxu0 %v7003
    %7070 = vmatpush1.msra.mxu0 %v7002
    %7071 = vmatprep.subr.mxu0 %v7006
    %7072 = vmatpush1.msra.mxu0 %v7005
    %7073 = vmatprep.subr.mxu0 %v7009
    %7074 = vmatpush1.msra.mxu0 %v7008
    %7075 = vmatprep.mubr.f32.mxu0 %v6821
    %7076 = vmatmul.mubr.f32.gmra.mrb[0].mxu0 %v6818
    %v7077 = vpop.f32.mrb[0].mxu0
    %v7078 = vadd.f32 0.0, %v7077
    %v7079 = vpop.f32.mrb[0].mxu0
    %v7080 = vadd.f32 0.0, %v7079
    %7081 = vmatprep.mubr.f32.mxu0 %v6825
    %7082 = vmatmul.mubr.f32.gmra.mrb[0].mxu0 %v6823
    %v7083 = vpop.f32.mrb[0].mxu0
    %v7084 = vadd.f32 0.0, %v7083
    %v7085 = vpop.f32.mrb[0].mxu0
    %v7086 = vadd.f32 0.0, %v7085
    %7087 = vmatprep.mubr.f32.mxu0 %v6829
    %7088 = vmatmul.mubr.f32.gmra.mrb[0].mxu0 %v6827
    %v7089 = vpop.f32.mrb[0].mxu0
    %v7090 = vadd.f32 0.0, %v7089
    %v7091 = vpop.f32.mrb[0].mxu0
    %v7092 = vadd.f32 0.0, %v7091
    %7093 = vmatprep.mubr.f32.mxu0 %v6833
    %7094 = vmatmul.mubr.f32.gmra.mrb[0].mxu0 %v6831
    %v7095 = vpop.f32.mrb[0].mxu0
    %v7096 = vadd.f32 0.0, %v7095
    %v7097 = vpop.f32.mrb[0].mxu0
    %v7098 = vadd.f32 0.0, %v7097
    %7099 = vmatprep.mubr.f32.mxu0 %v6837
    %7100 = vmatmul.mubr.f32.gmra.mrb[0].mxu0 %v6835
    %v7101 = vpop.f32.mrb[0].mxu0
    %v7102 = vadd.f32 0.0, %v7101
    %v7103 = vpop.f32.mrb[0].mxu0
    %v7104 = vadd.f32 0.0, %v7103
    %7105 = vmatprep.mubr.f32.mxu0 %v6841
    %7106 = vmatmul.mubr.f32.gmra.mrb[0].mxu0 %v6839
    %v7107 = vpop.f32.mrb[0].mxu0
    %v7108 = vadd.f32 0.0, %v7107
    %v7109 = vpop.f32.mrb[0].mxu0
    %v7110 = vadd.f32 0.0, %v7109
    %7111 = vmatprep.mubr.f32.mxu0 %v6845
    %7112 = vmatmul.mubr.f32.gmra.mrb[0].mxu0 %v6843
    %v7113 = vpop.f32.mrb[0].mxu0
    %v7114 = vadd.f32 0.0, %v7113
    %v7115 = vpop.f32.mrb[0].mxu0
    %v7116 = vadd.f32 0.0, %v7115
    %7117 = vmatprep.mubr.f32.mxu0 %v6849
    %7118 = vmatmul.mubr.f32.gmra.mrb[0].mxu0 %v6847
    %v7119 = vpop.f32.mrb[0].mxu0
    %v7120 = vadd.f32 0.0, %v7119
    %v7121 = vpop.f32.mrb[0].mxu0
    %v7122 = vadd.f32 0.0, %v7121
    %7123 = vmatprep.mubr.f32.mxu0 %v6853
    %7124 = vmatmul.mubr.f32.gmra.mrb[0].mxu0 %v6851
    %v7125 = vpop.f32.mrb[0].mxu0
    %v7126 = vadd.f32 0.0, %v7125
    %v7127 = vpop.f32.mrb[0].mxu0
    %v7128 = vadd.f32 0.0, %v7127
    %7129 = vmatprep.mubr.f32.mxu0 %v6857
    %7130 = vmatmul.mubr.f32.gmra.mrb[0].mxu0 %v6855
    %v7131 = vpop.f32.mrb[0].mxu0
    %v7132 = vadd.f32 0.0, %v7131
    %v7133 = vpop.f32.mrb[0].mxu0
    %v7134 = vadd.f32 0.0, %v7133
    %7135 = vmatprep.mubr.f32.mxu0 %v6861
    %7136 = vmatmul.mubr.f32.gmra.mrb[0].mxu0 %v6859
    %v7137 = vpop.f32.mrb[0].mxu0
    %v7138 = vadd.f32 0.0, %v7137
    %v7139 = vpop.f32.mrb[0].mxu0
    %v7140 = vadd.f32 0.0, %v7139
    %7141 = vmatprep.mubr.f32.mxu0 %v6865
    %7142 = vmatmul.mubr.f32.gmra.mrb[0].mxu0 %v6863
    %v7143 = vpop.f32.mrb[0].mxu0
    %v7144 = vadd.f32 0.0, %v7143
    %v7145 = vpop.f32.mrb[0].mxu0
    %v7146 = vadd.f32 0.0, %v7145
    %7147 = vmatprep.mubr.f32.mxu0 %v6869
    %7148 = vmatmul.mubr.f32.gmra.mrb[0].mxu0 %v6867
    %v7149 = vpop.f32.mrb[0].mxu0
    %v7150 = vadd.f32 0.0, %v7149
    %v7151 = vpop.f32.mrb[0].mxu0
    %v7152 = vadd.f32 0.0, %v7151
    %7153 = vmatprep.mubr.f32.mxu0 %v6873
    %7154 = vmatmul.mubr.f32.gmra.mrb[0].mxu0 %v6871
    %v7155 = vpop.f32.mrb[0].mxu0
    %v7156 = vadd.f32 0.0, %v7155
    %v7157 = vpop.f32.mrb[0].mxu0
    %v7158 = vadd.f32 0.0, %v7157
    %7159 = vmatprep.mubr.f32.mxu0 %v6913
    %7160 = vmatmul.mubr.f32.gmra.mrb[0].mxu0 %v6912
    %v7161 = vpop.f32.mrb[0].mxu0
    %v7162 = vadd.f32 0.0, %v7161
    %v7163 = vpop.f32.mrb[0].mxu0
    %v7164 = vadd.f32 0.0, %v7163
    %7165 = vmatprep.mubr.f32.mxu0 %v6907
    %7166 = vmatmul.mubr.f32.gmra.mrb[0].mxu0 %v6906
    %v7167 = vpop.f32.mrb[0].mxu0
    %v7168 = vadd.f32 0.0, %v7167
    %v7169 = vpop.f32.mrb[0].mxu0
    %v7170 = vadd.f32 0.0, %v7169
    %7171 = vdwg.mxu0
    %7172 = vmatprep.subr.mxu0 0.0
    %7173 = vmatpush1.msra.mxu0 %v6917
    %7174 = vmatprep.subr.mxu0 0.0
    %7175 = vmatpush1.msra.mxu0 %v6920
    %7176 = vmatprep.subr.mxu0 0.0
    %7177 = vmatpush1.msra.mxu0 %v6923
    %7178 = vmatprep.subr.mxu0 0.0
    %7179 = vmatpush1.msra.mxu0 %v6926
    %7180 = vmatprep.subr.mxu0 0.0
    %7181 = vmatpush1.msra.mxu0 %v6929
    %7182 = vmatprep.subr.mxu0 0.0
    %7183 = vmatpush1.msra.mxu0 %v6932
    %7184 = vmatprep.subr.mxu0 0.0
    %7185 = vmatpush1.msra.mxu0 %v6935
    %7186 = vmatprep.subr.mxu0 0.0
    %7187 = vmatpush1.msra.mxu0 %v6938
    %7188 = vmatprep.subr.mxu0 0.0
    %7189 = vmatpush1.msra.mxu0 %v6941
    %7190 = vmatprep.subr.mxu0 0.0
    %7191 = vmatpush1.msra.mxu0 %v6944
    %7192 = vmatprep.subr.mxu0 0.0
    %7193 = vmatpush1.msra.mxu0 %v6947
    %7194 = vmatprep.subr.mxu0 0.0
    %7195 = vmatpush1.msra.mxu0 %v6950
    %7196 = vmatprep.subr.mxu0 0.0
    %7197 = vmatpush1.msra.mxu0 %v6953
    %7198 = vmatprep.subr.mxu0 0.0
    %7199 = vmatpush1.msra.mxu0 %v6956
    %7200 = vmatprep.subr.mxu0 0.0
    %7201 = vmatpush1.msra.mxu0 %v6959
    %7202 = vmatprep.subr.mxu0 0.0
    %7203 = vmatpush1.msra.mxu0 %v6962
    %7204 = vmatprep.subr.mxu0 0.0
    %7205 = vmatpush1.msra.mxu0 %v6965
    %7206 = vmatprep.subr.mxu0 0.0
    %7207 = vmatpush1.msra.mxu0 %v6968
    %7208 = vmatprep.subr.mxu0 0.0
    %7209 = vmatpush1.msra.mxu0 %v6971
    %7210 = vmatprep.subr.mxu0 0.0
    %7211 = vmatpush1.msra.mxu0 %v6974
    %7212 = vmatprep.subr.mxu0 0.0
    %7213 = vmatpush1.msra.mxu0 %v6977
    %7214 = vmatprep.subr.mxu0 0.0
    %7215 = vmatpush1.msra.mxu0 %v6980
    %7216 = vmatprep.subr.mxu0 0.0
    %7217 = vmatpush1.msra.mxu0 %v6983
    %7218 = vmatprep.subr.mxu0 0.0
    %7219 = vmatpush1.msra.mxu0 %v6986
    %7220 = vmatprep.subr.mxu0 0.0
    %7221 = vmatpush1.msra.mxu0 %v6989
    %7222 = vmatprep.subr.mxu0 0.0
    %7223 = vmatpush1.msra.mxu0 %v6992
    %7224 = vmatprep.subr.mxu0 0.0
    %7225 = vmatpush1.msra.mxu0 %v6995
    %7226 = vmatprep.subr.mxu0 0.0
    %7227 = vmatpush1.msra.mxu0 %v6998
    %7228 = vmatprep.subr.mxu0 0.0
    %7229 = vmatpush1.msra.mxu0 %v7001
    %7230 = vmatprep.subr.mxu0 0.0
    %7231 = vmatpush1.msra.mxu0 %v7004
    %7232 = vmatprep.subr.mxu0 0.0
    %7233 = vmatpush1.msra.mxu0 %v7007
    %7234 = vmatprep.subr.mxu0 0.0
    %7235 = vmatpush1.msra.mxu0 %v7010
    %7236 = vmatprep.mubr.f32.mxu0 %v6821
    %7237 = vmatmul.mubr.f32.gmra.mrb[0].mxu0 %v6818
    %v7238 = vpop.f32.mrb[0].mxu0
    %v7239 = vadd.f32 0.0, %v7238
    %v7240 = vpop.f32.mrb[0].mxu0
    %7241 = vmatprep.mubr.f32.mxu0 %v6825
    %7242 = vmatmul.mubr.f32.gmra.mrb[0].mxu0 %v6823
    %v7243 = vpop.f32.mrb[0].mxu0
    %v7244 = vadd.f32 0.0, %v7243
    %v7245 = vpop.f32.mrb[0].mxu0
    %7246 = vmatprep.mubr.f32.mxu0 %v6829
    %7247 = vmatmul.mubr.f32.gmra.mrb[0].mxu0 %v6827
    %v7248 = vpop.f32.mrb[0].mxu0
    %v7249 = vadd.f32 0.0, %v7248
    %v7250 = vpop.f32.mrb[0].mxu0
    %7251 = vmatprep.mubr.f32.mxu0 %v6833
    %7252 = vmatmul.mubr.f32.gmra.mrb[0].mxu0 %v6831
    %v7253 = vpop.f32.mrb[0].mxu0
    %v7254 = vadd.f32 0.0, %v7253
    %v7255 = vpop.f32.mrb[0].mxu0
    %7256 = vmatprep.mubr.f32.mxu0 %v6837
    %7257 = vmatmul.mubr.f32.gmra.mrb[0].mxu0 %v6835
    %v7258 = vpop.f32.mrb[0].mxu0
    %v7259 = vadd.f32 0.0, %v7258
    %v7260 = vpop.f32.mrb[0].mxu0
    %7261 = vmatprep.mubr.f32.mxu0 %v6841
    %7262 = vmatmul.mubr.f32.gmra.mrb[0].mxu0 %v6839
    %v7263 = vpop.f32.mrb[0].mxu0
    %v7264 = vadd.f32 0.0, %v7263
    %v7265 = vpop.f32.mrb[0].mxu0
    %7266 = vmatprep.mubr.f32.mxu0 %v6845
    %7267 = vmatmul.mubr.f32.gmra.mrb[0].mxu0 %v6843
    %v7268 = vpop.f32.mrb[0].mxu0
    %v7269 = vadd.f32 0.0, %v7268
    %v7270 = vpop.f32.mrb[0].mxu0
    %7271 = vmatprep.mubr.f32.mxu0 %v6849
    %7272 = vmatmul.mubr.f32.gmra.mrb[0].mxu0 %v6847
    %v7273 = vpop.f32.mrb[0].mxu0
    %v7274 = vadd.f32 0.0, %v7273
    %v7275 = vpop.f32.mrb[0].mxu0
    %7276 = vmatprep.mubr.f32.mxu0 %v6853
    %7277 = vmatmul.mubr.f32.gmra.mrb[0].mxu0 %v6851
    %v7278 = vpop.f32.mrb[0].mxu0
    %v7279 = vadd.f32 0.0, %v7278
    %v7280 = vpop.f32.mrb[0].mxu0
    %7281 = vmatprep.mubr.f32.mxu0 %v6857
    %7282 = vmatmul.mubr.f32.gmra.mrb[0].mxu0 %v6855
    %v7283 = vpop.f32.mrb[0].mxu0
    %v7284 = vadd.f32 0.0, %v7283
    %v7285 = vpop.f32.mrb[0].mxu0
    %7286 = vmatprep.mubr.f32.mxu0 %v6861
    %7287 = vmatmul.mubr.f32.gmra.mrb[0].mxu0 %v6859
    %v7288 = vpop.f32.mrb[0].mxu0
    %v7289 = vadd.f32 0.0, %v7288
    %v7290 = vpop.f32.mrb[0].mxu0
    %7291 = vmatprep.mubr.f32.mxu0 %v6865
    %7292 = vmatmul.mubr.f32.gmra.mrb[0].mxu0 %v6863
    %v7293 = vpop.f32.mrb[0].mxu0
    %v7294 = vadd.f32 0.0, %v7293
    %v7295 = vpop.f32.mrb[0].mxu0
    %7296 = vmatprep.mubr.f32.mxu0 %v6869
    %7297 = vmatmul.mubr.f32.gmra.mrb[0].mxu0 %v6867
    %v7298 = vpop.f32.mrb[0].mxu0
    %v7299 = vadd.f32 0.0, %v7298
    %v7300 = vpop.f32.mrb[0].mxu0
    %7301 = vmatprep.mubr.f32.mxu0 %v6873
    %7302 = vmatmul.mubr.f32.gmra.mrb[0].mxu0 %v6871
    %v7303 = vpop.f32.mrb[0].mxu0
    %v7304 = vadd.f32 0.0, %v7303
    %v7305 = vpop.f32.mrb[0].mxu0
    %7306 = vmatprep.mubr.f32.mxu0 %v6913
    %7307 = vmatmul.mubr.f32.gmra.mrb[0].mxu0 %v6912
    %v7308 = vpop.f32.mrb[0].mxu0
    %v7309 = vadd.f32 0.0, %v7308
    %v7310 = vpop.f32.mrb[0].mxu0
    %7311 = vmatprep.mubr.f32.mxu0 %v6907
    %7312 = vmatmul.mubr.f32.gmra.mrb[0].mxu0 %v6906
    %v7313 = vpop.f32.mrb[0].mxu0
    %v7314 = vadd.f32 0.0, %v7313
    %v7315 = vpop.f32.mrb[0].mxu0
    %7316 = vdwg.mxu0
    %v7317 = vadd.f32 %v6768, %v7078
    %v7318 = vadd.f32 %v6769, %v7080
    %v7319 = vadd.f32 %v6770, %v7239
    %v7320 = vadd.f32 %v6771, %v7084
    %v7321 = vadd.f32 %v6772, %v7086
    %v7322 = vadd.f32 %v6773, %v7244
    %v7323 = vadd.f32 %v6774, %v7090
    %v7324 = vadd.f32 %v6775, %v7092
    %v7325 = vadd.f32 %v6776, %v7249
    %v7326 = vadd.f32 %v6777, %v7096
    %v7327 = vadd.f32 %v6778, %v7098
    %v7328 = vadd.f32 %v6779, %v7254
    %v7329 = vadd.f32 %v6780, %v7102
    %v7330 = vadd.f32 %v6781, %v7104
    %v7331 = vadd.f32 %v6782, %v7259
    %v7332 = vadd.f32 %v6783, %v7108
    %v7333 = vadd.f32 %v6784, %v7110
    %v7334 = vadd.f32 %v6785, %v7264
    %v7335 = vadd.f32 %v6786, %v7114
    %v7336 = vadd.f32 %v6787, %v7116
    %v7337 = vadd.f32 %v6788, %v7269
    %v7338 = vadd.f32 %v6789, %v7120
    %v7339 = vadd.f32 %v6790, %v7122
    %v7340 = vadd.f32 %v6791, %v7274
    %v7341 = vadd.f32 %v6792, %v7126
    %v7342 = vadd.f32 %v6793, %v7128
    %v7343 = vadd.f32 %v6794, %v7279
    %v7344 = vadd.f32 %v6795, %v7132
    %v7345 = vadd.f32 %v6796, %v7134
    %v7346 = vadd.f32 %v6797, %v7284
    %v7347 = vadd.f32 %v6798, %v7138
    %v7348 = vadd.f32 %v6799, %v7140
    %v7349 = vadd.f32 %v6800, %v7289
    %v7350 = vadd.f32 %v6801, %v7144
    %v7351 = vadd.f32 %v6802, %v7146
    %v7352 = vadd.f32 %v6803, %v7294
    %v7353 = vadd.f32 %v6804, %v7150
    %v7354 = vadd.f32 %v6805, %v7152
    %v7355 = vadd.f32 %v6806, %v7299
    %v7356 = vadd.f32 %v6807, %v7156
    %v7357 = vadd.f32 %v6808, %v7158
    %v7358 = vadd.f32 %v6809, %v7304
    %v7359 = vadd.f32 %v6810, %v7162
    %v7360 = vadd.f32 %v6811, %v7164
    %v7361 = vadd.f32 %v6812, %v7309
    %v7362 = vadd.f32 %v6813, %v7168
    %v7363 = vadd.f32 %v6814, %v7170
    %v7364 = vadd.f32 %v6815, %v7314
    %v7365 = vrot.slane %v5301, 4
    %v7366 = vrot.slane %v5303, 4
    %v7367 = vsel %vm2639, %v7365, %v7366
    %v7368 = vrot.slane %v5302, 4
    %v7369 = vrot.slane %v5304, 4
    %v7370 = vsel %vm2639, %v7368, %v7369
    %v7371 = vrot.slane %v5305, 4
    %v7372 = vsel %vm2639, %v7366, %v7371
    %v7373 = vrot.slane %v5306, 4
    %v7374 = vsel %vm2639, %v7369, %v7373
    %v7375 = vrot.slane %v5307, 4
    %v7376 = vsel %vm2639, %v7371, %v7375
    %v7377 = vrot.slane %v5308, 4
    %v7378 = vsel %vm2639, %v7373, %v7377
    %v7379 = vrot.slane %v5309, 4
    %v7380 = vsel %vm2639, %v7375, %v7379
    %v7381 = vrot.slane %v5310, 4
    %v7382 = vsel %vm2639, %v7377, %v7381
    %v7383 = vrot.slane %v5311, 4
    %v7384 = vsel %vm2639, %v7379, %v7383
    %v7385 = vrot.slane %v5312, 4
    %v7386 = vsel %vm2639, %v7381, %v7385
    %v7387 = vrot.slane %v5313, 4
    %v7388 = vsel %vm2639, %v7383, %v7387
    %v7389 = vrot.slane %v5314, 4
    %v7390 = vsel %vm2639, %v7385, %v7389
    %v7391 = vrot.slane %v5315, 4
    %v7392 = vsel %vm2639, %v7387, %v7391
    %v7393 = vrot.slane %v5316, 4
    %v7394 = vsel %vm2639, %v7389, %v7393
    %v7395 = vrot.slane %v5317, 4
    %v7396 = vsel %vm2639, %v7391, %v7395
    %v7397 = vrot.slane %v5318, 4
    %v7398 = vsel %vm2639, %v7393, %v7397
    %v7399 = vrot.slane %v5319, 4
    %v7400 = vsel %vm2639, %v7395, %v7399
    %v7401 = vrot.slane %v5320, 4
    %v7402 = vsel %vm2639, %v7397, %v7401
    %v7403 = vrot.slane %v5321, 4
    %v7404 = vsel %vm2639, %v7399, %v7403
    %v7405 = vrot.slane %v5322, 4
    %v7406 = vsel %vm2639, %v7401, %v7405
    %v7407 = vrot.slane %v5323, 4
    %v7408 = vsel %vm2639, %v7403, %v7407
    %v7409 = vrot.slane %v5324, 4
    %v7410 = vsel %vm2639, %v7405, %v7409
    %v7411 = vrot.slane %v5325, 4
    %v7412 = vsel %vm2639, %v7407, %v7411
    %v7413 = vrot.slane %v5326, 4
    %v7414 = vsel %vm2639, %v7409, %v7413
    %v7415 = vrot.slane %v5327, 4
    %v7416 = vsel %vm2639, %v7411, %v7415
    %v7417 = vrot.slane %v5328, 4
    %v7418 = vsel %vm2639, %v7413, %v7417
    %v7419 = vrot.slane %v5329, 4
    %v7420 = vsel %vm2639, %v7415, %v7419
    %v7421 = vrot.slane %v5330, 4
    %v7422 = vsel %vm2639, %v7417, %v7421
    %v7453 = vrot.slane %v5299, 4
    %v7454 = vrot.slane %v5300, 4
    %v7455 = vsel %vm2639, %v7453, %v7365
    %v7456 = vsel %vm2639, %v7454, %v7368
    %v7461 = vsel %vm2639, %v7419, %v7453
    %v7462 = vsel %vm2639, %v7421, %v7454
    %s7463 = scalar_lea.vmem [#allocation9], 3072
    %v7464 = vld [vmem:[%s7463] sm:$0xff]
    %v7465 = vld [vmem:[%s7463 + $0x8] sm:$0xff]
    %v7466 = vld [vmem:[%s7463 + $0x10] sm:$0xff]
    %v7467 = vld [vmem:[%s7463 + $0x18] sm:$0xff]
    %v7468 = vld [vmem:[%s7463 + $0x20] sm:$0xff]
    %v7469 = vld [vmem:[%s7463 + $0x28] sm:$0xff]
    %v7470 = vld [vmem:[%s7463 + $0x30] sm:$0xff]
    %v7471 = vld [vmem:[%s7463 + $0x38] sm:$0xff]
    %v7472 = vld [vmem:[%s7463 + $0x40] sm:$0xff]
    %v7473 = vld [vmem:[%s7463 + $0x48] sm:$0xff]
    %v7474 = vld [vmem:[%s7463 + $0x50] sm:$0xff]
    %v7475 = vld [vmem:[%s7463 + $0x58] sm:$0xff]
    %v7476 = vld [vmem:[%s7463 + $0x60] sm:$0xff]
    %v7477 = vld [vmem:[%s7463 + $0x68] sm:$0xff]
    %v7478 = vld [vmem:[%s7463 + $0x70] sm:$0xff]
    %v7479 = vld [vmem:[%s7463 + $0x78] sm:$0xff]
    %v7480 = vld [vmem:[%s7463 + $0x80] sm:$0xff]
    %v7481 = vld [vmem:[%s7463 + $0x88] sm:$0xff]
    %v7482 = vld [vmem:[%s7463 + $0x90] sm:$0xff]
    %v7483 = vld [vmem:[%s7463 + $0x98] sm:$0xff]
    %v7484 = vld [vmem:[%s7463 + $0xa0] sm:$0xff]
    %v7485 = vld [vmem:[%s7463 + $0xa8] sm:$0xff]
    %v7486 = vld [vmem:[%s7463 + $0xb0] sm:$0xff]
    %v7487 = vld [vmem:[%s7463 + $0xb8] sm:$0xff]
    %v7488 = vld [vmem:[%s7463 + $0xc0] sm:$0xff]
    %v7489 = vld [vmem:[%s7463 + $0xc8] sm:$0xff]
    %v7490 = vld [vmem:[%s7463 + $0xd0] sm:$0xff]
    %v7491 = vld [vmem:[%s7463 + $0xd8] sm:$0xff]
    %v7492 = vld [vmem:[%s7463 + $0xe0] sm:$0xff]
    %v7493 = vld [vmem:[%s7463 + $0xe8] sm:$0xff]
    %v7494 = vld [vmem:[%s7463 + $0xf0] sm:$0xff]
    %v7495 = vld [vmem:[%s7463 + $0xf8] sm:$0xff]
    %v7496 = vld [vmem:[%s7463 + $0x100] sm:$0xff]
    %v7497 = vld [vmem:[%s7463 + $0x108] sm:$0xff]
    %v7498 = vld [vmem:[%s7463 + $0x110] sm:$0xff]
    %v7499 = vld [vmem:[%s7463 + $0x118] sm:$0xff]
    %v7500 = vld [vmem:[%s7463 + $0x120] sm:$0xff]
    %v7501 = vld [vmem:[%s7463 + $0x128] sm:$0xff]
    %v7502 = vld [vmem:[%s7463 + $0x130] sm:$0xff]
    %v7503 = vld [vmem:[%s7463 + $0x138] sm:$0xff]
    %v7504 = vld [vmem:[%s7463 + $0x140] sm:$0xff]
    %v7505 = vld [vmem:[%s7463 + $0x148] sm:$0xff]
    %v7506 = vld [vmem:[%s7463 + $0x150] sm:$0xff]
    %v7507 = vld [vmem:[%s7463 + $0x158] sm:$0xff]
    %v7508 = vld [vmem:[%s7463 + $0x160] sm:$0xff]
    %v7509 = vld [vmem:[%s7463 + $0x168] sm:$0xff]
    %v7510 = vld [vmem:[%s7463 + $0x170] sm:$0xff]
    %v7511 = vld [vmem:[%s7463 + $0x178] sm:$0xff]
    %v7512 = vld [vmem:[%s7463 + $0x180] sm:$0xff]
    %v7513 = vld [vmem:[%s7463 + $0x188] sm:$0xff]
    %v7514 = vld [vmem:[%s7463 + $0x190] sm:$0xff]
    %v7515 = vld [vmem:[%s7463 + $0x198] sm:$0xff]
    %v7516 = vld [vmem:[%s7463 + $0x1a0] sm:$0xff]
    %v7517 = vld [vmem:[%s7463 + $0x1a8] sm:$0xff]
    %v7518 = vld [vmem:[%s7463 + $0x1b0] sm:$0xff]
    %v7519 = vld [vmem:[%s7463 + $0x1b8] sm:$0xff]
    %v7520 = vld [vmem:[%s7463 + $0x1c0] sm:$0xff]
    %v7521 = vld [vmem:[%s7463 + $0x1c8] sm:$0xff]
    %v7522 = vld [vmem:[%s7463 + $0x1d0] sm:$0xff]
    %v7523 = vld [vmem:[%s7463 + $0x1d8] sm:$0xff]
    %v7524 = vld [vmem:[%s7463 + $0x1e0] sm:$0xff]
    %v7525 = vld [vmem:[%s7463 + $0x1e8] sm:$0xff]
    %v7526 = vld [vmem:[%s7463 + $0x1f0] sm:$0xff]
    %v7527 = vld [vmem:[%s7463 + $0x1f8] sm:$0xff]
    %v7528 = vld [vmem:[%s7463 + $0x200] sm:$0xff]
    %v7529 = vld [vmem:[%s7463 + $0x208] sm:$0xff]
    %v7530 = vld [vmem:[%s7463 + $0x210] sm:$0xff]
    %v7531 = vld [vmem:[%s7463 + $0x218] sm:$0xff]
    %v7532 = vld [vmem:[%s7463 + $0x220] sm:$0xff]
    %v7533 = vld [vmem:[%s7463 + $0x228] sm:$0xff]
    %v7534 = vld [vmem:[%s7463 + $0x230] sm:$0xff]
    %v7535 = vld [vmem:[%s7463 + $0x238] sm:$0xff]
    %v7536 = vld [vmem:[%s7463 + $0x240] sm:$0xff]
    %v7537 = vld [vmem:[%s7463 + $0x248] sm:$0xff]
    %v7538 = vld [vmem:[%s7463 + $0x250] sm:$0xff]
    %v7539 = vld [vmem:[%s7463 + $0x258] sm:$0xff]
    %v7540 = vld [vmem:[%s7463 + $0x260] sm:$0xff]
    %v7541 = vld [vmem:[%s7463 + $0x268] sm:$0xff]
    %v7542 = vld [vmem:[%s7463 + $0x270] sm:$0xff]
    %v7543 = vld [vmem:[%s7463 + $0x278] sm:$0xff]
    %v7544 = vld [vmem:[%s7463 + $0x280] sm:$0xff]
    %v7545 = vld [vmem:[%s7463 + $0x288] sm:$0xff]
    %v7546 = vld [vmem:[%s7463 + $0x290] sm:$0xff]
    %v7547 = vld [vmem:[%s7463 + $0x298] sm:$0xff]
    %v7548 = vld [vmem:[%s7463 + $0x2a0] sm:$0xff]
    %v7549 = vld [vmem:[%s7463 + $0x2a8] sm:$0xff]
    %v7550 = vld [vmem:[%s7463 + $0x2b0] sm:$0xff]
    %v7551 = vld [vmem:[%s7463 + $0x2b8] sm:$0xff]
    %v7552 = vld [vmem:[%s7463 + $0x2c0] sm:$0xff]
    %v7553 = vld [vmem:[%s7463 + $0x2c8] sm:$0xff]
    %v7554 = vld [vmem:[%s7463 + $0x2d0] sm:$0xff]
    %v7555 = vld [vmem:[%s7463 + $0x2d8] sm:$0xff]
    %v7556 = vld [vmem:[%s7463 + $0x2e0] sm:$0xff]
    %v7557 = vld [vmem:[%s7463 + $0x2e8] sm:$0xff]
    %v7558 = vld [vmem:[%s7463 + $0x2f0] sm:$0xff]
    %v7559 = vld [vmem:[%s7463 + $0x2f8] sm:$0xff]
    %7560 = vmatprep.subr.mxu0 %v7465
    %7561 = vmatpush1.msra.mxu0 %v7464
    %7562 = vmatprep.subr.mxu0 %v7468
    %7563 = vmatpush1.msra.mxu0 %v7467
    %7564 = vmatprep.subr.mxu0 %v7471
    %7565 = vmatpush1.msra.mxu0 %v7470
    %7566 = vmatprep.subr.mxu0 %v7474
    %7567 = vmatpush1.msra.mxu0 %v7473
    %7568 = vmatprep.subr.mxu0 %v7477
    %7569 = vmatpush1.msra.mxu0 %v7476
    %7570 = vmatprep.subr.mxu0 %v7480
    %7571 = vmatpush1.msra.mxu0 %v7479
    %7572 = vmatprep.subr.mxu0 %v7483
    %7573 = vmatpush1.msra.mxu0 %v7482
    %7574 = vmatprep.subr.mxu0 %v7486
    %7575 = vmatpush1.msra.mxu0 %v7485
    %7576 = vmatprep.subr.mxu0 %v7489
    %7577 = vmatpush1.msra.mxu0 %v7488
    %7578 = vmatprep.subr.mxu0 %v7492
    %7579 = vmatpush1.msra.mxu0 %v7491
    %7580 = vmatprep.subr.mxu0 %v7495
    %7581 = vmatpush1.msra.mxu0 %v7494
    %7582 = vmatprep.subr.mxu0 %v7498
    %7583 = vmatpush1.msra.mxu0 %v7497
    %7584 = vmatprep.subr.mxu0 %v7501
    %7585 = vmatpush1.msra.mxu0 %v7500
    %7586 = vmatprep.subr.mxu0 %v7504
    %7587 = vmatpush1.msra.mxu0 %v7503
    %7588 = vmatprep.subr.mxu0 %v7507
    %7589 = vmatpush1.msra.mxu0 %v7506
    %7590 = vmatprep.subr.mxu0 %v7510
    %7591 = vmatpush1.msra.mxu0 %v7509
    %7592 = vmatprep.subr.mxu0 %v7513
    %7593 = vmatpush1.msra.mxu0 %v7512
    %7594 = vmatprep.subr.mxu0 %v7516
    %7595 = vmatpush1.msra.mxu0 %v7515
    %7596 = vmatprep.subr.mxu0 %v7519
    %7597 = vmatpush1.msra.mxu0 %v7518
    %7598 = vmatprep.subr.mxu0 %v7522
    %7599 = vmatpush1.msra.mxu0 %v7521
    %7600 = vmatprep.subr.mxu0 %v7525
    %7601 = vmatpush1.msra.mxu0 %v7524
    %7602 = vmatprep.subr.mxu0 %v7528
    %7603 = vmatpush1.msra.mxu0 %v7527
    %7604 = vmatprep.subr.mxu0 %v7531
    %7605 = vmatpush1.msra.mxu0 %v7530
    %7606 = vmatprep.subr.mxu0 %v7534
    %7607 = vmatpush1.msra.mxu0 %v7533
    %7608 = vmatprep.subr.mxu0 %v7537
    %7609 = vmatpush1.msra.mxu0 %v7536
    %7610 = vmatprep.subr.mxu0 %v7540
    %7611 = vmatpush1.msra.mxu0 %v7539
    %7612 = vmatprep.subr.mxu0 %v7543
    %7613 = vmatpush1.msra.mxu0 %v7542
    %7614 = vmatprep.subr.mxu0 %v7546
    %7615 = vmatpush1.msra.mxu0 %v7545
    %7616 = vmatprep.subr.mxu0 %v7549
    %7617 = vmatpush1.msra.mxu0 %v7548
    %7618 = vmatprep.subr.mxu0 %v7552
    %7619 = vmatpush1.msra.mxu0 %v7551
    %7620 = vmatprep.subr.mxu0 %v7555
    %7621 = vmatpush1.msra.mxu0 %v7554
    %7622 = vmatprep.subr.mxu0 %v7558
    %7623 = vmatpush1.msra.mxu0 %v7557
    %7624 = vmatprep.mubr.f32.mxu0 %v7370
    %7625 = vmatmul.mubr.f32.gmra.mrb[0].mxu0 %v7367
    %v7626 = vpop.f32.mrb[0].mxu0
    %v7627 = vadd.f32 0.0, %v7626
    %v7628 = vpop.f32.mrb[0].mxu0
    %v7629 = vadd.f32 0.0, %v7628
    %7630 = vmatprep.mubr.f32.mxu0 %v7374
    %7631 = vmatmul.mubr.f32.gmra.mrb[0].mxu0 %v7372
    %v7632 = vpop.f32.mrb[0].mxu0
    %v7633 = vadd.f32 0.0, %v7632
    %v7634 = vpop.f32.mrb[0].mxu0
    %v7635 = vadd.f32 0.0, %v7634
    %7636 = vmatprep.mubr.f32.mxu0 %v7378
    %7637 = vmatmul.mubr.f32.gmra.mrb[0].mxu0 %v7376
    %v7638 = vpop.f32.mrb[0].mxu0
    %v7639 = vadd.f32 0.0, %v7638
    %v7640 = vpop.f32.mrb[0].mxu0
    %v7641 = vadd.f32 0.0, %v7640
    %7642 = vmatprep.mubr.f32.mxu0 %v7382
    %7643 = vmatmul.mubr.f32.gmra.mrb[0].mxu0 %v7380
    %v7644 = vpop.f32.mrb[0].mxu0
    %v7645 = vadd.f32 0.0, %v7644
    %v7646 = vpop.f32.mrb[0].mxu0
    %v7647 = vadd.f32 0.0, %v7646
    %7648 = vmatprep.mubr.f32.mxu0 %v7386
    %7649 = vmatmul.mubr.f32.gmra.mrb[0].mxu0 %v7384
    %v7650 = vpop.f32.mrb[0].mxu0
    %v7651 = vadd.f32 0.0, %v7650
    %v7652 = vpop.f32.mrb[0].mxu0
    %v7653 = vadd.f32 0.0, %v7652
    %7654 = vmatprep.mubr.f32.mxu0 %v7390
    %7655 = vmatmul.mubr.f32.gmra.mrb[0].mxu0 %v7388
    %v7656 = vpop.f32.mrb[0].mxu0
    %v7657 = vadd.f32 0.0, %v7656
    %v7658 = vpop.f32.mrb[0].mxu0
    %v7659 = vadd.f32 0.0, %v7658
    %7660 = vmatprep.mubr.f32.mxu0 %v7394
    %7661 = vmatmul.mubr.f32.gmra.mrb[0].mxu0 %v7392
    %v7662 = vpop.f32.mrb[0].mxu0
    %v7663 = vadd.f32 0.0, %v7662
    %v7664 = vpop.f32.mrb[0].mxu0
    %v7665 = vadd.f32 0.0, %v7664
    %7666 = vmatprep.mubr.f32.mxu0 %v7398
    %7667 = vmatmul.mubr.f32.gmra.mrb[0].mxu0 %v7396
    %v7668 = vpop.f32.mrb[0].mxu0
    %v7669 = vadd.f32 0.0, %v7668
    %v7670 = vpop.f32.mrb[0].mxu0
    %v7671 = vadd.f32 0.0, %v7670
    %7672 = vmatprep.mubr.f32.mxu0 %v7402
    %7673 = vmatmul.mubr.f32.gmra.mrb[0].mxu0 %v7400
    %v7674 = vpop.f32.mrb[0].mxu0
    %v7675 = vadd.f32 0.0, %v7674
    %v7676 = vpop.f32.mrb[0].mxu0
    %v7677 = vadd.f32 0.0, %v7676
    %7678 = vmatprep.mubr.f32.mxu0 %v7406
    %7679 = vmatmul.mubr.f32.gmra.mrb[0].mxu0 %v7404
    %v7680 = vpop.f32.mrb[0].mxu0
    %v7681 = vadd.f32 0.0, %v7680
    %v7682 = vpop.f32.mrb[0].mxu0
    %v7683 = vadd.f32 0.0, %v7682
    %7684 = vmatprep.mubr.f32.mxu0 %v7410
    %7685 = vmatmul.mubr.f32.gmra.mrb[0].mxu0 %v7408
    %v7686 = vpop.f32.mrb[0].mxu0
    %v7687 = vadd.f32 0.0, %v7686
    %v7688 = vpop.f32.mrb[0].mxu0
    %v7689 = vadd.f32 0.0, %v7688
    %7690 = vmatprep.mubr.f32.mxu0 %v7414
    %7691 = vmatmul.mubr.f32.gmra.mrb[0].mxu0 %v7412
    %v7692 = vpop.f32.mrb[0].mxu0
    %v7693 = vadd.f32 0.0, %v7692
    %v7694 = vpop.f32.mrb[0].mxu0
    %v7695 = vadd.f32 0.0, %v7694
    %7696 = vmatprep.mubr.f32.mxu0 %v7418
    %7697 = vmatmul.mubr.f32.gmra.mrb[0].mxu0 %v7416
    %v7698 = vpop.f32.mrb[0].mxu0
    %v7699 = vadd.f32 0.0, %v7698
    %v7700 = vpop.f32.mrb[0].mxu0
    %v7701 = vadd.f32 0.0, %v7700
    %7702 = vmatprep.mubr.f32.mxu0 %v7422
    %7703 = vmatmul.mubr.f32.gmra.mrb[0].mxu0 %v7420
    %v7704 = vpop.f32.mrb[0].mxu0
    %v7705 = vadd.f32 0.0, %v7704
    %v7706 = vpop.f32.mrb[0].mxu0
    %v7707 = vadd.f32 0.0, %v7706
    %7708 = vmatprep.mubr.f32.mxu0 %v7462
    %7709 = vmatmul.mubr.f32.gmra.mrb[0].mxu0 %v7461
    %v7710 = vpop.f32.mrb[0].mxu0
    %v7711 = vadd.f32 0.0, %v7710
    %v7712 = vpop.f32.mrb[0].mxu0
    %v7713 = vadd.f32 0.0, %v7712
    %7714 = vmatprep.mubr.f32.mxu0 %v7456
    %7715 = vmatmul.mubr.f32.gmra.mrb[0].mxu0 %v7455
    %v7716 = vpop.f32.mrb[0].mxu0
    %v7717 = vadd.f32 0.0, %v7716
    %v7718 = vpop.f32.mrb[0].mxu0
    %v7719 = vadd.f32 0.0, %v7718
    %7720 = vdwg.mxu0
    %7721 = vmatprep.subr.mxu0 0.0
    %7722 = vmatpush1.msra.mxu0 %v7466
    %7723 = vmatprep.subr.mxu0 0.0
    %7724 = vmatpush1.msra.mxu0 %v7469
    %7725 = vmatprep.subr.mxu0 0.0
    %7726 = vmatpush1.msra.mxu0 %v7472
    %7727 = vmatprep.subr.mxu0 0.0
    %7728 = vmatpush1.msra.mxu0 %v7475
    %7729 = vmatprep.subr.mxu0 0.0
    %7730 = vmatpush1.msra.mxu0 %v7478
    %7731 = vmatprep.subr.mxu0 0.0
    %7732 = vmatpush1.msra.mxu0 %v7481
    %7733 = vmatprep.subr.mxu0 0.0
    %7734 = vmatpush1.msra.mxu0 %v7484
    %7735 = vmatprep.subr.mxu0 0.0
    %7736 = vmatpush1.msra.mxu0 %v7487
    %7737 = vmatprep.subr.mxu0 0.0
    %7738 = vmatpush1.msra.mxu0 %v7490
    %7739 = vmatprep.subr.mxu0 0.0
    %7740 = vmatpush1.msra.mxu0 %v7493
    %7741 = vmatprep.subr.mxu0 0.0
    %7742 = vmatpush1.msra.mxu0 %v7496
    %7743 = vmatprep.subr.mxu0 0.0
    %7744 = vmatpush1.msra.mxu0 %v7499
    %7745 = vmatprep.subr.mxu0 0.0
    %7746 = vmatpush1.msra.mxu0 %v7502
    %7747 = vmatprep.subr.mxu0 0.0
    %7748 = vmatpush1.msra.mxu0 %v7505
    %7749 = vmatprep.subr.mxu0 0.0
    %7750 = vmatpush1.msra.mxu0 %v7508
    %7751 = vmatprep.subr.mxu0 0.0
    %7752 = vmatpush1.msra.mxu0 %v7511
    %7753 = vmatprep.subr.mxu0 0.0
    %7754 = vmatpush1.msra.mxu0 %v7514
    %7755 = vmatprep.subr.mxu0 0.0
    %7756 = vmatpush1.msra.mxu0 %v7517
    %7757 = vmatprep.subr.mxu0 0.0
    %7758 = vmatpush1.msra.mxu0 %v7520
    %7759 = vmatprep.subr.mxu0 0.0
    %7760 = vmatpush1.msra.mxu0 %v7523
    %7761 = vmatprep.subr.mxu0 0.0
    %7762 = vmatpush1.msra.mxu0 %v7526
    %7763 = vmatprep.subr.mxu0 0.0
    %7764 = vmatpush1.msra.mxu0 %v7529
    %7765 = vmatprep.subr.mxu0 0.0
    %7766 = vmatpush1.msra.mxu0 %v7532
    %7767 = vmatprep.subr.mxu0 0.0
    %7768 = vmatpush1.msra.mxu0 %v7535
    %7769 = vmatprep.subr.mxu0 0.0
    %7770 = vmatpush1.msra.mxu0 %v7538
    %7771 = vmatprep.subr.mxu0 0.0
    %7772 = vmatpush1.msra.mxu0 %v7541
    %7773 = vmatprep.subr.mxu0 0.0
    %7774 = vmatpush1.msra.mxu0 %v7544
    %7775 = vmatprep.subr.mxu0 0.0
    %7776 = vmatpush1.msra.mxu0 %v7547
    %7777 = vmatprep.subr.mxu0 0.0
    %7778 = vmatpush1.msra.mxu0 %v7550
    %7779 = vmatprep.subr.mxu0 0.0
    %7780 = vmatpush1.msra.mxu0 %v7553
    %7781 = vmatprep.subr.mxu0 0.0
    %7782 = vmatpush1.msra.mxu0 %v7556
    %7783 = vmatprep.subr.mxu0 0.0
    %7784 = vmatpush1.msra.mxu0 %v7559
    %7785 = vmatprep.mubr.f32.mxu0 %v7370
    %7786 = vmatmul.mubr.f32.gmra.mrb[0].mxu0 %v7367
    %v7787 = vpop.f32.mrb[0].mxu0
    %v7788 = vadd.f32 0.0, %v7787
    %v7789 = vpop.f32.mrb[0].mxu0
    %7790 = vmatprep.mubr.f32.mxu0 %v7374
    %7791 = vmatmul.mubr.f32.gmra.mrb[0].mxu0 %v7372
    %v7792 = vpop.f32.mrb[0].mxu0
    %v7793 = vadd.f32 0.0, %v7792
    %v7794 = vpop.f32.mrb[0].mxu0
    %7795 = vmatprep.mubr.f32.mxu0 %v7378
    %7796 = vmatmul.mubr.f32.gmra.mrb[0].mxu0 %v7376
    %v7797 = vpop.f32.mrb[0].mxu0
    %v7798 = vadd.f32 0.0, %v7797
    %v7799 = vpop.f32.mrb[0].mxu0
    %7800 = vmatprep.mubr.f32.mxu0 %v7382
    %7801 = vmatmul.mubr.f32.gmra.mrb[0].mxu0 %v7380
    %v7802 = vpop.f32.mrb[0].mxu0
    %v7803 = vadd.f32 0.0, %v7802
    %v7804 = vpop.f32.mrb[0].mxu0
    %7805 = vmatprep.mubr.f32.mxu0 %v7386
    %7806 = vmatmul.mubr.f32.gmra.mrb[0].mxu0 %v7384
    %v7807 = vpop.f32.mrb[0].mxu0
    %v7808 = vadd.f32 0.0, %v7807
    %v7809 = vpop.f32.mrb[0].mxu0
    %7810 = vmatprep.mubr.f32.mxu0 %v7390
    %7811 = vmatmul.mubr.f32.gmra.mrb[0].mxu0 %v7388
    %v7812 = vpop.f32.mrb[0].mxu0
    %v7813 = vadd.f32 0.0, %v7812
    %v7814 = vpop.f32.mrb[0].mxu0
    %7815 = vmatprep.mubr.f32.mxu0 %v7394
    %7816 = vmatmul.mubr.f32.gmra.mrb[0].mxu0 %v7392
    %v7817 = vpop.f32.mrb[0].mxu0
    %v7818 = vadd.f32 0.0, %v7817
    %v7819 = vpop.f32.mrb[0].mxu0
    %7820 = vmatprep.mubr.f32.mxu0 %v7398
    %7821 = vmatmul.mubr.f32.gmra.mrb[0].mxu0 %v7396
    %v7822 = vpop.f32.mrb[0].mxu0
    %v7823 = vadd.f32 0.0, %v7822
    %v7824 = vpop.f32.mrb[0].mxu0
    %7825 = vmatprep.mubr.f32.mxu0 %v7402
    %7826 = vmatmul.mubr.f32.gmra.mrb[0].mxu0 %v7400
    %v7827 = vpop.f32.mrb[0].mxu0
    %v7828 = vadd.f32 0.0, %v7827
    %v7829 = vpop.f32.mrb[0].mxu0
    %7830 = vmatprep.mubr.f32.mxu0 %v7406
    %7831 = vmatmul.mubr.f32.gmra.mrb[0].mxu0 %v7404
    %v7832 = vpop.f32.mrb[0].mxu0
    %v7833 = vadd.f32 0.0, %v7832
    %v7834 = vpop.f32.mrb[0].mxu0
    %7835 = vmatprep.mubr.f32.mxu0 %v7410
    %7836 = vmatmul.mubr.f32.gmra.mrb[0].mxu0 %v7408
    %v7837 = vpop.f32.mrb[0].mxu0
    %v7838 = vadd.f32 0.0, %v7837
    %v7839 = vpop.f32.mrb[0].mxu0
    %7840 = vmatprep.mubr.f32.mxu0 %v7414
    %7841 = vmatmul.mubr.f32.gmra.mrb[0].mxu0 %v7412
    %v7842 = vpop.f32.mrb[0].mxu0
    %v7843 = vadd.f32 0.0, %v7842
    %v7844 = vpop.f32.mrb[0].mxu0
    %7845 = vmatprep.mubr.f32.mxu0 %v7418
    %7846 = vmatmul.mubr.f32.gmra.mrb[0].mxu0 %v7416
    %v7847 = vpop.f32.mrb[0].mxu0
    %v7848 = vadd.f32 0.0, %v7847
    %v7849 = vpop.f32.mrb[0].mxu0
    %7850 = vmatprep.mubr.f32.mxu0 %v7422
    %7851 = vmatmul.mubr.f32.gmra.mrb[0].mxu0 %v7420
    %v7852 = vpop.f32.mrb[0].mxu0
    %v7853 = vadd.f32 0.0, %v7852
    %v7854 = vpop.f32.mrb[0].mxu0
    %7855 = vmatprep.mubr.f32.mxu0 %v7462
    %7856 = vmatmul.mubr.f32.gmra.mrb[0].mxu0 %v7461
    %v7857 = vpop.f32.mrb[0].mxu0
    %v7858 = vadd.f32 0.0, %v7857
    %v7859 = vpop.f32.mrb[0].mxu0
    %7860 = vmatprep.mubr.f32.mxu0 %v7456
    %7861 = vmatmul.mubr.f32.gmra.mrb[0].mxu0 %v7455
    %v7862 = vpop.f32.mrb[0].mxu0
    %v7863 = vadd.f32 0.0, %v7862
    %v7864 = vpop.f32.mrb[0].mxu0
    %7865 = vdwg.mxu0
    %v7866 = vadd.f32 %v7317, %v7627
    %v7867 = vadd.f32 %v7318, %v7629
    %v7868 = vadd.f32 %v7319, %v7788
    %v7869 = vadd.f32 %v7320, %v7633
    %v7870 = vadd.f32 %v7321, %v7635
    %v7871 = vadd.f32 %v7322, %v7793
    %v7872 = vadd.f32 %v7323, %v7639
    %v7873 = vadd.f32 %v7324, %v7641
    %v7874 = vadd.f32 %v7325, %v7798
    %v7875 = vadd.f32 %v7326, %v7645
    %v7876 = vadd.f32 %v7327, %v7647
    %v7877 = vadd.f32 %v7328, %v7803
    %v7878 = vadd.f32 %v7329, %v7651
    %v7879 = vadd.f32 %v7330, %v7653
    %v7880 = vadd.f32 %v7331, %v7808
    %v7881 = vadd.f32 %v7332, %v7657
    %v7882 = vadd.f32 %v7333, %v7659
    %v7883 = vadd.f32 %v7334, %v7813
    %v7884 = vadd.f32 %v7335, %v7663
    %v7885 = vadd.f32 %v7336, %v7665
    %v7886 = vadd.f32 %v7337, %v7818
    %v7887 = vadd.f32 %v7338, %v7669
    %v7888 = vadd.f32 %v7339, %v7671
    %v7889 = vadd.f32 %v7340, %v7823
    %v7890 = vadd.f32 %v7341, %v7675
    %v7891 = vadd.f32 %v7342, %v7677
    %v7892 = vadd.f32 %v7343, %v7828
    %v7893 = vadd.f32 %v7344, %v7681
    %v7894 = vadd.f32 %v7345, %v7683
    %v7895 = vadd.f32 %v7346, %v7833
    %v7896 = vadd.f32 %v7347, %v7687
    %v7897 = vadd.f32 %v7348, %v7689
    %v7898 = vadd.f32 %v7349, %v7838
    %v7899 = vadd.f32 %v7350, %v7693
    %v7900 = vadd.f32 %v7351, %v7695
    %v7901 = vadd.f32 %v7352, %v7843
    %v7902 = vadd.f32 %v7353, %v7699
    %v7903 = vadd.f32 %v7354, %v7701
    %v7904 = vadd.f32 %v7355, %v7848
    %v7905 = vadd.f32 %v7356, %v7705
    %v7906 = vadd.f32 %v7357, %v7707
    %v7907 = vadd.f32 %v7358, %v7853
    %v7908 = vadd.f32 %v7359, %v7711
    %v7909 = vadd.f32 %v7360, %v7713
    %v7910 = vadd.f32 %v7361, %v7858
    %v7911 = vadd.f32 %v7362, %v7717
    %v7912 = vadd.f32 %v7363, %v7719
    %v7913 = vadd.f32 %v7364, %v7863
    %v7914 = vld [vmem:[#allocation10] sm:$0x7]
    %v7916 = vlaneseq
    %v7917 = vshrl.u32 %v7916, 7
    %v7918 = vsub.s32 0, %v7917
    %v7919 = vrot.slane %v7914, %v7918
    %v7920 = vlaneseq
    %v7921 = vshrl.u32 %v7920, 7
    %v7922 = vsub.s32 1, %v7921
    %v7923 = vrot.slane %v7914, %v7922
    %v7924 = vlaneseq
    %v7925 = vshrl.u32 %v7924, 7
    %v7926 = vsub.s32 2, %v7925
    %v7927 = vrot.slane %v7914, %v7926
    %v7931 = vadd.f32 %v7866, %v7919
    %v7932 = vadd.f32 %v7867, %v7923
    %v7933 = vadd.f32 %v7868, %v7927
    %v7934 = vadd.f32 %v7869, %v7919
    %v7935 = vadd.f32 %v7870, %v7923
    %v7936 = vadd.f32 %v7871, %v7927
    %v7937 = vadd.f32 %v7872, %v7919
    %v7938 = vadd.f32 %v7873, %v7923
    %v7939 = vadd.f32 %v7874, %v7927
    %v7940 = vadd.f32 %v7875, %v7919
    %v7941 = vadd.f32 %v7876, %v7923
    %v7942 = vadd.f32 %v7877, %v7927
    %v7943 = vadd.f32 %v7878, %v7919
    %v7944 = vadd.f32 %v7879, %v7923
    %v7945 = vadd.f32 %v7880, %v7927
    %v7946 = vadd.f32 %v7881, %v7919
    %v7947 = vadd.f32 %v7882, %v7923
    %v7948 = vadd.f32 %v7883, %v7927
    %v7949 = vadd.f32 %v7884, %v7919
    %v7950 = vadd.f32 %v7885, %v7923
    %v7951 = vadd.f32 %v7886, %v7927
    %v7952 = vadd.f32 %v7887, %v7919
    %v7953 = vadd.f32 %v7888, %v7923
    %v7954 = vadd.f32 %v7889, %v7927
    %v7955 = vadd.f32 %v7890, %v7919
    %v7956 = vadd.f32 %v7891, %v7923
    %v7957 = vadd.f32 %v7892, %v7927
    %v7958 = vadd.f32 %v7893, %v7919
    %v7959 = vadd.f32 %v7894, %v7923
    %v7960 = vadd.f32 %v7895, %v7927
    %v7961 = vadd.f32 %v7896, %v7919
    %v7962 = vadd.f32 %v7897, %v7923
    %v7963 = vadd.f32 %v7898, %v7927
    %v7964 = vadd.f32 %v7899, %v7919
    %v7965 = vadd.f32 %v7900, %v7923
    %v7966 = vadd.f32 %v7901, %v7927
    %v7967 = vadd.f32 %v7902, %v7919
    %v7968 = vadd.f32 %v7903, %v7923
    %v7969 = vadd.f32 %v7904, %v7927
    %v7970 = vadd.f32 %v7905, %v7919
    %v7971 = vadd.f32 %v7906, %v7923
    %v7972 = vadd.f32 %v7907, %v7927
    %v7973 = vadd.f32 %v7908, %v7919
    %v7974 = vadd.f32 %v7909, %v7923
    %v7975 = vadd.f32 %v7910, %v7927
    %v7976 = vadd.f32 %v7911, %v7919
    %v7977 = vadd.f32 %v7912, %v7923
    %v7978 = vadd.f32 %v7913, %v7927
    %v7979 = vmax.f32 %v7931, 0.0
    %v7980 = vmax.f32 %v7932, 0.0
    %v7981 = vmax.f32 %v7933, 0.0
    %v7982 = vmax.f32 %v7934, 0.0
    %v7983 = vmax.f32 %v7935, 0.0
    %v7984 = vmax.f32 %v7936, 0.0
    %v7985 = vmax.f32 %v7937, 0.0
    %v7986 = vmax.f32 %v7938, 0.0
    %v7987 = vmax.f32 %v7939, 0.0
    %v7988 = vmax.f32 %v7940, 0.0
    %v7989 = vmax.f32 %v7941, 0.0
    %v7990 = vmax.f32 %v7942, 0.0
    %v7991 = vmax.f32 %v7943, 0.0
    %v7992 = vmax.f32 %v7944, 0.0
    %v7993 = vmax.f32 %v7945, 0.0
    %v7994 = vmax.f32 %v7946, 0.0
    %v7995 = vmax.f32 %v7947, 0.0
    %v7996 = vmax.f32 %v7948, 0.0
    %v7997 = vmax.f32 %v7949, 0.0
    %v7998 = vmax.f32 %v7950, 0.0
    %v7999 = vmax.f32 %v7951, 0.0
    %v8000 = vmax.f32 %v7952, 0.0
    %v8001 = vmax.f32 %v7953, 0.0
    %v8002 = vmax.f32 %v7954, 0.0
    %v8003 = vmax.f32 %v7955, 0.0
    %v8004 = vmax.f32 %v7956, 0.0
    %v8005 = vmax.f32 %v7957, 0.0
    %v8006 = vmax.f32 %v7958, 0.0
    %v8007 = vmax.f32 %v7959, 0.0
    %v8008 = vmax.f32 %v7960, 0.0
    %v8009 = vmax.f32 %v7961, 0.0
    %v8010 = vmax.f32 %v7962, 0.0
    %v8011 = vmax.f32 %v7963, 0.0
    %v8012 = vmax.f32 %v7964, 0.0
    %v8013 = vmax.f32 %v7965, 0.0
    %v8014 = vmax.f32 %v7966, 0.0
    %v8015 = vmax.f32 %v7967, 0.0
    %v8016 = vmax.f32 %v7968, 0.0
    %v8017 = vmax.f32 %v7969, 0.0
    %v8018 = vmax.f32 %v7970, 0.0
    %v8019 = vmax.f32 %v7971, 0.0
    %v8020 = vmax.f32 %v7972, 0.0
    %v8021 = vmax.f32 %v7973, 0.0
    %v8022 = vmax.f32 %v7974, 0.0
    %v8023 = vmax.f32 %v7975, 0.0
    %v8024 = vmax.f32 %v7976, 0.0
    %v8025 = vmax.f32 %v7977, 0.0
    %v8026 = vmax.f32 %v7978, 0.0
    %8075 = vrot.lane.b32.xlu0 %v7979, 108
    %v8076 = vpop.permute.xlu0 %8075
    %8077 = vrot.lane.b32.xlu0 %v7980, 108
    %v8078 = vpop.permute.xlu0 %8077
    %8079 = vrot.lane.b32.xlu0 %v7981, 108
    %v8080 = vpop.permute.xlu0 %8079
    %8081 = vrot.lane.b32.xlu0 %v7982, 108
    %v8082 = vpop.permute.xlu0 %8081
    %8083 = vrot.lane.b32.xlu0 %v7983, 108
    %v8084 = vpop.permute.xlu0 %8083
    %8085 = vrot.lane.b32.xlu0 %v7984, 108
    %v8086 = vpop.permute.xlu0 %8085
    %8087 = vrot.lane.b32.xlu0 %v7985, 108
    %v8088 = vpop.permute.xlu0 %8087
    %8089 = vrot.lane.b32.xlu0 %v7986, 108
    %v8090 = vpop.permute.xlu0 %8089
    %8091 = vrot.lane.b32.xlu0 %v7987, 108
    %v8092 = vpop.permute.xlu0 %8091
    %8093 = vrot.lane.b32.xlu0 %v7988, 108
    %v8094 = vpop.permute.xlu0 %8093
    %8095 = vrot.lane.b32.xlu0 %v7989, 108
    %v8096 = vpop.permute.xlu0 %8095
    %8097 = vrot.lane.b32.xlu0 %v7990, 108
    %v8098 = vpop.permute.xlu0 %8097
    %8099 = vrot.lane.b32.xlu0 %v7991, 108
    %v8100 = vpop.permute.xlu0 %8099
    %8101 = vrot.lane.b32.xlu0 %v7992, 108
    %v8102 = vpop.permute.xlu0 %8101
    %8103 = vrot.lane.b32.xlu0 %v7993, 108
    %v8104 = vpop.permute.xlu0 %8103
    %8105 = vrot.lane.b32.xlu0 %v7994, 108
    %v8106 = vpop.permute.xlu0 %8105
    %8107 = vrot.lane.b32.xlu0 %v7995, 108
    %v8108 = vpop.permute.xlu0 %8107
    %8109 = vrot.lane.b32.xlu0 %v7996, 108
    %v8110 = vpop.permute.xlu0 %8109
    %8111 = vrot.lane.b32.xlu0 %v7997, 108
    %v8112 = vpop.permute.xlu0 %8111
    %8113 = vrot.lane.b32.xlu0 %v7998, 108
    %v8114 = vpop.permute.xlu0 %8113
    %8115 = vrot.lane.b32.xlu0 %v7999, 108
    %v8116 = vpop.permute.xlu0 %8115
    %8117 = vrot.lane.b32.xlu0 %v8000, 108
    %v8118 = vpop.permute.xlu0 %8117
    %8119 = vrot.lane.b32.xlu0 %v8001, 108
    %v8120 = vpop.permute.xlu0 %8119
    %8121 = vrot.lane.b32.xlu0 %v8002, 108
    %v8122 = vpop.permute.xlu0 %8121
    %8123 = vrot.lane.b32.xlu0 %v8003, 108
    %v8124 = vpop.permute.xlu0 %8123
    %8125 = vrot.lane.b32.xlu0 %v8004, 108
    %v8126 = vpop.permute.xlu0 %8125
    %8127 = vrot.lane.b32.xlu0 %v8005, 108
    %v8128 = vpop.permute.xlu0 %8127
    %8129 = vrot.lane.b32.xlu0 %v8006, 108
    %v8130 = vpop.permute.xlu0 %8129
    %8131 = vrot.lane.b32.xlu0 %v8007, 108
    %v8132 = vpop.permute.xlu0 %8131
    %8133 = vrot.lane.b32.xlu0 %v8008, 108
    %v8134 = vpop.permute.xlu0 %8133
    %8135 = vrot.lane.b32.xlu0 %v8009, 108
    %v8136 = vpop.permute.xlu0 %8135
    %8137 = vrot.lane.b32.xlu0 %v8010, 108
    %v8138 = vpop.permute.xlu0 %8137
    %8139 = vrot.lane.b32.xlu0 %v8011, 108
    %v8140 = vpop.permute.xlu0 %8139
    %8141 = vrot.lane.b32.xlu0 %v8012, 108
    %v8142 = vpop.permute.xlu0 %8141
    %8143 = vrot.lane.b32.xlu0 %v8013, 108
    %v8144 = vpop.permute.xlu0 %8143
    %8145 = vrot.lane.b32.xlu0 %v8014, 108
    %v8146 = vpop.permute.xlu0 %8145
    %8147 = vrot.lane.b32.xlu0 %v8015, 108
    %v8148 = vpop.permute.xlu0 %8147
    %8149 = vrot.lane.b32.xlu0 %v8016, 108
    %v8150 = vpop.permute.xlu0 %8149
    %8151 = vrot.lane.b32.xlu0 %v8017, 108
    %v8152 = vpop.permute.xlu0 %8151
    %8153 = vrot.lane.b32.xlu0 %v8018, 108
    %v8154 = vpop.permute.xlu0 %8153
    %8155 = vrot.lane.b32.xlu0 %v8019, 108
    %v8156 = vpop.permute.xlu0 %8155
    %8157 = vrot.lane.b32.xlu0 %v8020, 108
    %v8158 = vpop.permute.xlu0 %8157
    %8159 = vrot.lane.b32.xlu0 %v8021, 108
    %v8160 = vpop.permute.xlu0 %8159
    %8161 = vrot.lane.b32.xlu0 %v8022, 108
    %v8162 = vpop.permute.xlu0 %8161
    %8163 = vrot.lane.b32.xlu0 %v8023, 108
    %v8164 = vpop.permute.xlu0 %8163
    %8165 = vrot.lane.b32.xlu0 %v8024, 108
    %v8166 = vpop.permute.xlu0 %8165
    %8167 = vrot.lane.b32.xlu0 %v8025, 108
    %v8168 = vpop.permute.xlu0 %8167
    %8169 = vrot.lane.b32.xlu0 %v8026, 108
    %v8170 = vpop.permute.xlu0 %8169
    %v8171 = vsel %vm4139, %v8076, %v8078
    %v8172 = vsel %vm4139, %v8078, %v8080
    %v8173 = vsel %vm4139, %v8082, %v8084
    %v8174 = vsel %vm4139, %v8084, %v8086
    %v8175 = vsel %vm4139, %v8088, %v8090
    %v8176 = vsel %vm4139, %v8090, %v8092
    %v8177 = vsel %vm4139, %v8094, %v8096
    %v8178 = vsel %vm4139, %v8096, %v8098
    %v8179 = vsel %vm4139, %v8100, %v8102
    %v8180 = vsel %vm4139, %v8102, %v8104
    %v8181 = vsel %vm4139, %v8106, %v8108
    %v8182 = vsel %vm4139, %v8108, %v8110
    %v8183 = vsel %vm4139, %v8112, %v8114
    %v8184 = vsel %vm4139, %v8114, %v8116
    %v8185 = vsel %vm4139, %v8118, %v8120
    %v8186 = vsel %vm4139, %v8120, %v8122
    %v8187 = vsel %vm4139, %v8124, %v8126
    %v8188 = vsel %vm4139, %v8126, %v8128
    %v8189 = vsel %vm4139, %v8130, %v8132
    %v8190 = vsel %vm4139, %v8132, %v8134
    %v8191 = vsel %vm4139, %v8136, %v8138
    %v8192 = vsel %vm4139, %v8138, %v8140
    %v8193 = vsel %vm4139, %v8142, %v8144
    %v8194 = vsel %vm4139, %v8144, %v8146
    %v8195 = vsel %vm4139, %v8148, %v8150
    %v8196 = vsel %vm4139, %v8150, %v8152
    %v8197 = vsel %vm4139, %v8154, %v8156
    %v8198 = vsel %vm4139, %v8156, %v8158
    %v8199 = vsel %vm4139, %v8160, %v8162
    %v8200 = vsel %vm4139, %v8162, %v8164
    %v8201 = vsel %vm4139, %v8166, %v8168
    %v8202 = vsel %vm4139, %v8168, %v8170
    %v8267 = vsel %vm4139, %v8080, %v8076
    %v8268 = vsel %vm4139, %v8086, %v8082
    %v8269 = vsel %vm4139, %v8092, %v8088
    %v8270 = vsel %vm4139, %v8098, %v8094
    %v8271 = vsel %vm4139, %v8104, %v8100
    %v8272 = vsel %vm4139, %v8110, %v8106
    %v8273 = vsel %vm4139, %v8116, %v8112
    %v8274 = vsel %vm4139, %v8122, %v8118
    %v8275 = vsel %vm4139, %v8128, %v8124
    %v8276 = vsel %vm4139, %v8134, %v8130
    %v8277 = vsel %vm4139, %v8140, %v8136
    %v8278 = vsel %vm4139, %v8146, %v8142
    %v8279 = vsel %vm4139, %v8152, %v8148
    %v8280 = vsel %vm4139, %v8158, %v8154
    %v8281 = vsel %vm4139, %v8164, %v8160
    %v8282 = vsel %vm4139, %v8170, %v8166
    %v8283 = vmax.f32 %v7979, %v8171
    %v8284 = vmax.f32 %v7980, %v8172
    %v8285 = vmax.f32 %v7981, %v8267
    %v8286 = vmax.f32 %v7982, %v8173
    %v8287 = vmax.f32 %v7983, %v8174
    %v8288 = vmax.f32 %v7984, %v8268
    %v8289 = vmax.f32 %v7985, %v8175
    %v8290 = vmax.f32 %v7986, %v8176
    %v8291 = vmax.f32 %v7987, %v8269
    %v8292 = vmax.f32 %v7988, %v8177
    %v8293 = vmax.f32 %v7989, %v8178
    %v8294 = vmax.f32 %v7990, %v8270
    %v8295 = vmax.f32 %v7991, %v8179
    %v8296 = vmax.f32 %v7992, %v8180
    %v8297 = vmax.f32 %v7993, %v8271
    %v8298 = vmax.f32 %v7994, %v8181
    %v8299 = vmax.f32 %v7995, %v8182
    %v8300 = vmax.f32 %v7996, %v8272
    %v8301 = vmax.f32 %v7997, %v8183
    %v8302 = vmax.f32 %v7998, %v8184
    %v8303 = vmax.f32 %v7999, %v8273
    %v8304 = vmax.f32 %v8000, %v8185
    %v8305 = vmax.f32 %v8001, %v8186
    %v8306 = vmax.f32 %v8002, %v8274
    %v8307 = vmax.f32 %v8003, %v8187
    %v8308 = vmax.f32 %v8004, %v8188
    %v8309 = vmax.f32 %v8005, %v8275
    %v8310 = vmax.f32 %v8006, %v8189
    %v8311 = vmax.f32 %v8007, %v8190
    %v8312 = vmax.f32 %v8008, %v8276
    %v8313 = vmax.f32 %v8009, %v8191
    %v8314 = vmax.f32 %v8010, %v8192
    %v8315 = vmax.f32 %v8011, %v8277
    %v8316 = vmax.f32 %v8012, %v8193
    %v8317 = vmax.f32 %v8013, %v8194
    %v8318 = vmax.f32 %v8014, %v8278
    %v8319 = vmax.f32 %v8015, %v8195
    %v8320 = vmax.f32 %v8016, %v8196
    %v8321 = vmax.f32 %v8017, %v8279
    %v8322 = vmax.f32 %v8018, %v8197
    %v8323 = vmax.f32 %v8019, %v8198
    %v8324 = vmax.f32 %v8020, %v8280
    %v8325 = vmax.f32 %v8021, %v8199
    %v8326 = vmax.f32 %v8022, %v8200
    %v8327 = vmax.f32 %v8023, %v8281
    %v8328 = vmax.f32 %v8024, %v8201
    %v8329 = vmax.f32 %v8025, %v8202
    %v8330 = vmax.f32 %v8026, %v8282
    %8331 = vrot.lane.b32.xlu0 %v7979, 88
    %v8332 = vpop.permute.xlu0 %8331
    %8333 = vrot.lane.b32.xlu0 %v7980, 88
    %v8334 = vpop.permute.xlu0 %8333
    %8335 = vrot.lane.b32.xlu0 %v7981, 88
    %v8336 = vpop.permute.xlu0 %8335
    %8337 = vrot.lane.b32.xlu0 %v7982, 88
    %v8338 = vpop.permute.xlu0 %8337
    %8339 = vrot.lane.b32.xlu0 %v7983, 88
    %v8340 = vpop.permute.xlu0 %8339
    %8341 = vrot.lane.b32.xlu0 %v7984, 88
    %v8342 = vpop.permute.xlu0 %8341
    %8343 = vrot.lane.b32.xlu0 %v7985, 88
    %v8344 = vpop.permute.xlu0 %8343
    %8345 = vrot.lane.b32.xlu0 %v7986, 88
    %v8346 = vpop.permute.xlu0 %8345
    %8347 = vrot.lane.b32.xlu0 %v7987, 88
    %v8348 = vpop.permute.xlu0 %8347
    %8349 = vrot.lane.b32.xlu0 %v7988, 88
    %v8350 = vpop.permute.xlu0 %8349
    %8351 = vrot.lane.b32.xlu0 %v7989, 88
    %v8352 = vpop.permute.xlu0 %8351
    %8353 = vrot.lane.b32.xlu0 %v7990, 88
    %v8354 = vpop.permute.xlu0 %8353
    %8355 = vrot.lane.b32.xlu0 %v7991, 88
    %v8356 = vpop.permute.xlu0 %8355
    %8357 = vrot.lane.b32.xlu0 %v7992, 88
    %v8358 = vpop.permute.xlu0 %8357
    %8359 = vrot.lane.b32.xlu0 %v7993, 88
    %v8360 = vpop.permute.xlu0 %8359
    %8361 = vrot.lane.b32.xlu0 %v7994, 88
    %v8362 = vpop.permute.xlu0 %8361
    %8363 = vrot.lane.b32.xlu0 %v7995, 88
    %v8364 = vpop.permute.xlu0 %8363
    %8365 = vrot.lane.b32.xlu0 %v7996, 88
    %v8366 = vpop.permute.xlu0 %8365
    %8367 = vrot.lane.b32.xlu0 %v7997, 88
    %v8368 = vpop.permute.xlu0 %8367
    %8369 = vrot.lane.b32.xlu0 %v7998, 88
    %v8370 = vpop.permute.xlu0 %8369
    %8371 = vrot.lane.b32.xlu0 %v7999, 88
    %v8372 = vpop.permute.xlu0 %8371
    %8373 = vrot.lane.b32.xlu0 %v8000, 88
    %v8374 = vpop.permute.xlu0 %8373
    %8375 = vrot.lane.b32.xlu0 %v8001, 88
    %v8376 = vpop.permute.xlu0 %8375
    %8377 = vrot.lane.b32.xlu0 %v8002, 88
    %v8378 = vpop.permute.xlu0 %8377
    %8379 = vrot.lane.b32.xlu0 %v8003, 88
    %v8380 = vpop.permute.xlu0 %8379
    %8381 = vrot.lane.b32.xlu0 %v8004, 88
    %v8382 = vpop.permute.xlu0 %8381
    %8383 = vrot.lane.b32.xlu0 %v8005, 88
    %v8384 = vpop.permute.xlu0 %8383
    %8385 = vrot.lane.b32.xlu0 %v8006, 88
    %v8386 = vpop.permute.xlu0 %8385
    %8387 = vrot.lane.b32.xlu0 %v8007, 88
    %v8388 = vpop.permute.xlu0 %8387
    %8389 = vrot.lane.b32.xlu0 %v8008, 88
    %v8390 = vpop.permute.xlu0 %8389
    %8391 = vrot.lane.b32.xlu0 %v8009, 88
    %v8392 = vpop.permute.xlu0 %8391
    %8393 = vrot.lane.b32.xlu0 %v8010, 88
    %v8394 = vpop.permute.xlu0 %8393
    %8395 = vrot.lane.b32.xlu0 %v8011, 88
    %v8396 = vpop.permute.xlu0 %8395
    %8397 = vrot.lane.b32.xlu0 %v8012, 88
    %v8398 = vpop.permute.xlu0 %8397
    %8399 = vrot.lane.b32.xlu0 %v8013, 88
    %v8400 = vpop.permute.xlu0 %8399
    %8401 = vrot.lane.b32.xlu0 %v8014, 88
    %v8402 = vpop.permute.xlu0 %8401
    %8403 = vrot.lane.b32.xlu0 %v8015, 88
    %v8404 = vpop.permute.xlu0 %8403
    %8405 = vrot.lane.b32.xlu0 %v8016, 88
    %v8406 = vpop.permute.xlu0 %8405
    %8407 = vrot.lane.b32.xlu0 %v8017, 88
    %v8408 = vpop.permute.xlu0 %8407
    %8409 = vrot.lane.b32.xlu0 %v8018, 88
    %v8410 = vpop.permute.xlu0 %8409
    %8411 = vrot.lane.b32.xlu0 %v8019, 88
    %v8412 = vpop.permute.xlu0 %8411
    %8413 = vrot.lane.b32.xlu0 %v8020, 88
    %v8414 = vpop.permute.xlu0 %8413
    %8415 = vrot.lane.b32.xlu0 %v8021, 88
    %v8416 = vpop.permute.xlu0 %8415
    %8417 = vrot.lane.b32.xlu0 %v8022, 88
    %v8418 = vpop.permute.xlu0 %8417
    %8419 = vrot.lane.b32.xlu0 %v8023, 88
    %v8420 = vpop.permute.xlu0 %8419
    %8421 = vrot.lane.b32.xlu0 %v8024, 88
    %v8422 = vpop.permute.xlu0 %8421
    %8423 = vrot.lane.b32.xlu0 %v8025, 88
    %v8424 = vpop.permute.xlu0 %8423
    %8425 = vrot.lane.b32.xlu0 %v8026, 88
    %v8426 = vpop.permute.xlu0 %8425
    %vm8427 = vcmask 719872
    %v8428 = vsel %vm8427, %v8332, %v8334
    %v8429 = vsel %vm8427, %v8334, %v8336
    %v8430 = vsel %vm8427, %v8338, %v8340
    %v8431 = vsel %vm8427, %v8340, %v8342
    %v8432 = vsel %vm8427, %v8344, %v8346
    %v8433 = vsel %vm8427, %v8346, %v8348
    %v8434 = vsel %vm8427, %v8350, %v8352
    %v8435 = vsel %vm8427, %v8352, %v8354
    %v8436 = vsel %vm8427, %v8356, %v8358
    %v8437 = vsel %vm8427, %v8358, %v8360
    %v8438 = vsel %vm8427, %v8362, %v8364
    %v8439 = vsel %vm8427, %v8364, %v8366
    %v8440 = vsel %vm8427, %v8368, %v8370
    %v8441 = vsel %vm8427, %v8370, %v8372
    %v8442 = vsel %vm8427, %v8374, %v8376
    %v8443 = vsel %vm8427, %v8376, %v8378
    %v8444 = vsel %vm8427, %v8380, %v8382
    %v8445 = vsel %vm8427, %v8382, %v8384
    %v8446 = vsel %vm8427, %v8386, %v8388
    %v8447 = vsel %vm8427, %v8388, %v8390
    %v8448 = vsel %vm8427, %v8392, %v8394
    %v8449 = vsel %vm8427, %v8394, %v8396
    %v8450 = vsel %vm8427, %v8398, %v8400
    %v8451 = vsel %vm8427, %v8400, %v8402
    %v8452 = vsel %vm8427, %v8404, %v8406
    %v8453 = vsel %vm8427, %v8406, %v8408
    %v8454 = vsel %vm8427, %v8410, %v8412
    %v8455 = vsel %vm8427, %v8412, %v8414
    %v8456 = vsel %vm8427, %v8416, %v8418
    %v8457 = vsel %vm8427, %v8418, %v8420
    %v8458 = vsel %vm8427, %v8422, %v8424
    %v8459 = vsel %vm8427, %v8424, %v8426
    %v8524 = vsel %vm8427, %v8336, %v8332
    %v8525 = vsel %vm8427, %v8342, %v8338
    %v8526 = vsel %vm8427, %v8348, %v8344
    %v8527 = vsel %vm8427, %v8354, %v8350
    %v8528 = vsel %vm8427, %v8360, %v8356
    %v8529 = vsel %vm8427, %v8366, %v8362
    %v8530 = vsel %vm8427, %v8372, %v8368
    %v8531 = vsel %vm8427, %v8378, %v8374
    %v8532 = vsel %vm8427, %v8384, %v8380
    %v8533 = vsel %vm8427, %v8390, %v8386
    %v8534 = vsel %vm8427, %v8396, %v8392
    %v8535 = vsel %vm8427, %v8402, %v8398
    %v8536 = vsel %vm8427, %v8408, %v8404
    %v8537 = vsel %vm8427, %v8414, %v8410
    %v8538 = vsel %vm8427, %v8420, %v8416
    %v8539 = vsel %vm8427, %v8426, %v8422
    %v8540 = vmax.f32 %v8283, %v8428
    %v8541 = vmax.f32 %v8284, %v8429
    %v8542 = vmax.f32 %v8285, %v8524
    %v8543 = vmax.f32 %v8286, %v8430
    %v8544 = vmax.f32 %v8287, %v8431
    %v8545 = vmax.f32 %v8288, %v8525
    %v8546 = vmax.f32 %v8289, %v8432
    %v8547 = vmax.f32 %v8290, %v8433
    %v8548 = vmax.f32 %v8291, %v8526
    %v8549 = vmax.f32 %v8292, %v8434
    %v8550 = vmax.f32 %v8293, %v8435
    %v8551 = vmax.f32 %v8294, %v8527
    %v8552 = vmax.f32 %v8295, %v8436
    %v8553 = vmax.f32 %v8296, %v8437
    %v8554 = vmax.f32 %v8297, %v8528
    %v8555 = vmax.f32 %v8298, %v8438
    %v8556 = vmax.f32 %v8299, %v8439
    %v8557 = vmax.f32 %v8300, %v8529
    %v8558 = vmax.f32 %v8301, %v8440
    %v8559 = vmax.f32 %v8302, %v8441
    %v8560 = vmax.f32 %v8303, %v8530
    %v8561 = vmax.f32 %v8304, %v8442
    %v8562 = vmax.f32 %v8305, %v8443
    %v8563 = vmax.f32 %v8306, %v8531
    %v8564 = vmax.f32 %v8307, %v8444
    %v8565 = vmax.f32 %v8308, %v8445
    %v8566 = vmax.f32 %v8309, %v8532
    %v8567 = vmax.f32 %v8310, %v8446
    %v8568 = vmax.f32 %v8311, %v8447
    %v8569 = vmax.f32 %v8312, %v8533
    %v8570 = vmax.f32 %v8313, %v8448
    %v8571 = vmax.f32 %v8314, %v8449
    %v8572 = vmax.f32 %v8315, %v8534
    %v8573 = vmax.f32 %v8316, %v8450
    %v8574 = vmax.f32 %v8317, %v8451
    %v8575 = vmax.f32 %v8318, %v8535
    %v8576 = vmax.f32 %v8319, %v8452
    %v8577 = vmax.f32 %v8320, %v8453
    %v8578 = vmax.f32 %v8321, %v8536
    %v8579 = vmax.f32 %v8322, %v8454
    %v8580 = vmax.f32 %v8323, %v8455
    %v8581 = vmax.f32 %v8324, %v8537
    %v8582 = vmax.f32 %v8325, %v8456
    %v8583 = vmax.f32 %v8326, %v8457
    %v8584 = vmax.f32 %v8327, %v8538
    %v8585 = vmax.f32 %v8328, %v8458
    %v8586 = vmax.f32 %v8329, %v8459
    %v8587 = vmax.f32 %v8330, %v8539
    %v8588 = vld [vmem:[#allocation12] sm:$0xff]
    %v8589 = vld [vmem:[#allocation12 + $0x8] sm:$0xff]
    %v8590 = vld [vmem:[#allocation12 + $0x10] sm:$0xff]
    %v8591 = vld [vmem:[#allocation12 + $0x18] sm:$0xff]
    %v8592 = vld [vmem:[#allocation12 + $0x20] sm:$0xff]
    %v8593 = vld [vmem:[#allocation12 + $0x28] sm:$0xff]
    %v8594 = vld [vmem:[#allocation12 + $0x30] sm:$0xff]
    %v8595 = vld [vmem:[#allocation12 + $0x38] sm:$0xff]
    %v8596 = vld [vmem:[#allocation12 + $0x40] sm:$0xff]
    %v8597 = vld [vmem:[#allocation12 + $0x48] sm:$0xff]
    %v8598 = vld [vmem:[#allocation12 + $0x50] sm:$0xff]
    %v8599 = vld [vmem:[#allocation12 + $0x58] sm:$0xff]
    %v8600 = vld [vmem:[#allocation12 + $0x60] sm:$0xff]
    %v8601 = vld [vmem:[#allocation12 + $0x68] sm:$0xff]
    %v8602 = vld [vmem:[#allocation12 + $0x70] sm:$0xff]
    %v8603 = vld [vmem:[#allocation12 + $0x78] sm:$0xff]
    %v8604 = vld [vmem:[#allocation12 + $0x80] sm:$0xff]
    %v8605 = vld [vmem:[#allocation12 + $0x88] sm:$0xff]
    %v8606 = vld [vmem:[#allocation12 + $0x90] sm:$0xff]
    %v8607 = vld [vmem:[#allocation12 + $0x98] sm:$0xff]
    %v8608 = vld [vmem:[#allocation12 + $0xa0] sm:$0xff]
    %v8609 = vld [vmem:[#allocation12 + $0xa8] sm:$0xff]
    %v8610 = vld [vmem:[#allocation12 + $0xb0] sm:$0xff]
    %v8611 = vld [vmem:[#allocation12 + $0xb8] sm:$0xff]
    %v8612 = vld [vmem:[#allocation12 + $0xc0] sm:$0xff]
    %v8613 = vld [vmem:[#allocation12 + $0xc8] sm:$0xff]
    %v8614 = vld [vmem:[#allocation12 + $0xd0] sm:$0xff]
    %v8615 = vld [vmem:[#allocation12 + $0xd8] sm:$0xff]
    %v8616 = vld [vmem:[#allocation12 + $0xe0] sm:$0xff]
    %v8617 = vld [vmem:[#allocation12 + $0xe8] sm:$0xff]
    %v8618 = vld [vmem:[#allocation12 + $0xf0] sm:$0xff]
    %v8619 = vld [vmem:[#allocation12 + $0xf8] sm:$0xff]
    %v8620 = vld [vmem:[#allocation12 + $0x100] sm:$0xff]
    %v8621 = vld [vmem:[#allocation12 + $0x108] sm:$0xff]
    %v8622 = vld [vmem:[#allocation12 + $0x110] sm:$0xff]
    %v8623 = vld [vmem:[#allocation12 + $0x118] sm:$0xff]
    %v8624 = vld [vmem:[#allocation12 + $0x120] sm:$0xff]
    %v8625 = vld [vmem:[#allocation12 + $0x128] sm:$0xff]
    %v8626 = vld [vmem:[#allocation12 + $0x130] sm:$0xff]
    %v8627 = vld [vmem:[#allocation12 + $0x138] sm:$0xff]
    %v8628 = vld [vmem:[#allocation12 + $0x140] sm:$0xff]
    %v8629 = vld [vmem:[#allocation12 + $0x148] sm:$0xff]
    %v8630 = vld [vmem:[#allocation12 + $0x150] sm:$0xff]
    %v8631 = vld [vmem:[#allocation12 + $0x158] sm:$0xff]
    %v8632 = vld [vmem:[#allocation12 + $0x160] sm:$0xff]
    %v8633 = vld [vmem:[#allocation12 + $0x168] sm:$0xff]
    %v8634 = vld [vmem:[#allocation12 + $0x170] sm:$0xff]
    %v8635 = vld [vmem:[#allocation12 + $0x178] sm:$0xff]
    %8636 = vmatprep.subr.mxu0 0.0
    %8637 = vmatpush1.msra.mxu0 %v8588
    %8638 = vmatprep.subr.mxu0 0.0
    %8639 = vmatpush1.msra.mxu0 %v8589
    %8640 = vmatprep.subr.mxu0 0.0
    %8641 = vmatpush1.msra.mxu0 %v8590
    %8642 = vmatprep.subr.mxu0 0.0
    %8643 = vmatpush1.msra.mxu0 %v8591
    %8644 = vmatprep.subr.mxu0 0.0
    %8645 = vmatpush1.msra.mxu0 %v8592
    %8646 = vmatprep.subr.mxu0 0.0
    %8647 = vmatpush1.msra.mxu0 %v8593
    %8648 = vmatprep.subr.mxu0 0.0
    %8649 = vmatpush1.msra.mxu0 %v8594
    %8650 = vmatprep.subr.mxu0 0.0
    %8651 = vmatpush1.msra.mxu0 %v8595
    %8652 = vmatprep.subr.mxu0 0.0
    %8653 = vmatpush1.msra.mxu0 %v8596
    %8654 = vmatprep.subr.mxu0 0.0
    %8655 = vmatpush1.msra.mxu0 %v8597
    %8656 = vmatprep.subr.mxu0 0.0
    %8657 = vmatpush1.msra.mxu0 %v8598
    %8658 = vmatprep.subr.mxu0 0.0
    %8659 = vmatpush1.msra.mxu0 %v8599
    %8660 = vmatprep.subr.mxu0 0.0
    %8661 = vmatpush1.msra.mxu0 %v8600
    %8662 = vmatprep.subr.mxu0 0.0
    %8663 = vmatpush1.msra.mxu0 %v8601
    %8664 = vmatprep.subr.mxu0 0.0
    %8665 = vmatpush1.msra.mxu0 %v8602
    %8666 = vmatprep.subr.mxu0 0.0
    %8667 = vmatpush1.msra.mxu0 %v8603
    %8668 = vmatprep.subr.mxu0 0.0
    %8669 = vmatpush1.msra.mxu0 %v8604
    %8670 = vmatprep.subr.mxu0 0.0
    %8671 = vmatpush1.msra.mxu0 %v8605
    %8672 = vmatprep.subr.mxu0 0.0
    %8673 = vmatpush1.msra.mxu0 %v8606
    %8674 = vmatprep.subr.mxu0 0.0
    %8675 = vmatpush1.msra.mxu0 %v8607
    %8676 = vmatprep.subr.mxu0 0.0
    %8677 = vmatpush1.msra.mxu0 %v8608
    %8678 = vmatprep.subr.mxu0 0.0
    %8679 = vmatpush1.msra.mxu0 %v8609
    %8680 = vmatprep.subr.mxu0 0.0
    %8681 = vmatpush1.msra.mxu0 %v8610
    %8682 = vmatprep.subr.mxu0 0.0
    %8683 = vmatpush1.msra.mxu0 %v8611
    %8684 = vmatprep.subr.mxu0 0.0
    %8685 = vmatpush1.msra.mxu0 %v8612
    %8686 = vmatprep.subr.mxu0 0.0
    %8687 = vmatpush1.msra.mxu0 %v8613
    %8688 = vmatprep.subr.mxu0 0.0
    %8689 = vmatpush1.msra.mxu0 %v8614
    %8690 = vmatprep.subr.mxu0 0.0
    %8691 = vmatpush1.msra.mxu0 %v8615
    %8692 = vmatprep.subr.mxu0 0.0
    %8693 = vmatpush1.msra.mxu0 %v8616
    %8694 = vmatprep.subr.mxu0 0.0
    %8695 = vmatpush1.msra.mxu0 %v8617
    %8696 = vmatprep.subr.mxu0 0.0
    %8697 = vmatpush1.msra.mxu0 %v8618
    %8698 = vmatprep.subr.mxu0 0.0
    %8699 = vmatpush1.msra.mxu0 %v8619
    %8700 = vmatprep.mubr.f32.mxu0 %v8541
    %8701 = vmatmul.mubr.f32.gmra.mrb[0].mxu0 %v8540
    %v8702 = vpop.f32.mrb[0].mxu0
    %v8703 = vadd.f32 0.0, %v8702
    %v8704 = vpop.f32.mrb[0].mxu0
    %8705 = vmatprep.mubr.f32.mxu0 %v8544
    %8706 = vmatmul.mubr.f32.gmra.mrb[0].mxu0 %v8543
    %v8707 = vpop.f32.mrb[0].mxu0
    %v8708 = vadd.f32 0.0, %v8707
    %v8709 = vpop.f32.mrb[0].mxu0
    %8710 = vmatprep.mubr.f32.mxu0 %v8547
    %8711 = vmatmul.mubr.f32.gmra.mrb[0].mxu0 %v8546
    %v8712 = vpop.f32.mrb[0].mxu0
    %v8713 = vadd.f32 0.0, %v8712
    %v8714 = vpop.f32.mrb[0].mxu0
    %8715 = vmatprep.mubr.f32.mxu0 %v8550
    %8716 = vmatmul.mubr.f32.gmra.mrb[0].mxu0 %v8549
    %v8717 = vpop.f32.mrb[0].mxu0
    %v8718 = vadd.f32 0.0, %v8717
    %v8719 = vpop.f32.mrb[0].mxu0
    %8720 = vmatprep.mubr.f32.mxu0 %v8553
    %8721 = vmatmul.mubr.f32.gmra.mrb[0].mxu0 %v8552
    %v8722 = vpop.f32.mrb[0].mxu0
    %v8723 = vadd.f32 0.0, %v8722
    %v8724 = vpop.f32.mrb[0].mxu0
    %8725 = vmatprep.mubr.f32.mxu0 %v8556
    %8726 = vmatmul.mubr.f32.gmra.mrb[0].mxu0 %v8555
    %v8727 = vpop.f32.mrb[0].mxu0
    %v8728 = vadd.f32 0.0, %v8727
    %v8729 = vpop.f32.mrb[0].mxu0
    %8730 = vmatprep.mubr.f32.mxu0 %v8559
    %8731 = vmatmul.mubr.f32.gmra.mrb[0].mxu0 %v8558
    %v8732 = vpop.f32.mrb[0].mxu0
    %v8733 = vpop.f32.mrb[0].mxu0
    %8734 = vmatprep.mubr.f32.mxu0 %v8562
    %8735 = vmatmul.mubr.f32.gmra.mrb[0].mxu0 %v8561
    %v8736 = vpop.f32.mrb[0].mxu0
    %v8737 = vpop.f32.mrb[0].mxu0
    %8738 = vmatprep.mubr.f32.mxu0 %v8565
    %8739 = vmatmul.mubr.f32.gmra.mrb[0].mxu0 %v8564
    %v8740 = vpop.f32.mrb[0].mxu0
    %v8741 = vadd.f32 0.0, %v8740
    %v8742 = vpop.f32.mrb[0].mxu0
    %8743 = vmatprep.mubr.f32.mxu0 %v8568
    %8744 = vmatmul.mubr.f32.gmra.mrb[0].mxu0 %v8567
    %v8745 = vpop.f32.mrb[0].mxu0
    %v8746 = vadd.f32 0.0, %v8745
    %v8747 = vpop.f32.mrb[0].mxu0
    %8748 = vmatprep.mubr.f32.mxu0 %v8571
    %8749 = vmatmul.mubr.f32.gmra.mrb[0].mxu0 %v8570
    %v8750 = vpop.f32.mrb[0].mxu0
    %v8751 = vadd.f32 0.0, %v8750
    %v8752 = vpop.f32.mrb[0].mxu0
    %8753 = vmatprep.mubr.f32.mxu0 %v8574
    %8754 = vmatmul.mubr.f32.gmra.mrb[0].mxu0 %v8573
    %v8755 = vpop.f32.mrb[0].mxu0
    %v8756 = vadd.f32 0.0, %v8755
    %v8757 = vpop.f32.mrb[0].mxu0
    %8758 = vmatprep.mubr.f32.mxu0 %v8577
    %8759 = vmatmul.mubr.f32.gmra.mrb[0].mxu0 %v8576
    %v8760 = vpop.f32.mrb[0].mxu0
    %v8761 = vadd.f32 0.0, %v8760
    %v8762 = vpop.f32.mrb[0].mxu0
    %8763 = vmatprep.mubr.f32.mxu0 %v8580
    %8764 = vmatmul.mubr.f32.gmra.mrb[0].mxu0 %v8579
    %v8765 = vpop.f32.mrb[0].mxu0
    %v8766 = vadd.f32 0.0, %v8765
    %v8767 = vpop.f32.mrb[0].mxu0
    %8768 = vmatprep.mubr.f32.mxu0 %v8583
    %8769 = vmatmul.mubr.f32.gmra.mrb[0].mxu0 %v8582
    %v8770 = vpop.f32.mrb[0].mxu0
    %v8771 = vpop.f32.mrb[0].mxu0
    %8772 = vmatprep.mubr.f32.mxu0 %v8586
    %8773 = vmatmul.mubr.f32.gmra.mrb[0].mxu0 %v8585
    %v8774 = vpop.f32.mrb[0].mxu0
    %v8775 = vpop.f32.mrb[0].mxu0
    %8776 = vdwg.mxu0
    %8777 = vmatprep.subr.mxu0 0.0
    %8778 = vmatpush1.msra.mxu0 %v8620
    %8779 = vmatprep.subr.mxu0 0.0
    %8780 = vmatpush1.msra.mxu0 %v8621
    %8781 = vmatprep.subr.mxu0 0.0
    %8782 = vmatpush1.msra.mxu0 %v8622
    %8783 = vmatprep.subr.mxu0 0.0
    %8784 = vmatpush1.msra.mxu0 %v8623
    %8785 = vmatprep.subr.mxu0 0.0
    %8786 = vmatpush1.msra.mxu0 %v8624
    %8787 = vmatprep.subr.mxu0 0.0
    %8788 = vmatpush1.msra.mxu0 %v8625
    %8789 = vmatprep.subr.mxu0 0.0
    %8790 = vmatpush1.msra.mxu0 %v8626
    %8791 = vmatprep.subr.mxu0 0.0
    %8792 = vmatpush1.msra.mxu0 %v8627
    %8793 = vmatprep.subr.mxu0 0.0
    %8794 = vmatpush1.msra.mxu0 %v8628
    %8795 = vmatprep.subr.mxu0 0.0
    %8796 = vmatpush1.msra.mxu0 %v8629
    %8797 = vmatprep.subr.mxu0 0.0
    %8798 = vmatpush1.msra.mxu0 %v8630
    %8799 = vmatprep.subr.mxu0 0.0
    %8800 = vmatpush1.msra.mxu0 %v8631
    %8801 = vmatprep.subr.mxu0 0.0
    %8802 = vmatpush1.msra.mxu0 %v8632
    %8803 = vmatprep.subr.mxu0 0.0
    %8804 = vmatpush1.msra.mxu0 %v8633
    %8805 = vmatprep.subr.mxu0 0.0
    %8806 = vmatpush1.msra.mxu0 %v8634
    %8807 = vmatprep.subr.mxu0 0.0
    %8808 = vmatpush1.msra.mxu0 %v8635
    %8809 = vmatprep.subr.mxu0 0.0
    %8810 = vmatpush1.msra.mxu0 0.0
    %8811 = vmatprep.subr.mxu0 0.0
    %8812 = vmatpush1.msra.mxu0 0.0
    %8813 = vmatprep.subr.mxu0 0.0
    %8814 = vmatpush1.msra.mxu0 0.0
    %8815 = vmatprep.subr.mxu0 0.0
    %8816 = vmatpush1.msra.mxu0 0.0
    %8817 = vmatprep.subr.mxu0 0.0
    %8818 = vmatpush1.msra.mxu0 0.0
    %8819 = vmatprep.subr.mxu0 0.0
    %8820 = vmatpush1.msra.mxu0 0.0
    %8821 = vmatprep.subr.mxu0 0.0
    %8822 = vmatpush1.msra.mxu0 0.0
    %8823 = vmatprep.subr.mxu0 0.0
    %8824 = vmatpush1.msra.mxu0 0.0
    %8825 = vmatprep.subr.mxu0 0.0
    %8826 = vmatpush1.msra.mxu0 0.0
    %8827 = vmatprep.subr.mxu0 0.0
    %8828 = vmatpush1.msra.mxu0 0.0
    %8829 = vmatprep.subr.mxu0 0.0
    %8830 = vmatpush1.msra.mxu0 0.0
    %8831 = vmatprep.subr.mxu0 0.0
    %8832 = vmatpush1.msra.mxu0 0.0
    %8833 = vmatprep.subr.mxu0 0.0
    %8834 = vmatpush1.msra.mxu0 0.0
    %8835 = vmatprep.subr.mxu0 0.0
    %8836 = vmatpush1.msra.mxu0 0.0
    %8837 = vmatprep.subr.mxu0 0.0
    %8838 = vmatpush1.msra.mxu0 0.0
    %8839 = vmatprep.subr.mxu0 0.0
    %8840 = vmatpush1.msra.mxu0 0.0
    %8841 = vmatprep.mubr.f32.mxu0 0.0
    %8842 = vmatmul.mubr.f32.gmra.mrb[0].mxu0 %v8542
    %v8843 = vpop.f32.mrb[0].mxu0
    %v8844 = vadd.f32 %v8703, %v8843
    %v8845 = vpop.f32.mrb[0].mxu0
    %8846 = vmatprep.mubr.f32.mxu0 0.0
    %8847 = vmatmul.mubr.f32.gmra.mrb[0].mxu0 %v8545
    %v8848 = vpop.f32.mrb[0].mxu0
    %v8849 = vadd.f32 %v8708, %v8848
    %v8850 = vpop.f32.mrb[0].mxu0
    %8851 = vmatprep.mubr.f32.mxu0 0.0
    %8852 = vmatmul.mubr.f32.gmra.mrb[0].mxu0 %v8548
    %v8853 = vpop.f32.mrb[0].mxu0
    %v8854 = vadd.f32 %v8713, %v8853
    %v8855 = vpop.f32.mrb[0].mxu0
    %8856 = vmatprep.mubr.f32.mxu0 0.0
    %8857 = vmatmul.mubr.f32.gmra.mrb[0].mxu0 %v8551
    %v8858 = vpop.f32.mrb[0].mxu0
    %v8859 = vadd.f32 %v8718, %v8858
    %v8860 = vpop.f32.mrb[0].mxu0
    %8861 = vmatprep.mubr.f32.mxu0 0.0
    %8862 = vmatmul.mubr.f32.gmra.mrb[0].mxu0 %v8554
    %v8863 = vpop.f32.mrb[0].mxu0
    %v8864 = vadd.f32 %v8723, %v8863
    %v8865 = vpop.f32.mrb[0].mxu0
    %8866 = vmatprep.mubr.f32.mxu0 0.0
    %8867 = vmatmul.mubr.f32.gmra.mrb[0].mxu0 %v8557
    %v8868 = vpop.f32.mrb[0].mxu0
    %v8869 = vadd.f32 %v8728, %v8868
    %v8870 = vpop.f32.mrb[0].mxu0
    %8871 = vmatprep.mubr.f32.mxu0 0.0
    %8872 = vmatmul.mubr.f32.gmra.mrb[0].mxu0 %v8560
    %v8873 = vpop.f32.mrb[0].mxu0
    %v8874 = vpop.f32.mrb[0].mxu0
    %8875 = vmatprep.mubr.f32.mxu0 0.0
    %8876 = vmatmul.mubr.f32.gmra.mrb[0].mxu0 %v8563
    %v8877 = vpop.f32.mrb[0].mxu0
    %v8878 = vpop.f32.mrb[0].mxu0
    %8879 = vmatprep.mubr.f32.mxu0 0.0
    %8880 = vmatmul.mubr.f32.gmra.mrb[0].mxu0 %v8566
    %v8881 = vpop.f32.mrb[0].mxu0
    %v8882 = vadd.f32 %v8741, %v8881
    %v8883 = vpop.f32.mrb[0].mxu0
    %8884 = vmatprep.mubr.f32.mxu0 0.0
    %8885 = vmatmul.mubr.f32.gmra.mrb[0].mxu0 %v8569
    %v8886 = vpop.f32.mrb[0].mxu0
    %v8887 = vadd.f32 %v8746, %v8886
    %v8888 = vpop.f32.mrb[0].mxu0
    %8889 = vmatprep.mubr.f32.mxu0 0.0
    %8890 = vmatmul.mubr.f32.gmra.mrb[0].mxu0 %v8572
    %v8891 = vpop.f32.mrb[0].mxu0
    %v8892 = vadd.f32 %v8751, %v8891
    %v8893 = vpop.f32.mrb[0].mxu0
    %8894 = vmatprep.mubr.f32.mxu0 0.0
    %8895 = vmatmul.mubr.f32.gmra.mrb[0].mxu0 %v8575
    %v8896 = vpop.f32.mrb[0].mxu0
    %v8897 = vadd.f32 %v8756, %v8896
    %v8898 = vpop.f32.mrb[0].mxu0
    %8899 = vmatprep.mubr.f32.mxu0 0.0
    %8900 = vmatmul.mubr.f32.gmra.mrb[0].mxu0 %v8578
    %v8901 = vpop.f32.mrb[0].mxu0
    %v8902 = vadd.f32 %v8761, %v8901
    %v8903 = vpop.f32.mrb[0].mxu0
    %8904 = vmatprep.mubr.f32.mxu0 0.0
    %8905 = vmatmul.mubr.f32.gmra.mrb[0].mxu0 %v8581
    %v8906 = vpop.f32.mrb[0].mxu0
    %v8907 = vadd.f32 %v8766, %v8906
    %v8908 = vpop.f32.mrb[0].mxu0
    %8909 = vmatprep.mubr.f32.mxu0 0.0
    %8910 = vmatmul.mubr.f32.gmra.mrb[0].mxu0 %v8584
    %v8911 = vpop.f32.mrb[0].mxu0
    %v8912 = vpop.f32.mrb[0].mxu0
    %8913 = vmatprep.mubr.f32.mxu0 0.0
    %8914 = vmatmul.mubr.f32.gmra.mrb[0].mxu0 %v8587
    %v8915 = vpop.f32.mrb[0].mxu0
    %v8916 = vpop.f32.mrb[0].mxu0
    %8917 = vdwg.mxu0
    %v8930 = vrot.slane %v8844, 3
    %v8931 = vrot.slane %v8849, 3
    %v8932 = vsel %vm1983, %v8930, %v8931
    %v8933 = vrot.slane %v8854, 3
    %v8934 = vsel %vm1983, %v8931, %v8933
    %v8935 = vrot.slane %v8859, 3
    %v8936 = vsel %vm1983, %v8933, %v8935
    %v8937 = vrot.slane %v8864, 3
    %v8938 = vsel %vm1983, %v8935, %v8937
    %v8939 = vrot.slane %v8869, 3
    %v8940 = vsel %vm1983, %v8937, %v8939
    %v8941 = vrot.slane %v8882, 3
    %v8942 = vrot.slane %v8887, 3
    %v8943 = vsel %vm1983, %v8941, %v8942
    %v8944 = vrot.slane %v8892, 3
    %v8945 = vsel %vm1983, %v8942, %v8944
    %v8946 = vrot.slane %v8897, 3
    %v8947 = vsel %vm1983, %v8944, %v8946
    %v8948 = vrot.slane %v8902, 3
    %v8949 = vsel %vm1983, %v8946, %v8948
    %v8950 = vrot.slane %v8907, 3
    %v8951 = vsel %vm1983, %v8948, %v8950
    %v8962 = vmax.f32 %v8844, %v8932
    %v8963 = vmax.f32 %v8849, %v8934
    %v8964 = vmax.f32 %v8854, %v8936
    %v8965 = vmax.f32 %v8859, %v8938
    %v8966 = vmax.f32 %v8864, %v8940
    %v8967 = vmax.f32 %v8882, %v8943
    %v8968 = vmax.f32 %v8887, %v8945
    %v8969 = vmax.f32 %v8892, %v8947
    %v8970 = vmax.f32 %v8897, %v8949
    %v8971 = vmax.f32 %v8902, %v8951
    %v8972 = vrot.slane %v8844, 6
    %v8973 = vrot.slane %v8849, 6
    %v8974 = vsel %vm6266, %v8972, %v8973
    %v8975 = vrot.slane %v8854, 6
    %v8976 = vsel %vm6266, %v8973, %v8975
    %v8977 = vrot.slane %v8859, 6
    %v8978 = vsel %vm6266, %v8975, %v8977
    %v8979 = vrot.slane %v8864, 6
    %v8980 = vsel %vm6266, %v8977, %v8979
    %v8981 = vrot.slane %v8869, 6
    %v8982 = vsel %vm6266, %v8979, %v8981
    %v8983 = vrot.slane %v8882, 6
    %v8984 = vrot.slane %v8887, 6
    %v8985 = vsel %vm6266, %v8983, %v8984
    %v8986 = vrot.slane %v8892, 6
    %v8987 = vsel %vm6266, %v8984, %v8986
    %v8988 = vrot.slane %v8897, 6
    %v8989 = vsel %vm6266, %v8986, %v8988
    %v8990 = vrot.slane %v8902, 6
    %v8991 = vsel %vm6266, %v8988, %v8990
    %v8992 = vrot.slane %v8907, 6
    %v8993 = vsel %vm6266, %v8990, %v8992
    %v9004 = vmax.f32 %v8962, %v8974
    %v9005 = vmax.f32 %v8963, %v8976
    %v9006 = vmax.f32 %v8964, %v8978
    %v9007 = vmax.f32 %v8965, %v8980
    %v9008 = vmax.f32 %v8966, %v8982
    %v9009 = vmax.f32 %v8967, %v8985
    %v9010 = vmax.f32 %v8968, %v8987
    %v9011 = vmax.f32 %v8969, %v8989
    %v9012 = vmax.f32 %v8970, %v8991
    %v9013 = vmax.f32 %v8971, %v8993
    %v9014 = vld [vmem:[#allocation13] sm:$0xff]
    %v9015 = vld [vmem:[#allocation13 + $0x8] sm:$0xff]
    %v9016 = vld [vmem:[#allocation13 + $0x10] sm:$0xff]
    %v9017 = vld [vmem:[#allocation13 + $0x18] sm:$0xff]
    %v9018 = vld [vmem:[#allocation13 + $0x20] sm:$0xff]
    %v9019 = vld [vmem:[#allocation13 + $0x28] sm:$0xff]
    %v9020 = vld [vmem:[#allocation13 + $0x30] sm:$0xff]
    %v9021 = vld [vmem:[#allocation13 + $0x38] sm:$0xff]
    %v9022 = vld [vmem:[#allocation13 + $0x40] sm:$0xff]
    %v9023 = vld [vmem:[#allocation13 + $0x48] sm:$0xff]
    %v9024 = vld [vmem:[#allocation13 + $0x50] sm:$0xff]
    %v9025 = vld [vmem:[#allocation13 + $0x58] sm:$0xff]
    %v9026 = vld [vmem:[#allocation13 + $0x60] sm:$0xff]
    %v9027 = vld [vmem:[#allocation13 + $0x68] sm:$0xff]
    %v9028 = vld [vmem:[#allocation13 + $0x70] sm:$0xff]
    %v9029 = vld [vmem:[#allocation13 + $0x78] sm:$0xff]
    %v9039 = vrot.slane %v9005, 1
    %v9040 = vrot.slane %v9006, 1
    %v9041 = vsel %vm251, %v9039, %v9040
    %v9042 = vrot.slane %v9007, 1
    %v9043 = vsel %vm251, %v9040, %v9042
    %v9044 = vrot.slane %v9008, 1
    %v9045 = vsel %vm251, %v9042, %v9044
    %v9046 = vrot.slane %v9009, 1
    %v9047 = vsel %vm251, %v9044, %v9046
    %v9048 = vrot.slane %v9010, 1
    %v9049 = vsel %vm251, %v9046, %v9048
    %v9050 = vrot.slane %v9011, 1
    %v9051 = vsel %vm251, %v9048, %v9050
    %v9052 = vrot.slane %v9012, 1
    %v9053 = vsel %vm251, %v9050, %v9052
    %v9054 = vrot.slane %v9013, 1
    %v9055 = vsel %vm251, %v9052, %v9054
    %v9066 = vrot.slane %v9004, 1
    %v9067 = vsel %vm251, %v9066, %v9039
    %v9070 = vsel %vm251, %v9054, %v9066
    %s9071 = scalar_lea.vmem [#allocation13], 128
    %v9072 = vld [vmem:[%s9071] sm:$0xff]
    %v9073 = vld [vmem:[%s9071 + $0x8] sm:$0xff]
    %v9074 = vld [vmem:[%s9071 + $0x10] sm:$0xff]
    %v9075 = vld [vmem:[%s9071 + $0x18] sm:$0xff]
    %v9076 = vld [vmem:[%s9071 + $0x20] sm:$0xff]
    %v9077 = vld [vmem:[%s9071 + $0x28] sm:$0xff]
    %v9078 = vld [vmem:[%s9071 + $0x30] sm:$0xff]
    %v9079 = vld [vmem:[%s9071 + $0x38] sm:$0xff]
    %v9080 = vld [vmem:[%s9071 + $0x40] sm:$0xff]
    %v9081 = vld [vmem:[%s9071 + $0x48] sm:$0xff]
    %v9082 = vld [vmem:[%s9071 + $0x50] sm:$0xff]
    %v9083 = vld [vmem:[%s9071 + $0x58] sm:$0xff]
    %v9084 = vld [vmem:[%s9071 + $0x60] sm:$0xff]
    %v9085 = vld [vmem:[%s9071 + $0x68] sm:$0xff]
    %v9086 = vld [vmem:[%s9071 + $0x70] sm:$0xff]
    %v9087 = vld [vmem:[%s9071 + $0x78] sm:$0xff]
    %9088 = vmatprep.subr.mxu0 0.0
    %9089 = vmatpush1.msra.mxu0 %v9072
    %9090 = vmatprep.subr.mxu0 0.0
    %9091 = vmatpush1.msra.mxu0 %v9073
    %9092 = vmatprep.subr.mxu0 0.0
    %9093 = vmatpush1.msra.mxu0 %v9074
    %9094 = vmatprep.subr.mxu0 0.0
    %9095 = vmatpush1.msra.mxu0 %v9075
    %9096 = vmatprep.subr.mxu0 0.0
    %9097 = vmatpush1.msra.mxu0 %v9076
    %9098 = vmatprep.subr.mxu0 0.0
    %9099 = vmatpush1.msra.mxu0 %v9077
    %9100 = vmatprep.subr.mxu0 0.0
    %9101 = vmatpush1.msra.mxu0 %v9078
    %9102 = vmatprep.subr.mxu0 0.0
    %9103 = vmatpush1.msra.mxu0 %v9079
    %9104 = vmatprep.subr.mxu0 0.0
    %9105 = vmatpush1.msra.mxu0 %v9080
    %9106 = vmatprep.subr.mxu0 0.0
    %9107 = vmatpush1.msra.mxu0 %v9081
    %9108 = vmatprep.subr.mxu0 0.0
    %9109 = vmatpush1.msra.mxu0 %v9082
    %9110 = vmatprep.subr.mxu0 0.0
    %9111 = vmatpush1.msra.mxu0 %v9083
    %9112 = vmatprep.subr.mxu0 0.0
    %9113 = vmatpush1.msra.mxu0 %v9084
    %9114 = vmatprep.subr.mxu0 0.0
    %9115 = vmatpush1.msra.mxu0 %v9085
    %9116 = vmatprep.subr.mxu0 0.0
    %9117 = vmatpush1.msra.mxu0 %v9086
    %9118 = vmatprep.subr.mxu0 0.0
    %9119 = vmatpush1.msra.mxu0 %v9087
    %9120 = vmatprep.subr.mxu0 0.0
    %9121 = vmatpush1.msra.mxu0 0.0
    %9122 = vmatprep.subr.mxu0 0.0
    %9123 = vmatpush1.msra.mxu0 0.0
    %9124 = vmatprep.subr.mxu0 0.0
    %9125 = vmatpush1.msra.mxu0 0.0
    %9126 = vmatprep.subr.mxu0 0.0
    %9127 = vmatpush1.msra.mxu0 0.0
    %9128 = vmatprep.subr.mxu0 0.0
    %9129 = vmatpush1.msra.mxu0 0.0
    %9130 = vmatprep.subr.mxu0 0.0
    %9131 = vmatpush1.msra.mxu0 0.0
    %9132 = vmatprep.subr.mxu0 0.0
    %9133 = vmatpush1.msra.mxu0 0.0
    %9134 = vmatprep.subr.mxu0 0.0
    %9135 = vmatpush1.msra.mxu0 0.0
    %9136 = vmatprep.subr.mxu0 0.0
    %9137 = vmatpush1.msra.mxu0 0.0
    %9138 = vmatprep.subr.mxu0 0.0
    %9139 = vmatpush1.msra.mxu0 0.0
    %9140 = vmatprep.subr.mxu0 0.0
    %9141 = vmatpush1.msra.mxu0 0.0
    %9142 = vmatprep.subr.mxu0 0.0
    %9143 = vmatpush1.msra.mxu0 0.0
    %9144 = vmatprep.subr.mxu0 0.0
    %9145 = vmatpush1.msra.mxu0 0.0
    %9146 = vmatprep.subr.mxu0 0.0
    %9147 = vmatpush1.msra.mxu0 0.0
    %9148 = vmatprep.subr.mxu0 0.0
    %9149 = vmatpush1.msra.mxu0 0.0
    %9150 = vmatprep.subr.mxu0 0.0
    %9151 = vmatpush1.msra.mxu0 0.0
    %9152 = vmatprep.mubr.f32.mxu0 0.0
    %9153 = vmatmul.mubr.f32.gmra.mrb[0].mxu0 %v9041
    %v9154 = vpop.f32.mrb[0].mxu0
    %v9155 = vadd.f32 0.0, %v9154
    %v9156 = vpop.f32.mrb[0].mxu0
    %9157 = vmatprep.mubr.f32.mxu0 0.0
    %9158 = vmatmul.mubr.f32.gmra.mrb[0].mxu0 %v9043
    %v9159 = vpop.f32.mrb[0].mxu0
    %v9160 = vadd.f32 0.0, %v9159
    %v9161 = vpop.f32.mrb[0].mxu0
    %9162 = vmatprep.mubr.f32.mxu0 0.0
    %9163 = vmatmul.mubr.f32.gmra.mrb[0].mxu0 %v9045
    %v9164 = vpop.f32.mrb[0].mxu0
    %v9165 = vadd.f32 0.0, %v9164
    %v9166 = vpop.f32.mrb[0].mxu0
    %9167 = vmatprep.mubr.f32.mxu0 0.0
    %9168 = vmatmul.mubr.f32.gmra.mrb[0].mxu0 %v9047
    %v9169 = vpop.f32.mrb[0].mxu0
    %v9170 = vadd.f32 0.0, %v9169
    %v9171 = vpop.f32.mrb[0].mxu0
    %9172 = vmatprep.mubr.f32.mxu0 0.0
    %9173 = vmatmul.mubr.f32.gmra.mrb[0].mxu0 %v9049
    %v9174 = vpop.f32.mrb[0].mxu0
    %v9175 = vadd.f32 0.0, %v9174
    %v9176 = vpop.f32.mrb[0].mxu0
    %9177 = vmatprep.mubr.f32.mxu0 0.0
    %9178 = vmatmul.mubr.f32.gmra.mrb[0].mxu0 %v9051
    %v9179 = vpop.f32.mrb[0].mxu0
    %v9180 = vadd.f32 0.0, %v9179
    %v9181 = vpop.f32.mrb[0].mxu0
    %9182 = vmatprep.mubr.f32.mxu0 0.0
    %9183 = vmatmul.mubr.f32.gmra.mrb[0].mxu0 %v9053
    %v9184 = vpop.f32.mrb[0].mxu0
    %v9185 = vadd.f32 0.0, %v9184
    %v9186 = vpop.f32.mrb[0].mxu0
    %9187 = vmatprep.mubr.f32.mxu0 0.0
    %9188 = vmatmul.mubr.f32.gmra.mrb[0].mxu0 %v9055
    %v9189 = vpop.f32.mrb[0].mxu0
    %v9190 = vadd.f32 0.0, %v9189
    %v9191 = vpop.f32.mrb[0].mxu0
    %9192 = vmatprep.mubr.f32.mxu0 0.0
    %9193 = vmatmul.mubr.f32.gmra.mrb[0].mxu0 %v9070
    %v9194 = vpop.f32.mrb[0].mxu0
    %v9195 = vadd.f32 0.0, %v9194
    %v9196 = vpop.f32.mrb[0].mxu0
    %9197 = vmatprep.mubr.f32.mxu0 0.0
    %9198 = vmatmul.mubr.f32.gmra.mrb[0].mxu0 %v9067
    %v9199 = vpop.f32.mrb[0].mxu0
    %v9200 = vadd.f32 0.0, %v9199
    %v9201 = vpop.f32.mrb[0].mxu0
    %9202 = vdwg.mxu0
    %9203 = vmatprep.subr.mxu0 0.0
    %9204 = vmatpush1.msra.mxu0 %v9014
    %9205 = vmatprep.subr.mxu0 0.0
    %9206 = vmatpush1.msra.mxu0 %v9015
    %9207 = vmatprep.subr.mxu0 0.0
    %9208 = vmatpush1.msra.mxu0 %v9016
    %9209 = vmatprep.subr.mxu0 0.0
    %9210 = vmatpush1.msra.mxu0 %v9017
    %9211 = vmatprep.subr.mxu0 0.0
    %9212 = vmatpush1.msra.mxu0 %v9018
    %9213 = vmatprep.subr.mxu0 0.0
    %9214 = vmatpush1.msra.mxu0 %v9019
    %9215 = vmatprep.subr.mxu0 0.0
    %9216 = vmatpush1.msra.mxu0 %v9020
    %9217 = vmatprep.subr.mxu0 0.0
    %9218 = vmatpush1.msra.mxu0 %v9021
    %9219 = vmatprep.subr.mxu0 0.0
    %9220 = vmatpush1.msra.mxu0 %v9022
    %9221 = vmatprep.subr.mxu0 0.0
    %9222 = vmatpush1.msra.mxu0 %v9023
    %9223 = vmatprep.subr.mxu0 0.0
    %9224 = vmatpush1.msra.mxu0 %v9024
    %9225 = vmatprep.subr.mxu0 0.0
    %9226 = vmatpush1.msra.mxu0 %v9025
    %9227 = vmatprep.subr.mxu0 0.0
    %9228 = vmatpush1.msra.mxu0 %v9026
    %9229 = vmatprep.subr.mxu0 0.0
    %9230 = vmatpush1.msra.mxu0 %v9027
    %9231 = vmatprep.subr.mxu0 0.0
    %9232 = vmatpush1.msra.mxu0 %v9028
    %9233 = vmatprep.subr.mxu0 0.0
    %9234 = vmatpush1.msra.mxu0 %v9029
    %9235 = vmatprep.subr.mxu0 0.0
    %9236 = vmatpush1.msra.mxu0 0.0
    %9237 = vmatprep.subr.mxu0 0.0
    %9238 = vmatpush1.msra.mxu0 0.0
    %9239 = vmatprep.subr.mxu0 0.0
    %9240 = vmatpush1.msra.mxu0 0.0
    %9241 = vmatprep.subr.mxu0 0.0
    %9242 = vmatpush1.msra.mxu0 0.0
    %9243 = vmatprep.subr.mxu0 0.0
    %9244 = vmatpush1.msra.mxu0 0.0
    %9245 = vmatprep.subr.mxu0 0.0
    %9246 = vmatpush1.msra.mxu0 0.0
    %9247 = vmatprep.subr.mxu0 0.0
    %9248 = vmatpush1.msra.mxu0 0.0
    %9249 = vmatprep.subr.mxu0 0.0
    %9250 = vmatpush1.msra.mxu0 0.0
    %9251 = vmatprep.subr.mxu0 0.0
    %9252 = vmatpush1.msra.mxu0 0.0
    %9253 = vmatprep.subr.mxu0 0.0
    %9254 = vmatpush1.msra.mxu0 0.0
    %9255 = vmatprep.subr.mxu0 0.0
    %9256 = vmatpush1.msra.mxu0 0.0
    %9257 = vmatprep.subr.mxu0 0.0
    %9258 = vmatpush1.msra.mxu0 0.0
    %9259 = vmatprep.subr.mxu0 0.0
    %9260 = vmatpush1.msra.mxu0 0.0
    %9261 = vmatprep.subr.mxu0 0.0
    %9262 = vmatpush1.msra.mxu0 0.0
    %9263 = vmatprep.subr.mxu0 0.0
    %9264 = vmatpush1.msra.mxu0 0.0
    %9265 = vmatprep.subr.mxu0 0.0
    %9266 = vmatpush1.msra.mxu0 0.0
    %9267 = vmatprep.mubr.f32.mxu0 0.0
    %9268 = vmatmul.mubr.f32.gmra.mrb[0].mxu0 %v9004
    %v9269 = vpop.f32.mrb[0].mxu0
    %v9270 = vadd.f32 %v9155, %v9269
    %v9271 = vpop.f32.mrb[0].mxu0
    %9272 = vmatprep.mubr.f32.mxu0 0.0
    %9273 = vmatmul.mubr.f32.gmra.mrb[0].mxu0 %v9005
    %v9274 = vpop.f32.mrb[0].mxu0
    %v9275 = vadd.f32 %v9160, %v9274
    %v9276 = vpop.f32.mrb[0].mxu0
    %9277 = vmatprep.mubr.f32.mxu0 0.0
    %9278 = vmatmul.mubr.f32.gmra.mrb[0].mxu0 %v9006
    %v9279 = vpop.f32.mrb[0].mxu0
    %v9280 = vadd.f32 %v9165, %v9279
    %v9281 = vpop.f32.mrb[0].mxu0
    %9282 = vmatprep.mubr.f32.mxu0 0.0
    %9283 = vmatmul.mubr.f32.gmra.mrb[0].mxu0 %v9007
    %v9284 = vpop.f32.mrb[0].mxu0
    %v9285 = vadd.f32 %v9170, %v9284
    %v9286 = vpop.f32.mrb[0].mxu0
    %9287 = vmatprep.mubr.f32.mxu0 0.0
    %9288 = vmatmul.mubr.f32.gmra.mrb[0].mxu0 %v9008
    %v9289 = vpop.f32.mrb[0].mxu0
    %v9290 = vadd.f32 %v9175, %v9289
    %v9291 = vpop.f32.mrb[0].mxu0
    %9292 = vmatprep.mubr.f32.mxu0 0.0
    %9293 = vmatmul.mubr.f32.gmra.mrb[0].mxu0 %v9009
    %v9294 = vpop.f32.mrb[0].mxu0
    %v9295 = vadd.f32 %v9180, %v9294
    %v9296 = vpop.f32.mrb[0].mxu0
    %9297 = vmatprep.mubr.f32.mxu0 0.0
    %9298 = vmatmul.mubr.f32.gmra.mrb[0].mxu0 %v9010
    %v9299 = vpop.f32.mrb[0].mxu0
    %v9300 = vadd.f32 %v9185, %v9299
    %v9301 = vpop.f32.mrb[0].mxu0
    %9302 = vmatprep.mubr.f32.mxu0 0.0
    %9303 = vmatmul.mubr.f32.gmra.mrb[0].mxu0 %v9011
    %v9304 = vpop.f32.mrb[0].mxu0
    %v9305 = vadd.f32 %v9190, %v9304
    %v9306 = vpop.f32.mrb[0].mxu0
    %9307 = vmatprep.mubr.f32.mxu0 0.0
    %9308 = vmatmul.mubr.f32.gmra.mrb[0].mxu0 %v9012
    %v9309 = vpop.f32.mrb[0].mxu0
    %v9310 = vadd.f32 %v9195, %v9309
    %v9311 = vpop.f32.mrb[0].mxu0
    %9312 = vmatprep.mubr.f32.mxu0 0.0
    %9313 = vmatmul.mubr.f32.gmra.mrb[0].mxu0 %v9013
    %v9314 = vpop.f32.mrb[0].mxu0
    %v9315 = vadd.f32 %v9200, %v9314
    %v9316 = vpop.f32.mrb[0].mxu0
    %9317 = vdwg.mxu0
    %v9318 = vrot.slane %v9006, 2
    %v9319 = vrot.slane %v9007, 2
    %v9320 = vsel %vm1327, %v9318, %v9319
    %v9321 = vrot.slane %v9008, 2
    %v9322 = vsel %vm1327, %v9319, %v9321
    %v9323 = vrot.slane %v9009, 2
    %v9324 = vsel %vm1327, %v9321, %v9323
    %v9325 = vrot.slane %v9010, 2
    %v9326 = vsel %vm1327, %v9323, %v9325
    %v9327 = vrot.slane %v9011, 2
    %v9328 = vsel %vm1327, %v9325, %v9327
    %v9329 = vrot.slane %v9012, 2
    %v9330 = vsel %vm1327, %v9327, %v9329
    %v9331 = vrot.slane %v9013, 2
    %v9332 = vsel %vm1327, %v9329, %v9331
    %v9341 = vrot.slane %v9004, 2
    %v9342 = vrot.slane %v9005, 2
    %v9343 = vsel %vm1327, %v9341, %v9342
    %v9344 = vsel %vm1327, %v9342, %v9318
    %v9348 = vsel %vm1327, %v9331, %v9341
    %s9349 = scalar_lea.vmem [#allocation13], 256
    %v9350 = vld [vmem:[%s9349] sm:$0xff]
    %v9351 = vld [vmem:[%s9349 + $0x8] sm:$0xff]
    %v9352 = vld [vmem:[%s9349 + $0x10] sm:$0xff]
    %v9353 = vld [vmem:[%s9349 + $0x18] sm:$0xff]
    %v9354 = vld [vmem:[%s9349 + $0x20] sm:$0xff]
    %v9355 = vld [vmem:[%s9349 + $0x28] sm:$0xff]
    %v9356 = vld [vmem:[%s9349 + $0x30] sm:$0xff]
    %v9357 = vld [vmem:[%s9349 + $0x38] sm:$0xff]
    %v9358 = vld [vmem:[%s9349 + $0x40] sm:$0xff]
    %v9359 = vld [vmem:[%s9349 + $0x48] sm:$0xff]
    %v9360 = vld [vmem:[%s9349 + $0x50] sm:$0xff]
    %v9361 = vld [vmem:[%s9349 + $0x58] sm:$0xff]
    %v9362 = vld [vmem:[%s9349 + $0x60] sm:$0xff]
    %v9363 = vld [vmem:[%s9349 + $0x68] sm:$0xff]
    %v9364 = vld [vmem:[%s9349 + $0x70] sm:$0xff]
    %v9365 = vld [vmem:[%s9349 + $0x78] sm:$0xff]
    %9366 = vmatprep.subr.mxu0 0.0
    %9367 = vmatpush1.msra.mxu0 %v9350
    %9368 = vmatprep.subr.mxu0 0.0
    %9369 = vmatpush1.msra.mxu0 %v9351
    %9370 = vmatprep.subr.mxu0 0.0
    %9371 = vmatpush1.msra.mxu0 %v9352
    %9372 = vmatprep.subr.mxu0 0.0
    %9373 = vmatpush1.msra.mxu0 %v9353
    %9374 = vmatprep.subr.mxu0 0.0
    %9375 = vmatpush1.msra.mxu0 %v9354
    %9376 = vmatprep.subr.mxu0 0.0
    %9377 = vmatpush1.msra.mxu0 %v9355
    %9378 = vmatprep.subr.mxu0 0.0
    %9379 = vmatpush1.msra.mxu0 %v9356
    %9380 = vmatprep.subr.mxu0 0.0
    %9381 = vmatpush1.msra.mxu0 %v9357
    %9382 = vmatprep.subr.mxu0 0.0
    %9383 = vmatpush1.msra.mxu0 %v9358
    %9384 = vmatprep.subr.mxu0 0.0
    %9385 = vmatpush1.msra.mxu0 %v9359
    %9386 = vmatprep.subr.mxu0 0.0
    %9387 = vmatpush1.msra.mxu0 %v9360
    %9388 = vmatprep.subr.mxu0 0.0
    %9389 = vmatpush1.msra.mxu0 %v9361
    %9390 = vmatprep.subr.mxu0 0.0
    %9391 = vmatpush1.msra.mxu0 %v9362
    %9392 = vmatprep.subr.mxu0 0.0
    %9393 = vmatpush1.msra.mxu0 %v9363
    %9394 = vmatprep.subr.mxu0 0.0
    %9395 = vmatpush1.msra.mxu0 %v9364
    %9396 = vmatprep.subr.mxu0 0.0
    %9397 = vmatpush1.msra.mxu0 %v9365
    %9398 = vmatprep.subr.mxu0 0.0
    %9399 = vmatpush1.msra.mxu0 0.0
    %9400 = vmatprep.subr.mxu0 0.0
    %9401 = vmatpush1.msra.mxu0 0.0
    %9402 = vmatprep.subr.mxu0 0.0
    %9403 = vmatpush1.msra.mxu0 0.0
    %9404 = vmatprep.subr.mxu0 0.0
    %9405 = vmatpush1.msra.mxu0 0.0
    %9406 = vmatprep.subr.mxu0 0.0
    %9407 = vmatpush1.msra.mxu0 0.0
    %9408 = vmatprep.subr.mxu0 0.0
    %9409 = vmatpush1.msra.mxu0 0.0
    %9410 = vmatprep.subr.mxu0 0.0
    %9411 = vmatpush1.msra.mxu0 0.0
    %9412 = vmatprep.subr.mxu0 0.0
    %9413 = vmatpush1.msra.mxu0 0.0
    %9414 = vmatprep.subr.mxu0 0.0
    %9415 = vmatpush1.msra.mxu0 0.0
    %9416 = vmatprep.subr.mxu0 0.0
    %9417 = vmatpush1.msra.mxu0 0.0
    %9418 = vmatprep.subr.mxu0 0.0
    %9419 = vmatpush1.msra.mxu0 0.0
    %9420 = vmatprep.subr.mxu0 0.0
    %9421 = vmatpush1.msra.mxu0 0.0
    %9422 = vmatprep.subr.mxu0 0.0
    %9423 = vmatpush1.msra.mxu0 0.0
    %9424 = vmatprep.subr.mxu0 0.0
    %9425 = vmatpush1.msra.mxu0 0.0
    %9426 = vmatprep.subr.mxu0 0.0
    %9427 = vmatpush1.msra.mxu0 0.0
    %9428 = vmatprep.subr.mxu0 0.0
    %9429 = vmatpush1.msra.mxu0 0.0
    %9430 = vmatprep.mubr.f32.mxu0 0.0
    %9431 = vmatmul.mubr.f32.gmra.mrb[0].mxu0 %v9320
    %v9432 = vpop.f32.mrb[0].mxu0
    %v9433 = vadd.f32 0.0, %v9432
    %v9434 = vpop.f32.mrb[0].mxu0
    %9435 = vmatprep.mubr.f32.mxu0 0.0
    %9436 = vmatmul.mubr.f32.gmra.mrb[0].mxu0 %v9322
    %v9437 = vpop.f32.mrb[0].mxu0
    %v9438 = vadd.f32 0.0, %v9437
    %v9439 = vpop.f32.mrb[0].mxu0
    %9440 = vmatprep.mubr.f32.mxu0 0.0
    %9441 = vmatmul.mubr.f32.gmra.mrb[0].mxu0 %v9324
    %v9442 = vpop.f32.mrb[0].mxu0
    %v9443 = vadd.f32 0.0, %v9442
    %v9444 = vpop.f32.mrb[0].mxu0
    %9445 = vmatprep.mubr.f32.mxu0 0.0
    %9446 = vmatmul.mubr.f32.gmra.mrb[0].mxu0 %v9326
    %v9447 = vpop.f32.mrb[0].mxu0
    %v9448 = vadd.f32 0.0, %v9447
    %v9449 = vpop.f32.mrb[0].mxu0
    %9450 = vmatprep.mubr.f32.mxu0 0.0
    %9451 = vmatmul.mubr.f32.gmra.mrb[0].mxu0 %v9328
    %v9452 = vpop.f32.mrb[0].mxu0
    %v9453 = vadd.f32 0.0, %v9452
    %v9454 = vpop.f32.mrb[0].mxu0
    %9455 = vmatprep.mubr.f32.mxu0 0.0
    %9456 = vmatmul.mubr.f32.gmra.mrb[0].mxu0 %v9330
    %v9457 = vpop.f32.mrb[0].mxu0
    %v9458 = vadd.f32 0.0, %v9457
    %v9459 = vpop.f32.mrb[0].mxu0
    %9460 = vmatprep.mubr.f32.mxu0 0.0
    %9461 = vmatmul.mubr.f32.gmra.mrb[0].mxu0 %v9332
    %v9462 = vpop.f32.mrb[0].mxu0
    %v9463 = vadd.f32 0.0, %v9462
    %v9464 = vpop.f32.mrb[0].mxu0
    %9465 = vmatprep.mubr.f32.mxu0 0.0
    %9466 = vmatmul.mubr.f32.gmra.mrb[0].mxu0 %v9348
    %v9467 = vpop.f32.mrb[0].mxu0
    %v9468 = vadd.f32 0.0, %v9467
    %v9469 = vpop.f32.mrb[0].mxu0
    %9470 = vmatprep.mubr.f32.mxu0 0.0
    %9471 = vmatmul.mubr.f32.gmra.mrb[0].mxu0 %v9343
    %v9472 = vpop.f32.mrb[0].mxu0
    %v9473 = vadd.f32 0.0, %v9472
    %v9474 = vpop.f32.mrb[0].mxu0
    %9475 = vmatprep.mubr.f32.mxu0 0.0
    %9476 = vmatmul.mubr.f32.gmra.mrb[0].mxu0 %v9344
    %v9477 = vpop.f32.mrb[0].mxu0
    %v9478 = vadd.f32 0.0, %v9477
    %v9479 = vpop.f32.mrb[0].mxu0
    %9480 = vdwg.mxu0
    %v9481 = vadd.f32 %v9270, %v9433
    %v9482 = vadd.f32 %v9275, %v9438
    %v9483 = vadd.f32 %v9280, %v9443
    %v9484 = vadd.f32 %v9285, %v9448
    %v9485 = vadd.f32 %v9290, %v9453
    %v9486 = vadd.f32 %v9295, %v9458
    %v9487 = vadd.f32 %v9300, %v9463
    %v9488 = vadd.f32 %v9305, %v9468
    %v9489 = vadd.f32 %v9310, %v9473
    %v9490 = vadd.f32 %v9315, %v9478
    %v9491 = vrot.slane %v9007, 3
    %v9492 = vrot.slane %v9008, 3
    %v9493 = vsel %vm1983, %v9491, %v9492
    %v9494 = vrot.slane %v9009, 3
    %v9495 = vsel %vm1983, %v9492, %v9494
    %v9496 = vrot.slane %v9010, 3
    %v9497 = vsel %vm1983, %v9494, %v9496
    %v9498 = vrot.slane %v9011, 3
    %v9499 = vsel %vm1983, %v9496, %v9498
    %v9500 = vrot.slane %v9012, 3
    %v9501 = vsel %vm1983, %v9498, %v9500
    %v9502 = vrot.slane %v9013, 3
    %v9503 = vsel %vm1983, %v9500, %v9502
    %v9511 = vrot.slane %v9004, 3
    %v9512 = vrot.slane %v9005, 3
    %v9513 = vsel %vm1983, %v9511, %v9512
    %v9514 = vrot.slane %v9006, 3
    %v9515 = vsel %vm1983, %v9512, %v9514
    %v9516 = vsel %vm1983, %v9514, %v9491
    %v9521 = vsel %vm1983, %v9502, %v9511
    %s9522 = scalar_lea.vmem [#allocation13], 384
    %v9523 = vld [vmem:[%s9522] sm:$0xff]
    %v9524 = vld [vmem:[%s9522 + $0x8] sm:$0xff]
    %v9525 = vld [vmem:[%s9522 + $0x10] sm:$0xff]
    %v9526 = vld [vmem:[%s9522 + $0x18] sm:$0xff]
    %v9527 = vld [vmem:[%s9522 + $0x20] sm:$0xff]
    %v9528 = vld [vmem:[%s9522 + $0x28] sm:$0xff]
    %v9529 = vld [vmem:[%s9522 + $0x30] sm:$0xff]
    %v9530 = vld [vmem:[%s9522 + $0x38] sm:$0xff]
    %v9531 = vld [vmem:[%s9522 + $0x40] sm:$0xff]
    %v9532 = vld [vmem:[%s9522 + $0x48] sm:$0xff]
    %v9533 = vld [vmem:[%s9522 + $0x50] sm:$0xff]
    %v9534 = vld [vmem:[%s9522 + $0x58] sm:$0xff]
    %v9535 = vld [vmem:[%s9522 + $0x60] sm:$0xff]
    %v9536 = vld [vmem:[%s9522 + $0x68] sm:$0xff]
    %v9537 = vld [vmem:[%s9522 + $0x70] sm:$0xff]
    %v9538 = vld [vmem:[%s9522 + $0x78] sm:$0xff]
    %9539 = vmatprep.subr.mxu0 0.0
    %9540 = vmatpush1.msra.mxu0 %v9523
    %9541 = vmatprep.subr.mxu0 0.0
    %9542 = vmatpush1.msra.mxu0 %v9524
    %9543 = vmatprep.subr.mxu0 0.0
    %9544 = vmatpush1.msra.mxu0 %v9525
    %9545 = vmatprep.subr.mxu0 0.0
    %9546 = vmatpush1.msra.mxu0 %v9526
    %9547 = vmatprep.subr.mxu0 0.0
    %9548 = vmatpush1.msra.mxu0 %v9527
    %9549 = vmatprep.subr.mxu0 0.0
    %9550 = vmatpush1.msra.mxu0 %v9528
    %9551 = vmatprep.subr.mxu0 0.0
    %9552 = vmatpush1.msra.mxu0 %v9529
    %9553 = vmatprep.subr.mxu0 0.0
    %9554 = vmatpush1.msra.mxu0 %v9530
    %9555 = vmatprep.subr.mxu0 0.0
    %9556 = vmatpush1.msra.mxu0 %v9531
    %9557 = vmatprep.subr.mxu0 0.0
    %9558 = vmatpush1.msra.mxu0 %v9532
    %9559 = vmatprep.subr.mxu0 0.0
    %9560 = vmatpush1.msra.mxu0 %v9533
    %9561 = vmatprep.subr.mxu0 0.0
    %9562 = vmatpush1.msra.mxu0 %v9534
    %9563 = vmatprep.subr.mxu0 0.0
    %9564 = vmatpush1.msra.mxu0 %v9535
    %9565 = vmatprep.subr.mxu0 0.0
    %9566 = vmatpush1.msra.mxu0 %v9536
    %9567 = vmatprep.subr.mxu0 0.0
    %9568 = vmatpush1.msra.mxu0 %v9537
    %9569 = vmatprep.subr.mxu0 0.0
    %9570 = vmatpush1.msra.mxu0 %v9538
    %9571 = vmatprep.subr.mxu0 0.0
    %9572 = vmatpush1.msra.mxu0 0.0
    %9573 = vmatprep.subr.mxu0 0.0
    %9574 = vmatpush1.msra.mxu0 0.0
    %9575 = vmatprep.subr.mxu0 0.0
    %9576 = vmatpush1.msra.mxu0 0.0
    %9577 = vmatprep.subr.mxu0 0.0
    %9578 = vmatpush1.msra.mxu0 0.0
    %9579 = vmatprep.subr.mxu0 0.0
    %9580 = vmatpush1.msra.mxu0 0.0
    %9581 = vmatprep.subr.mxu0 0.0
    %9582 = vmatpush1.msra.mxu0 0.0
    %9583 = vmatprep.subr.mxu0 0.0
    %9584 = vmatpush1.msra.mxu0 0.0
    %9585 = vmatprep.subr.mxu0 0.0
    %9586 = vmatpush1.msra.mxu0 0.0
    %9587 = vmatprep.subr.mxu0 0.0
    %9588 = vmatpush1.msra.mxu0 0.0
    %9589 = vmatprep.subr.mxu0 0.0
    %9590 = vmatpush1.msra.mxu0 0.0
    %9591 = vmatprep.subr.mxu0 0.0
    %9592 = vmatpush1.msra.mxu0 0.0
    %9593 = vmatprep.subr.mxu0 0.0
    %9594 = vmatpush1.msra.mxu0 0.0
    %9595 = vmatprep.subr.mxu0 0.0
    %9596 = vmatpush1.msra.mxu0 0.0
    %9597 = vmatprep.subr.mxu0 0.0
    %9598 = vmatpush1.msra.mxu0 0.0
    %9599 = vmatprep.subr.mxu0 0.0
    %9600 = vmatpush1.msra.mxu0 0.0
    %9601 = vmatprep.subr.mxu0 0.0
    %9602 = vmatpush1.msra.mxu0 0.0
    %9603 = vmatprep.mubr.f32.mxu0 0.0
    %9604 = vmatmul.mubr.f32.gmra.mrb[0].mxu0 %v9493
    %v9605 = vpop.f32.mrb[0].mxu0
    %v9606 = vadd.f32 0.0, %v9605
    %v9607 = vpop.f32.mrb[0].mxu0
    %9608 = vmatprep.mubr.f32.mxu0 0.0
    %9609 = vmatmul.mubr.f32.gmra.mrb[0].mxu0 %v9495
    %v9610 = vpop.f32.mrb[0].mxu0
    %v9611 = vadd.f32 0.0, %v9610
    %v9612 = vpop.f32.mrb[0].mxu0
    %9613 = vmatprep.mubr.f32.mxu0 0.0
    %9614 = vmatmul.mubr.f32.gmra.mrb[0].mxu0 %v9497
    %v9615 = vpop.f32.mrb[0].mxu0
    %v9616 = vadd.f32 0.0, %v9615
    %v9617 = vpop.f32.mrb[0].mxu0
    %9618 = vmatprep.mubr.f32.mxu0 0.0
    %9619 = vmatmul.mubr.f32.gmra.mrb[0].mxu0 %v9499
    %v9620 = vpop.f32.mrb[0].mxu0
    %v9621 = vadd.f32 0.0, %v9620
    %v9622 = vpop.f32.mrb[0].mxu0
    %9623 = vmatprep.mubr.f32.mxu0 0.0
    %9624 = vmatmul.mubr.f32.gmra.mrb[0].mxu0 %v9501
    %v9625 = vpop.f32.mrb[0].mxu0
    %v9626 = vadd.f32 0.0, %v9625
    %v9627 = vpop.f32.mrb[0].mxu0
    %9628 = vmatprep.mubr.f32.mxu0 0.0
    %9629 = vmatmul.mubr.f32.gmra.mrb[0].mxu0 %v9503
    %v9630 = vpop.f32.mrb[0].mxu0
    %v9631 = vadd.f32 0.0, %v9630
    %v9632 = vpop.f32.mrb[0].mxu0
    %9633 = vmatprep.mubr.f32.mxu0 0.0
    %9634 = vmatmul.mubr.f32.gmra.mrb[0].mxu0 %v9521
    %v9635 = vpop.f32.mrb[0].mxu0
    %v9636 = vadd.f32 0.0, %v9635
    %v9637 = vpop.f32.mrb[0].mxu0
    %9638 = vmatprep.mubr.f32.mxu0 0.0
    %9639 = vmatmul.mubr.f32.gmra.mrb[0].mxu0 %v9513
    %v9640 = vpop.f32.mrb[0].mxu0
    %v9641 = vadd.f32 0.0, %v9640
    %v9642 = vpop.f32.mrb[0].mxu0
    %9643 = vmatprep.mubr.f32.mxu0 0.0
    %9644 = vmatmul.mubr.f32.gmra.mrb[0].mxu0 %v9515
    %v9645 = vpop.f32.mrb[0].mxu0
    %v9646 = vadd.f32 0.0, %v9645
    %v9647 = vpop.f32.mrb[0].mxu0
    %9648 = vmatprep.mubr.f32.mxu0 0.0
    %9649 = vmatmul.mubr.f32.gmra.mrb[0].mxu0 %v9516
    %v9650 = vpop.f32.mrb[0].mxu0
    %v9651 = vadd.f32 0.0, %v9650
    %v9652 = vpop.f32.mrb[0].mxu0
    %9653 = vdwg.mxu0
    %v9654 = vadd.f32 %v9481, %v9606
    %v9655 = vadd.f32 %v9482, %v9611
    %v9656 = vadd.f32 %v9483, %v9616
    %v9657 = vadd.f32 %v9484, %v9621
    %v9658 = vadd.f32 %v9485, %v9626
    %v9659 = vadd.f32 %v9486, %v9631
    %v9660 = vadd.f32 %v9487, %v9636
    %v9661 = vadd.f32 %v9488, %v9641
    %v9662 = vadd.f32 %v9489, %v9646
    %v9663 = vadd.f32 %v9490, %v9651
    %v9664 = vrot.slane %v9008, 4
    %v9665 = vrot.slane %v9009, 4
    %v9666 = vsel %vm2639, %v9664, %v9665
    %v9667 = vrot.slane %v9010, 4
    %v9668 = vsel %vm2639, %v9665, %v9667
    %v9669 = vrot.slane %v9011, 4
    %v9670 = vsel %vm2639, %v9667, %v9669
    %v9671 = vrot.slane %v9012, 4
    %v9672 = vsel %vm2639, %v9669, %v9671
    %v9673 = vrot.slane %v9013, 4
    %v9674 = vsel %vm2639, %v9671, %v9673
    %v9681 = vrot.slane %v9004, 4
    %v9682 = vrot.slane %v9005, 4
    %v9683 = vsel %vm2639, %v9681, %v9682
    %v9684 = vrot.slane %v9006, 4
    %v9685 = vsel %vm2639, %v9682, %v9684
    %v9686 = vrot.slane %v9007, 4
    %v9687 = vsel %vm2639, %v9684, %v9686
    %v9688 = vsel %vm2639, %v9686, %v9664
    %v9694 = vsel %vm2639, %v9673, %v9681
    %s9695 = scalar_lea.vmem [#allocation13], 512
    %v9696 = vld [vmem:[%s9695] sm:$0xff]
    %v9697 = vld [vmem:[%s9695 + $0x8] sm:$0xff]
    %v9698 = vld [vmem:[%s9695 + $0x10] sm:$0xff]
    %v9699 = vld [vmem:[%s9695 + $0x18] sm:$0xff]
    %v9700 = vld [vmem:[%s9695 + $0x20] sm:$0xff]
    %v9701 = vld [vmem:[%s9695 + $0x28] sm:$0xff]
    %v9702 = vld [vmem:[%s9695 + $0x30] sm:$0xff]
    %v9703 = vld [vmem:[%s9695 + $0x38] sm:$0xff]
    %v9704 = vld [vmem:[%s9695 + $0x40] sm:$0xff]
    %v9705 = vld [vmem:[%s9695 + $0x48] sm:$0xff]
    %v9706 = vld [vmem:[%s9695 + $0x50] sm:$0xff]
    %v9707 = vld [vmem:[%s9695 + $0x58] sm:$0xff]
    %v9708 = vld [vmem:[%s9695 + $0x60] sm:$0xff]
    %v9709 = vld [vmem:[%s9695 + $0x68] sm:$0xff]
    %v9710 = vld [vmem:[%s9695 + $0x70] sm:$0xff]
    %v9711 = vld [vmem:[%s9695 + $0x78] sm:$0xff]
    %9712 = vmatprep.subr.mxu0 0.0
    %9713 = vmatpush1.msra.mxu0 %v9696
    %9714 = vmatprep.subr.mxu0 0.0
    %9715 = vmatpush1.msra.mxu0 %v9697
    %9716 = vmatprep.subr.mxu0 0.0
    %9717 = vmatpush1.msra.mxu0 %v9698
    %9718 = vmatprep.subr.mxu0 0.0
    %9719 = vmatpush1.msra.mxu0 %v9699
    %9720 = vmatprep.subr.mxu0 0.0
    %9721 = vmatpush1.msra.mxu0 %v9700
    %9722 = vmatprep.subr.mxu0 0.0
    %9723 = vmatpush1.msra.mxu0 %v9701
    %9724 = vmatprep.subr.mxu0 0.0
    %9725 = vmatpush1.msra.mxu0 %v9702
    %9726 = vmatprep.subr.mxu0 0.0
    %9727 = vmatpush1.msra.mxu0 %v9703
    %9728 = vmatprep.subr.mxu0 0.0
    %9729 = vmatpush1.msra.mxu0 %v9704
    %9730 = vmatprep.subr.mxu0 0.0
    %9731 = vmatpush1.msra.mxu0 %v9705
    %9732 = vmatprep.subr.mxu0 0.0
    %9733 = vmatpush1.msra.mxu0 %v9706
    %9734 = vmatprep.subr.mxu0 0.0
    %9735 = vmatpush1.msra.mxu0 %v9707
    %9736 = vmatprep.subr.mxu0 0.0
    %9737 = vmatpush1.msra.mxu0 %v9708
    %9738 = vmatprep.subr.mxu0 0.0
    %9739 = vmatpush1.msra.mxu0 %v9709
    %9740 = vmatprep.subr.mxu0 0.0
    %9741 = vmatpush1.msra.mxu0 %v9710
    %9742 = vmatprep.subr.mxu0 0.0
    %9743 = vmatpush1.msra.mxu0 %v9711
    %9744 = vmatprep.subr.mxu0 0.0
    %9745 = vmatpush1.msra.mxu0 0.0
    %9746 = vmatprep.subr.mxu0 0.0
    %9747 = vmatpush1.msra.mxu0 0.0
    %9748 = vmatprep.subr.mxu0 0.0
    %9749 = vmatpush1.msra.mxu0 0.0
    %9750 = vmatprep.subr.mxu0 0.0
    %9751 = vmatpush1.msra.mxu0 0.0
    %9752 = vmatprep.subr.mxu0 0.0
    %9753 = vmatpush1.msra.mxu0 0.0
    %9754 = vmatprep.subr.mxu0 0.0
    %9755 = vmatpush1.msra.mxu0 0.0
    %9756 = vmatprep.subr.mxu0 0.0
    %9757 = vmatpush1.msra.mxu0 0.0
    %9758 = vmatprep.subr.mxu0 0.0
    %9759 = vmatpush1.msra.mxu0 0.0
    %9760 = vmatprep.subr.mxu0 0.0
    %9761 = vmatpush1.msra.mxu0 0.0
    %9762 = vmatprep.subr.mxu0 0.0
    %9763 = vmatpush1.msra.mxu0 0.0
    %9764 = vmatprep.subr.mxu0 0.0
    %9765 = vmatpush1.msra.mxu0 0.0
    %9766 = vmatprep.subr.mxu0 0.0
    %9767 = vmatpush1.msra.mxu0 0.0
    %9768 = vmatprep.subr.mxu0 0.0
    %9769 = vmatpush1.msra.mxu0 0.0
    %9770 = vmatprep.subr.mxu0 0.0
    %9771 = vmatpush1.msra.mxu0 0.0
    %9772 = vmatprep.subr.mxu0 0.0
    %9773 = vmatpush1.msra.mxu0 0.0
    %9774 = vmatprep.subr.mxu0 0.0
    %9775 = vmatpush1.msra.mxu0 0.0
    %9776 = vmatprep.mubr.f32.mxu0 0.0
    %9777 = vmatmul.mubr.f32.gmra.mrb[0].mxu0 %v9666
    %v9778 = vpop.f32.mrb[0].mxu0
    %v9779 = vadd.f32 0.0, %v9778
    %v9780 = vpop.f32.mrb[0].mxu0
    %9781 = vmatprep.mubr.f32.mxu0 0.0
    %9782 = vmatmul.mubr.f32.gmra.mrb[0].mxu0 %v9668
    %v9783 = vpop.f32.mrb[0].mxu0
    %v9784 = vadd.f32 0.0, %v9783
    %v9785 = vpop.f32.mrb[0].mxu0
    %9786 = vmatprep.mubr.f32.mxu0 0.0
    %9787 = vmatmul.mubr.f32.gmra.mrb[0].mxu0 %v9670
    %v9788 = vpop.f32.mrb[0].mxu0
    %v9789 = vadd.f32 0.0, %v9788
    %v9790 = vpop.f32.mrb[0].mxu0
    %9791 = vmatprep.mubr.f32.mxu0 0.0
    %9792 = vmatmul.mubr.f32.gmra.mrb[0].mxu0 %v9672
    %v9793 = vpop.f32.mrb[0].mxu0
    %v9794 = vadd.f32 0.0, %v9793
    %v9795 = vpop.f32.mrb[0].mxu0
    %9796 = vmatprep.mubr.f32.mxu0 0.0
    %9797 = vmatmul.mubr.f32.gmra.mrb[0].mxu0 %v9674
    %v9798 = vpop.f32.mrb[0].mxu0
    %v9799 = vadd.f32 0.0, %v9798
    %v9800 = vpop.f32.mrb[0].mxu0
    %9801 = vmatprep.mubr.f32.mxu0 0.0
    %9802 = vmatmul.mubr.f32.gmra.mrb[0].mxu0 %v9694
    %v9803 = vpop.f32.mrb[0].mxu0
    %v9804 = vadd.f32 0.0, %v9803
    %v9805 = vpop.f32.mrb[0].mxu0
    %9806 = vmatprep.mubr.f32.mxu0 0.0
    %9807 = vmatmul.mubr.f32.gmra.mrb[0].mxu0 %v9683
    %v9808 = vpop.f32.mrb[0].mxu0
    %v9809 = vadd.f32 0.0, %v9808
    %v9810 = vpop.f32.mrb[0].mxu0
    %9811 = vmatprep.mubr.f32.mxu0 0.0
    %9812 = vmatmul.mubr.f32.gmra.mrb[0].mxu0 %v9685
    %v9813 = vpop.f32.mrb[0].mxu0
    %v9814 = vadd.f32 0.0, %v9813
    %v9815 = vpop.f32.mrb[0].mxu0
    %9816 = vmatprep.mubr.f32.mxu0 0.0
    %9817 = vmatmul.mubr.f32.gmra.mrb[0].mxu0 %v9687
    %v9818 = vpop.f32.mrb[0].mxu0
    %v9819 = vadd.f32 0.0, %v9818
    %v9820 = vpop.f32.mrb[0].mxu0
    %9821 = vmatprep.mubr.f32.mxu0 0.0
    %9822 = vmatmul.mubr.f32.gmra.mrb[0].mxu0 %v9688
    %v9823 = vpop.f32.mrb[0].mxu0
    %v9824 = vadd.f32 0.0, %v9823
    %v9825 = vpop.f32.mrb[0].mxu0
    %9826 = vdwg.mxu0
    %v9827 = vadd.f32 %v9654, %v9779
    %v9828 = vadd.f32 %v9655, %v9784
    %v9829 = vadd.f32 %v9656, %v9789
    %v9830 = vadd.f32 %v9657, %v9794
    %v9831 = vadd.f32 %v9658, %v9799
    %v9832 = vadd.f32 %v9659, %v9804
    %v9833 = vadd.f32 %v9660, %v9809
    %v9834 = vadd.f32 %v9661, %v9814
    %v9835 = vadd.f32 %v9662, %v9819
    %v9836 = vadd.f32 %v9663, %v9824
    %v9837 = vld [vmem:[#allocation15] sm:$0x1]
    %v9839 = vlaneseq
    %v9840 = vshrl.u32 %v9839, 7
    %v9841 = vsub.s32 0, %v9840
    %v9842 = vrot.slane %v9837, %v9841
    %v9844 = vadd.f32 %v9827, %v9842
    %v9845 = vadd.f32 %v9828, %v9842
    %v9846 = vadd.f32 %v9829, %v9842
    %v9847 = vadd.f32 %v9830, %v9842
    %v9848 = vadd.f32 %v9831, %v9842
    %v9849 = vadd.f32 %v9832, %v9842
    %v9850 = vadd.f32 %v9833, %v9842
    %v9851 = vadd.f32 %v9834, %v9842
    %v9852 = vadd.f32 %v9835, %v9842
    %v9853 = vadd.f32 %v9836, %v9842
    %v9854 = vld [vmem:[#allocation16] sm:$0xff]
    %v9855 = vld [vmem:[#allocation16 + $0x8] sm:$0xff]
    %v9856 = vld [vmem:[#allocation16 + $0x10] sm:$0xff]
    %v9857 = vld [vmem:[#allocation16 + $0x18] sm:$0xff]
    %v9858 = vld [vmem:[#allocation16 + $0x20] sm:$0xff]
    %v9859 = vld [vmem:[#allocation16 + $0x28] sm:$0xff]
    %v9860 = vld [vmem:[#allocation16 + $0x30] sm:$0xff]
    %v9861 = vld [vmem:[#allocation16 + $0x38] sm:$0xff]
    %v9862 = vld [vmem:[#allocation16 + $0x40] sm:$0xff]
    %v9863 = vld [vmem:[#allocation16 + $0x48] sm:$0xff]
    %v9864 = vld [vmem:[#allocation16 + $0x50] sm:$0xff]
    %v9865 = vld [vmem:[#allocation16 + $0x58] sm:$0xff]
    %v9866 = vld [vmem:[#allocation16 + $0x60] sm:$0xff]
    %v9867 = vld [vmem:[#allocation16 + $0x68] sm:$0xff]
    %v9868 = vld [vmem:[#allocation16 + $0x70] sm:$0xff]
    %v9869 = vld [vmem:[#allocation16 + $0x78] sm:$0xff]
    %v9870 = vld [vmem:[#allocation18] sm:$0x1]
    %v9872 = vlaneseq
    %v9873 = vshrl.u32 %v9872, 7
    %v9874 = vsub.s32 0, %v9873
    %v9875 = vrot.slane %v9870, %v9874
    %9877 = vmatprep.subr.mxu0 0.0
    %9878 = vmatpush1.msra.mxu0 %v9854
    %9879 = vmatprep.subr.mxu0 0.0
    %9880 = vmatpush1.msra.mxu0 %v9855
    %9881 = vmatprep.subr.mxu0 0.0
    %9882 = vmatpush1.msra.mxu0 %v9856
    %9883 = vmatprep.subr.mxu0 0.0
    %9884 = vmatpush1.msra.mxu0 %v9857
    %9885 = vmatprep.subr.mxu0 0.0
    %9886 = vmatpush1.msra.mxu0 %v9858
    %9887 = vmatprep.subr.mxu0 0.0
    %9888 = vmatpush1.msra.mxu0 %v9859
    %9889 = vmatprep.subr.mxu0 0.0
    %9890 = vmatpush1.msra.mxu0 %v9860
    %9891 = vmatprep.subr.mxu0 0.0
    %9892 = vmatpush1.msra.mxu0 %v9861
    %9893 = vmatprep.subr.mxu0 0.0
    %9894 = vmatpush1.msra.mxu0 %v9862
    %9895 = vmatprep.subr.mxu0 0.0
    %9896 = vmatpush1.msra.mxu0 %v9863
    %9897 = vmatprep.subr.mxu0 0.0
    %9898 = vmatpush1.msra.mxu0 %v9864
    %9899 = vmatprep.subr.mxu0 0.0
    %9900 = vmatpush1.msra.mxu0 %v9865
    %9901 = vmatprep.subr.mxu0 0.0
    %9902 = vmatpush1.msra.mxu0 %v9866
    %9903 = vmatprep.subr.mxu0 0.0
    %9904 = vmatpush1.msra.mxu0 %v9867
    %9905 = vmatprep.subr.mxu0 0.0
    %9906 = vmatpush1.msra.mxu0 %v9868
    %9907 = vmatprep.subr.mxu0 0.0
    %9908 = vmatpush1.msra.mxu0 %v9869
    %9909 = vmatprep.subr.mxu0 0.0
    %9910 = vmatpush1.msra.mxu0 0.0
    %9911 = vmatprep.subr.mxu0 0.0
    %9912 = vmatpush1.msra.mxu0 0.0
    %9913 = vmatprep.subr.mxu0 0.0
    %9914 = vmatpush1.msra.mxu0 0.0
    %9915 = vmatprep.subr.mxu0 0.0
    %9916 = vmatpush1.msra.mxu0 0.0
    %9917 = vmatprep.subr.mxu0 0.0
    %9918 = vmatpush1.msra.mxu0 0.0
    %9919 = vmatprep.subr.mxu0 0.0
    %9920 = vmatpush1.msra.mxu0 0.0
    %9921 = vmatprep.subr.mxu0 0.0
    %9922 = vmatpush1.msra.mxu0 0.0
    %9923 = vmatprep.subr.mxu0 0.0
    %9924 = vmatpush1.msra.mxu0 0.0
    %9925 = vmatprep.subr.mxu0 0.0
    %9926 = vmatpush1.msra.mxu0 0.0
    %9927 = vmatprep.subr.mxu0 0.0
    %9928 = vmatpush1.msra.mxu0 0.0
    %9929 = vmatprep.subr.mxu0 0.0
    %9930 = vmatpush1.msra.mxu0 0.0
    %9931 = vmatprep.subr.mxu0 0.0
    %9932 = vmatpush1.msra.mxu0 0.0
    %9933 = vmatprep.subr.mxu0 0.0
    %9934 = vmatpush1.msra.mxu0 0.0
    %9935 = vmatprep.subr.mxu0 0.0
    %9936 = vmatpush1.msra.mxu0 0.0
    %9937 = vmatprep.subr.mxu0 0.0
    %9938 = vmatpush1.msra.mxu0 0.0
    %9939 = vmatprep.subr.mxu0 0.0
    %9940 = vmatpush1.msra.mxu0 0.0
    %9941 = vmatprep.mubr.f32.mxu0 0.0
    %9942 = vmatmul.mubr.f32.gmra.mrb[0].mxu0 %v9844
    %v9943 = vpop.f32.mrb[0].mxu0
    %v9944 = vadd.f32 %v9875, %v9943
    %v9945 = vpop.f32.mrb[0].mxu0
    %9946 = vmatprep.mubr.f32.mxu0 0.0
    %9947 = vmatmul.mubr.f32.gmra.mrb[0].mxu0 %v9845
    %v9948 = vpop.f32.mrb[0].mxu0
    %v9949 = vpop.f32.mrb[0].mxu0
    %9950 = vmatprep.mubr.f32.mxu0 0.0
    %9951 = vmatmul.mubr.f32.gmra.mrb[0].mxu0 %v9846
    %v9952 = vpop.f32.mrb[0].mxu0
    %v9953 = vpop.f32.mrb[0].mxu0
    %9954 = vmatprep.mubr.f32.mxu0 0.0
    %9955 = vmatmul.mubr.f32.gmra.mrb[0].mxu0 %v9847
    %v9956 = vpop.f32.mrb[0].mxu0
    %v9957 = vpop.f32.mrb[0].mxu0
    %9958 = vmatprep.mubr.f32.mxu0 0.0
    %9959 = vmatmul.mubr.f32.gmra.mrb[0].mxu0 %v9848
    %v9960 = vpop.f32.mrb[0].mxu0
    %v9961 = vpop.f32.mrb[0].mxu0
    %9962 = vmatprep.mubr.f32.mxu0 0.0
    %9963 = vmatmul.mubr.f32.gmra.mrb[0].mxu0 %v9849
    %v9964 = vpop.f32.mrb[0].mxu0
    %v9965 = vadd.f32 %v9875, %v9964
    %v9966 = vpop.f32.mrb[0].mxu0
    %9967 = vmatprep.mubr.f32.mxu0 0.0
    %9968 = vmatmul.mubr.f32.gmra.mrb[0].mxu0 %v9850
    %v9969 = vpop.f32.mrb[0].mxu0
    %v9970 = vpop.f32.mrb[0].mxu0
    %9971 = vmatprep.mubr.f32.mxu0 0.0
    %9972 = vmatmul.mubr.f32.gmra.mrb[0].mxu0 %v9851
    %v9973 = vpop.f32.mrb[0].mxu0
    %v9974 = vpop.f32.mrb[0].mxu0
    %9975 = vmatprep.mubr.f32.mxu0 0.0
    %9976 = vmatmul.mubr.f32.gmra.mrb[0].mxu0 %v9852
    %v9977 = vpop.f32.mrb[0].mxu0
    %v9978 = vpop.f32.mrb[0].mxu0
    %9979 = vmatprep.mubr.f32.mxu0 0.0
    %9980 = vmatmul.mubr.f32.gmra.mrb[0].mxu0 %v9853
    %v9981 = vpop.f32.mrb[0].mxu0
    %v9982 = vpop.f32.mrb[0].mxu0
    %9983 = vdwg.mxu0
    %9984 = vst [vmem:[%s11] sm:$0xff] %v9944
    %9985 = vst [vmem:[%s11 + $0x8] sm:$0xff] %v9965
    // Predicated region
    $region90: #{simple_net_forward.1} parent=1 // pred_check
      _
    $region91: #{simple_net_forward.1} parent=1 // pred_check_branch
      %9987 = sbr.rel (0) target = $region93
    $region92: #{simple_net_forward.1} parent=1 // pred_region
      _
    $region93: #{simple_net_forward.1} parent=1 // pred_fallthru
      _
    // Predicated region
    $region94: #{simple_net_forward.1} parent=1 // pred_check
      _
    $region95: #{simple_net_forward.1} parent=1 // pred_check_branch
      %9989 = sbr.rel (0) target = $region97
    $region96: #{simple_net_forward.1} parent=1 // pred_region
      _
    $region97: #{simple_net_forward.1} parent=1 // pred_fallthru
      _
    %9990 = vsyncpa [#allocation3], 1
    %9991 = vsyncpa [#allocation5], 1
    %9992 = vsyncpa [#allocation8], 1
    %9993 = vsyncpa [#allocation11], 1
    %9994 = vsyncpa [#allocation14], 1
    %9995 = vsyncpa [#allocation17], 1

</llo_original>
